<compile_context>
chip_gen: v7x
topology: tpu7x:2x2x1
jax: 0.10.0
libtpu: 0.0.40
codegen_flags: <defaults>
</compile_context>

<pallas_src>
import jax
import jax.numpy as jnp
from jax.experimental import pallas as pl
from jax.experimental.pallas import tpu as pltpu

# --- configuration consistent with the PyTorch module ---
N_EMBD     = 384                  # n_embd (hardcoded in the module's Linear layers)
N_HEAD     = 6                    # num_heads (head_size = n_embd // num_heads)
HEAD_SIZE  = N_EMBD // N_HEAD     # 64
BLOCK_SIZE = 256                  # causal-mask buffer size (T <= BLOCK_SIZE)
# TODO(synk): nn.Dropout(p=0.2) on attention weights and on the projection output is
#             identity in this inference forward pass (no RNG / scaling applied).


def mha_kernel(x_ref, wqkv_ref, wp_ref, bp_ref, o_ref, qkv_ref, heads_ref):
    """One batch element of fused multi-head causal self-attention.

    x_ref:     (1, T, C)  bf16   current batch element (auto-pipelined block)
    wqkv_ref:  (C, 3*C)   bf16   columns = [Q heads | K heads | V heads] (resident)
    wp_ref:    (C, C)     bf16   output projection weight (resident)
    bp_ref:    (1, C)     f32    output projection bias (resident)
    o_ref:     (1, T, C)  bf16   output block
    qkv_ref:   (T, 3*C)   bf16   VMEM scratch holding the fused QKV projection
    heads_ref: (T, C)     bf16   VMEM scratch holding concat(head outputs)
    """
    T = x_ref.shape[1]
    C = x_ref.shape[2]

    # ---- fused QKV projection: one (T,C)@(C,3C) matmul, stored bf16 once ----
    qkv_ref[...] = jnp.dot(
        x_ref[0], wqkv_ref[...], preferred_element_type=jnp.float32
    ).astype(jnp.bfloat16)

    # causal mask + scale, built once per grid step
    row = jax.lax.broadcasted_iota(jnp.int32, (T, T), 0)
    col = jax.lax.broadcasted_iota(jnp.int32, (T, T), 1)
    causal = row >= col
    scale = jnp.float32(C ** -0.5)            # reference scales by C**-0.5 with C = n_embd
    neg_big = jnp.float32(-1e30)              # finite mask value (avoids inf-inf NaN risk)

    # ---- per-head attention (static loop of N_HEAD; column offsets stay static) ----
    for h in range(N_HEAD):
        cq = slice(h * HEAD_SIZE, (h + 1) * HEAD_SIZE)
        ck = slice(C + h * HEAD_SIZE, C + (h + 1) * HEAD_SIZE)
        cv = slice(2 * C + h * HEAD_SIZE, 2 * C + (h + 1) * HEAD_SIZE)
        qh = qkv_ref[:, cq]                                           # (T, d) bf16
        kh = qkv_ref[:, ck]                                           # (T, d) bf16
        vh = qkv_ref[:, cv]                                           # (T, d) bf16

        # scores = q @ k^T * C**-0.5  (contract over head dim, no explicit transpose)
        s = jax.lax.dot_general(qh, kh, (((1,), (1,)), ((), ())),
                                preferred_element_type=jnp.float32) * scale
        s = jnp.where(causal, s, neg_big)                             # causal mask
        s = s - jnp.max(s, axis=-1, keepdims=True)                    # stable softmax (f32)
        p = jnp.exp(s)
        p = p * pl.reciprocal(jnp.sum(p, axis=-1, keepdims=True), approx=True)
        # dropout(p) is identity at inference

        ho = jnp.dot(p.astype(jnp.bfloat16), vh,
                     preferred_element_type=jnp.float32)              # (T, d) f32
        heads_ref[:, cq] = ho.astype(jnp.bfloat16)                    # head-concat slot

    # ---- single full-width output projection: (T,C)@(C,C), K = 384 ----
    out = jnp.dot(heads_ref[...], wp_ref[...],
                  preferred_element_type=jnp.float32) + bp_ref[...]   # (T, C) f32
    o_ref[0] = out.astype(o_ref.dtype)
    # dropout(proj(...)) is identity at inference


def multi_head_attention(x, w_qkv, w_proj, b_proj):
    """x: (B, T, C) bf16; w_qkv: (C, 3C) bf16; w_proj: (C, C) bf16; b_proj: (1, C) f32."""
    B, T, C = x.shape
    return pl.pallas_call(
        mha_kernel,
        out_shape=jax.ShapeDtypeStruct((B, T, C), jnp.bfloat16),
        grid=(B,),
        in_specs=[
            pl.BlockSpec((1, T, C), lambda b: (b, 0, 0)),     # x: per-batch block
            pl.BlockSpec((C, 3 * C), lambda b: (0, 0)),       # wqkv: resident
            pl.BlockSpec((C, C), lambda b: (0, 0)),           # wproj: resident
            pl.BlockSpec((1, C), lambda b: (0, 0)),           # bias: resident
        ],
        out_specs=pl.BlockSpec((1, T, C), lambda b: (b, 0, 0)),
        scratch_shapes=[
            pltpu.VMEM((T, 3 * C), jnp.bfloat16),             # fused QKV
            pltpu.VMEM((T, C), jnp.bfloat16),                 # concat(head outputs)
        ],
        compiler_params=pltpu.CompilerParams(
            dimension_semantics=("parallel",),                # v7x: batch over 2 TCs
            vmem_limit_bytes=32 * 1024 * 1024,                # explicit, with headroom
        ),
    )(x, w_qkv, w_proj, b_proj)


# ---------------------------------------------------------------------------
# Pure-JAX reference (f32 math, same bf16-rounded inputs/weights) for validation
# ---------------------------------------------------------------------------
def mha_reference(x, w_qkv, w_proj, b_proj):
    B, T, C = x.shape
    xf = x.astype(jnp.float32)
    qkv = xf @ w_qkv.astype(jnp.float32)                              # (B, T, 3C)
    q, k, v = qkv[..., :C], qkv[..., C:2 * C], qkv[..., 2 * C:]
    q = q.reshape(B, T, N_HEAD, HEAD_SIZE).transpose(0, 2, 1, 3)
    k = k.reshape(B, T, N_HEAD, HEAD_SIZE).transpose(0, 2, 1, 3)
    v = v.reshape(B, T, N_HEAD, HEAD_SIZE).transpose(0, 2, 1, 3)
    s = jnp.einsum('bhqd,bhkd->bhqk', q, k) * (C ** -0.5)
    mask = jnp.tril(jnp.ones((T, T), dtype=bool))
    s = jnp.where(mask, s, -jnp.inf)
    p = jax.nn.softmax(s, axis=-1)
    o = jnp.einsum('bhqk,bhkd->bhqd', p, v)
    o = o.transpose(0, 2, 1, 3).reshape(B, T, C)
    return o @ w_proj.astype(jnp.float32) + b_proj


if __name__ == "__main__":
    key = jax.random.PRNGKey(0)
    kx, kqkv, kp, kb = jax.random.split(key, 4)

    B, T, C = 2, 128, N_EMBD   # T <= block_size (256); C fixed by the module's Linears
    x = jax.random.normal(kx, (B, T, C), dtype=jnp.float32).astype(jnp.bfloat16)
    w_qkv = (jax.random.normal(kqkv, (C, 3 * C), dtype=jnp.float32) * 0.02).astype(jnp.bfloat16)
    w_proj = (jax.random.normal(kp, (C, C), dtype=jnp.float32) * 0.02).astype(jnp.bfloat16)
    b_proj = jax.random.normal(kb, (1, C), dtype=jnp.float32) * 0.02

    out = jax.block_until_ready(multi_head_attention(x, w_qkv, w_proj, b_proj))

    assert out.shape == (B, T, C)
    out_f32 = out.astype(jnp.float32)
    assert bool(jnp.all(jnp.isfinite(out_f32)))
    ref = mha_reference(x, w_qkv, w_proj, b_proj)
    max_err = float(jnp.max(jnp.abs(out_f32 - ref)))
    assert max_err < 1e-1, f"max abs error vs reference: {max_err}"
    print("KERNEL_OK")
</pallas_src>

<mosaic_0001>
module attributes {stable_mosaic.version = 11 : i64} {
  func.func @mha_kernel(%arg0: i32, %arg1: memref<1x128x384xbf16, #tpu.memory_space<vmem>>, %arg2: memref<384x1152xbf16, #tpu.memory_space<vmem>>, %arg3: memref<384x384xbf16, #tpu.memory_space<vmem>>, %arg4: memref<1x384xf32, #tpu.memory_space<vmem>>, %arg5: memref<1x128x384xbf16, #tpu.memory_space<vmem>>, %arg6: memref<128x1152xbf16, #tpu.memory_space<vmem>>, %arg7: memref<128x384xbf16, #tpu.memory_space<vmem>>) attributes {dimension_semantics = [#tpu.dimension_semantics<parallel>], iteration_bounds = array<i64: 2>, scalar_prefetch = 0 : i64, scratch_operands = 2 : i64, tpu.core_type = #tpu.core_type<tc>, window_params = [{transform_indices = @transform_0, window_bounds = array<i64: 1, 128, 384>}, {pipeline_mode = #tpu.pipeline_mode<synchronous>, transform_indices = @transform_1, window_bounds = array<i64: 384, 1152>}, {pipeline_mode = #tpu.pipeline_mode<synchronous>, transform_indices = @transform_2, window_bounds = array<i64: 384, 384>}, {pipeline_mode = #tpu.pipeline_mode<synchronous>, transform_indices = @transform_3, window_bounds = array<i64: 1, 384>}, {transform_indices = @transform_4, window_bounds = array<i64: 1, 128, 384>}]} {
    %c0 = arith.constant 0 : index
    %c0_0 = arith.constant 0 : index
    %c0_1 = arith.constant 0 : index
    %0 = vector.load %arg1[%c0, %c0_0, %c0_1] : memref<1x128x384xbf16, #tpu.memory_space<vmem>>, vector<1x128x384xbf16>
    %1 = vector.shape_cast %0 : vector<1x128x384xbf16> to vector<128x384xbf16>
    %c0_2 = arith.constant 0 : index
    %c0_3 = arith.constant 0 : index
    %2 = vector.load %arg2[%c0_2, %c0_3] : memref<384x1152xbf16, #tpu.memory_space<vmem>>, vector<384x1152xbf16>
    %cst = arith.constant dense<0.000000e+00> : vector<128x1152xf32>
    %3 = tpu.matmul %1, %2, %cst {dimension_numbers = #tpu.dot_dimension_numbers<[1], [0], [0], [1], [0, 0, 1, 1], [], []>} : vector<128x384xbf16>, vector<384x1152xbf16>, vector<128x1152xf32> -> vector<128x1152xf32>
    %4 = arith.truncf %3 : vector<128x1152xf32> to vector<128x1152xbf16>
    %c0_4 = arith.constant 0 : index
    %c0_5 = arith.constant 0 : index
    %5 = vector.load %arg6[%c0_4, %c0_5] : memref<128x1152xbf16, #tpu.memory_space<vmem>>, vector<128x1152xbf16>
    tpu.vector_store %arg6[%c0_4, %c0_5], %4 {strides = array<i32>} : memref<128x1152xbf16, #tpu.memory_space<vmem>>, vector<128x1152xbf16>,
    %6 = tpu.iota {dimensions = array<i32: 0>} : vector<128x128xi32>
    %7 = tpu.iota {dimensions = array<i32: 1>} : vector<128x128xi32>
    %8 = arith.cmpi sge, %6, %7 : vector<128x128xi32>
    %c0_6 = arith.constant 0 : index
    %c0_7 = arith.constant 0 : index
    %9 = vector.load %arg6[%c0_6, %c0_7] : memref<128x1152xbf16, #tpu.memory_space<vmem>>, vector<128x64xbf16>
    %c0_8 = arith.constant 0 : index
    %c384 = arith.constant 384 : index
    %10 = vector.load %arg6[%c0_8, %c384] : memref<128x1152xbf16, #tpu.memory_space<vmem>>, vector<128x64xbf16>
    %c0_9 = arith.constant 0 : index
    %c768 = arith.constant 768 : index
    %11 = vector.load %arg6[%c0_9, %c768] : memref<128x1152xbf16, #tpu.memory_space<vmem>>, vector<128x64xbf16>
    %cst_10 = arith.constant dense<0.000000e+00> : vector<128x128xf32>
    %12 = tpu.matmul %9, %10, %cst_10 {dimension_numbers = #tpu.dot_dimension_numbers<[1], [1], [0], [0], [0, 0, 1, 0], [], []>} : vector<128x64xbf16>, vector<128x64xbf16>, vector<128x128xf32> -> vector<128x128xf32>
    %cst_11 = arith.constant 0.0510310382 : f32
    %13 = vector.broadcast %cst_11 : f32 to vector<128x128xf32>
    %14 = arith.mulf %12, %13 : vector<128x128xf32>
    %cst_12 = arith.constant -1.000000e+30 : f32
    %15 = vector.broadcast %cst_12 : f32 to vector<128x128xf32>
    %16 = arith.select %8, %14, %15 : vector<128x128xi1>, vector<128x128xf32>
    %cst_13 = arith.constant dense<0xFF800000> : vector<128xf32>
    %17 = vector.multi_reduction <maximumf>, %16, %cst_13 [1] : vector<128x128xf32> to vector<128xf32>
    %18 = vector.shape_cast %17 : vector<128xf32> to vector<128x1xf32>
    %19 = vector.broadcast %18 : vector<128x1xf32> to vector<128x128xf32>
    %20 = arith.subf %16, %19 : vector<128x128xf32>
    %21 = math.exp %20 : vector<128x128xf32>
    %cst_14 = arith.constant dense<0.000000e+00> : vector<128xf32>
    %22 = vector.multi_reduction <add>, %21, %cst_14 [1] : vector<128x128xf32> to vector<128xf32>
    %23 = vector.shape_cast %22 : vector<128xf32> to vector<128x1xf32>
    %24 = tpu.reciprocal %23 {approx = true} : vector<128x1xf32> -> vector<128x1xf32>
    %25 = vector.broadcast %24 : vector<128x1xf32> to vector<128x128xf32>
    %26 = arith.mulf %21, %25 : vector<128x128xf32>
    %27 = arith.truncf %26 : vector<128x128xf32> to vector<128x128xbf16>
    %cst_15 = arith.constant dense<0.000000e+00> : vector<128x64xf32>
    %28 = tpu.matmul %27, %11, %cst_15 {dimension_numbers = #tpu.dot_dimension_numbers<[1], [0], [0], [1], [0, 0, 1, 1], [], []>} : vector<128x128xbf16>, vector<128x64xbf16>, vector<128x64xf32> -> vector<128x64xf32>
    %29 = arith.truncf %28 : vector<128x64xf32> to vector<128x64xbf16>
    %c0_16 = arith.constant 0 : index
    %c0_17 = arith.constant 0 : index
    %30 = vector.load %arg7[%c0_16, %c0_17] : memref<128x384xbf16, #tpu.memory_space<vmem>>, vector<128x64xbf16>
    tpu.vector_store %arg7[%c0_16, %c0_17], %29 {strides = array<i32>} : memref<128x384xbf16, #tpu.memory_space<vmem>>, vector<128x64xbf16>,
    %c0_18 = arith.constant 0 : index
    %c64 = arith.constant 64 : index
    %31 = vector.load %arg6[%c0_18, %c64] : memref<128x1152xbf16, #tpu.memory_space<vmem>>, vector<128x64xbf16>
    %c0_19 = arith.constant 0 : index
    %c448 = arith.constant 448 : index
    %32 = vector.load %arg6[%c0_19, %c448] : memref<128x1152xbf16, #tpu.memory_space<vmem>>, vector<128x64xbf16>
    %c0_20 = arith.constant 0 : index
    %c832 = arith.constant 832 : index
    %33 = vector.load %arg6[%c0_20, %c832] : memref<128x1152xbf16, #tpu.memory_space<vmem>>, vector<128x64xbf16>
    %cst_21 = arith.constant dense<0.000000e+00> : vector<128x128xf32>
    %34 = tpu.matmul %31, %32, %cst_21 {dimension_numbers = #tpu.dot_dimension_numbers<[1], [1], [0], [0], [0, 0, 1, 0], [], []>} : vector<128x64xbf16>, vector<128x64xbf16>, vector<128x128xf32> -> vector<128x128xf32>
    %cst_22 = arith.constant 0.0510310382 : f32
    %35 = vector.broadcast %cst_22 : f32 to vector<128x128xf32>
    %36 = arith.mulf %34, %35 : vector<128x128xf32>
    %cst_23 = arith.constant -1.000000e+30 : f32
    %37 = vector.broadcast %cst_23 : f32 to vector<128x128xf32>
    %38 = arith.select %8, %36, %37 : vector<128x128xi1>, vector<128x128xf32>
    %cst_24 = arith.constant dense<0xFF800000> : vector<128xf32>
    %39 = vector.multi_reduction <maximumf>, %38, %cst_24 [1] : vector<128x128xf32> to vector<128xf32>
    %40 = vector.shape_cast %39 : vector<128xf32> to vector<128x1xf32>
    %41 = vector.broadcast %40 : vector<128x1xf32> to vector<128x128xf32>
    %42 = arith.subf %38, %41 : vector<128x128xf32>
    %43 = math.exp %42 : vector<128x128xf32>
    %cst_25 = arith.constant dense<0.000000e+00> : vector<128xf32>
    %44 = vector.multi_reduction <add>, %43, %cst_25 [1] : vector<128x128xf32> to vector<128xf32>
    %45 = vector.shape_cast %44 : vector<128xf32> to vector<128x1xf32>
    %46 = tpu.reciprocal %45 {approx = true} : vector<128x1xf32> -> vector<128x1xf32>
    %47 = vector.broadcast %46 : vector<128x1xf32> to vector<128x128xf32>
    %48 = arith.mulf %43, %47 : vector<128x128xf32>
    %49 = arith.truncf %48 : vector<128x128xf32> to vector<128x128xbf16>
    %cst_26 = arith.constant dense<0.000000e+00> : vector<128x64xf32>
    %50 = tpu.matmul %49, %33, %cst_26 {dimension_numbers = #tpu.dot_dimension_numbers<[1], [0], [0], [1], [0, 0, 1, 1], [], []>} : vector<128x128xbf16>, vector<128x64xbf16>, vector<128x64xf32> -> vector<128x64xf32>
    %51 = arith.truncf %50 : vector<128x64xf32> to vector<128x64xbf16>
    %c0_27 = arith.constant 0 : index
    %c64_28 = arith.constant 64 : index
    %52 = vector.load %arg7[%c0_27, %c64_28] : memref<128x384xbf16, #tpu.memory_space<vmem>>, vector<128x64xbf16>
    tpu.vector_store %arg7[%c0_27, %c64_28], %51 {strides = array<i32>} : memref<128x384xbf16, #tpu.memory_space<vmem>>, vector<128x64xbf16>,
    %c0_29 = arith.constant 0 : index
    %c128 = arith.constant 128 : index
    %53 = vector.load %arg6[%c0_29, %c128] : memref<128x1152xbf16, #tpu.memory_space<vmem>>, vector<128x64xbf16>
    %c0_30 = arith.constant 0 : index
    %c512 = arith.constant 512 : index
    %54 = vector.load %arg6[%c0_30, %c512] : memref<128x1152xbf16, #tpu.memory_space<vmem>>, vector<128x64xbf16>
    %c0_31 = arith.constant 0 : index
    %c896 = arith.constant 896 : index
    %55 = vector.load %arg6[%c0_31, %c896] : memref<128x1152xbf16, #tpu.memory_space<vmem>>, vector<128x64xbf16>
    %cst_32 = arith.constant dense<0.000000e+00> : vector<128x128xf32>
    %56 = tpu.matmul %53, %54, %cst_32 {dimension_numbers = #tpu.dot_dimension_numbers<[1], [1], [0], [0], [0, 0, 1, 0], [], []>} : vector<128x64xbf16>, vector<128x64xbf16>, vector<128x128xf32> -> vector<128x128xf32>
    %cst_33 = arith.constant 0.0510310382 : f32
    %57 = vector.broadcast %cst_33 : f32 to vector<128x128xf32>
    %58 = arith.mulf %56, %57 : vector<128x128xf32>
    %cst_34 = arith.constant -1.000000e+30 : f32
    %59 = vector.broadcast %cst_34 : f32 to vector<128x128xf32>
    %60 = arith.select %8, %58, %59 : vector<128x128xi1>, vector<128x128xf32>
    %cst_35 = arith.constant dense<0xFF800000> : vector<128xf32>
    %61 = vector.multi_reduction <maximumf>, %60, %cst_35 [1] : vector<128x128xf32> to vector<128xf32>
    %62 = vector.shape_cast %61 : vector<128xf32> to vector<128x1xf32>
    %63 = vector.broadcast %62 : vector<128x1xf32> to vector<128x128xf32>
    %64 = arith.subf %60, %63 : vector<128x128xf32>
    %65 = math.exp %64 : vector<128x128xf32>
    %cst_36 = arith.constant dense<0.000000e+00> : vector<128xf32>
    %66 = vector.multi_reduction <add>, %65, %cst_36 [1] : vector<128x128xf32> to vector<128xf32>
    %67 = vector.shape_cast %66 : vector<128xf32> to vector<128x1xf32>
    %68 = tpu.reciprocal %67 {approx = true} : vector<128x1xf32> -> vector<128x1xf32>
    %69 = vector.broadcast %68 : vector<128x1xf32> to vector<128x128xf32>
    %70 = arith.mulf %65, %69 : vector<128x128xf32>
    %71 = arith.truncf %70 : vector<128x128xf32> to vector<128x128xbf16>
    %cst_37 = arith.constant dense<0.000000e+00> : vector<128x64xf32>
    %72 = tpu.matmul %71, %55, %cst_37 {dimension_numbers = #tpu.dot_dimension_numbers<[1], [0], [0], [1], [0, 0, 1, 1], [], []>} : vector<128x128xbf16>, vector<128x64xbf16>, vector<128x64xf32> -> vector<128x64xf32>
    %73 = arith.truncf %72 : vector<128x64xf32> to vector<128x64xbf16>
    %c0_38 = arith.constant 0 : index
    %c128_39 = arith.constant 128 : index
    %74 = vector.load %arg7[%c0_38, %c128_39] : memref<128x384xbf16, #tpu.memory_space<vmem>>, vector<128x64xbf16>
    tpu.vector_store %arg7[%c0_38, %c128_39], %73 {strides = array<i32>} : memref<128x384xbf16, #tpu.memory_space<vmem>>, vector<128x64xbf16>,
    %c0_40 = arith.constant 0 : index
    %c192 = arith.constant 192 : index
    %75 = vector.load %arg6[%c0_40, %c192] : memref<128x1152xbf16, #tpu.memory_space<vmem>>, vector<128x64xbf16>
    %c0_41 = arith.constant 0 : index
    %c576 = arith.constant 576 : index
    %76 = vector.load %arg6[%c0_41, %c576] : memref<128x1152xbf16, #tpu.memory_space<vmem>>, vector<128x64xbf16>
    %c0_42 = arith.constant 0 : index
    %c960 = arith.constant 960 : index
    %77 = vector.load %arg6[%c0_42, %c960] : memref<128x1152xbf16, #tpu.memory_space<vmem>>, vector<128x64xbf16>
    %cst_43 = arith.constant dense<0.000000e+00> : vector<128x128xf32>
    %78 = tpu.matmul %75, %76, %cst_43 {dimension_numbers = #tpu.dot_dimension_numbers<[1], [1], [0], [0], [0, 0, 1, 0], [], []>} : vector<128x64xbf16>, vector<128x64xbf16>, vector<128x128xf32> -> vector<128x128xf32>
    %cst_44 = arith.constant 0.0510310382 : f32
    %79 = vector.broadcast %cst_44 : f32 to vector<128x128xf32>
    %80 = arith.mulf %78, %79 : vector<128x128xf32>
    %cst_45 = arith.constant -1.000000e+30 : f32
    %81 = vector.broadcast %cst_45 : f32 to vector<128x128xf32>
    %82 = arith.select %8, %80, %81 : vector<128x128xi1>, vector<128x128xf32>
    %cst_46 = arith.constant dense<0xFF800000> : vector<128xf32>
    %83 = vector.multi_reduction <maximumf>, %82, %cst_46 [1] : vector<128x128xf32> to vector<128xf32>
    %84 = vector.shape_cast %83 : vector<128xf32> to vector<128x1xf32>
    %85 = vector.broadcast %84 : vector<128x1xf32> to vector<128x128xf32>
    %86 = arith.subf %82, %85 : vector<128x128xf32>
    %87 = math.exp %86 : vector<128x128xf32>
    %cst_47 = arith.constant dense<0.000000e+00> : vector<128xf32>
    %88 = vector.multi_reduction <add>, %87, %cst_47 [1] : vector<128x128xf32> to vector<128xf32>
    %89 = vector.shape_cast %88 : vector<128xf32> to vector<128x1xf32>
    %90 = tpu.reciprocal %89 {approx = true} : vector<128x1xf32> -> vector<128x1xf32>
    %91 = vector.broadcast %90 : vector<128x1xf32> to vector<128x128xf32>
    %92 = arith.mulf %87, %91 : vector<128x128xf32>
    %93 = arith.truncf %92 : vector<128x128xf32> to vector<128x128xbf16>
    %cst_48 = arith.constant dense<0.000000e+00> : vector<128x64xf32>
    %94 = tpu.matmul %93, %77, %cst_48 {dimension_numbers = #tpu.dot_dimension_numbers<[1], [0], [0], [1], [0, 0, 1, 1], [], []>} : vector<128x128xbf16>, vector<128x64xbf16>, vector<128x64xf32> -> vector<128x64xf32>
    %95 = arith.truncf %94 : vector<128x64xf32> to vector<128x64xbf16>
    %c0_49 = arith.constant 0 : index
    %c192_50 = arith.constant 192 : index
    %96 = vector.load %arg7[%c0_49, %c192_50] : memref<128x384xbf16, #tpu.memory_space<vmem>>, vector<128x64xbf16>
    tpu.vector_store %arg7[%c0_49, %c192_50], %95 {strides = array<i32>} : memref<128x384xbf16, #tpu.memory_space<vmem>>, vector<128x64xbf16>,
    %c0_51 = arith.constant 0 : index
    %c256 = arith.constant 256 : index
    %97 = vector.load %arg6[%c0_51, %c256] : memref<128x1152xbf16, #tpu.memory_space<vmem>>, vector<128x64xbf16>
    %c0_52 = arith.constant 0 : index
    %c640 = arith.constant 640 : index
    %98 = vector.load %arg6[%c0_52, %c640] : memref<128x1152xbf16, #tpu.memory_space<vmem>>, vector<128x64xbf16>
    %c0_53 = arith.constant 0 : index
    %c1024 = arith.constant 1024 : index
    %99 = vector.load %arg6[%c0_53, %c1024] : memref<128x1152xbf16, #tpu.memory_space<vmem>>, vector<128x64xbf16>
    %cst_54 = arith.constant dense<0.000000e+00> : vector<128x128xf32>
    %100 = tpu.matmul %97, %98, %cst_54 {dimension_numbers = #tpu.dot_dimension_numbers<[1], [1], [0], [0], [0, 0, 1, 0], [], []>} : vector<128x64xbf16>, vector<128x64xbf16>, vector<128x128xf32> -> vector<128x128xf32>
    %cst_55 = arith.constant 0.0510310382 : f32
    %101 = vector.broadcast %cst_55 : f32 to vector<128x128xf32>
    %102 = arith.mulf %100, %101 : vector<128x128xf32>
    %cst_56 = arith.constant -1.000000e+30 : f32
    %103 = vector.broadcast %cst_56 : f32 to vector<128x128xf32>
    %104 = arith.select %8, %102, %103 : vector<128x128xi1>, vector<128x128xf32>
    %cst_57 = arith.constant dense<0xFF800000> : vector<128xf32>
    %105 = vector.multi_reduction <maximumf>, %104, %cst_57 [1] : vector<128x128xf32> to vector<128xf32>
    %106 = vector.shape_cast %105 : vector<128xf32> to vector<128x1xf32>
    %107 = vector.broadcast %106 : vector<128x1xf32> to vector<128x128xf32>
    %108 = arith.subf %104, %107 : vector<128x128xf32>
    %109 = math.exp %108 : vector<128x128xf32>
    %cst_58 = arith.constant dense<0.000000e+00> : vector<128xf32>
    %110 = vector.multi_reduction <add>, %109, %cst_58 [1] : vector<128x128xf32> to vector<128xf32>
    %111 = vector.shape_cast %110 : vector<128xf32> to vector<128x1xf32>
    %112 = tpu.reciprocal %111 {approx = true} : vector<128x1xf32> -> vector<128x1xf32>
    %113 = vector.broadcast %112 : vector<128x1xf32> to vector<128x128xf32>
    %114 = arith.mulf %109, %113 : vector<128x128xf32>
    %115 = arith.truncf %114 : vector<128x128xf32> to vector<128x128xbf16>
    %cst_59 = arith.constant dense<0.000000e+00> : vector<128x64xf32>
    %116 = tpu.matmul %115, %99, %cst_59 {dimension_numbers = #tpu.dot_dimension_numbers<[1], [0], [0], [1], [0, 0, 1, 1], [], []>} : vector<128x128xbf16>, vector<128x64xbf16>, vector<128x64xf32> -> vector<128x64xf32>
    %117 = arith.truncf %116 : vector<128x64xf32> to vector<128x64xbf16>
    %c0_60 = arith.constant 0 : index
    %c256_61 = arith.constant 256 : index
    %118 = vector.load %arg7[%c0_60, %c256_61] : memref<128x384xbf16, #tpu.memory_space<vmem>>, vector<128x64xbf16>
    tpu.vector_store %arg7[%c0_60, %c256_61], %117 {strides = array<i32>} : memref<128x384xbf16, #tpu.memory_space<vmem>>, vector<128x64xbf16>,
    %c0_62 = arith.constant 0 : index
    %c320 = arith.constant 320 : index
    %119 = vector.load %arg6[%c0_62, %c320] : memref<128x1152xbf16, #tpu.memory_space<vmem>>, vector<128x64xbf16>
    %c0_63 = arith.constant 0 : index
    %c704 = arith.constant 704 : index
    %120 = vector.load %arg6[%c0_63, %c704] : memref<128x1152xbf16, #tpu.memory_space<vmem>>, vector<128x64xbf16>
    %c0_64 = arith.constant 0 : index
    %c1088 = arith.constant 1088 : index
    %121 = vector.load %arg6[%c0_64, %c1088] : memref<128x1152xbf16, #tpu.memory_space<vmem>>, vector<128x64xbf16>
    %cst_65 = arith.constant dense<0.000000e+00> : vector<128x128xf32>
    %122 = tpu.matmul %119, %120, %cst_65 {dimension_numbers = #tpu.dot_dimension_numbers<[1], [1], [0], [0], [0, 0, 1, 0], [], []>} : vector<128x64xbf16>, vector<128x64xbf16>, vector<128x128xf32> -> vector<128x128xf32>
    %cst_66 = arith.constant 0.0510310382 : f32
    %123 = vector.broadcast %cst_66 : f32 to vector<128x128xf32>
    %124 = arith.mulf %122, %123 : vector<128x128xf32>
    %cst_67 = arith.constant -1.000000e+30 : f32
    %125 = vector.broadcast %cst_67 : f32 to vector<128x128xf32>
    %126 = arith.select %8, %124, %125 : vector<128x128xi1>, vector<128x128xf32>
    %cst_68 = arith.constant dense<0xFF800000> : vector<128xf32>
    %127 = vector.multi_reduction <maximumf>, %126, %cst_68 [1] : vector<128x128xf32> to vector<128xf32>
    %128 = vector.shape_cast %127 : vector<128xf32> to vector<128x1xf32>
    %129 = vector.broadcast %128 : vector<128x1xf32> to vector<128x128xf32>
    %130 = arith.subf %126, %129 : vector<128x128xf32>
    %131 = math.exp %130 : vector<128x128xf32>
    %cst_69 = arith.constant dense<0.000000e+00> : vector<128xf32>
    %132 = vector.multi_reduction <add>, %131, %cst_69 [1] : vector<128x128xf32> to vector<128xf32>
    %133 = vector.shape_cast %132 : vector<128xf32> to vector<128x1xf32>
    %134 = tpu.reciprocal %133 {approx = true} : vector<128x1xf32> -> vector<128x1xf32>
    %135 = vector.broadcast %134 : vector<128x1xf32> to vector<128x128xf32>
    %136 = arith.mulf %131, %135 : vector<128x128xf32>
    %137 = arith.truncf %136 : vector<128x128xf32> to vector<128x128xbf16>
    %cst_70 = arith.constant dense<0.000000e+00> : vector<128x64xf32>
    %138 = tpu.matmul %137, %121, %cst_70 {dimension_numbers = #tpu.dot_dimension_numbers<[1], [0], [0], [1], [0, 0, 1, 1], [], []>} : vector<128x128xbf16>, vector<128x64xbf16>, vector<128x64xf32> -> vector<128x64xf32>
    %139 = arith.truncf %138 : vector<128x64xf32> to vector<128x64xbf16>
    %c0_71 = arith.constant 0 : index
    %c320_72 = arith.constant 320 : index
    %140 = vector.load %arg7[%c0_71, %c320_72] : memref<128x384xbf16, #tpu.memory_space<vmem>>, vector<128x64xbf16>
    tpu.vector_store %arg7[%c0_71, %c320_72], %139 {strides = array<i32>} : memref<128x384xbf16, #tpu.memory_space<vmem>>, vector<128x64xbf16>,
    %c0_73 = arith.constant 0 : index
    %c0_74 = arith.constant 0 : index
    %141 = vector.load %arg7[%c0_73, %c0_74] : memref<128x384xbf16, #tpu.memory_space<vmem>>, vector<128x384xbf16>
    %c0_75 = arith.constant 0 : index
    %c0_76 = arith.constant 0 : index
    %142 = vector.load %arg3[%c0_75, %c0_76] : memref<384x384xbf16, #tpu.memory_space<vmem>>, vector<384x384xbf16>
    %cst_77 = arith.constant dense<0.000000e+00> : vector<128x384xf32>
    %143 = tpu.matmul %141, %142, %cst_77 {dimension_numbers = #tpu.dot_dimension_numbers<[1], [0], [0], [1], [0, 0, 1, 1], [], []>} : vector<128x384xbf16>, vector<384x384xbf16>, vector<128x384xf32> -> vector<128x384xf32>
    %c0_78 = arith.constant 0 : index
    %c0_79 = arith.constant 0 : index
    %144 = vector.load %arg4[%c0_78, %c0_79] : memref<1x384xf32, #tpu.memory_space<vmem>>, vector<1x384xf32>
    %145 = vector.broadcast %144 : vector<1x384xf32> to vector<128x384xf32>
    %146 = arith.addf %143, %145 : vector<128x384xf32>
    %147 = arith.truncf %146 : vector<128x384xf32> to vector<128x384xbf16>
    %c0_80 = arith.constant 0 : index
    %c0_81 = arith.constant 0 : index
    %c0_82 = arith.constant 0 : index
    %148 = vector.load %arg5[%c0_80, %c0_81, %c0_82] : memref<1x128x384xbf16, #tpu.memory_space<vmem>>, vector<1x128x384xbf16>
    %149 = vector.shape_cast %148 : vector<1x128x384xbf16> to vector<128x384xbf16>
    %150 = vector.shape_cast %147 : vector<128x384xbf16> to vector<1x128x384xbf16>
    tpu.vector_store %arg5[%c0_80, %c0_81, %c0_82], %150 {strides = array<i32>} : memref<1x128x384xbf16, #tpu.memory_space<vmem>>, vector<1x128x384xbf16>,
    return
  }
  func.func @transform_0(%arg0: i32) -> (i32, i32, i32) {
    %c0_i32 = arith.constant 0 : i32
    %c0_i32_0 = arith.constant 0 : i32
    %c0_i32_1 = arith.constant 0 : i32
    return %arg0, %c0_i32, %c0_i32_0 : i32, i32, i32
  }
  func.func @transform_1(%arg0: i32) -> (i32, i32) {
    %c0_i32 = arith.constant 0 : i32
    %c0_i32_0 = arith.constant 0 : i32
    %c0_i32_1 = arith.constant 0 : i32
    return %c0_i32, %c0_i32_0 : i32, i32
  }
  func.func @transform_2(%arg0: i32) -> (i32, i32) {
    %c0_i32 = arith.constant 0 : i32
    %c0_i32_0 = arith.constant 0 : i32
    %c0_i32_1 = arith.constant 0 : i32
    return %c0_i32, %c0_i32_0 : i32, i32
  }
  func.func @transform_3(%arg0: i32) -> (i32, i32) {
    %c0_i32 = arith.constant 0 : i32
    %c0_i32_0 = arith.constant 0 : i32
    %c0_i32_1 = arith.constant 0 : i32
    return %c0_i32, %c0_i32_0 : i32, i32
  }
  func.func @transform_4(%arg0: i32) -> (i32, i32, i32) {
    %c0_i32 = arith.constant 0 : i32
    %c0_i32_0 = arith.constant 0 : i32
    %c0_i32_1 = arith.constant 0 : i32
    return %arg0, %c0_i32, %c0_i32_0 : i32, i32, i32
  }
}

</mosaic_0001>

<llo_original>
// kernel: tpu_custom_call.1
$region0: #{tpu_custom_call.1}
  #allocation0 [shape = 'u32[]', space=smem, size = 0x4, offset = 0x4, fixed_abs, tag = 'smem constant byte address 0x4 - core index']
  #allocation1 [shape = 'u32[144,128]{1,0:T(1,128)}', space=vmem, size = 0x12000, scoped, tag = 'internal scratch']
  #allocation2 [shape = 'bf16[128,1152]{1,0:T(16,128)(2,1)}', space=vmem, size = 0x48000, scoped, tag = 'scratch operand']
  #allocation3 [shape = 'bf16[128,384]{1,0:T(16,128)(2,1)}', space=vmem, size = 0x18000, scoped, tag = 'scratch operand']
  %s0 = inlined_call_operand.hbm [shape: bf16[2,128,384], index: 0, kind: input, shape index: {}]
  %s1 = inlined_call_operand.hbm [shape: bf16[384,1152], index: 1, kind: input, shape index: {}]
  %s2 = inlined_call_operand.hbm [shape: bf16[384,384], index: 2, kind: input, shape index: {}]
  %s3 = inlined_call_operand.vmem [shape: f32[1,384], index: 3, kind: input, shape index: {}]
  %s4 = inlined_call_operand.hbm [shape: bf16[2,128,384], index: 4, kind: output, shape index: {}]
  %s5 = sld [smem:[#allocation0]]
  $region61: #{tpu_custom_call.1} parent=0
    _
  %s7 = ssub.s32 1, %s5
  %s8 = scalar_select 0, %s7, %s5
  $region1: #{tpu_custom_call.1} parent=0
    #allocation4 [shape = 'u8[196608]{0}', space=vmem, size = 0x30000, scoped, tag = 'input window, operand 0']
    #allocation5 [shape = 's32[2]{0}', space=sflag, size = 0x8, scoped, tag = 'scoped memory for tpu_custom_call.1']
    #allocation6 [shape = 's32[2]{0}', space=sflag, size = 0x8, scoped, tag = 'scoped memory for tpu_custom_call.1']
    #allocation7 [shape = 'u8[884736]{0}', space=vmem, size = 0xd8000, scoped, tag = 'input window, operand 1, single buffered']
    #allocation8 [shape = 's32[1]{0}', space=sflag, size = 0x4, scoped, tag = 'scoped memory for tpu_custom_call.1']
    #allocation9 [shape = 'u8[294912]{0}', space=vmem, size = 0x48000, scoped, tag = 'input window, operand 2, single buffered']
    #allocation10 [shape = 'u8[196608]{0}', space=vmem, size = 0x30000, scoped, tag = 'output window, operand 0']
    %9 = vsyncpa [#allocation5], 0
    %s10 = scalar_lea.sflag [#allocation5], 1
    %11 = vsyncpa %s10, 0
    %12 = vsyncpa [#allocation8], 0
    %13 = vsyncpa [#allocation6], 0
    %s14 = scalar_lea.sflag [#allocation6], 1
    %15 = vsyncpa %s14, 0
    loop: start=0, step=1, limit=4
    $region2: #{tpu_custom_call.1} parent=1 // loop_pre_header
      _
    $region3: #{tpu_custom_call.1} parent=1 // loop_header
      %s17 = sphi 0, %s21
      %p18 = scmp.ge.s32.totalorder %s17, 4
      %s27 = sphi 0, %s29
      %s30 = sphi 0, %s27
      %s31 = sphi 0, %s30
      %s47 = sphi 0, %s31
      %s51 = sphi 0, %s51
      %s53 = sphi 0, %s51
      %s54 = sphi 0, %s53
      %s68 = sphi 0, %s54
      %s72 = sphi 0, %s72
      %s74 = sphi 0, %s72
      %s75 = sphi 0, %s74
      %s89 = sphi 0, %s75
      %s93 = sphi 0, %s93
      %s95 = sphi 0, %s93
      %s96 = sphi 0, %s95
      %s110 = sphi 0, %s96
      %s116 = sphi 0, %s118
      %s119 = sphi 0, %s116
      %s120 = sphi 0, %s119
      %s136 = sphi 0, %s120
    $region4: #{tpu_custom_call.1} parent=1 // loop_header_branch
      %20 = sbr.rel (%p18) target = $region8
    $region5: #{tpu_custom_call.1} parent=1 // loop_body
      %s22 = ssub.s32 %s17, 1
      %s23 = ssub.s32 %s17, 2
      %s24 = sadd.s32 %s17, 1
      %s25 = ssub.s32 %s17, %s24
      %p26 = scmp.eq.s32.totalorder %s25, 0
      %s28 = sadd.s32 %s27, 1
      %s29 = scalar_select %p26, %s27, %s28
      %p32 = pneg %p26
      %p33 = scmp.eq.s32.totalorder %s17, 1
      %p34 = por %p32, %p33
      %p35 = scmp.ne.s32.totalorder %s27, %s30
      %p36 = scmp.eq.s32.totalorder %s17, 0
      %p37 = por %p35, %p36
      %p38 = scmp.ne.s32.totalorder %s27, %s30
      %p39 = scmp.eq.s32.totalorder %s22, 1
      %p40 = por %p38, %p39
      %p41 = scmp.ne.s32.totalorder %s30, %s31
      %p42 = scmp.eq.s32.totalorder %s22, 0
      %p43 = por %p41, %p42
      %p44 = scmp.ne.s32.totalorder %s30, %s31
      %p45 = scmp.eq.s32.totalorder %s23, 1
      %p46 = por %p44, %p45
      %p48 = scmp.ne.s32.totalorder %s31, %s47
      %p49 = scmp.eq.s32.totalorder %s23, 0
      %p50 = por %p48, %p49
      %s52 = sadd.s32 %s51, 1
      %p55 = scmp.eq.s32.totalorder %s17, 1
      %p56 = scmp.ne.s32.totalorder %s51, %s53
      %p57 = scmp.eq.s32.totalorder %s17, 0
      %p58 = por %p56, %p57
      %p59 = scmp.ne.s32.totalorder %s51, %s53
      %p60 = scmp.eq.s32.totalorder %s22, 1
      %p61 = por %p59, %p60
      %p62 = scmp.ne.s32.totalorder %s53, %s54
      %p63 = scmp.eq.s32.totalorder %s22, 0
      %p64 = por %p62, %p63
      %p65 = scmp.ne.s32.totalorder %s53, %s54
      %p66 = scmp.eq.s32.totalorder %s23, 1
      %p67 = por %p65, %p66
      %p69 = scmp.ne.s32.totalorder %s54, %s68
      %p70 = scmp.eq.s32.totalorder %s23, 0
      %p71 = por %p69, %p70
      %s73 = sadd.s32 %s72, 1
      %p76 = scmp.eq.s32.totalorder %s17, 1
      %p77 = scmp.ne.s32.totalorder %s72, %s74
      %p78 = scmp.eq.s32.totalorder %s17, 0
      %p79 = por %p77, %p78
      %p80 = scmp.ne.s32.totalorder %s72, %s74
      %p81 = scmp.eq.s32.totalorder %s22, 1
      %p82 = por %p80, %p81
      %p83 = scmp.ne.s32.totalorder %s74, %s75
      %p84 = scmp.eq.s32.totalorder %s22, 0
      %p85 = por %p83, %p84
      %p86 = scmp.ne.s32.totalorder %s74, %s75
      %p87 = scmp.eq.s32.totalorder %s23, 1
      %p88 = por %p86, %p87
      %p90 = scmp.ne.s32.totalorder %s75, %s89
      %p91 = scmp.eq.s32.totalorder %s23, 0
      %p92 = por %p90, %p91
      %s94 = sadd.s32 %s93, 1
      %p97 = scmp.eq.s32.totalorder %s17, 1
      %p98 = scmp.ne.s32.totalorder %s93, %s95
      %p99 = scmp.eq.s32.totalorder %s17, 0
      %p100 = por %p98, %p99
      %p101 = scmp.ne.s32.totalorder %s93, %s95
      %p102 = scmp.eq.s32.totalorder %s22, 1
      %p103 = por %p101, %p102
      %p104 = scmp.ne.s32.totalorder %s95, %s96
      %p105 = scmp.eq.s32.totalorder %s22, 0
      %p106 = por %p104, %p105
      %p107 = scmp.ne.s32.totalorder %s95, %s96
      %p108 = scmp.eq.s32.totalorder %s23, 1
      %p109 = por %p107, %p108
      %p111 = scmp.ne.s32.totalorder %s96, %s110
      %p112 = scmp.eq.s32.totalorder %s23, 0
      %p113 = por %p111, %p112
      %s114 = ssub.s32 %s17, %s24
      %p115 = scmp.eq.s32.totalorder %s114, 0
      %s117 = sadd.s32 %s116, 1
      %s118 = scalar_select %p115, %s116, %s117
      %p121 = pneg %p115
      %p122 = scmp.eq.s32.totalorder %s17, 1
      %p123 = por %p121, %p122
      %p124 = scmp.ne.s32.totalorder %s116, %s119
      %p125 = scmp.eq.s32.totalorder %s17, 0
      %p126 = por %p124, %p125
      %p127 = scmp.ne.s32.totalorder %s116, %s119
      %p128 = scmp.eq.s32.totalorder %s22, 1
      %p129 = por %p127, %p128
      %p130 = scmp.ne.s32.totalorder %s119, %s120
      %p131 = scmp.eq.s32.totalorder %s22, 0
      %p132 = por %p130, %p131
      %p133 = scmp.ne.s32.totalorder %s119, %s120
      %p134 = scmp.eq.s32.totalorder %s23, 1
      %p135 = por %p133, %p134
      %p137 = scmp.ne.s32.totalorder %s120, %s136
      %p138 = scmp.eq.s32.totalorder %s23, 0
      %p139 = por %p137, %p138
      %p140 = scmp.le.s32.totalorder 1, %s17
      %p141 = scmp.lt.s32.totalorder %s17, 3
      %p142 = pnand %p140, %p141
      %p143 = pneg %p142
      // Predicated region
      $region9: #{tpu_custom_call.1} parent=5 // pred_check
        _
      $region10: #{tpu_custom_call.1} parent=5 // pred_check_branch
        %145 = sbr.rel (%p142) target = $region12
      $region11: #{tpu_custom_call.1} parent=5 // pred_region
        %s146 = ssub.s32 %s17, 1
        // Predicated region
        $region13: #{tpu_custom_call.1} parent=11 // pred_check
          %p147 = pneg %p64
        $region14: #{tpu_custom_call.1} parent=11 // pred_check_branch
          %149 = sbr.rel (%p147) target = $region16
        $region15: #{tpu_custom_call.1} parent=11 // pred_region
          %s151 = ssub.s32 27648, 27648
          %152 = vsyncadd [#allocation8], %s151
          %s153 = sshll.u32 [#allocation7], 4
          %s154 = int_to_ptr.vmem [resolvable:$true] %s153
          %159 = dma.hbm_to_vmem [thread:$0]  %s1, 27648, %s154, [#allocation8], 576, 576, 36
        $region16: #{tpu_custom_call.1} parent=11 // pred_fallthru
          _
        // Predicated region
        $region17: #{tpu_custom_call.1} parent=11 // pred_check
          %p160 = pneg %p85
        $region18: #{tpu_custom_call.1} parent=11 // pred_check_branch
          %162 = sbr.rel (%p160) target = $region20
        $region19: #{tpu_custom_call.1} parent=11 // pred_region
          %s164 = ssub.s32 9216, 9216
          %165 = vsyncadd [#allocation8], %s164
          %s166 = sshll.u32 [#allocation9], 4
          %s167 = int_to_ptr.vmem [resolvable:$true] %s166
          %172 = dma.hbm_to_vmem [thread:$0]  %s2, 9216, %s167, [#allocation8], 192, 192, 12
        $region20: #{tpu_custom_call.1} parent=11 // pred_fallthru
          _
        // Predicated region
        $region21: #{tpu_custom_call.1} parent=11 // pred_check
          %p173 = pneg %p106
        $region22: #{tpu_custom_call.1} parent=11 // pred_check_branch
          %175 = sbr.rel (%p173) target = $region24
        $region23: #{tpu_custom_call.1} parent=11 // pred_region
          _
        $region24: #{tpu_custom_call.1} parent=11 // pred_fallthru
          _
      $region12: #{tpu_custom_call.1} parent=5 // pred_fallthru
        _
      %p176 = scmp.lt.s32.totalorder %s17, 2
      // Predicated region
      $region25: #{tpu_custom_call.1} parent=5 // pred_check
        %p177 = pneg %p176
      $region26: #{tpu_custom_call.1} parent=5 // pred_check_branch
        %179 = sbr.rel (%p177) target = $region28
      $region27: #{tpu_custom_call.1} parent=5 // pred_region
        // Predicated region
        $region29: #{tpu_custom_call.1} parent=27 // pred_check
          %p180 = pneg %p37
        $region30: #{tpu_custom_call.1} parent=27 // pred_check_branch
          %182 = sbr.rel (%p180) target = $region32
        $region31: #{tpu_custom_call.1} parent=27 // pred_region
          %s183 = sand.u32 %s27, 1
          %s184 = scalar_lea.sflag [#allocation5], %s183
          %s185 = sand.u32 %s27, 1
          %s186 = smul.addr %s185, 192
          %s187 = scalar_lea.vmem [#allocation4], %s186
          %s189 = ssub.s32 3072, 3072
          %190 = vsyncadd %s184, %s189
          %s191 = smul.addr %s17, 48
          %s192 = smul.addr %s191, 64
          %s193 = scalar_lea.hbm %s0, %s192
          %s194 = sshll.u32 %s187, 4
          %s195 = int_to_ptr.vmem [resolvable:$true] %s194
          %200 = dma.hbm_to_vmem [thread:$0]  %s193, 3072, %s195, %s184, 192, 192, 12
        $region32: #{tpu_custom_call.1} parent=27 // pred_fallthru
          _
      $region28: #{tpu_custom_call.1} parent=5 // pred_fallthru
        _
      %p201 = scmp.le.s32.totalorder 1, %s17
      %p202 = scmp.lt.s32.totalorder %s17, 3
      %p203 = pnand %p201, %p202
      %p204 = pneg %p203
      // Predicated region
      $region33: #{tpu_custom_call.1} parent=5 // pred_check
        _
      $region34: #{tpu_custom_call.1} parent=5 // pred_check_branch
        %206 = sbr.rel (%p203) target = $region36
      $region35: #{tpu_custom_call.1} parent=5 // pred_region
        %s207 = ssub.s32 %s17, 1
        %s208 = sand.u32 %s30, 1
        %s209 = scalar_lea.sflag [#allocation5], %s208
        %s210 = sand.u32 %s30, 1
        %s211 = smul.addr %s210, 192
        %s212 = scalar_lea.vmem [#allocation4], %s211
        // Predicated region
        $region37: #{tpu_custom_call.1} parent=35 // pred_check
          %p213 = pneg %p43
        $region38: #{tpu_custom_call.1} parent=35 // pred_check_branch
          %215 = sbr.rel (%p213) target = $region40
        $region39: #{tpu_custom_call.1} parent=35 // pred_region
          %216 = dma.done %s209, 3072
        $region40: #{tpu_custom_call.1} parent=35 // pred_fallthru
          _
        // Predicated region
        $region41: #{tpu_custom_call.1} parent=35 // pred_check
          %p217 = pneg %p64
        $region42: #{tpu_custom_call.1} parent=35 // pred_check_branch
          %219 = sbr.rel (%p217) target = $region44
        $region43: #{tpu_custom_call.1} parent=35 // pred_region
          %220 = dma.done [#allocation8], 27648
        $region44: #{tpu_custom_call.1} parent=35 // pred_fallthru
          _
        // Predicated region
        $region45: #{tpu_custom_call.1} parent=35 // pred_check
          %p221 = pneg %p85
        $region46: #{tpu_custom_call.1} parent=35 // pred_check_branch
          %223 = sbr.rel (%p221) target = $region48
        $region47: #{tpu_custom_call.1} parent=35 // pred_region
          %224 = dma.done [#allocation8], 9216
        $region48: #{tpu_custom_call.1} parent=35 // pred_fallthru
          _
        %s225 = sand.u32 %s30, 1
        %s226 = scalar_lea.sflag [#allocation5], %s225
        %s227 = sand.u32 %s30, 1
        %s228 = smul.addr %s227, 192
        %s229 = scalar_lea.vmem [#allocation4], %s228
        %p230 = pneg %p43
        %p231 = pneg %p40
        %p232 = pneg %p64
        %p233 = pneg %p61
        %p234 = pneg %p85
        %p235 = pneg %p82
        %p236 = pneg %p106
        %p237 = pneg %p103
        %p238 = pneg %p132
        %p239 = pneg %p129
        %s240 = sand.u32 %s119, 1
        %s241 = scalar_lea.sflag [#allocation6], %s240
        %s242 = sand.u32 %s119, 1
        %s243 = smul.addr %s242, 192
        %s244 = scalar_lea.vmem [#allocation10], %s243
        %v246 = vld [vmem:[%s212] sm:$0xff]
        %v247 = vld [vmem:[%s212 + $0x8] sm:$0xf]
        %v248 = vld [vmem:[%s212 + $0xc] sm:$0xff]
        %v249 = vld [vmem:[%s212 + $0x14] sm:$0xf]
        %v250 = vld [vmem:[%s212 + $0x18] sm:$0xff]
        %v251 = vld [vmem:[%s212 + $0x20] sm:$0xf]
        %v252 = vld [vmem:[%s212 + $0x24] sm:$0xff]
        %v253 = vld [vmem:[%s212 + $0x2c] sm:$0xf]
        %v254 = vld [vmem:[%s212 + $0x30] sm:$0xff]
        %v255 = vld [vmem:[%s212 + $0x38] sm:$0xf]
        %v256 = vld [vmem:[%s212 + $0x3c] sm:$0xff]
        %v257 = vld [vmem:[%s212 + $0x44] sm:$0xf]
        %v258 = vld [vmem:[%s212 + $0x48] sm:$0xff]
        %v259 = vld [vmem:[%s212 + $0x50] sm:$0xf]
        %v260 = vld [vmem:[%s212 + $0x54] sm:$0xff]
        %v261 = vld [vmem:[%s212 + $0x5c] sm:$0xf]
        %v262 = vld [vmem:[%s212 + $0x60] sm:$0xff]
        %v263 = vld [vmem:[%s212 + $0x68] sm:$0xf]
        %v264 = vld [vmem:[%s212 + $0x6c] sm:$0xff]
        %v265 = vld [vmem:[%s212 + $0x74] sm:$0xf]
        %v266 = vld [vmem:[%s212 + $0x78] sm:$0xff]
        %v267 = vld [vmem:[%s212 + $0x80] sm:$0xf]
        %v268 = vld [vmem:[%s212 + $0x84] sm:$0xff]
        %v269 = vld [vmem:[%s212 + $0x8c] sm:$0xf]
        %v270 = vld [vmem:[%s212 + $0x90] sm:$0xff]
        %v271 = vld [vmem:[%s212 + $0x98] sm:$0xf]
        %v272 = vld [vmem:[%s212 + $0x9c] sm:$0xff]
        %v273 = vld [vmem:[%s212 + $0xa4] sm:$0xf]
        %v274 = vld [vmem:[%s212 + $0xa8] sm:$0xff]
        %v275 = vld [vmem:[%s212 + $0xb0] sm:$0xf]
        %v276 = vld [vmem:[%s212 + $0xb4] sm:$0xff]
        %v277 = vld [vmem:[%s212 + $0xbc] sm:$0xf]
        %v278 = vld [vmem:[#allocation7] sm:$0xff]
        %v279 = vld [vmem:[#allocation7 + $0x8] sm:$0xff]
        %v280 = vld [vmem:[#allocation7 + $0x10] sm:$0xff]
        %v281 = vld [vmem:[#allocation7 + $0x18] sm:$0xff]
        %v282 = vld [vmem:[#allocation7 + $0x20] sm:$0xf]
        %v283 = vld [vmem:[#allocation7 + $0x24] sm:$0xff]
        %v284 = vld [vmem:[#allocation7 + $0x2c] sm:$0xff]
        %v285 = vld [vmem:[#allocation7 + $0x34] sm:$0xff]
        %v286 = vld [vmem:[#allocation7 + $0x3c] sm:$0xff]
        %v287 = vld [vmem:[#allocation7 + $0x44] sm:$0xf]
        %v288 = vld [vmem:[#allocation7 + $0x48] sm:$0xff]
        %v289 = vld [vmem:[#allocation7 + $0x50] sm:$0xff]
        %v290 = vld [vmem:[#allocation7 + $0x58] sm:$0xff]
        %v291 = vld [vmem:[#allocation7 + $0x60] sm:$0xff]
        %v292 = vld [vmem:[#allocation7 + $0x68] sm:$0xf]
        %v293 = vld [vmem:[#allocation7 + $0x6c] sm:$0xff]
        %v294 = vld [vmem:[#allocation7 + $0x74] sm:$0xff]
        %v295 = vld [vmem:[#allocation7 + $0x7c] sm:$0xff]
        %v296 = vld [vmem:[#allocation7 + $0x84] sm:$0xff]
        %v297 = vld [vmem:[#allocation7 + $0x8c] sm:$0xf]
        %v298 = vld [vmem:[#allocation7 + $0x90] sm:$0xff]
        %v299 = vld [vmem:[#allocation7 + $0x98] sm:$0xff]
        %v300 = vld [vmem:[#allocation7 + $0xa0] sm:$0xff]
        %v301 = vld [vmem:[#allocation7 + $0xa8] sm:$0xff]
        %v302 = vld [vmem:[#allocation7 + $0xb0] sm:$0xf]
        %v303 = vld [vmem:[#allocation7 + $0xb4] sm:$0xff]
        %v304 = vld [vmem:[#allocation7 + $0xbc] sm:$0xff]
        %v305 = vld [vmem:[#allocation7 + $0xc4] sm:$0xff]
        %v306 = vld [vmem:[#allocation7 + $0xcc] sm:$0xff]
        %v307 = vld [vmem:[#allocation7 + $0xd4] sm:$0xf]
        %v308 = vld [vmem:[#allocation7 + $0xd8] sm:$0xff]
        %v309 = vld [vmem:[#allocation7 + $0xe0] sm:$0xff]
        %v310 = vld [vmem:[#allocation7 + $0xe8] sm:$0xff]
        %v311 = vld [vmem:[#allocation7 + $0xf0] sm:$0xff]
        %v312 = vld [vmem:[#allocation7 + $0xf8] sm:$0xf]
        %v313 = vld [vmem:[#allocation7 + $0xfc] sm:$0xff]
        %v314 = vld [vmem:[#allocation7 + $0x104] sm:$0xff]
        %v315 = vld [vmem:[#allocation7 + $0x10c] sm:$0xff]
        %v316 = vld [vmem:[#allocation7 + $0x114] sm:$0xff]
        %v317 = vld [vmem:[#allocation7 + $0x11c] sm:$0xf]
        %v318 = vld [vmem:[#allocation7 + $0x120] sm:$0xff]
        %v319 = vld [vmem:[#allocation7 + $0x128] sm:$0xff]
        %v320 = vld [vmem:[#allocation7 + $0x130] sm:$0xff]
        %v321 = vld [vmem:[#allocation7 + $0x138] sm:$0xff]
        %v322 = vld [vmem:[#allocation7 + $0x140] sm:$0xf]
        %v323 = vld [vmem:[#allocation7 + $0x144] sm:$0xff]
        %v324 = vld [vmem:[#allocation7 + $0x14c] sm:$0xff]
        %v325 = vld [vmem:[#allocation7 + $0x154] sm:$0xff]
        %v326 = vld [vmem:[#allocation7 + $0x15c] sm:$0xff]
        %v327 = vld [vmem:[#allocation7 + $0x164] sm:$0xf]
        %v328 = vld [vmem:[#allocation7 + $0x168] sm:$0xff]
        %v329 = vld [vmem:[#allocation7 + $0x170] sm:$0xff]
        %v330 = vld [vmem:[#allocation7 + $0x178] sm:$0xff]
        %v331 = vld [vmem:[#allocation7 + $0x180] sm:$0xff]
        %v332 = vld [vmem:[#allocation7 + $0x188] sm:$0xf]
        %v333 = vld [vmem:[#allocation7 + $0x18c] sm:$0xff]
        %v334 = vld [vmem:[#allocation7 + $0x194] sm:$0xff]
        %v335 = vld [vmem:[#allocation7 + $0x19c] sm:$0xff]
        %v336 = vld [vmem:[#allocation7 + $0x1a4] sm:$0xff]
        %v337 = vld [vmem:[#allocation7 + $0x1ac] sm:$0xf]
        %v338 = vld [vmem:[#allocation7 + $0x1b0] sm:$0xff]
        %v339 = vld [vmem:[#allocation7 + $0x1b8] sm:$0xff]
        %v340 = vld [vmem:[#allocation7 + $0x1c0] sm:$0xff]
        %v341 = vld [vmem:[#allocation7 + $0x1c8] sm:$0xff]
        %v342 = vld [vmem:[#allocation7 + $0x1d0] sm:$0xf]
        %v343 = vld [vmem:[#allocation7 + $0x1d4] sm:$0xff]
        %v344 = vld [vmem:[#allocation7 + $0x1dc] sm:$0xff]
        %v345 = vld [vmem:[#allocation7 + $0x1e4] sm:$0xff]
        %v346 = vld [vmem:[#allocation7 + $0x1ec] sm:$0xff]
        %v347 = vld [vmem:[#allocation7 + $0x1f4] sm:$0xf]
        %v348 = vld [vmem:[#allocation7 + $0x1f8] sm:$0xff]
        %v349 = vld [vmem:[#allocation7 + $0x200] sm:$0xff]
        %v350 = vld [vmem:[#allocation7 + $0x208] sm:$0xff]
        %v351 = vld [vmem:[#allocation7 + $0x210] sm:$0xff]
        %v352 = vld [vmem:[#allocation7 + $0x218] sm:$0xf]
        %v353 = vld [vmem:[#allocation7 + $0x21c] sm:$0xff]
        %v354 = vld [vmem:[#allocation7 + $0x224] sm:$0xff]
        %v355 = vld [vmem:[#allocation7 + $0x22c] sm:$0xff]
        %v356 = vld [vmem:[#allocation7 + $0x234] sm:$0xff]
        %v357 = vld [vmem:[#allocation7 + $0x23c] sm:$0xf]
        %v358 = vld [vmem:[#allocation7 + $0x240] sm:$0xff]
        %v359 = vld [vmem:[#allocation7 + $0x248] sm:$0xff]
        %v360 = vld [vmem:[#allocation7 + $0x250] sm:$0xff]
        %v361 = vld [vmem:[#allocation7 + $0x258] sm:$0xff]
        %v362 = vld [vmem:[#allocation7 + $0x260] sm:$0xf]
        %v363 = vld [vmem:[#allocation7 + $0x264] sm:$0xff]
        %v364 = vld [vmem:[#allocation7 + $0x26c] sm:$0xff]
        %v365 = vld [vmem:[#allocation7 + $0x274] sm:$0xff]
        %v366 = vld [vmem:[#allocation7 + $0x27c] sm:$0xff]
        %v367 = vld [vmem:[#allocation7 + $0x284] sm:$0xf]
        %v368 = vld [vmem:[#allocation7 + $0x288] sm:$0xff]
        %v369 = vld [vmem:[#allocation7 + $0x290] sm:$0xff]
        %v370 = vld [vmem:[#allocation7 + $0x298] sm:$0xff]
        %v371 = vld [vmem:[#allocation7 + $0x2a0] sm:$0xff]
        %v372 = vld [vmem:[#allocation7 + $0x2a8] sm:$0xf]
        %v373 = vld [vmem:[#allocation7 + $0x2ac] sm:$0xff]
        %v374 = vld [vmem:[#allocation7 + $0x2b4] sm:$0xff]
        %v375 = vld [vmem:[#allocation7 + $0x2bc] sm:$0xff]
        %v376 = vld [vmem:[#allocation7 + $0x2c4] sm:$0xff]
        %v377 = vld [vmem:[#allocation7 + $0x2cc] sm:$0xf]
        %v378 = vld [vmem:[#allocation7 + $0x2d0] sm:$0xff]
        %v379 = vld [vmem:[#allocation7 + $0x2d8] sm:$0xff]
        %v380 = vld [vmem:[#allocation7 + $0x2e0] sm:$0xff]
        %v381 = vld [vmem:[#allocation7 + $0x2e8] sm:$0xff]
        %v382 = vld [vmem:[#allocation7 + $0x2f0] sm:$0xf]
        %v383 = vld [vmem:[#allocation7 + $0x2f4] sm:$0xff]
        %v384 = vld [vmem:[#allocation7 + $0x2fc] sm:$0xff]
        %v385 = vld [vmem:[#allocation7 + $0x304] sm:$0xff]
        %v386 = vld [vmem:[#allocation7 + $0x30c] sm:$0xff]
        %v387 = vld [vmem:[#allocation7 + $0x314] sm:$0xf]
        %v388 = vld [vmem:[#allocation7 + $0x318] sm:$0xff]
        %v389 = vld [vmem:[#allocation7 + $0x320] sm:$0xff]
        %v390 = vld [vmem:[#allocation7 + $0x328] sm:$0xff]
        %v391 = vld [vmem:[#allocation7 + $0x330] sm:$0xff]
        %v392 = vld [vmem:[#allocation7 + $0x338] sm:$0xf]
        %v393 = vld [vmem:[#allocation7 + $0x33c] sm:$0xff]
        %v394 = vld [vmem:[#allocation7 + $0x344] sm:$0xff]
        %v395 = vld [vmem:[#allocation7 + $0x34c] sm:$0xff]
        %v396 = vld [vmem:[#allocation7 + $0x354] sm:$0xff]
        %v397 = vld [vmem:[#allocation7 + $0x35c] sm:$0xf]
        %v398 = vld [vmem:[#allocation7 + $0x360] sm:$0xff]
        %v399 = vld [vmem:[#allocation7 + $0x368] sm:$0xff]
        %v400 = vld [vmem:[#allocation7 + $0x370] sm:$0xff]
        %v401 = vld [vmem:[#allocation7 + $0x378] sm:$0xff]
        %v402 = vld [vmem:[#allocation7 + $0x380] sm:$0xf]
        %v403 = vld [vmem:[#allocation7 + $0x384] sm:$0xff]
        %v404 = vld [vmem:[#allocation7 + $0x38c] sm:$0xff]
        %v405 = vld [vmem:[#allocation7 + $0x394] sm:$0xff]
        %v406 = vld [vmem:[#allocation7 + $0x39c] sm:$0xff]
        %v407 = vld [vmem:[#allocation7 + $0x3a4] sm:$0xf]
        %v408 = vld [vmem:[#allocation7 + $0x3a8] sm:$0xff]
        %v409 = vld [vmem:[#allocation7 + $0x3b0] sm:$0xff]
        %v410 = vld [vmem:[#allocation7 + $0x3b8] sm:$0xff]
        %v411 = vld [vmem:[#allocation7 + $0x3c0] sm:$0xff]
        %v412 = vld [vmem:[#allocation7 + $0x3c8] sm:$0xf]
        %v413 = vld [vmem:[#allocation7 + $0x3cc] sm:$0xff]
        %v414 = vld [vmem:[#allocation7 + $0x3d4] sm:$0xff]
        %v415 = vld [vmem:[#allocation7 + $0x3dc] sm:$0xff]
        %v416 = vld [vmem:[#allocation7 + $0x3e4] sm:$0xff]
        %v417 = vld [vmem:[#allocation7 + $0x3ec] sm:$0xf]
        %v418 = vld [vmem:[#allocation7 + $0x3f0] sm:$0xff]
        %v419 = vld [vmem:[#allocation7 + $0x3f8] sm:$0xff]
        %v420 = vld [vmem:[#allocation7 + $0x400] sm:$0xff]
        %v421 = vld [vmem:[#allocation7 + $0x408] sm:$0xff]
        %v422 = vld [vmem:[#allocation7 + $0x410] sm:$0xf]
        %v423 = vld [vmem:[#allocation7 + $0x414] sm:$0xff]
        %v424 = vld [vmem:[#allocation7 + $0x41c] sm:$0xff]
        %v425 = vld [vmem:[#allocation7 + $0x424] sm:$0xff]
        %v426 = vld [vmem:[#allocation7 + $0x42c] sm:$0xff]
        %v427 = vld [vmem:[#allocation7 + $0x434] sm:$0xf]
        %v428 = vld [vmem:[#allocation7 + $0x438] sm:$0xff]
        %v429 = vld [vmem:[#allocation7 + $0x440] sm:$0xff]
        %v430 = vld [vmem:[#allocation7 + $0x448] sm:$0xff]
        %v431 = vld [vmem:[#allocation7 + $0x450] sm:$0xff]
        %v432 = vld [vmem:[#allocation7 + $0x458] sm:$0xf]
        %v433 = vld [vmem:[#allocation7 + $0x45c] sm:$0xff]
        %v434 = vld [vmem:[#allocation7 + $0x464] sm:$0xff]
        %v435 = vld [vmem:[#allocation7 + $0x46c] sm:$0xff]
        %v436 = vld [vmem:[#allocation7 + $0x474] sm:$0xff]
        %v437 = vld [vmem:[#allocation7 + $0x47c] sm:$0xf]
        %v438 = vld [vmem:[#allocation7 + $0x480] sm:$0xff]
        %v439 = vld [vmem:[#allocation7 + $0x488] sm:$0xff]
        %v440 = vld [vmem:[#allocation7 + $0x490] sm:$0xff]
        %v441 = vld [vmem:[#allocation7 + $0x498] sm:$0xff]
        %v442 = vld [vmem:[#allocation7 + $0x4a0] sm:$0xf]
        %v443 = vld [vmem:[#allocation7 + $0x4a4] sm:$0xff]
        %v444 = vld [vmem:[#allocation7 + $0x4ac] sm:$0xff]
        %v445 = vld [vmem:[#allocation7 + $0x4b4] sm:$0xff]
        %v446 = vld [vmem:[#allocation7 + $0x4bc] sm:$0xff]
        %v447 = vld [vmem:[#allocation7 + $0x4c4] sm:$0xf]
        %v448 = vld [vmem:[#allocation7 + $0x4c8] sm:$0xff]
        %v449 = vld [vmem:[#allocation7 + $0x4d0] sm:$0xff]
        %v450 = vld [vmem:[#allocation7 + $0x4d8] sm:$0xff]
        %v451 = vld [vmem:[#allocation7 + $0x4e0] sm:$0xff]
        %v452 = vld [vmem:[#allocation7 + $0x4e8] sm:$0xf]
        %v453 = vld [vmem:[#allocation7 + $0x4ec] sm:$0xff]
        %v454 = vld [vmem:[#allocation7 + $0x4f4] sm:$0xff]
        %v455 = vld [vmem:[#allocation7 + $0x4fc] sm:$0xff]
        %v456 = vld [vmem:[#allocation7 + $0x504] sm:$0xff]
        %v457 = vld [vmem:[#allocation7 + $0x50c] sm:$0xf]
        %v458 = vld [vmem:[#allocation7 + $0x510] sm:$0xff]
        %v459 = vld [vmem:[#allocation7 + $0x518] sm:$0xff]
        %v460 = vld [vmem:[#allocation7 + $0x520] sm:$0xff]
        %v461 = vld [vmem:[#allocation7 + $0x528] sm:$0xff]
        %v462 = vld [vmem:[#allocation7 + $0x530] sm:$0xf]
        %v463 = vld [vmem:[#allocation7 + $0x534] sm:$0xff]
        %v464 = vld [vmem:[#allocation7 + $0x53c] sm:$0xff]
        %v465 = vld [vmem:[#allocation7 + $0x544] sm:$0xff]
        %v466 = vld [vmem:[#allocation7 + $0x54c] sm:$0xff]
        %v467 = vld [vmem:[#allocation7 + $0x554] sm:$0xf]
        %v468 = vld [vmem:[#allocation7 + $0x558] sm:$0xff]
        %v469 = vld [vmem:[#allocation7 + $0x560] sm:$0xff]
        %v470 = vld [vmem:[#allocation7 + $0x568] sm:$0xff]
        %v471 = vld [vmem:[#allocation7 + $0x570] sm:$0xff]
        %v472 = vld [vmem:[#allocation7 + $0x578] sm:$0xf]
        %v473 = vld [vmem:[#allocation7 + $0x57c] sm:$0xff]
        %v474 = vld [vmem:[#allocation7 + $0x584] sm:$0xff]
        %v475 = vld [vmem:[#allocation7 + $0x58c] sm:$0xff]
        %v476 = vld [vmem:[#allocation7 + $0x594] sm:$0xff]
        %v477 = vld [vmem:[#allocation7 + $0x59c] sm:$0xf]
        %v478 = vld [vmem:[#allocation7 + $0x5a0] sm:$0xff]
        %v479 = vld [vmem:[#allocation7 + $0x5a8] sm:$0xff]
        %v480 = vld [vmem:[#allocation7 + $0x5b0] sm:$0xff]
        %v481 = vld [vmem:[#allocation7 + $0x5b8] sm:$0xff]
        %v482 = vld [vmem:[#allocation7 + $0x5c0] sm:$0xf]
        %v483 = vld [vmem:[#allocation7 + $0x5c4] sm:$0xff]
        %v484 = vld [vmem:[#allocation7 + $0x5cc] sm:$0xff]
        %v485 = vld [vmem:[#allocation7 + $0x5d4] sm:$0xff]
        %v486 = vld [vmem:[#allocation7 + $0x5dc] sm:$0xff]
        %v487 = vld [vmem:[#allocation7 + $0x5e4] sm:$0xf]
        %v488 = vld [vmem:[#allocation7 + $0x5e8] sm:$0xff]
        %v489 = vld [vmem:[#allocation7 + $0x5f0] sm:$0xff]
        %v490 = vld [vmem:[#allocation7 + $0x5f8] sm:$0xff]
        %v491 = vld [vmem:[#allocation7 + $0x600] sm:$0xff]
        %v492 = vld [vmem:[#allocation7 + $0x608] sm:$0xf]
        %v493 = vld [vmem:[#allocation7 + $0x60c] sm:$0xff]
        %v494 = vld [vmem:[#allocation7 + $0x614] sm:$0xff]
        %v495 = vld [vmem:[#allocation7 + $0x61c] sm:$0xff]
        %v496 = vld [vmem:[#allocation7 + $0x624] sm:$0xff]
        %v497 = vld [vmem:[#allocation7 + $0x62c] sm:$0xf]
        %v498 = vld [vmem:[#allocation7 + $0x630] sm:$0xff]
        %v499 = vld [vmem:[#allocation7 + $0x638] sm:$0xff]
        %v500 = vld [vmem:[#allocation7 + $0x640] sm:$0xff]
        %v501 = vld [vmem:[#allocation7 + $0x648] sm:$0xff]
        %v502 = vld [vmem:[#allocation7 + $0x650] sm:$0xf]
        %v503 = vld [vmem:[#allocation7 + $0x654] sm:$0xff]
        %v504 = vld [vmem:[#allocation7 + $0x65c] sm:$0xff]
        %v505 = vld [vmem:[#allocation7 + $0x664] sm:$0xff]
        %v506 = vld [vmem:[#allocation7 + $0x66c] sm:$0xff]
        %v507 = vld [vmem:[#allocation7 + $0x674] sm:$0xf]
        %v508 = vld [vmem:[#allocation7 + $0x678] sm:$0xff]
        %v509 = vld [vmem:[#allocation7 + $0x680] sm:$0xff]
        %v510 = vld [vmem:[#allocation7 + $0x688] sm:$0xff]
        %v511 = vld [vmem:[#allocation7 + $0x690] sm:$0xff]
        %v512 = vld [vmem:[#allocation7 + $0x698] sm:$0xf]
        %v513 = vld [vmem:[#allocation7 + $0x69c] sm:$0xff]
        %v514 = vld [vmem:[#allocation7 + $0x6a4] sm:$0xff]
        %v515 = vld [vmem:[#allocation7 + $0x6ac] sm:$0xff]
        %v516 = vld [vmem:[#allocation7 + $0x6b4] sm:$0xff]
        %v517 = vld [vmem:[#allocation7 + $0x6bc] sm:$0xf]
        %v550 = vunpack.c.l.b16 %v246
        %v551 = vunpack.c.h.b16 %v246
        %v552 = vunpack.c.l.b16 %v247
        %v553 = vunpack.c.l.b16 %v248
        %v554 = vunpack.c.h.b16 %v248
        %v555 = vunpack.c.l.b16 %v249
        %v556 = vunpack.c.l.b16 %v250
        %v557 = vunpack.c.h.b16 %v250
        %v558 = vunpack.c.l.b16 %v251
        %v559 = vunpack.c.l.b16 %v252
        %v560 = vunpack.c.h.b16 %v252
        %v561 = vunpack.c.l.b16 %v253
        %v562 = vunpack.c.l.b16 %v254
        %v563 = vunpack.c.h.b16 %v254
        %v564 = vunpack.c.l.b16 %v255
        %v565 = vunpack.c.l.b16 %v256
        %v566 = vunpack.c.h.b16 %v256
        %v567 = vunpack.c.l.b16 %v257
        %v568 = vunpack.c.l.b16 %v258
        %v569 = vunpack.c.h.b16 %v258
        %v570 = vunpack.c.l.b16 %v259
        %v571 = vunpack.c.l.b16 %v260
        %v572 = vunpack.c.h.b16 %v260
        %v573 = vunpack.c.l.b16 %v261
        %v574 = vunpack.c.l.b16 %v262
        %v575 = vunpack.c.h.b16 %v262
        %v576 = vunpack.c.l.b16 %v263
        %v577 = vunpack.c.l.b16 %v264
        %v578 = vunpack.c.h.b16 %v264
        %v579 = vunpack.c.l.b16 %v265
        %v580 = vunpack.c.l.b16 %v266
        %v581 = vunpack.c.h.b16 %v266
        %v582 = vunpack.c.l.b16 %v267
        %v583 = vunpack.c.l.b16 %v268
        %v584 = vunpack.c.h.b16 %v268
        %v585 = vunpack.c.l.b16 %v269
        %v586 = vunpack.c.l.b16 %v270
        %v587 = vunpack.c.h.b16 %v270
        %v588 = vunpack.c.l.b16 %v271
        %v589 = vunpack.c.l.b16 %v272
        %v590 = vunpack.c.h.b16 %v272
        %v591 = vunpack.c.l.b16 %v273
        %v592 = vunpack.c.l.b16 %v274
        %v593 = vunpack.c.h.b16 %v274
        %v594 = vunpack.c.l.b16 %v275
        %v595 = vunpack.c.l.b16 %v276
        %v596 = vunpack.c.h.b16 %v276
        %v597 = vunpack.c.l.b16 %v277
        %v598 = vpack.c.b16 %v553, %v550
        %v599 = vpack.c.b16 %v554, %v551
        %v600 = vpack.c.b16 %v555, %v552
        %v601 = vpack.c.b16 %v559, %v556
        %v602 = vpack.c.b16 %v560, %v557
        %v603 = vpack.c.b16 %v561, %v558
        %v604 = vpack.c.b16 %v565, %v562
        %v605 = vpack.c.b16 %v566, %v563
        %v606 = vpack.c.b16 %v567, %v564
        %v607 = vpack.c.b16 %v571, %v568
        %v608 = vpack.c.b16 %v572, %v569
        %v609 = vpack.c.b16 %v573, %v570
        %v610 = vpack.c.b16 %v577, %v574
        %v611 = vpack.c.b16 %v578, %v575
        %v612 = vpack.c.b16 %v579, %v576
        %v613 = vpack.c.b16 %v583, %v580
        %v614 = vpack.c.b16 %v584, %v581
        %v615 = vpack.c.b16 %v585, %v582
        %v616 = vpack.c.b16 %v589, %v586
        %v617 = vpack.c.b16 %v590, %v587
        %v618 = vpack.c.b16 %v591, %v588
        %v619 = vpack.c.b16 %v595, %v592
        %v620 = vpack.c.b16 %v596, %v593
        %v621 = vpack.c.b16 %v597, %v594
        %v886 = vunpack.c.l.b16 %v278
        %v887 = vunpack.c.h.b16 %v278
        %v888 = vunpack.c.l.b16 %v279
        %v889 = vunpack.c.h.b16 %v279
        %v890 = vunpack.c.l.b16 %v280
        %v891 = vunpack.c.h.b16 %v280
        %v892 = vunpack.c.l.b16 %v281
        %v893 = vunpack.c.h.b16 %v281
        %v894 = vunpack.c.l.b16 %v282
        %v895 = vunpack.c.l.b16 %v283
        %v896 = vunpack.c.h.b16 %v283
        %v897 = vunpack.c.l.b16 %v284
        %v898 = vunpack.c.h.b16 %v284
        %v899 = vunpack.c.l.b16 %v285
        %v900 = vunpack.c.h.b16 %v285
        %v901 = vunpack.c.l.b16 %v286
        %v902 = vunpack.c.h.b16 %v286
        %v903 = vunpack.c.l.b16 %v287
        %v904 = vunpack.c.l.b16 %v288
        %v905 = vunpack.c.h.b16 %v288
        %v906 = vunpack.c.l.b16 %v289
        %v907 = vunpack.c.h.b16 %v289
        %v908 = vunpack.c.l.b16 %v290
        %v909 = vunpack.c.h.b16 %v290
        %v910 = vunpack.c.l.b16 %v291
        %v911 = vunpack.c.h.b16 %v291
        %v912 = vunpack.c.l.b16 %v292
        %v913 = vunpack.c.l.b16 %v293
        %v914 = vunpack.c.h.b16 %v293
        %v915 = vunpack.c.l.b16 %v294
        %v916 = vunpack.c.h.b16 %v294
        %v917 = vunpack.c.l.b16 %v295
        %v918 = vunpack.c.h.b16 %v295
        %v919 = vunpack.c.l.b16 %v296
        %v920 = vunpack.c.h.b16 %v296
        %v921 = vunpack.c.l.b16 %v297
        %v922 = vunpack.c.l.b16 %v298
        %v923 = vunpack.c.h.b16 %v298
        %v924 = vunpack.c.l.b16 %v299
        %v925 = vunpack.c.h.b16 %v299
        %v926 = vunpack.c.l.b16 %v300
        %v927 = vunpack.c.h.b16 %v300
        %v928 = vunpack.c.l.b16 %v301
        %v929 = vunpack.c.h.b16 %v301
        %v930 = vunpack.c.l.b16 %v302
        %v931 = vunpack.c.l.b16 %v303
        %v932 = vunpack.c.h.b16 %v303
        %v933 = vunpack.c.l.b16 %v304
        %v934 = vunpack.c.h.b16 %v304
        %v935 = vunpack.c.l.b16 %v305
        %v936 = vunpack.c.h.b16 %v305
        %v937 = vunpack.c.l.b16 %v306
        %v938 = vunpack.c.h.b16 %v306
        %v939 = vunpack.c.l.b16 %v307
        %v940 = vunpack.c.l.b16 %v308
        %v941 = vunpack.c.h.b16 %v308
        %v942 = vunpack.c.l.b16 %v309
        %v943 = vunpack.c.h.b16 %v309
        %v944 = vunpack.c.l.b16 %v310
        %v945 = vunpack.c.h.b16 %v310
        %v946 = vunpack.c.l.b16 %v311
        %v947 = vunpack.c.h.b16 %v311
        %v948 = vunpack.c.l.b16 %v312
        %v949 = vunpack.c.l.b16 %v313
        %v950 = vunpack.c.h.b16 %v313
        %v951 = vunpack.c.l.b16 %v314
        %v952 = vunpack.c.h.b16 %v314
        %v953 = vunpack.c.l.b16 %v315
        %v954 = vunpack.c.h.b16 %v315
        %v955 = vunpack.c.l.b16 %v316
        %v956 = vunpack.c.h.b16 %v316
        %v957 = vunpack.c.l.b16 %v317
        %v958 = vunpack.c.l.b16 %v318
        %v959 = vunpack.c.h.b16 %v318
        %v960 = vunpack.c.l.b16 %v319
        %v961 = vunpack.c.h.b16 %v319
        %v962 = vunpack.c.l.b16 %v320
        %v963 = vunpack.c.h.b16 %v320
        %v964 = vunpack.c.l.b16 %v321
        %v965 = vunpack.c.h.b16 %v321
        %v966 = vunpack.c.l.b16 %v322
        %v967 = vunpack.c.l.b16 %v323
        %v968 = vunpack.c.h.b16 %v323
        %v969 = vunpack.c.l.b16 %v324
        %v970 = vunpack.c.h.b16 %v324
        %v971 = vunpack.c.l.b16 %v325
        %v972 = vunpack.c.h.b16 %v325
        %v973 = vunpack.c.l.b16 %v326
        %v974 = vunpack.c.h.b16 %v326
        %v975 = vunpack.c.l.b16 %v327
        %v976 = vunpack.c.l.b16 %v328
        %v977 = vunpack.c.h.b16 %v328
        %v978 = vunpack.c.l.b16 %v329
        %v979 = vunpack.c.h.b16 %v329
        %v980 = vunpack.c.l.b16 %v330
        %v981 = vunpack.c.h.b16 %v330
        %v982 = vunpack.c.l.b16 %v331
        %v983 = vunpack.c.h.b16 %v331
        %v984 = vunpack.c.l.b16 %v332
        %v985 = vunpack.c.l.b16 %v333
        %v986 = vunpack.c.h.b16 %v333
        %v987 = vunpack.c.l.b16 %v334
        %v988 = vunpack.c.h.b16 %v334
        %v989 = vunpack.c.l.b16 %v335
        %v990 = vunpack.c.h.b16 %v335
        %v991 = vunpack.c.l.b16 %v336
        %v992 = vunpack.c.h.b16 %v336
        %v993 = vunpack.c.l.b16 %v337
        %v994 = vunpack.c.l.b16 %v338
        %v995 = vunpack.c.h.b16 %v338
        %v996 = vunpack.c.l.b16 %v339
        %v997 = vunpack.c.h.b16 %v339
        %v998 = vunpack.c.l.b16 %v340
        %v999 = vunpack.c.h.b16 %v340
        %v1000 = vunpack.c.l.b16 %v341
        %v1001 = vunpack.c.h.b16 %v341
        %v1002 = vunpack.c.l.b16 %v342
        %v1003 = vunpack.c.l.b16 %v343
        %v1004 = vunpack.c.h.b16 %v343
        %v1005 = vunpack.c.l.b16 %v344
        %v1006 = vunpack.c.h.b16 %v344
        %v1007 = vunpack.c.l.b16 %v345
        %v1008 = vunpack.c.h.b16 %v345
        %v1009 = vunpack.c.l.b16 %v346
        %v1010 = vunpack.c.h.b16 %v346
        %v1011 = vunpack.c.l.b16 %v347
        %v1012 = vunpack.c.l.b16 %v348
        %v1013 = vunpack.c.h.b16 %v348
        %v1014 = vunpack.c.l.b16 %v349
        %v1015 = vunpack.c.h.b16 %v349
        %v1016 = vunpack.c.l.b16 %v350
        %v1017 = vunpack.c.h.b16 %v350
        %v1018 = vunpack.c.l.b16 %v351
        %v1019 = vunpack.c.h.b16 %v351
        %v1020 = vunpack.c.l.b16 %v352
        %v1021 = vunpack.c.l.b16 %v353
        %v1022 = vunpack.c.h.b16 %v353
        %v1023 = vunpack.c.l.b16 %v354
        %v1024 = vunpack.c.h.b16 %v354
        %v1025 = vunpack.c.l.b16 %v355
        %v1026 = vunpack.c.h.b16 %v355
        %v1027 = vunpack.c.l.b16 %v356
        %v1028 = vunpack.c.h.b16 %v356
        %v1029 = vunpack.c.l.b16 %v357
        %v1030 = vunpack.c.l.b16 %v358
        %v1031 = vunpack.c.h.b16 %v358
        %v1032 = vunpack.c.l.b16 %v359
        %v1033 = vunpack.c.h.b16 %v359
        %v1034 = vunpack.c.l.b16 %v360
        %v1035 = vunpack.c.h.b16 %v360
        %v1036 = vunpack.c.l.b16 %v361
        %v1037 = vunpack.c.h.b16 %v361
        %v1038 = vunpack.c.l.b16 %v362
        %v1039 = vunpack.c.l.b16 %v363
        %v1040 = vunpack.c.h.b16 %v363
        %v1041 = vunpack.c.l.b16 %v364
        %v1042 = vunpack.c.h.b16 %v364
        %v1043 = vunpack.c.l.b16 %v365
        %v1044 = vunpack.c.h.b16 %v365
        %v1045 = vunpack.c.l.b16 %v366
        %v1046 = vunpack.c.h.b16 %v366
        %v1047 = vunpack.c.l.b16 %v367
        %v1048 = vunpack.c.l.b16 %v368
        %v1049 = vunpack.c.h.b16 %v368
        %v1050 = vunpack.c.l.b16 %v369
        %v1051 = vunpack.c.h.b16 %v369
        %v1052 = vunpack.c.l.b16 %v370
        %v1053 = vunpack.c.h.b16 %v370
        %v1054 = vunpack.c.l.b16 %v371
        %v1055 = vunpack.c.h.b16 %v371
        %v1056 = vunpack.c.l.b16 %v372
        %v1057 = vunpack.c.l.b16 %v373
        %v1058 = vunpack.c.h.b16 %v373
        %v1059 = vunpack.c.l.b16 %v374
        %v1060 = vunpack.c.h.b16 %v374
        %v1061 = vunpack.c.l.b16 %v375
        %v1062 = vunpack.c.h.b16 %v375
        %v1063 = vunpack.c.l.b16 %v376
        %v1064 = vunpack.c.h.b16 %v376
        %v1065 = vunpack.c.l.b16 %v377
        %v1066 = vunpack.c.l.b16 %v378
        %v1067 = vunpack.c.h.b16 %v378
        %v1068 = vunpack.c.l.b16 %v379
        %v1069 = vunpack.c.h.b16 %v379
        %v1070 = vunpack.c.l.b16 %v380
        %v1071 = vunpack.c.h.b16 %v380
        %v1072 = vunpack.c.l.b16 %v381
        %v1073 = vunpack.c.h.b16 %v381
        %v1074 = vunpack.c.l.b16 %v382
        %v1075 = vunpack.c.l.b16 %v383
        %v1076 = vunpack.c.h.b16 %v383
        %v1077 = vunpack.c.l.b16 %v384
        %v1078 = vunpack.c.h.b16 %v384
        %v1079 = vunpack.c.l.b16 %v385
        %v1080 = vunpack.c.h.b16 %v385
        %v1081 = vunpack.c.l.b16 %v386
        %v1082 = vunpack.c.h.b16 %v386
        %v1083 = vunpack.c.l.b16 %v387
        %v1084 = vunpack.c.l.b16 %v388
        %v1085 = vunpack.c.h.b16 %v388
        %v1086 = vunpack.c.l.b16 %v389
        %v1087 = vunpack.c.h.b16 %v389
        %v1088 = vunpack.c.l.b16 %v390
        %v1089 = vunpack.c.h.b16 %v390
        %v1090 = vunpack.c.l.b16 %v391
        %v1091 = vunpack.c.h.b16 %v391
        %v1092 = vunpack.c.l.b16 %v392
        %v1093 = vunpack.c.l.b16 %v393
        %v1094 = vunpack.c.h.b16 %v393
        %v1095 = vunpack.c.l.b16 %v394
        %v1096 = vunpack.c.h.b16 %v394
        %v1097 = vunpack.c.l.b16 %v395
        %v1098 = vunpack.c.h.b16 %v395
        %v1099 = vunpack.c.l.b16 %v396
        %v1100 = vunpack.c.h.b16 %v396
        %v1101 = vunpack.c.l.b16 %v397
        %v1102 = vunpack.c.l.b16 %v398
        %v1103 = vunpack.c.h.b16 %v398
        %v1104 = vunpack.c.l.b16 %v399
        %v1105 = vunpack.c.h.b16 %v399
        %v1106 = vunpack.c.l.b16 %v400
        %v1107 = vunpack.c.h.b16 %v400
        %v1108 = vunpack.c.l.b16 %v401
        %v1109 = vunpack.c.h.b16 %v401
        %v1110 = vunpack.c.l.b16 %v402
        %v1111 = vunpack.c.l.b16 %v403
        %v1112 = vunpack.c.h.b16 %v403
        %v1113 = vunpack.c.l.b16 %v404
        %v1114 = vunpack.c.h.b16 %v404
        %v1115 = vunpack.c.l.b16 %v405
        %v1116 = vunpack.c.h.b16 %v405
        %v1117 = vunpack.c.l.b16 %v406
        %v1118 = vunpack.c.h.b16 %v406
        %v1119 = vunpack.c.l.b16 %v407
        %v1120 = vunpack.c.l.b16 %v408
        %v1121 = vunpack.c.h.b16 %v408
        %v1122 = vunpack.c.l.b16 %v409
        %v1123 = vunpack.c.h.b16 %v409
        %v1124 = vunpack.c.l.b16 %v410
        %v1125 = vunpack.c.h.b16 %v410
        %v1126 = vunpack.c.l.b16 %v411
        %v1127 = vunpack.c.h.b16 %v411
        %v1128 = vunpack.c.l.b16 %v412
        %v1129 = vunpack.c.l.b16 %v413
        %v1130 = vunpack.c.h.b16 %v413
        %v1131 = vunpack.c.l.b16 %v414
        %v1132 = vunpack.c.h.b16 %v414
        %v1133 = vunpack.c.l.b16 %v415
        %v1134 = vunpack.c.h.b16 %v415
        %v1135 = vunpack.c.l.b16 %v416
        %v1136 = vunpack.c.h.b16 %v416
        %v1137 = vunpack.c.l.b16 %v417
        %v1138 = vunpack.c.l.b16 %v418
        %v1139 = vunpack.c.h.b16 %v418
        %v1140 = vunpack.c.l.b16 %v419
        %v1141 = vunpack.c.h.b16 %v419
        %v1142 = vunpack.c.l.b16 %v420
        %v1143 = vunpack.c.h.b16 %v420
        %v1144 = vunpack.c.l.b16 %v421
        %v1145 = vunpack.c.h.b16 %v421
        %v1146 = vunpack.c.l.b16 %v422
        %v1147 = vunpack.c.l.b16 %v423
        %v1148 = vunpack.c.h.b16 %v423
        %v1149 = vunpack.c.l.b16 %v424
        %v1150 = vunpack.c.h.b16 %v424
        %v1151 = vunpack.c.l.b16 %v425
        %v1152 = vunpack.c.h.b16 %v425
        %v1153 = vunpack.c.l.b16 %v426
        %v1154 = vunpack.c.h.b16 %v426
        %v1155 = vunpack.c.l.b16 %v427
        %v1156 = vunpack.c.l.b16 %v428
        %v1157 = vunpack.c.h.b16 %v428
        %v1158 = vunpack.c.l.b16 %v429
        %v1159 = vunpack.c.h.b16 %v429
        %v1160 = vunpack.c.l.b16 %v430
        %v1161 = vunpack.c.h.b16 %v430
        %v1162 = vunpack.c.l.b16 %v431
        %v1163 = vunpack.c.h.b16 %v431
        %v1164 = vunpack.c.l.b16 %v432
        %v1165 = vunpack.c.l.b16 %v433
        %v1166 = vunpack.c.h.b16 %v433
        %v1167 = vunpack.c.l.b16 %v434
        %v1168 = vunpack.c.h.b16 %v434
        %v1169 = vunpack.c.l.b16 %v435
        %v1170 = vunpack.c.h.b16 %v435
        %v1171 = vunpack.c.l.b16 %v436
        %v1172 = vunpack.c.h.b16 %v436
        %v1173 = vunpack.c.l.b16 %v437
        %v1174 = vunpack.c.l.b16 %v438
        %v1175 = vunpack.c.h.b16 %v438
        %v1176 = vunpack.c.l.b16 %v439
        %v1177 = vunpack.c.h.b16 %v439
        %v1178 = vunpack.c.l.b16 %v440
        %v1179 = vunpack.c.h.b16 %v440
        %v1180 = vunpack.c.l.b16 %v441
        %v1181 = vunpack.c.h.b16 %v441
        %v1182 = vunpack.c.l.b16 %v442
        %v1183 = vunpack.c.l.b16 %v443
        %v1184 = vunpack.c.h.b16 %v443
        %v1185 = vunpack.c.l.b16 %v444
        %v1186 = vunpack.c.h.b16 %v444
        %v1187 = vunpack.c.l.b16 %v445
        %v1188 = vunpack.c.h.b16 %v445
        %v1189 = vunpack.c.l.b16 %v446
        %v1190 = vunpack.c.h.b16 %v446
        %v1191 = vunpack.c.l.b16 %v447
        %v1192 = vunpack.c.l.b16 %v448
        %v1193 = vunpack.c.h.b16 %v448
        %v1194 = vunpack.c.l.b16 %v449
        %v1195 = vunpack.c.h.b16 %v449
        %v1196 = vunpack.c.l.b16 %v450
        %v1197 = vunpack.c.h.b16 %v450
        %v1198 = vunpack.c.l.b16 %v451
        %v1199 = vunpack.c.h.b16 %v451
        %v1200 = vunpack.c.l.b16 %v452
        %v1201 = vunpack.c.l.b16 %v453
        %v1202 = vunpack.c.h.b16 %v453
        %v1203 = vunpack.c.l.b16 %v454
        %v1204 = vunpack.c.h.b16 %v454
        %v1205 = vunpack.c.l.b16 %v455
        %v1206 = vunpack.c.h.b16 %v455
        %v1207 = vunpack.c.l.b16 %v456
        %v1208 = vunpack.c.h.b16 %v456
        %v1209 = vunpack.c.l.b16 %v457
        %v1210 = vunpack.c.l.b16 %v458
        %v1211 = vunpack.c.h.b16 %v458
        %v1212 = vunpack.c.l.b16 %v459
        %v1213 = vunpack.c.h.b16 %v459
        %v1214 = vunpack.c.l.b16 %v460
        %v1215 = vunpack.c.h.b16 %v460
        %v1216 = vunpack.c.l.b16 %v461
        %v1217 = vunpack.c.h.b16 %v461
        %v1218 = vunpack.c.l.b16 %v462
        %v1219 = vunpack.c.l.b16 %v463
        %v1220 = vunpack.c.h.b16 %v463
        %v1221 = vunpack.c.l.b16 %v464
        %v1222 = vunpack.c.h.b16 %v464
        %v1223 = vunpack.c.l.b16 %v465
        %v1224 = vunpack.c.h.b16 %v465
        %v1225 = vunpack.c.l.b16 %v466
        %v1226 = vunpack.c.h.b16 %v466
        %v1227 = vunpack.c.l.b16 %v467
        %v1228 = vunpack.c.l.b16 %v468
        %v1229 = vunpack.c.h.b16 %v468
        %v1230 = vunpack.c.l.b16 %v469
        %v1231 = vunpack.c.h.b16 %v469
        %v1232 = vunpack.c.l.b16 %v470
        %v1233 = vunpack.c.h.b16 %v470
        %v1234 = vunpack.c.l.b16 %v471
        %v1235 = vunpack.c.h.b16 %v471
        %v1236 = vunpack.c.l.b16 %v472
        %v1237 = vunpack.c.l.b16 %v473
        %v1238 = vunpack.c.h.b16 %v473
        %v1239 = vunpack.c.l.b16 %v474
        %v1240 = vunpack.c.h.b16 %v474
        %v1241 = vunpack.c.l.b16 %v475
        %v1242 = vunpack.c.h.b16 %v475
        %v1243 = vunpack.c.l.b16 %v476
        %v1244 = vunpack.c.h.b16 %v476
        %v1245 = vunpack.c.l.b16 %v477
        %v1246 = vunpack.c.l.b16 %v478
        %v1247 = vunpack.c.h.b16 %v478
        %v1248 = vunpack.c.l.b16 %v479
        %v1249 = vunpack.c.h.b16 %v479
        %v1250 = vunpack.c.l.b16 %v480
        %v1251 = vunpack.c.h.b16 %v480
        %v1252 = vunpack.c.l.b16 %v481
        %v1253 = vunpack.c.h.b16 %v481
        %v1254 = vunpack.c.l.b16 %v482
        %v1255 = vunpack.c.l.b16 %v483
        %v1256 = vunpack.c.h.b16 %v483
        %v1257 = vunpack.c.l.b16 %v484
        %v1258 = vunpack.c.h.b16 %v484
        %v1259 = vunpack.c.l.b16 %v485
        %v1260 = vunpack.c.h.b16 %v485
        %v1261 = vunpack.c.l.b16 %v486
        %v1262 = vunpack.c.h.b16 %v486
        %v1263 = vunpack.c.l.b16 %v487
        %v1264 = vunpack.c.l.b16 %v488
        %v1265 = vunpack.c.h.b16 %v488
        %v1266 = vunpack.c.l.b16 %v489
        %v1267 = vunpack.c.h.b16 %v489
        %v1268 = vunpack.c.l.b16 %v490
        %v1269 = vunpack.c.h.b16 %v490
        %v1270 = vunpack.c.l.b16 %v491
        %v1271 = vunpack.c.h.b16 %v491
        %v1272 = vunpack.c.l.b16 %v492
        %v1273 = vunpack.c.l.b16 %v493
        %v1274 = vunpack.c.h.b16 %v493
        %v1275 = vunpack.c.l.b16 %v494
        %v1276 = vunpack.c.h.b16 %v494
        %v1277 = vunpack.c.l.b16 %v495
        %v1278 = vunpack.c.h.b16 %v495
        %v1279 = vunpack.c.l.b16 %v496
        %v1280 = vunpack.c.h.b16 %v496
        %v1281 = vunpack.c.l.b16 %v497
        %v1282 = vunpack.c.l.b16 %v498
        %v1283 = vunpack.c.h.b16 %v498
        %v1284 = vunpack.c.l.b16 %v499
        %v1285 = vunpack.c.h.b16 %v499
        %v1286 = vunpack.c.l.b16 %v500
        %v1287 = vunpack.c.h.b16 %v500
        %v1288 = vunpack.c.l.b16 %v501
        %v1289 = vunpack.c.h.b16 %v501
        %v1290 = vunpack.c.l.b16 %v502
        %v1291 = vunpack.c.l.b16 %v503
        %v1292 = vunpack.c.h.b16 %v503
        %v1293 = vunpack.c.l.b16 %v504
        %v1294 = vunpack.c.h.b16 %v504
        %v1295 = vunpack.c.l.b16 %v505
        %v1296 = vunpack.c.h.b16 %v505
        %v1297 = vunpack.c.l.b16 %v506
        %v1298 = vunpack.c.h.b16 %v506
        %v1299 = vunpack.c.l.b16 %v507
        %v1300 = vunpack.c.l.b16 %v508
        %v1301 = vunpack.c.h.b16 %v508
        %v1302 = vunpack.c.l.b16 %v509
        %v1303 = vunpack.c.h.b16 %v509
        %v1304 = vunpack.c.l.b16 %v510
        %v1305 = vunpack.c.h.b16 %v510
        %v1306 = vunpack.c.l.b16 %v511
        %v1307 = vunpack.c.h.b16 %v511
        %v1308 = vunpack.c.l.b16 %v512
        %v1309 = vunpack.c.l.b16 %v513
        %v1310 = vunpack.c.h.b16 %v513
        %v1311 = vunpack.c.l.b16 %v514
        %v1312 = vunpack.c.h.b16 %v514
        %v1313 = vunpack.c.l.b16 %v515
        %v1314 = vunpack.c.h.b16 %v515
        %v1315 = vunpack.c.l.b16 %v516
        %v1316 = vunpack.c.h.b16 %v516
        %v1317 = vunpack.c.l.b16 %v517
        %v1318 = vpack.c.b16 %v895, %v886
        %v1319 = vpack.c.b16 %v896, %v887
        %v1320 = vpack.c.b16 %v897, %v888
        %v1321 = vpack.c.b16 %v898, %v889
        %v1322 = vpack.c.b16 %v899, %v890
        %v1323 = vpack.c.b16 %v900, %v891
        %v1324 = vpack.c.b16 %v901, %v892
        %v1325 = vpack.c.b16 %v902, %v893
        %v1326 = vpack.c.b16 %v903, %v894
        %v1327 = vpack.c.b16 %v913, %v904
        %v1328 = vpack.c.b16 %v914, %v905
        %v1329 = vpack.c.b16 %v915, %v906
        %v1330 = vpack.c.b16 %v916, %v907
        %v1331 = vpack.c.b16 %v917, %v908
        %v1332 = vpack.c.b16 %v918, %v909
        %v1333 = vpack.c.b16 %v919, %v910
        %v1334 = vpack.c.b16 %v920, %v911
        %v1335 = vpack.c.b16 %v921, %v912
        %v1336 = vpack.c.b16 %v931, %v922
        %v1337 = vpack.c.b16 %v932, %v923
        %v1338 = vpack.c.b16 %v933, %v924
        %v1339 = vpack.c.b16 %v934, %v925
        %v1340 = vpack.c.b16 %v935, %v926
        %v1341 = vpack.c.b16 %v936, %v927
        %v1342 = vpack.c.b16 %v937, %v928
        %v1343 = vpack.c.b16 %v938, %v929
        %v1344 = vpack.c.b16 %v939, %v930
        %v1345 = vpack.c.b16 %v949, %v940
        %v1346 = vpack.c.b16 %v950, %v941
        %v1347 = vpack.c.b16 %v951, %v942
        %v1348 = vpack.c.b16 %v952, %v943
        %v1349 = vpack.c.b16 %v953, %v944
        %v1350 = vpack.c.b16 %v954, %v945
        %v1351 = vpack.c.b16 %v955, %v946
        %v1352 = vpack.c.b16 %v956, %v947
        %v1353 = vpack.c.b16 %v957, %v948
        %v1354 = vpack.c.b16 %v967, %v958
        %v1355 = vpack.c.b16 %v968, %v959
        %v1356 = vpack.c.b16 %v969, %v960
        %v1357 = vpack.c.b16 %v970, %v961
        %v1358 = vpack.c.b16 %v971, %v962
        %v1359 = vpack.c.b16 %v972, %v963
        %v1360 = vpack.c.b16 %v973, %v964
        %v1361 = vpack.c.b16 %v974, %v965
        %v1362 = vpack.c.b16 %v975, %v966
        %v1363 = vpack.c.b16 %v985, %v976
        %v1364 = vpack.c.b16 %v986, %v977
        %v1365 = vpack.c.b16 %v987, %v978
        %v1366 = vpack.c.b16 %v988, %v979
        %v1367 = vpack.c.b16 %v989, %v980
        %v1368 = vpack.c.b16 %v990, %v981
        %v1369 = vpack.c.b16 %v991, %v982
        %v1370 = vpack.c.b16 %v992, %v983
        %v1371 = vpack.c.b16 %v993, %v984
        %v1372 = vpack.c.b16 %v1003, %v994
        %v1373 = vpack.c.b16 %v1004, %v995
        %v1374 = vpack.c.b16 %v1005, %v996
        %v1375 = vpack.c.b16 %v1006, %v997
        %v1376 = vpack.c.b16 %v1007, %v998
        %v1377 = vpack.c.b16 %v1008, %v999
        %v1378 = vpack.c.b16 %v1009, %v1000
        %v1379 = vpack.c.b16 %v1010, %v1001
        %v1380 = vpack.c.b16 %v1011, %v1002
        %v1381 = vpack.c.b16 %v1021, %v1012
        %v1382 = vpack.c.b16 %v1022, %v1013
        %v1383 = vpack.c.b16 %v1023, %v1014
        %v1384 = vpack.c.b16 %v1024, %v1015
        %v1385 = vpack.c.b16 %v1025, %v1016
        %v1386 = vpack.c.b16 %v1026, %v1017
        %v1387 = vpack.c.b16 %v1027, %v1018
        %v1388 = vpack.c.b16 %v1028, %v1019
        %v1389 = vpack.c.b16 %v1029, %v1020
        %v1390 = vpack.c.b16 %v1039, %v1030
        %v1391 = vpack.c.b16 %v1040, %v1031
        %v1392 = vpack.c.b16 %v1041, %v1032
        %v1393 = vpack.c.b16 %v1042, %v1033
        %v1394 = vpack.c.b16 %v1043, %v1034
        %v1395 = vpack.c.b16 %v1044, %v1035
        %v1396 = vpack.c.b16 %v1045, %v1036
        %v1397 = vpack.c.b16 %v1046, %v1037
        %v1398 = vpack.c.b16 %v1047, %v1038
        %v1399 = vpack.c.b16 %v1057, %v1048
        %v1400 = vpack.c.b16 %v1058, %v1049
        %v1401 = vpack.c.b16 %v1059, %v1050
        %v1402 = vpack.c.b16 %v1060, %v1051
        %v1403 = vpack.c.b16 %v1061, %v1052
        %v1404 = vpack.c.b16 %v1062, %v1053
        %v1405 = vpack.c.b16 %v1063, %v1054
        %v1406 = vpack.c.b16 %v1064, %v1055
        %v1407 = vpack.c.b16 %v1065, %v1056
        %v1408 = vpack.c.b16 %v1075, %v1066
        %v1409 = vpack.c.b16 %v1076, %v1067
        %v1410 = vpack.c.b16 %v1077, %v1068
        %v1411 = vpack.c.b16 %v1078, %v1069
        %v1412 = vpack.c.b16 %v1079, %v1070
        %v1413 = vpack.c.b16 %v1080, %v1071
        %v1414 = vpack.c.b16 %v1081, %v1072
        %v1415 = vpack.c.b16 %v1082, %v1073
        %v1416 = vpack.c.b16 %v1083, %v1074
        %v1417 = vpack.c.b16 %v1093, %v1084
        %v1418 = vpack.c.b16 %v1094, %v1085
        %v1419 = vpack.c.b16 %v1095, %v1086
        %v1420 = vpack.c.b16 %v1096, %v1087
        %v1421 = vpack.c.b16 %v1097, %v1088
        %v1422 = vpack.c.b16 %v1098, %v1089
        %v1423 = vpack.c.b16 %v1099, %v1090
        %v1424 = vpack.c.b16 %v1100, %v1091
        %v1425 = vpack.c.b16 %v1101, %v1092
        %v1426 = vpack.c.b16 %v1111, %v1102
        %v1427 = vpack.c.b16 %v1112, %v1103
        %v1428 = vpack.c.b16 %v1113, %v1104
        %v1429 = vpack.c.b16 %v1114, %v1105
        %v1430 = vpack.c.b16 %v1115, %v1106
        %v1431 = vpack.c.b16 %v1116, %v1107
        %v1432 = vpack.c.b16 %v1117, %v1108
        %v1433 = vpack.c.b16 %v1118, %v1109
        %v1434 = vpack.c.b16 %v1119, %v1110
        %v1435 = vpack.c.b16 %v1129, %v1120
        %v1436 = vpack.c.b16 %v1130, %v1121
        %v1437 = vpack.c.b16 %v1131, %v1122
        %v1438 = vpack.c.b16 %v1132, %v1123
        %v1439 = vpack.c.b16 %v1133, %v1124
        %v1440 = vpack.c.b16 %v1134, %v1125
        %v1441 = vpack.c.b16 %v1135, %v1126
        %v1442 = vpack.c.b16 %v1136, %v1127
        %v1443 = vpack.c.b16 %v1137, %v1128
        %v1444 = vpack.c.b16 %v1147, %v1138
        %v1445 = vpack.c.b16 %v1148, %v1139
        %v1446 = vpack.c.b16 %v1149, %v1140
        %v1447 = vpack.c.b16 %v1150, %v1141
        %v1448 = vpack.c.b16 %v1151, %v1142
        %v1449 = vpack.c.b16 %v1152, %v1143
        %v1450 = vpack.c.b16 %v1153, %v1144
        %v1451 = vpack.c.b16 %v1154, %v1145
        %v1452 = vpack.c.b16 %v1155, %v1146
        %v1453 = vpack.c.b16 %v1165, %v1156
        %v1454 = vpack.c.b16 %v1166, %v1157
        %v1455 = vpack.c.b16 %v1167, %v1158
        %v1456 = vpack.c.b16 %v1168, %v1159
        %v1457 = vpack.c.b16 %v1169, %v1160
        %v1458 = vpack.c.b16 %v1170, %v1161
        %v1459 = vpack.c.b16 %v1171, %v1162
        %v1460 = vpack.c.b16 %v1172, %v1163
        %v1461 = vpack.c.b16 %v1173, %v1164
        %v1462 = vpack.c.b16 %v1183, %v1174
        %v1463 = vpack.c.b16 %v1184, %v1175
        %v1464 = vpack.c.b16 %v1185, %v1176
        %v1465 = vpack.c.b16 %v1186, %v1177
        %v1466 = vpack.c.b16 %v1187, %v1178
        %v1467 = vpack.c.b16 %v1188, %v1179
        %v1468 = vpack.c.b16 %v1189, %v1180
        %v1469 = vpack.c.b16 %v1190, %v1181
        %v1470 = vpack.c.b16 %v1191, %v1182
        %v1471 = vpack.c.b16 %v1201, %v1192
        %v1472 = vpack.c.b16 %v1202, %v1193
        %v1473 = vpack.c.b16 %v1203, %v1194
        %v1474 = vpack.c.b16 %v1204, %v1195
        %v1475 = vpack.c.b16 %v1205, %v1196
        %v1476 = vpack.c.b16 %v1206, %v1197
        %v1477 = vpack.c.b16 %v1207, %v1198
        %v1478 = vpack.c.b16 %v1208, %v1199
        %v1479 = vpack.c.b16 %v1209, %v1200
        %v1480 = vpack.c.b16 %v1219, %v1210
        %v1481 = vpack.c.b16 %v1220, %v1211
        %v1482 = vpack.c.b16 %v1221, %v1212
        %v1483 = vpack.c.b16 %v1222, %v1213
        %v1484 = vpack.c.b16 %v1223, %v1214
        %v1485 = vpack.c.b16 %v1224, %v1215
        %v1486 = vpack.c.b16 %v1225, %v1216
        %v1487 = vpack.c.b16 %v1226, %v1217
        %v1488 = vpack.c.b16 %v1227, %v1218
        %v1489 = vpack.c.b16 %v1237, %v1228
        %v1490 = vpack.c.b16 %v1238, %v1229
        %v1491 = vpack.c.b16 %v1239, %v1230
        %v1492 = vpack.c.b16 %v1240, %v1231
        %v1493 = vpack.c.b16 %v1241, %v1232
        %v1494 = vpack.c.b16 %v1242, %v1233
        %v1495 = vpack.c.b16 %v1243, %v1234
        %v1496 = vpack.c.b16 %v1244, %v1235
        %v1497 = vpack.c.b16 %v1245, %v1236
        %v1498 = vpack.c.b16 %v1255, %v1246
        %v1499 = vpack.c.b16 %v1256, %v1247
        %v1500 = vpack.c.b16 %v1257, %v1248
        %v1501 = vpack.c.b16 %v1258, %v1249
        %v1502 = vpack.c.b16 %v1259, %v1250
        %v1503 = vpack.c.b16 %v1260, %v1251
        %v1504 = vpack.c.b16 %v1261, %v1252
        %v1505 = vpack.c.b16 %v1262, %v1253
        %v1506 = vpack.c.b16 %v1263, %v1254
        %v1507 = vpack.c.b16 %v1273, %v1264
        %v1508 = vpack.c.b16 %v1274, %v1265
        %v1509 = vpack.c.b16 %v1275, %v1266
        %v1510 = vpack.c.b16 %v1276, %v1267
        %v1511 = vpack.c.b16 %v1277, %v1268
        %v1512 = vpack.c.b16 %v1278, %v1269
        %v1513 = vpack.c.b16 %v1279, %v1270
        %v1514 = vpack.c.b16 %v1280, %v1271
        %v1515 = vpack.c.b16 %v1281, %v1272
        %v1516 = vpack.c.b16 %v1291, %v1282
        %v1517 = vpack.c.b16 %v1292, %v1283
        %v1518 = vpack.c.b16 %v1293, %v1284
        %v1519 = vpack.c.b16 %v1294, %v1285
        %v1520 = vpack.c.b16 %v1295, %v1286
        %v1521 = vpack.c.b16 %v1296, %v1287
        %v1522 = vpack.c.b16 %v1297, %v1288
        %v1523 = vpack.c.b16 %v1298, %v1289
        %v1524 = vpack.c.b16 %v1299, %v1290
        %v1525 = vpack.c.b16 %v1309, %v1300
        %v1526 = vpack.c.b16 %v1310, %v1301
        %v1527 = vpack.c.b16 %v1311, %v1302
        %v1528 = vpack.c.b16 %v1312, %v1303
        %v1529 = vpack.c.b16 %v1313, %v1304
        %v1530 = vpack.c.b16 %v1314, %v1305
        %v1531 = vpack.c.b16 %v1315, %v1306
        %v1532 = vpack.c.b16 %v1316, %v1307
        %v1533 = vpack.c.b16 %v1317, %v1308
        %1750 = vmatprep.subr.bf16.mxu0 %v1319
        %1751 = vmatpush1.bf16.msra.mxu0 %v1318
        %1752 = vmatprep.subr.bf16.mxu0 %v1328
        %1753 = vmatpush1.bf16.msra.mxu0 %v1327
        %1754 = vmatprep.subr.bf16.mxu0 %v1337
        %1755 = vmatpush1.bf16.msra.mxu0 %v1336
        %1756 = vmatprep.subr.bf16.mxu0 %v1346
        %1757 = vmatpush1.bf16.msra.mxu0 %v1345
        %1758 = vmatprep.subr.bf16.mxu0 %v1355
        %1759 = vmatpush1.bf16.msra.mxu0 %v1354
        %1760 = vmatprep.subr.bf16.mxu0 %v1364
        %1761 = vmatpush1.bf16.msra.mxu0 %v1363
        %1762 = vmatprep.subr.bf16.mxu0 %v1373
        %1763 = vmatpush1.bf16.msra.mxu0 %v1372
        %1764 = vmatprep.subr.bf16.mxu0 %v1382
        %1765 = vmatpush1.bf16.msra.mxu0 %v1381
        %1766 = vmatprep.subr.bf16.mxu0 %v1391
        %1767 = vmatpush1.bf16.msra.mxu0 %v1390
        %1768 = vmatprep.subr.bf16.mxu0 %v1400
        %1769 = vmatpush1.bf16.msra.mxu0 %v1399
        %1770 = vmatprep.subr.bf16.mxu0 %v1409
        %1771 = vmatpush1.bf16.msra.mxu0 %v1408
        %1772 = vmatprep.subr.bf16.mxu0 %v1418
        %1773 = vmatpush1.bf16.msra.mxu0 %v1417
        %1774 = vmatprep.subr.bf16.mxu0 %v1427
        %1775 = vmatpush1.bf16.msra.mxu0 %v1426
        %1776 = vmatprep.subr.bf16.mxu0 %v1436
        %1777 = vmatpush1.bf16.msra.mxu0 %v1435
        %1778 = vmatprep.subr.bf16.mxu0 %v1445
        %1779 = vmatpush1.bf16.msra.mxu0 %v1444
        %1780 = vmatprep.subr.bf16.mxu0 %v1454
        %1781 = vmatpush1.bf16.msra.mxu0 %v1453
        %1782 = vmatprep.mubr.bf16.mxu0 %v599
        %1783 = vmatmul.mubr.bf16.gmra.mrb[0].mxu0 %v598
        %v1784 = vpop.f32.mrb[0].mxu0
        %v1785 = vadd.f32 0.0, %v1784
        %v1786 = vpop.f32.mrb[0].mxu0
        %v1787 = vadd.f32 0.0, %v1786
        %v1788 = vpop.f32.mrb[0].mxu0
        %v1789 = vadd.f32 0.0, %v1788
        %v1790 = vpop.f32.mrb[0].mxu0
        %v1791 = vadd.f32 0.0, %v1790
        %1792 = vmatprep.mubr.bf16.mxu0 %v602
        %1793 = vmatmul.mubr.bf16.gmra.mrb[0].mxu0 %v601
        %v1794 = vpop.f32.mrb[0].mxu0
        %v1795 = vadd.f32 0.0, %v1794
        %v1796 = vpop.f32.mrb[0].mxu0
        %v1797 = vadd.f32 0.0, %v1796
        %v1798 = vpop.f32.mrb[0].mxu0
        %v1799 = vadd.f32 0.0, %v1798
        %v1800 = vpop.f32.mrb[0].mxu0
        %v1801 = vadd.f32 0.0, %v1800
        %1802 = vmatprep.mubr.bf16.mxu0 %v605
        %1803 = vmatmul.mubr.bf16.gmra.mrb[0].mxu0 %v604
        %v1804 = vpop.f32.mrb[0].mxu0
        %v1805 = vadd.f32 0.0, %v1804
        %v1806 = vpop.f32.mrb[0].mxu0
        %v1807 = vadd.f32 0.0, %v1806
        %v1808 = vpop.f32.mrb[0].mxu0
        %v1809 = vadd.f32 0.0, %v1808
        %v1810 = vpop.f32.mrb[0].mxu0
        %v1811 = vadd.f32 0.0, %v1810
        %1812 = vmatprep.mubr.bf16.mxu0 %v608
        %1813 = vmatmul.mubr.bf16.gmra.mrb[0].mxu0 %v607
        %v1814 = vpop.f32.mrb[0].mxu0
        %v1815 = vadd.f32 0.0, %v1814
        %v1816 = vpop.f32.mrb[0].mxu0
        %v1817 = vadd.f32 0.0, %v1816
        %v1818 = vpop.f32.mrb[0].mxu0
        %v1819 = vadd.f32 0.0, %v1818
        %v1820 = vpop.f32.mrb[0].mxu0
        %v1821 = vadd.f32 0.0, %v1820
        %1822 = vmatprep.mubr.bf16.mxu0 %v611
        %1823 = vmatmul.mubr.bf16.gmra.mrb[0].mxu0 %v610
        %v1824 = vpop.f32.mrb[0].mxu0
        %v1825 = vadd.f32 0.0, %v1824
        %v1826 = vpop.f32.mrb[0].mxu0
        %v1827 = vadd.f32 0.0, %v1826
        %v1828 = vpop.f32.mrb[0].mxu0
        %v1829 = vadd.f32 0.0, %v1828
        %v1830 = vpop.f32.mrb[0].mxu0
        %v1831 = vadd.f32 0.0, %v1830
        %1832 = vmatprep.mubr.bf16.mxu0 %v614
        %1833 = vmatmul.mubr.bf16.gmra.mrb[0].mxu0 %v613
        %v1834 = vpop.f32.mrb[0].mxu0
        %v1835 = vadd.f32 0.0, %v1834
        %v1836 = vpop.f32.mrb[0].mxu0
        %v1837 = vadd.f32 0.0, %v1836
        %v1838 = vpop.f32.mrb[0].mxu0
        %v1839 = vadd.f32 0.0, %v1838
        %v1840 = vpop.f32.mrb[0].mxu0
        %v1841 = vadd.f32 0.0, %v1840
        %1842 = vmatprep.mubr.bf16.mxu0 %v617
        %1843 = vmatmul.mubr.bf16.gmra.mrb[0].mxu0 %v616
        %v1844 = vpop.f32.mrb[0].mxu0
        %v1845 = vadd.f32 0.0, %v1844
        %v1846 = vpop.f32.mrb[0].mxu0
        %v1847 = vadd.f32 0.0, %v1846
        %v1848 = vpop.f32.mrb[0].mxu0
        %v1849 = vadd.f32 0.0, %v1848
        %v1850 = vpop.f32.mrb[0].mxu0
        %v1851 = vadd.f32 0.0, %v1850
        %1852 = vmatprep.mubr.bf16.mxu0 %v620
        %1853 = vmatmul.mubr.bf16.gmra.mrb[0].mxu0 %v619
        %v1854 = vpop.f32.mrb[0].mxu0
        %v1855 = vadd.f32 0.0, %v1854
        %v1856 = vpop.f32.mrb[0].mxu0
        %v1857 = vadd.f32 0.0, %v1856
        %v1858 = vpop.f32.mrb[0].mxu0
        %v1859 = vadd.f32 0.0, %v1858
        %v1860 = vpop.f32.mrb[0].mxu0
        %v1861 = vadd.f32 0.0, %v1860
        %1862 = vdwg.mxu0
        %1863 = vmatprep.subr.bf16.mxu0 %v1463
        %1864 = vmatpush1.bf16.msra.mxu0 %v1462
        %1865 = vmatprep.subr.bf16.mxu0 %v1472
        %1866 = vmatpush1.bf16.msra.mxu0 %v1471
        %1867 = vmatprep.subr.bf16.mxu0 %v1481
        %1868 = vmatpush1.bf16.msra.mxu0 %v1480
        %1869 = vmatprep.subr.bf16.mxu0 %v1490
        %1870 = vmatpush1.bf16.msra.mxu0 %v1489
        %1871 = vmatprep.subr.bf16.mxu0 %v1499
        %1872 = vmatpush1.bf16.msra.mxu0 %v1498
        %1873 = vmatprep.subr.bf16.mxu0 %v1508
        %1874 = vmatpush1.bf16.msra.mxu0 %v1507
        %1875 = vmatprep.subr.bf16.mxu0 %v1517
        %1876 = vmatpush1.bf16.msra.mxu0 %v1516
        %1877 = vmatprep.subr.bf16.mxu0 %v1526
        %1878 = vmatpush1.bf16.msra.mxu0 %v1525
        %1879 = vmatprep.subr.bf16.mxu0 0
        %1880 = vmatpush1.bf16.msra.mxu0 0
        %1881 = vmatprep.subr.bf16.mxu0 0
        %1882 = vmatpush1.bf16.msra.mxu0 0
        %1883 = vmatprep.subr.bf16.mxu0 0
        %1884 = vmatpush1.bf16.msra.mxu0 0
        %1885 = vmatprep.subr.bf16.mxu0 0
        %1886 = vmatpush1.bf16.msra.mxu0 0
        %1887 = vmatprep.subr.bf16.mxu0 0
        %1888 = vmatpush1.bf16.msra.mxu0 0
        %1889 = vmatprep.subr.bf16.mxu0 0
        %1890 = vmatpush1.bf16.msra.mxu0 0
        %1891 = vmatprep.subr.bf16.mxu0 0
        %1892 = vmatpush1.bf16.msra.mxu0 0
        %1893 = vmatprep.subr.bf16.mxu0 0
        %1894 = vmatpush1.bf16.msra.mxu0 0
        %1895 = vmatprep.mubr.bf16.mxu0 0
        %1896 = vmatmul.mubr.bf16.gmra.mrb[0].mxu0 %v600
        %v1897 = vpop.f32.mrb[0].mxu0
        %v1898 = vadd.f32 %v1785, %v1897
        %v1899 = vpop.f32.mrb[0].mxu0
        %v1900 = vadd.f32 %v1787, %v1899
        %v1901 = vpop.f32.mrb[0].mxu0
        %v1902 = vadd.f32 %v1789, %v1901
        %v1903 = vpop.f32.mrb[0].mxu0
        %v1904 = vadd.f32 %v1791, %v1903
        %1905 = vmatprep.mubr.bf16.mxu0 0
        %1906 = vmatmul.mubr.bf16.gmra.mrb[0].mxu0 %v603
        %v1907 = vpop.f32.mrb[0].mxu0
        %v1908 = vadd.f32 %v1795, %v1907
        %v1909 = vpop.f32.mrb[0].mxu0
        %v1910 = vadd.f32 %v1797, %v1909
        %v1911 = vpop.f32.mrb[0].mxu0
        %v1912 = vadd.f32 %v1799, %v1911
        %v1913 = vpop.f32.mrb[0].mxu0
        %v1914 = vadd.f32 %v1801, %v1913
        %1915 = vmatprep.mubr.bf16.mxu0 0
        %1916 = vmatmul.mubr.bf16.gmra.mrb[0].mxu0 %v606
        %v1917 = vpop.f32.mrb[0].mxu0
        %v1918 = vadd.f32 %v1805, %v1917
        %v1919 = vpop.f32.mrb[0].mxu0
        %v1920 = vadd.f32 %v1807, %v1919
        %v1921 = vpop.f32.mrb[0].mxu0
        %v1922 = vadd.f32 %v1809, %v1921
        %v1923 = vpop.f32.mrb[0].mxu0
        %v1924 = vadd.f32 %v1811, %v1923
        %1925 = vmatprep.mubr.bf16.mxu0 0
        %1926 = vmatmul.mubr.bf16.gmra.mrb[0].mxu0 %v609
        %v1927 = vpop.f32.mrb[0].mxu0
        %v1928 = vadd.f32 %v1815, %v1927
        %v1929 = vpop.f32.mrb[0].mxu0
        %v1930 = vadd.f32 %v1817, %v1929
        %v1931 = vpop.f32.mrb[0].mxu0
        %v1932 = vadd.f32 %v1819, %v1931
        %v1933 = vpop.f32.mrb[0].mxu0
        %v1934 = vadd.f32 %v1821, %v1933
        %1935 = vmatprep.mubr.bf16.mxu0 0
        %1936 = vmatmul.mubr.bf16.gmra.mrb[0].mxu0 %v612
        %v1937 = vpop.f32.mrb[0].mxu0
        %v1938 = vadd.f32 %v1825, %v1937
        %v1939 = vpop.f32.mrb[0].mxu0
        %v1940 = vadd.f32 %v1827, %v1939
        %v1941 = vpop.f32.mrb[0].mxu0
        %v1942 = vadd.f32 %v1829, %v1941
        %v1943 = vpop.f32.mrb[0].mxu0
        %v1944 = vadd.f32 %v1831, %v1943
        %1945 = vmatprep.mubr.bf16.mxu0 0
        %1946 = vmatmul.mubr.bf16.gmra.mrb[0].mxu0 %v615
        %v1947 = vpop.f32.mrb[0].mxu0
        %v1948 = vadd.f32 %v1835, %v1947
        %v1949 = vpop.f32.mrb[0].mxu0
        %v1950 = vadd.f32 %v1837, %v1949
        %v1951 = vpop.f32.mrb[0].mxu0
        %v1952 = vadd.f32 %v1839, %v1951
        %v1953 = vpop.f32.mrb[0].mxu0
        %v1954 = vadd.f32 %v1841, %v1953
        %1955 = vmatprep.mubr.bf16.mxu0 0
        %1956 = vmatmul.mubr.bf16.gmra.mrb[0].mxu0 %v618
        %v1957 = vpop.f32.mrb[0].mxu0
        %v1958 = vadd.f32 %v1845, %v1957
        %v1959 = vpop.f32.mrb[0].mxu0
        %v1960 = vadd.f32 %v1847, %v1959
        %v1961 = vpop.f32.mrb[0].mxu0
        %v1962 = vadd.f32 %v1849, %v1961
        %v1963 = vpop.f32.mrb[0].mxu0
        %v1964 = vadd.f32 %v1851, %v1963
        %1965 = vmatprep.mubr.bf16.mxu0 0
        %1966 = vmatmul.mubr.bf16.gmra.mrb[0].mxu0 %v621
        %v1967 = vpop.f32.mrb[0].mxu0
        %v1968 = vadd.f32 %v1855, %v1967
        %v1969 = vpop.f32.mrb[0].mxu0
        %v1970 = vadd.f32 %v1857, %v1969
        %v1971 = vpop.f32.mrb[0].mxu0
        %v1972 = vadd.f32 %v1859, %v1971
        %v1973 = vpop.f32.mrb[0].mxu0
        %v1974 = vadd.f32 %v1861, %v1973
        %1975 = vdwg.mxu0
        %1976 = vmatprep.subr.bf16.mxu0 %v1321
        %1977 = vmatpush1.bf16.msra.mxu0 %v1320
        %1978 = vmatprep.subr.bf16.mxu0 %v1330
        %1979 = vmatpush1.bf16.msra.mxu0 %v1329
        %1980 = vmatprep.subr.bf16.mxu0 %v1339
        %1981 = vmatpush1.bf16.msra.mxu0 %v1338
        %1982 = vmatprep.subr.bf16.mxu0 %v1348
        %1983 = vmatpush1.bf16.msra.mxu0 %v1347
        %1984 = vmatprep.subr.bf16.mxu0 %v1357
        %1985 = vmatpush1.bf16.msra.mxu0 %v1356
        %1986 = vmatprep.subr.bf16.mxu0 %v1366
        %1987 = vmatpush1.bf16.msra.mxu0 %v1365
        %1988 = vmatprep.subr.bf16.mxu0 %v1375
        %1989 = vmatpush1.bf16.msra.mxu0 %v1374
        %1990 = vmatprep.subr.bf16.mxu0 %v1384
        %1991 = vmatpush1.bf16.msra.mxu0 %v1383
        %1992 = vmatprep.subr.bf16.mxu0 %v1393
        %1993 = vmatpush1.bf16.msra.mxu0 %v1392
        %1994 = vmatprep.subr.bf16.mxu0 %v1402
        %1995 = vmatpush1.bf16.msra.mxu0 %v1401
        %1996 = vmatprep.subr.bf16.mxu0 %v1411
        %1997 = vmatpush1.bf16.msra.mxu0 %v1410
        %1998 = vmatprep.subr.bf16.mxu0 %v1420
        %1999 = vmatpush1.bf16.msra.mxu0 %v1419
        %2000 = vmatprep.subr.bf16.mxu0 %v1429
        %2001 = vmatpush1.bf16.msra.mxu0 %v1428
        %2002 = vmatprep.subr.bf16.mxu0 %v1438
        %2003 = vmatpush1.bf16.msra.mxu0 %v1437
        %2004 = vmatprep.subr.bf16.mxu0 %v1447
        %2005 = vmatpush1.bf16.msra.mxu0 %v1446
        %2006 = vmatprep.subr.bf16.mxu0 %v1456
        %2007 = vmatpush1.bf16.msra.mxu0 %v1455
        %2008 = vmatprep.mubr.bf16.mxu0 %v599
        %2009 = vmatmul.mubr.bf16.gmra.mrb[0].mxu0 %v598
        %v2010 = vpop.f32.mrb[0].mxu0
        %v2011 = vadd.f32 0.0, %v2010
        %v2012 = vpop.f32.mrb[0].mxu0
        %v2013 = vadd.f32 0.0, %v2012
        %v2014 = vpop.f32.mrb[0].mxu0
        %v2015 = vadd.f32 0.0, %v2014
        %v2016 = vpop.f32.mrb[0].mxu0
        %v2017 = vadd.f32 0.0, %v2016
        %2018 = vmatprep.mubr.bf16.mxu0 %v602
        %2019 = vmatmul.mubr.bf16.gmra.mrb[0].mxu0 %v601
        %v2020 = vpop.f32.mrb[0].mxu0
        %v2021 = vadd.f32 0.0, %v2020
        %v2022 = vpop.f32.mrb[0].mxu0
        %v2023 = vadd.f32 0.0, %v2022
        %v2024 = vpop.f32.mrb[0].mxu0
        %v2025 = vadd.f32 0.0, %v2024
        %v2026 = vpop.f32.mrb[0].mxu0
        %v2027 = vadd.f32 0.0, %v2026
        %2028 = vmatprep.mubr.bf16.mxu0 %v605
        %2029 = vmatmul.mubr.bf16.gmra.mrb[0].mxu0 %v604
        %v2030 = vpop.f32.mrb[0].mxu0
        %v2031 = vadd.f32 0.0, %v2030
        %v2032 = vpop.f32.mrb[0].mxu0
        %v2033 = vadd.f32 0.0, %v2032
        %v2034 = vpop.f32.mrb[0].mxu0
        %v2035 = vadd.f32 0.0, %v2034
        %v2036 = vpop.f32.mrb[0].mxu0
        %v2037 = vadd.f32 0.0, %v2036
        %2038 = vmatprep.mubr.bf16.mxu0 %v608
        %2039 = vmatmul.mubr.bf16.gmra.mrb[0].mxu0 %v607
        %v2040 = vpop.f32.mrb[0].mxu0
        %v2041 = vadd.f32 0.0, %v2040
        %v2042 = vpop.f32.mrb[0].mxu0
        %v2043 = vadd.f32 0.0, %v2042
        %v2044 = vpop.f32.mrb[0].mxu0
        %v2045 = vadd.f32 0.0, %v2044
        %v2046 = vpop.f32.mrb[0].mxu0
        %v2047 = vadd.f32 0.0, %v2046
        %2048 = vmatprep.mubr.bf16.mxu0 %v611
        %2049 = vmatmul.mubr.bf16.gmra.mrb[0].mxu0 %v610
        %v2050 = vpop.f32.mrb[0].mxu0
        %v2051 = vadd.f32 0.0, %v2050
        %v2052 = vpop.f32.mrb[0].mxu0
        %v2053 = vadd.f32 0.0, %v2052
        %v2054 = vpop.f32.mrb[0].mxu0
        %v2055 = vadd.f32 0.0, %v2054
        %v2056 = vpop.f32.mrb[0].mxu0
        %v2057 = vadd.f32 0.0, %v2056
        %2058 = vmatprep.mubr.bf16.mxu0 %v614
        %2059 = vmatmul.mubr.bf16.gmra.mrb[0].mxu0 %v613
        %v2060 = vpop.f32.mrb[0].mxu0
        %v2061 = vadd.f32 0.0, %v2060
        %v2062 = vpop.f32.mrb[0].mxu0
        %v2063 = vadd.f32 0.0, %v2062
        %v2064 = vpop.f32.mrb[0].mxu0
        %v2065 = vadd.f32 0.0, %v2064
        %v2066 = vpop.f32.mrb[0].mxu0
        %v2067 = vadd.f32 0.0, %v2066
        %2068 = vmatprep.mubr.bf16.mxu0 %v617
        %2069 = vmatmul.mubr.bf16.gmra.mrb[0].mxu0 %v616
        %v2070 = vpop.f32.mrb[0].mxu0
        %v2071 = vadd.f32 0.0, %v2070
        %v2072 = vpop.f32.mrb[0].mxu0
        %v2073 = vadd.f32 0.0, %v2072
        %v2074 = vpop.f32.mrb[0].mxu0
        %v2075 = vadd.f32 0.0, %v2074
        %v2076 = vpop.f32.mrb[0].mxu0
        %v2077 = vadd.f32 0.0, %v2076
        %2078 = vmatprep.mubr.bf16.mxu0 %v620
        %2079 = vmatmul.mubr.bf16.gmra.mrb[0].mxu0 %v619
        %v2080 = vpop.f32.mrb[0].mxu0
        %v2081 = vadd.f32 0.0, %v2080
        %v2082 = vpop.f32.mrb[0].mxu0
        %v2083 = vadd.f32 0.0, %v2082
        %v2084 = vpop.f32.mrb[0].mxu0
        %v2085 = vadd.f32 0.0, %v2084
        %v2086 = vpop.f32.mrb[0].mxu0
        %v2087 = vadd.f32 0.0, %v2086
        %2088 = vdwg.mxu0
        %2089 = vmatprep.subr.bf16.mxu0 %v1465
        %2090 = vmatpush1.bf16.msra.mxu0 %v1464
        %2091 = vmatprep.subr.bf16.mxu0 %v1474
        %2092 = vmatpush1.bf16.msra.mxu0 %v1473
        %2093 = vmatprep.subr.bf16.mxu0 %v1483
        %2094 = vmatpush1.bf16.msra.mxu0 %v1482
        %2095 = vmatprep.subr.bf16.mxu0 %v1492
        %2096 = vmatpush1.bf16.msra.mxu0 %v1491
        %2097 = vmatprep.subr.bf16.mxu0 %v1501
        %2098 = vmatpush1.bf16.msra.mxu0 %v1500
        %2099 = vmatprep.subr.bf16.mxu0 %v1510
        %2100 = vmatpush1.bf16.msra.mxu0 %v1509
        %2101 = vmatprep.subr.bf16.mxu0 %v1519
        %2102 = vmatpush1.bf16.msra.mxu0 %v1518
        %2103 = vmatprep.subr.bf16.mxu0 %v1528
        %2104 = vmatpush1.bf16.msra.mxu0 %v1527
        %2105 = vmatprep.subr.bf16.mxu0 0
        %2106 = vmatpush1.bf16.msra.mxu0 0
        %2107 = vmatprep.subr.bf16.mxu0 0
        %2108 = vmatpush1.bf16.msra.mxu0 0
        %2109 = vmatprep.subr.bf16.mxu0 0
        %2110 = vmatpush1.bf16.msra.mxu0 0
        %2111 = vmatprep.subr.bf16.mxu0 0
        %2112 = vmatpush1.bf16.msra.mxu0 0
        %2113 = vmatprep.subr.bf16.mxu0 0
        %2114 = vmatpush1.bf16.msra.mxu0 0
        %2115 = vmatprep.subr.bf16.mxu0 0
        %2116 = vmatpush1.bf16.msra.mxu0 0
        %2117 = vmatprep.subr.bf16.mxu0 0
        %2118 = vmatpush1.bf16.msra.mxu0 0
        %2119 = vmatprep.subr.bf16.mxu0 0
        %2120 = vmatpush1.bf16.msra.mxu0 0
        %2121 = vmatprep.mubr.bf16.mxu0 0
        %2122 = vmatmul.mubr.bf16.gmra.mrb[0].mxu0 %v600
        %v2123 = vpop.f32.mrb[0].mxu0
        %v2124 = vadd.f32 %v2011, %v2123
        %v2125 = vpop.f32.mrb[0].mxu0
        %v2126 = vadd.f32 %v2013, %v2125
        %v2127 = vpop.f32.mrb[0].mxu0
        %v2128 = vadd.f32 %v2015, %v2127
        %v2129 = vpop.f32.mrb[0].mxu0
        %v2130 = vadd.f32 %v2017, %v2129
        %2131 = vmatprep.mubr.bf16.mxu0 0
        %2132 = vmatmul.mubr.bf16.gmra.mrb[0].mxu0 %v603
        %v2133 = vpop.f32.mrb[0].mxu0
        %v2134 = vadd.f32 %v2021, %v2133
        %v2135 = vpop.f32.mrb[0].mxu0
        %v2136 = vadd.f32 %v2023, %v2135
        %v2137 = vpop.f32.mrb[0].mxu0
        %v2138 = vadd.f32 %v2025, %v2137
        %v2139 = vpop.f32.mrb[0].mxu0
        %v2140 = vadd.f32 %v2027, %v2139
        %2141 = vmatprep.mubr.bf16.mxu0 0
        %2142 = vmatmul.mubr.bf16.gmra.mrb[0].mxu0 %v606
        %v2143 = vpop.f32.mrb[0].mxu0
        %v2144 = vadd.f32 %v2031, %v2143
        %v2145 = vpop.f32.mrb[0].mxu0
        %v2146 = vadd.f32 %v2033, %v2145
        %v2147 = vpop.f32.mrb[0].mxu0
        %v2148 = vadd.f32 %v2035, %v2147
        %v2149 = vpop.f32.mrb[0].mxu0
        %v2150 = vadd.f32 %v2037, %v2149
        %2151 = vmatprep.mubr.bf16.mxu0 0
        %2152 = vmatmul.mubr.bf16.gmra.mrb[0].mxu0 %v609
        %v2153 = vpop.f32.mrb[0].mxu0
        %v2154 = vadd.f32 %v2041, %v2153
        %v2155 = vpop.f32.mrb[0].mxu0
        %v2156 = vadd.f32 %v2043, %v2155
        %v2157 = vpop.f32.mrb[0].mxu0
        %v2158 = vadd.f32 %v2045, %v2157
        %v2159 = vpop.f32.mrb[0].mxu0
        %v2160 = vadd.f32 %v2047, %v2159
        %2161 = vmatprep.mubr.bf16.mxu0 0
        %2162 = vmatmul.mubr.bf16.gmra.mrb[0].mxu0 %v612
        %v2163 = vpop.f32.mrb[0].mxu0
        %v2164 = vadd.f32 %v2051, %v2163
        %v2165 = vpop.f32.mrb[0].mxu0
        %v2166 = vadd.f32 %v2053, %v2165
        %v2167 = vpop.f32.mrb[0].mxu0
        %v2168 = vadd.f32 %v2055, %v2167
        %v2169 = vpop.f32.mrb[0].mxu0
        %v2170 = vadd.f32 %v2057, %v2169
        %2171 = vmatprep.mubr.bf16.mxu0 0
        %2172 = vmatmul.mubr.bf16.gmra.mrb[0].mxu0 %v615
        %v2173 = vpop.f32.mrb[0].mxu0
        %v2174 = vadd.f32 %v2061, %v2173
        %v2175 = vpop.f32.mrb[0].mxu0
        %v2176 = vadd.f32 %v2063, %v2175
        %v2177 = vpop.f32.mrb[0].mxu0
        %v2178 = vadd.f32 %v2065, %v2177
        %v2179 = vpop.f32.mrb[0].mxu0
        %v2180 = vadd.f32 %v2067, %v2179
        %2181 = vmatprep.mubr.bf16.mxu0 0
        %2182 = vmatmul.mubr.bf16.gmra.mrb[0].mxu0 %v618
        %v2183 = vpop.f32.mrb[0].mxu0
        %v2184 = vadd.f32 %v2071, %v2183
        %v2185 = vpop.f32.mrb[0].mxu0
        %v2186 = vadd.f32 %v2073, %v2185
        %v2187 = vpop.f32.mrb[0].mxu0
        %v2188 = vadd.f32 %v2075, %v2187
        %v2189 = vpop.f32.mrb[0].mxu0
        %v2190 = vadd.f32 %v2077, %v2189
        %2191 = vmatprep.mubr.bf16.mxu0 0
        %2192 = vmatmul.mubr.bf16.gmra.mrb[0].mxu0 %v621
        %v2193 = vpop.f32.mrb[0].mxu0
        %v2194 = vadd.f32 %v2081, %v2193
        %v2195 = vpop.f32.mrb[0].mxu0
        %v2196 = vadd.f32 %v2083, %v2195
        %v2197 = vpop.f32.mrb[0].mxu0
        %v2198 = vadd.f32 %v2085, %v2197
        %v2199 = vpop.f32.mrb[0].mxu0
        %v2200 = vadd.f32 %v2087, %v2199
        %2201 = vdwg.mxu0
        %2202 = vmatprep.subr.bf16.mxu0 %v1323
        %2203 = vmatpush1.bf16.msra.mxu0 %v1322
        %2204 = vmatprep.subr.bf16.mxu0 %v1332
        %2205 = vmatpush1.bf16.msra.mxu0 %v1331
        %2206 = vmatprep.subr.bf16.mxu0 %v1341
        %2207 = vmatpush1.bf16.msra.mxu0 %v1340
        %2208 = vmatprep.subr.bf16.mxu0 %v1350
        %2209 = vmatpush1.bf16.msra.mxu0 %v1349
        %2210 = vmatprep.subr.bf16.mxu0 %v1359
        %2211 = vmatpush1.bf16.msra.mxu0 %v1358
        %2212 = vmatprep.subr.bf16.mxu0 %v1368
        %2213 = vmatpush1.bf16.msra.mxu0 %v1367
        %2214 = vmatprep.subr.bf16.mxu0 %v1377
        %2215 = vmatpush1.bf16.msra.mxu0 %v1376
        %2216 = vmatprep.subr.bf16.mxu0 %v1386
        %2217 = vmatpush1.bf16.msra.mxu0 %v1385
        %2218 = vmatprep.subr.bf16.mxu0 %v1395
        %2219 = vmatpush1.bf16.msra.mxu0 %v1394
        %2220 = vmatprep.subr.bf16.mxu0 %v1404
        %2221 = vmatpush1.bf16.msra.mxu0 %v1403
        %2222 = vmatprep.subr.bf16.mxu0 %v1413
        %2223 = vmatpush1.bf16.msra.mxu0 %v1412
        %2224 = vmatprep.subr.bf16.mxu0 %v1422
        %2225 = vmatpush1.bf16.msra.mxu0 %v1421
        %2226 = vmatprep.subr.bf16.mxu0 %v1431
        %2227 = vmatpush1.bf16.msra.mxu0 %v1430
        %2228 = vmatprep.subr.bf16.mxu0 %v1440
        %2229 = vmatpush1.bf16.msra.mxu0 %v1439
        %2230 = vmatprep.subr.bf16.mxu0 %v1449
        %2231 = vmatpush1.bf16.msra.mxu0 %v1448
        %2232 = vmatprep.subr.bf16.mxu0 %v1458
        %2233 = vmatpush1.bf16.msra.mxu0 %v1457
        %2234 = vmatprep.mubr.bf16.mxu0 %v599
        %2235 = vmatmul.mubr.bf16.gmra.mrb[0].mxu0 %v598
        %v2236 = vpop.f32.mrb[0].mxu0
        %v2237 = vadd.f32 0.0, %v2236
        %v2238 = vpop.f32.mrb[0].mxu0
        %v2239 = vadd.f32 0.0, %v2238
        %v2240 = vpop.f32.mrb[0].mxu0
        %v2241 = vadd.f32 0.0, %v2240
        %v2242 = vpop.f32.mrb[0].mxu0
        %v2243 = vadd.f32 0.0, %v2242
        %2244 = vmatprep.mubr.bf16.mxu0 %v602
        %2245 = vmatmul.mubr.bf16.gmra.mrb[0].mxu0 %v601
        %v2246 = vpop.f32.mrb[0].mxu0
        %v2247 = vadd.f32 0.0, %v2246
        %v2248 = vpop.f32.mrb[0].mxu0
        %v2249 = vadd.f32 0.0, %v2248
        %v2250 = vpop.f32.mrb[0].mxu0
        %v2251 = vadd.f32 0.0, %v2250
        %v2252 = vpop.f32.mrb[0].mxu0
        %v2253 = vadd.f32 0.0, %v2252
        %2254 = vmatprep.mubr.bf16.mxu0 %v605
        %2255 = vmatmul.mubr.bf16.gmra.mrb[0].mxu0 %v604
        %v2256 = vpop.f32.mrb[0].mxu0
        %v2257 = vadd.f32 0.0, %v2256
        %v2258 = vpop.f32.mrb[0].mxu0
        %v2259 = vadd.f32 0.0, %v2258
        %v2260 = vpop.f32.mrb[0].mxu0
        %v2261 = vadd.f32 0.0, %v2260
        %v2262 = vpop.f32.mrb[0].mxu0
        %v2263 = vadd.f32 0.0, %v2262
        %2264 = vmatprep.mubr.bf16.mxu0 %v608
        %2265 = vmatmul.mubr.bf16.gmra.mrb[0].mxu0 %v607
        %v2266 = vpop.f32.mrb[0].mxu0
        %v2267 = vadd.f32 0.0, %v2266
        %v2268 = vpop.f32.mrb[0].mxu0
        %v2269 = vadd.f32 0.0, %v2268
        %v2270 = vpop.f32.mrb[0].mxu0
        %v2271 = vadd.f32 0.0, %v2270
        %v2272 = vpop.f32.mrb[0].mxu0
        %v2273 = vadd.f32 0.0, %v2272
        %2274 = vmatprep.mubr.bf16.mxu0 %v611
        %2275 = vmatmul.mubr.bf16.gmra.mrb[0].mxu0 %v610
        %v2276 = vpop.f32.mrb[0].mxu0
        %v2277 = vadd.f32 0.0, %v2276
        %v2278 = vpop.f32.mrb[0].mxu0
        %v2279 = vadd.f32 0.0, %v2278
        %v2280 = vpop.f32.mrb[0].mxu0
        %v2281 = vadd.f32 0.0, %v2280
        %v2282 = vpop.f32.mrb[0].mxu0
        %v2283 = vadd.f32 0.0, %v2282
        %2284 = vmatprep.mubr.bf16.mxu0 %v614
        %2285 = vmatmul.mubr.bf16.gmra.mrb[0].mxu0 %v613
        %v2286 = vpop.f32.mrb[0].mxu0
        %v2287 = vadd.f32 0.0, %v2286
        %v2288 = vpop.f32.mrb[0].mxu0
        %v2289 = vadd.f32 0.0, %v2288
        %v2290 = vpop.f32.mrb[0].mxu0
        %v2291 = vadd.f32 0.0, %v2290
        %v2292 = vpop.f32.mrb[0].mxu0
        %v2293 = vadd.f32 0.0, %v2292
        %2294 = vmatprep.mubr.bf16.mxu0 %v617
        %2295 = vmatmul.mubr.bf16.gmra.mrb[0].mxu0 %v616
        %v2296 = vpop.f32.mrb[0].mxu0
        %v2297 = vadd.f32 0.0, %v2296
        %v2298 = vpop.f32.mrb[0].mxu0
        %v2299 = vadd.f32 0.0, %v2298
        %v2300 = vpop.f32.mrb[0].mxu0
        %v2301 = vadd.f32 0.0, %v2300
        %v2302 = vpop.f32.mrb[0].mxu0
        %v2303 = vadd.f32 0.0, %v2302
        %2304 = vmatprep.mubr.bf16.mxu0 %v620
        %2305 = vmatmul.mubr.bf16.gmra.mrb[0].mxu0 %v619
        %v2306 = vpop.f32.mrb[0].mxu0
        %v2307 = vadd.f32 0.0, %v2306
        %v2308 = vpop.f32.mrb[0].mxu0
        %v2309 = vadd.f32 0.0, %v2308
        %v2310 = vpop.f32.mrb[0].mxu0
        %v2311 = vadd.f32 0.0, %v2310
        %v2312 = vpop.f32.mrb[0].mxu0
        %v2313 = vadd.f32 0.0, %v2312
        %2314 = vdwg.mxu0
        %2315 = vmatprep.subr.bf16.mxu0 %v1467
        %2316 = vmatpush1.bf16.msra.mxu0 %v1466
        %2317 = vmatprep.subr.bf16.mxu0 %v1476
        %2318 = vmatpush1.bf16.msra.mxu0 %v1475
        %2319 = vmatprep.subr.bf16.mxu0 %v1485
        %2320 = vmatpush1.bf16.msra.mxu0 %v1484
        %2321 = vmatprep.subr.bf16.mxu0 %v1494
        %2322 = vmatpush1.bf16.msra.mxu0 %v1493
        %2323 = vmatprep.subr.bf16.mxu0 %v1503
        %2324 = vmatpush1.bf16.msra.mxu0 %v1502
        %2325 = vmatprep.subr.bf16.mxu0 %v1512
        %2326 = vmatpush1.bf16.msra.mxu0 %v1511
        %2327 = vmatprep.subr.bf16.mxu0 %v1521
        %2328 = vmatpush1.bf16.msra.mxu0 %v1520
        %2329 = vmatprep.subr.bf16.mxu0 %v1530
        %2330 = vmatpush1.bf16.msra.mxu0 %v1529
        %2331 = vmatprep.subr.bf16.mxu0 0
        %2332 = vmatpush1.bf16.msra.mxu0 0
        %2333 = vmatprep.subr.bf16.mxu0 0
        %2334 = vmatpush1.bf16.msra.mxu0 0
        %2335 = vmatprep.subr.bf16.mxu0 0
        %2336 = vmatpush1.bf16.msra.mxu0 0
        %2337 = vmatprep.subr.bf16.mxu0 0
        %2338 = vmatpush1.bf16.msra.mxu0 0
        %2339 = vmatprep.subr.bf16.mxu0 0
        %2340 = vmatpush1.bf16.msra.mxu0 0
        %2341 = vmatprep.subr.bf16.mxu0 0
        %2342 = vmatpush1.bf16.msra.mxu0 0
        %2343 = vmatprep.subr.bf16.mxu0 0
        %2344 = vmatpush1.bf16.msra.mxu0 0
        %2345 = vmatprep.subr.bf16.mxu0 0
        %2346 = vmatpush1.bf16.msra.mxu0 0
        %2347 = vmatprep.mubr.bf16.mxu0 0
        %2348 = vmatmul.mubr.bf16.gmra.mrb[0].mxu0 %v600
        %v2349 = vpop.f32.mrb[0].mxu0
        %v2350 = vadd.f32 %v2237, %v2349
        %v2351 = vpop.f32.mrb[0].mxu0
        %v2352 = vadd.f32 %v2239, %v2351
        %v2353 = vpop.f32.mrb[0].mxu0
        %v2354 = vadd.f32 %v2241, %v2353
        %v2355 = vpop.f32.mrb[0].mxu0
        %v2356 = vadd.f32 %v2243, %v2355
        %2357 = vmatprep.mubr.bf16.mxu0 0
        %2358 = vmatmul.mubr.bf16.gmra.mrb[0].mxu0 %v603
        %v2359 = vpop.f32.mrb[0].mxu0
        %v2360 = vadd.f32 %v2247, %v2359
        %v2361 = vpop.f32.mrb[0].mxu0
        %v2362 = vadd.f32 %v2249, %v2361
        %v2363 = vpop.f32.mrb[0].mxu0
        %v2364 = vadd.f32 %v2251, %v2363
        %v2365 = vpop.f32.mrb[0].mxu0
        %v2366 = vadd.f32 %v2253, %v2365
        %2367 = vmatprep.mubr.bf16.mxu0 0
        %2368 = vmatmul.mubr.bf16.gmra.mrb[0].mxu0 %v606
        %v2369 = vpop.f32.mrb[0].mxu0
        %v2370 = vadd.f32 %v2257, %v2369
        %v2371 = vpop.f32.mrb[0].mxu0
        %v2372 = vadd.f32 %v2259, %v2371
        %v2373 = vpop.f32.mrb[0].mxu0
        %v2374 = vadd.f32 %v2261, %v2373
        %v2375 = vpop.f32.mrb[0].mxu0
        %v2376 = vadd.f32 %v2263, %v2375
        %2377 = vmatprep.mubr.bf16.mxu0 0
        %2378 = vmatmul.mubr.bf16.gmra.mrb[0].mxu0 %v609
        %v2379 = vpop.f32.mrb[0].mxu0
        %v2380 = vadd.f32 %v2267, %v2379
        %v2381 = vpop.f32.mrb[0].mxu0
        %v2382 = vadd.f32 %v2269, %v2381
        %v2383 = vpop.f32.mrb[0].mxu0
        %v2384 = vadd.f32 %v2271, %v2383
        %v2385 = vpop.f32.mrb[0].mxu0
        %v2386 = vadd.f32 %v2273, %v2385
        %2387 = vmatprep.mubr.bf16.mxu0 0
        %2388 = vmatmul.mubr.bf16.gmra.mrb[0].mxu0 %v612
        %v2389 = vpop.f32.mrb[0].mxu0
        %v2390 = vadd.f32 %v2277, %v2389
        %v2391 = vpop.f32.mrb[0].mxu0
        %v2392 = vadd.f32 %v2279, %v2391
        %v2393 = vpop.f32.mrb[0].mxu0
        %v2394 = vadd.f32 %v2281, %v2393
        %v2395 = vpop.f32.mrb[0].mxu0
        %v2396 = vadd.f32 %v2283, %v2395
        %2397 = vmatprep.mubr.bf16.mxu0 0
        %2398 = vmatmul.mubr.bf16.gmra.mrb[0].mxu0 %v615
        %v2399 = vpop.f32.mrb[0].mxu0
        %v2400 = vadd.f32 %v2287, %v2399
        %v2401 = vpop.f32.mrb[0].mxu0
        %v2402 = vadd.f32 %v2289, %v2401
        %v2403 = vpop.f32.mrb[0].mxu0
        %v2404 = vadd.f32 %v2291, %v2403
        %v2405 = vpop.f32.mrb[0].mxu0
        %v2406 = vadd.f32 %v2293, %v2405
        %2407 = vmatprep.mubr.bf16.mxu0 0
        %2408 = vmatmul.mubr.bf16.gmra.mrb[0].mxu0 %v618
        %v2409 = vpop.f32.mrb[0].mxu0
        %v2410 = vadd.f32 %v2297, %v2409
        %v2411 = vpop.f32.mrb[0].mxu0
        %v2412 = vadd.f32 %v2299, %v2411
        %v2413 = vpop.f32.mrb[0].mxu0
        %v2414 = vadd.f32 %v2301, %v2413
        %v2415 = vpop.f32.mrb[0].mxu0
        %v2416 = vadd.f32 %v2303, %v2415
        %2417 = vmatprep.mubr.bf16.mxu0 0
        %2418 = vmatmul.mubr.bf16.gmra.mrb[0].mxu0 %v621
        %v2419 = vpop.f32.mrb[0].mxu0
        %v2420 = vadd.f32 %v2307, %v2419
        %v2421 = vpop.f32.mrb[0].mxu0
        %v2422 = vadd.f32 %v2309, %v2421
        %v2423 = vpop.f32.mrb[0].mxu0
        %v2424 = vadd.f32 %v2311, %v2423
        %v2425 = vpop.f32.mrb[0].mxu0
        %v2426 = vadd.f32 %v2313, %v2425
        %2427 = vdwg.mxu0
        %2428 = vmatprep.subr.bf16.mxu0 %v1325
        %2429 = vmatpush1.bf16.msra.mxu0 %v1324
        %2430 = vmatprep.subr.bf16.mxu0 %v1334
        %2431 = vmatpush1.bf16.msra.mxu0 %v1333
        %2432 = vmatprep.subr.bf16.mxu0 %v1343
        %2433 = vmatpush1.bf16.msra.mxu0 %v1342
        %2434 = vmatprep.subr.bf16.mxu0 %v1352
        %2435 = vmatpush1.bf16.msra.mxu0 %v1351
        %2436 = vmatprep.subr.bf16.mxu0 %v1361
        %2437 = vmatpush1.bf16.msra.mxu0 %v1360
        %2438 = vmatprep.subr.bf16.mxu0 %v1370
        %2439 = vmatpush1.bf16.msra.mxu0 %v1369
        %2440 = vmatprep.subr.bf16.mxu0 %v1379
        %2441 = vmatpush1.bf16.msra.mxu0 %v1378
        %2442 = vmatprep.subr.bf16.mxu0 %v1388
        %2443 = vmatpush1.bf16.msra.mxu0 %v1387
        %2444 = vmatprep.subr.bf16.mxu0 %v1397
        %2445 = vmatpush1.bf16.msra.mxu0 %v1396
        %2446 = vmatprep.subr.bf16.mxu0 %v1406
        %2447 = vmatpush1.bf16.msra.mxu0 %v1405
        %2448 = vmatprep.subr.bf16.mxu0 %v1415
        %2449 = vmatpush1.bf16.msra.mxu0 %v1414
        %2450 = vmatprep.subr.bf16.mxu0 %v1424
        %2451 = vmatpush1.bf16.msra.mxu0 %v1423
        %2452 = vmatprep.subr.bf16.mxu0 %v1433
        %2453 = vmatpush1.bf16.msra.mxu0 %v1432
        %2454 = vmatprep.subr.bf16.mxu0 %v1442
        %2455 = vmatpush1.bf16.msra.mxu0 %v1441
        %2456 = vmatprep.subr.bf16.mxu0 %v1451
        %2457 = vmatpush1.bf16.msra.mxu0 %v1450
        %2458 = vmatprep.subr.bf16.mxu0 %v1460
        %2459 = vmatpush1.bf16.msra.mxu0 %v1459
        %2460 = vmatprep.mubr.bf16.mxu0 %v599
        %2461 = vmatmul.mubr.bf16.gmra.mrb[0].mxu0 %v598
        %v2462 = vpop.f32.mrb[0].mxu0
        %v2463 = vadd.f32 0.0, %v2462
        %v2464 = vpop.f32.mrb[0].mxu0
        %v2465 = vadd.f32 0.0, %v2464
        %v2466 = vpop.f32.mrb[0].mxu0
        %v2467 = vadd.f32 0.0, %v2466
        %v2468 = vpop.f32.mrb[0].mxu0
        %v2469 = vadd.f32 0.0, %v2468
        %2470 = vmatprep.mubr.bf16.mxu0 %v602
        %2471 = vmatmul.mubr.bf16.gmra.mrb[0].mxu0 %v601
        %v2472 = vpop.f32.mrb[0].mxu0
        %v2473 = vadd.f32 0.0, %v2472
        %v2474 = vpop.f32.mrb[0].mxu0
        %v2475 = vadd.f32 0.0, %v2474
        %v2476 = vpop.f32.mrb[0].mxu0
        %v2477 = vadd.f32 0.0, %v2476
        %v2478 = vpop.f32.mrb[0].mxu0
        %v2479 = vadd.f32 0.0, %v2478
        %2480 = vmatprep.mubr.bf16.mxu0 %v605
        %2481 = vmatmul.mubr.bf16.gmra.mrb[0].mxu0 %v604
        %v2482 = vpop.f32.mrb[0].mxu0
        %v2483 = vadd.f32 0.0, %v2482
        %v2484 = vpop.f32.mrb[0].mxu0
        %v2485 = vadd.f32 0.0, %v2484
        %v2486 = vpop.f32.mrb[0].mxu0
        %v2487 = vadd.f32 0.0, %v2486
        %v2488 = vpop.f32.mrb[0].mxu0
        %v2489 = vadd.f32 0.0, %v2488
        %2490 = vmatprep.mubr.bf16.mxu0 %v608
        %2491 = vmatmul.mubr.bf16.gmra.mrb[0].mxu0 %v607
        %v2492 = vpop.f32.mrb[0].mxu0
        %v2493 = vadd.f32 0.0, %v2492
        %v2494 = vpop.f32.mrb[0].mxu0
        %v2495 = vadd.f32 0.0, %v2494
        %v2496 = vpop.f32.mrb[0].mxu0
        %v2497 = vadd.f32 0.0, %v2496
        %v2498 = vpop.f32.mrb[0].mxu0
        %v2499 = vadd.f32 0.0, %v2498
        %2500 = vmatprep.mubr.bf16.mxu0 %v611
        %2501 = vmatmul.mubr.bf16.gmra.mrb[0].mxu0 %v610
        %v2502 = vpop.f32.mrb[0].mxu0
        %v2503 = vadd.f32 0.0, %v2502
        %v2504 = vpop.f32.mrb[0].mxu0
        %v2505 = vadd.f32 0.0, %v2504
        %v2506 = vpop.f32.mrb[0].mxu0
        %v2507 = vadd.f32 0.0, %v2506
        %v2508 = vpop.f32.mrb[0].mxu0
        %v2509 = vadd.f32 0.0, %v2508
        %2510 = vmatprep.mubr.bf16.mxu0 %v614
        %2511 = vmatmul.mubr.bf16.gmra.mrb[0].mxu0 %v613
        %v2512 = vpop.f32.mrb[0].mxu0
        %v2513 = vadd.f32 0.0, %v2512
        %v2514 = vpop.f32.mrb[0].mxu0
        %v2515 = vadd.f32 0.0, %v2514
        %v2516 = vpop.f32.mrb[0].mxu0
        %v2517 = vadd.f32 0.0, %v2516
        %v2518 = vpop.f32.mrb[0].mxu0
        %v2519 = vadd.f32 0.0, %v2518
        %2520 = vmatprep.mubr.bf16.mxu0 %v617
        %2521 = vmatmul.mubr.bf16.gmra.mrb[0].mxu0 %v616
        %v2522 = vpop.f32.mrb[0].mxu0
        %v2523 = vadd.f32 0.0, %v2522
        %v2524 = vpop.f32.mrb[0].mxu0
        %v2525 = vadd.f32 0.0, %v2524
        %v2526 = vpop.f32.mrb[0].mxu0
        %v2527 = vadd.f32 0.0, %v2526
        %v2528 = vpop.f32.mrb[0].mxu0
        %v2529 = vadd.f32 0.0, %v2528
        %2530 = vmatprep.mubr.bf16.mxu0 %v620
        %2531 = vmatmul.mubr.bf16.gmra.mrb[0].mxu0 %v619
        %v2532 = vpop.f32.mrb[0].mxu0
        %v2533 = vadd.f32 0.0, %v2532
        %v2534 = vpop.f32.mrb[0].mxu0
        %v2535 = vadd.f32 0.0, %v2534
        %v2536 = vpop.f32.mrb[0].mxu0
        %v2537 = vadd.f32 0.0, %v2536
        %v2538 = vpop.f32.mrb[0].mxu0
        %v2539 = vadd.f32 0.0, %v2538
        %2540 = vdwg.mxu0
        %2541 = vmatprep.subr.bf16.mxu0 %v1469
        %2542 = vmatpush1.bf16.msra.mxu0 %v1468
        %2543 = vmatprep.subr.bf16.mxu0 %v1478
        %2544 = vmatpush1.bf16.msra.mxu0 %v1477
        %2545 = vmatprep.subr.bf16.mxu0 %v1487
        %2546 = vmatpush1.bf16.msra.mxu0 %v1486
        %2547 = vmatprep.subr.bf16.mxu0 %v1496
        %2548 = vmatpush1.bf16.msra.mxu0 %v1495
        %2549 = vmatprep.subr.bf16.mxu0 %v1505
        %2550 = vmatpush1.bf16.msra.mxu0 %v1504
        %2551 = vmatprep.subr.bf16.mxu0 %v1514
        %2552 = vmatpush1.bf16.msra.mxu0 %v1513
        %2553 = vmatprep.subr.bf16.mxu0 %v1523
        %2554 = vmatpush1.bf16.msra.mxu0 %v1522
        %2555 = vmatprep.subr.bf16.mxu0 %v1532
        %2556 = vmatpush1.bf16.msra.mxu0 %v1531
        %2557 = vmatprep.subr.bf16.mxu0 0
        %2558 = vmatpush1.bf16.msra.mxu0 0
        %2559 = vmatprep.subr.bf16.mxu0 0
        %2560 = vmatpush1.bf16.msra.mxu0 0
        %2561 = vmatprep.subr.bf16.mxu0 0
        %2562 = vmatpush1.bf16.msra.mxu0 0
        %2563 = vmatprep.subr.bf16.mxu0 0
        %2564 = vmatpush1.bf16.msra.mxu0 0
        %2565 = vmatprep.subr.bf16.mxu0 0
        %2566 = vmatpush1.bf16.msra.mxu0 0
        %2567 = vmatprep.subr.bf16.mxu0 0
        %2568 = vmatpush1.bf16.msra.mxu0 0
        %2569 = vmatprep.subr.bf16.mxu0 0
        %2570 = vmatpush1.bf16.msra.mxu0 0
        %2571 = vmatprep.subr.bf16.mxu0 0
        %2572 = vmatpush1.bf16.msra.mxu0 0
        %2573 = vmatprep.mubr.bf16.mxu0 0
        %2574 = vmatmul.mubr.bf16.gmra.mrb[0].mxu0 %v600
        %v2575 = vpop.f32.mrb[0].mxu0
        %v2576 = vadd.f32 %v2463, %v2575
        %v2577 = vpop.f32.mrb[0].mxu0
        %v2578 = vadd.f32 %v2465, %v2577
        %v2579 = vpop.f32.mrb[0].mxu0
        %v2580 = vadd.f32 %v2467, %v2579
        %v2581 = vpop.f32.mrb[0].mxu0
        %v2582 = vadd.f32 %v2469, %v2581
        %2583 = vmatprep.mubr.bf16.mxu0 0
        %2584 = vmatmul.mubr.bf16.gmra.mrb[0].mxu0 %v603
        %v2585 = vpop.f32.mrb[0].mxu0
        %v2586 = vadd.f32 %v2473, %v2585
        %v2587 = vpop.f32.mrb[0].mxu0
        %v2588 = vadd.f32 %v2475, %v2587
        %v2589 = vpop.f32.mrb[0].mxu0
        %v2590 = vadd.f32 %v2477, %v2589
        %v2591 = vpop.f32.mrb[0].mxu0
        %v2592 = vadd.f32 %v2479, %v2591
        %2593 = vmatprep.mubr.bf16.mxu0 0
        %2594 = vmatmul.mubr.bf16.gmra.mrb[0].mxu0 %v606
        %v2595 = vpop.f32.mrb[0].mxu0
        %v2596 = vadd.f32 %v2483, %v2595
        %v2597 = vpop.f32.mrb[0].mxu0
        %v2598 = vadd.f32 %v2485, %v2597
        %v2599 = vpop.f32.mrb[0].mxu0
        %v2600 = vadd.f32 %v2487, %v2599
        %v2601 = vpop.f32.mrb[0].mxu0
        %v2602 = vadd.f32 %v2489, %v2601
        %2603 = vmatprep.mubr.bf16.mxu0 0
        %2604 = vmatmul.mubr.bf16.gmra.mrb[0].mxu0 %v609
        %v2605 = vpop.f32.mrb[0].mxu0
        %v2606 = vadd.f32 %v2493, %v2605
        %v2607 = vpop.f32.mrb[0].mxu0
        %v2608 = vadd.f32 %v2495, %v2607
        %v2609 = vpop.f32.mrb[0].mxu0
        %v2610 = vadd.f32 %v2497, %v2609
        %v2611 = vpop.f32.mrb[0].mxu0
        %v2612 = vadd.f32 %v2499, %v2611
        %2613 = vmatprep.mubr.bf16.mxu0 0
        %2614 = vmatmul.mubr.bf16.gmra.mrb[0].mxu0 %v612
        %v2615 = vpop.f32.mrb[0].mxu0
        %v2616 = vadd.f32 %v2503, %v2615
        %v2617 = vpop.f32.mrb[0].mxu0
        %v2618 = vadd.f32 %v2505, %v2617
        %v2619 = vpop.f32.mrb[0].mxu0
        %v2620 = vadd.f32 %v2507, %v2619
        %v2621 = vpop.f32.mrb[0].mxu0
        %v2622 = vadd.f32 %v2509, %v2621
        %2623 = vmatprep.mubr.bf16.mxu0 0
        %2624 = vmatmul.mubr.bf16.gmra.mrb[0].mxu0 %v615
        %v2625 = vpop.f32.mrb[0].mxu0
        %v2626 = vadd.f32 %v2513, %v2625
        %v2627 = vpop.f32.mrb[0].mxu0
        %v2628 = vadd.f32 %v2515, %v2627
        %v2629 = vpop.f32.mrb[0].mxu0
        %v2630 = vadd.f32 %v2517, %v2629
        %v2631 = vpop.f32.mrb[0].mxu0
        %v2632 = vadd.f32 %v2519, %v2631
        %2633 = vmatprep.mubr.bf16.mxu0 0
        %2634 = vmatmul.mubr.bf16.gmra.mrb[0].mxu0 %v618
        %v2635 = vpop.f32.mrb[0].mxu0
        %v2636 = vadd.f32 %v2523, %v2635
        %v2637 = vpop.f32.mrb[0].mxu0
        %v2638 = vadd.f32 %v2525, %v2637
        %v2639 = vpop.f32.mrb[0].mxu0
        %v2640 = vadd.f32 %v2527, %v2639
        %v2641 = vpop.f32.mrb[0].mxu0
        %v2642 = vadd.f32 %v2529, %v2641
        %2643 = vmatprep.mubr.bf16.mxu0 0
        %2644 = vmatmul.mubr.bf16.gmra.mrb[0].mxu0 %v621
        %v2645 = vpop.f32.mrb[0].mxu0
        %v2646 = vadd.f32 %v2533, %v2645
        %v2647 = vpop.f32.mrb[0].mxu0
        %v2648 = vadd.f32 %v2535, %v2647
        %v2649 = vpop.f32.mrb[0].mxu0
        %v2650 = vadd.f32 %v2537, %v2649
        %v2651 = vpop.f32.mrb[0].mxu0
        %v2652 = vadd.f32 %v2539, %v2651
        %2653 = vdwg.mxu0
        %2654 = vmatprep.subr.bf16.mxu0 0
        %2655 = vmatpush1.bf16.msra.mxu0 %v1326
        %2656 = vmatprep.subr.bf16.mxu0 0
        %2657 = vmatpush1.bf16.msra.mxu0 %v1335
        %2658 = vmatprep.subr.bf16.mxu0 0
        %2659 = vmatpush1.bf16.msra.mxu0 %v1344
        %2660 = vmatprep.subr.bf16.mxu0 0
        %2661 = vmatpush1.bf16.msra.mxu0 %v1353
        %2662 = vmatprep.subr.bf16.mxu0 0
        %2663 = vmatpush1.bf16.msra.mxu0 %v1362
        %2664 = vmatprep.subr.bf16.mxu0 0
        %2665 = vmatpush1.bf16.msra.mxu0 %v1371
        %2666 = vmatprep.subr.bf16.mxu0 0
        %2667 = vmatpush1.bf16.msra.mxu0 %v1380
        %2668 = vmatprep.subr.bf16.mxu0 0
        %2669 = vmatpush1.bf16.msra.mxu0 %v1389
        %2670 = vmatprep.subr.bf16.mxu0 0
        %2671 = vmatpush1.bf16.msra.mxu0 %v1398
        %2672 = vmatprep.subr.bf16.mxu0 0
        %2673 = vmatpush1.bf16.msra.mxu0 %v1407
        %2674 = vmatprep.subr.bf16.mxu0 0
        %2675 = vmatpush1.bf16.msra.mxu0 %v1416
        %2676 = vmatprep.subr.bf16.mxu0 0
        %2677 = vmatpush1.bf16.msra.mxu0 %v1425
        %2678 = vmatprep.subr.bf16.mxu0 0
        %2679 = vmatpush1.bf16.msra.mxu0 %v1434
        %2680 = vmatprep.subr.bf16.mxu0 0
        %2681 = vmatpush1.bf16.msra.mxu0 %v1443
        %2682 = vmatprep.subr.bf16.mxu0 0
        %2683 = vmatpush1.bf16.msra.mxu0 %v1452
        %2684 = vmatprep.subr.bf16.mxu0 0
        %2685 = vmatpush1.bf16.msra.mxu0 %v1461
        %2686 = vmatprep.mubr.bf16.mxu0 %v599
        %2687 = vmatmul.mubr.bf16.gmra.mrb[0].mxu0 %v598
        %v2688 = vpop.f32.mrb[0].mxu0
        %v2689 = vadd.f32 0.0, %v2688
        %v2690 = vpop.f32.mrb[0].mxu0
        %v2691 = vpop.f32.mrb[0].mxu0
        %v2692 = vadd.f32 0.0, %v2691
        %v2693 = vpop.f32.mrb[0].mxu0
        %2694 = vmatprep.mubr.bf16.mxu0 %v602
        %2695 = vmatmul.mubr.bf16.gmra.mrb[0].mxu0 %v601
        %v2696 = vpop.f32.mrb[0].mxu0
        %v2697 = vadd.f32 0.0, %v2696
        %v2698 = vpop.f32.mrb[0].mxu0
        %v2699 = vpop.f32.mrb[0].mxu0
        %v2700 = vadd.f32 0.0, %v2699
        %v2701 = vpop.f32.mrb[0].mxu0
        %2702 = vmatprep.mubr.bf16.mxu0 %v605
        %2703 = vmatmul.mubr.bf16.gmra.mrb[0].mxu0 %v604
        %v2704 = vpop.f32.mrb[0].mxu0
        %v2705 = vadd.f32 0.0, %v2704
        %v2706 = vpop.f32.mrb[0].mxu0
        %v2707 = vpop.f32.mrb[0].mxu0
        %v2708 = vadd.f32 0.0, %v2707
        %v2709 = vpop.f32.mrb[0].mxu0
        %2710 = vmatprep.mubr.bf16.mxu0 %v608
        %2711 = vmatmul.mubr.bf16.gmra.mrb[0].mxu0 %v607
        %v2712 = vpop.f32.mrb[0].mxu0
        %v2713 = vadd.f32 0.0, %v2712
        %v2714 = vpop.f32.mrb[0].mxu0
        %v2715 = vpop.f32.mrb[0].mxu0
        %v2716 = vadd.f32 0.0, %v2715
        %v2717 = vpop.f32.mrb[0].mxu0
        %2718 = vmatprep.mubr.bf16.mxu0 %v611
        %2719 = vmatmul.mubr.bf16.gmra.mrb[0].mxu0 %v610
        %v2720 = vpop.f32.mrb[0].mxu0
        %v2721 = vadd.f32 0.0, %v2720
        %v2722 = vpop.f32.mrb[0].mxu0
        %v2723 = vpop.f32.mrb[0].mxu0
        %v2724 = vadd.f32 0.0, %v2723
        %v2725 = vpop.f32.mrb[0].mxu0
        %2726 = vmatprep.mubr.bf16.mxu0 %v614
        %2727 = vmatmul.mubr.bf16.gmra.mrb[0].mxu0 %v613
        %v2728 = vpop.f32.mrb[0].mxu0
        %v2729 = vadd.f32 0.0, %v2728
        %v2730 = vpop.f32.mrb[0].mxu0
        %v2731 = vpop.f32.mrb[0].mxu0
        %v2732 = vadd.f32 0.0, %v2731
        %v2733 = vpop.f32.mrb[0].mxu0
        %2734 = vmatprep.mubr.bf16.mxu0 %v617
        %2735 = vmatmul.mubr.bf16.gmra.mrb[0].mxu0 %v616
        %v2736 = vpop.f32.mrb[0].mxu0
        %v2737 = vadd.f32 0.0, %v2736
        %v2738 = vpop.f32.mrb[0].mxu0
        %v2739 = vpop.f32.mrb[0].mxu0
        %v2740 = vadd.f32 0.0, %v2739
        %v2741 = vpop.f32.mrb[0].mxu0
        %2742 = vmatprep.mubr.bf16.mxu0 %v620
        %2743 = vmatmul.mubr.bf16.gmra.mrb[0].mxu0 %v619
        %v2744 = vpop.f32.mrb[0].mxu0
        %v2745 = vadd.f32 0.0, %v2744
        %v2746 = vpop.f32.mrb[0].mxu0
        %v2747 = vpop.f32.mrb[0].mxu0
        %v2748 = vadd.f32 0.0, %v2747
        %v2749 = vpop.f32.mrb[0].mxu0
        %2750 = vdwg.mxu0
        %2751 = vmatprep.subr.bf16.mxu0 0
        %2752 = vmatpush1.bf16.msra.mxu0 %v1470
        %2753 = vmatprep.subr.bf16.mxu0 0
        %2754 = vmatpush1.bf16.msra.mxu0 %v1479
        %2755 = vmatprep.subr.bf16.mxu0 0
        %2756 = vmatpush1.bf16.msra.mxu0 %v1488
        %2757 = vmatprep.subr.bf16.mxu0 0
        %2758 = vmatpush1.bf16.msra.mxu0 %v1497
        %2759 = vmatprep.subr.bf16.mxu0 0
        %2760 = vmatpush1.bf16.msra.mxu0 %v1506
        %2761 = vmatprep.subr.bf16.mxu0 0
        %2762 = vmatpush1.bf16.msra.mxu0 %v1515
        %2763 = vmatprep.subr.bf16.mxu0 0
        %2764 = vmatpush1.bf16.msra.mxu0 %v1524
        %2765 = vmatprep.subr.bf16.mxu0 0
        %2766 = vmatpush1.bf16.msra.mxu0 %v1533
        %2767 = vmatprep.subr.bf16.mxu0 0
        %2768 = vmatpush1.bf16.msra.mxu0 0
        %2769 = vmatprep.subr.bf16.mxu0 0
        %2770 = vmatpush1.bf16.msra.mxu0 0
        %2771 = vmatprep.subr.bf16.mxu0 0
        %2772 = vmatpush1.bf16.msra.mxu0 0
        %2773 = vmatprep.subr.bf16.mxu0 0
        %2774 = vmatpush1.bf16.msra.mxu0 0
        %2775 = vmatprep.subr.bf16.mxu0 0
        %2776 = vmatpush1.bf16.msra.mxu0 0
        %2777 = vmatprep.subr.bf16.mxu0 0
        %2778 = vmatpush1.bf16.msra.mxu0 0
        %2779 = vmatprep.subr.bf16.mxu0 0
        %2780 = vmatpush1.bf16.msra.mxu0 0
        %2781 = vmatprep.subr.bf16.mxu0 0
        %2782 = vmatpush1.bf16.msra.mxu0 0
        %2783 = vmatprep.mubr.bf16.mxu0 0
        %2784 = vmatmul.mubr.bf16.gmra.mrb[0].mxu0 %v600
        %v2785 = vpop.f32.mrb[0].mxu0
        %v2786 = vadd.f32 %v2689, %v2785
        %v2787 = vpop.f32.mrb[0].mxu0
        %v2788 = vpop.f32.mrb[0].mxu0
        %v2789 = vadd.f32 %v2692, %v2788
        %v2790 = vpop.f32.mrb[0].mxu0
        %2791 = vmatprep.mubr.bf16.mxu0 0
        %2792 = vmatmul.mubr.bf16.gmra.mrb[0].mxu0 %v603
        %v2793 = vpop.f32.mrb[0].mxu0
        %v2794 = vadd.f32 %v2697, %v2793
        %v2795 = vpop.f32.mrb[0].mxu0
        %v2796 = vpop.f32.mrb[0].mxu0
        %v2797 = vadd.f32 %v2700, %v2796
        %v2798 = vpop.f32.mrb[0].mxu0
        %2799 = vmatprep.mubr.bf16.mxu0 0
        %2800 = vmatmul.mubr.bf16.gmra.mrb[0].mxu0 %v606
        %v2801 = vpop.f32.mrb[0].mxu0
        %v2802 = vadd.f32 %v2705, %v2801
        %v2803 = vpop.f32.mrb[0].mxu0
        %v2804 = vpop.f32.mrb[0].mxu0
        %v2805 = vadd.f32 %v2708, %v2804
        %v2806 = vpop.f32.mrb[0].mxu0
        %2807 = vmatprep.mubr.bf16.mxu0 0
        %2808 = vmatmul.mubr.bf16.gmra.mrb[0].mxu0 %v609
        %v2809 = vpop.f32.mrb[0].mxu0
        %v2810 = vadd.f32 %v2713, %v2809
        %v2811 = vpop.f32.mrb[0].mxu0
        %v2812 = vpop.f32.mrb[0].mxu0
        %v2813 = vadd.f32 %v2716, %v2812
        %v2814 = vpop.f32.mrb[0].mxu0
        %2815 = vmatprep.mubr.bf16.mxu0 0
        %2816 = vmatmul.mubr.bf16.gmra.mrb[0].mxu0 %v612
        %v2817 = vpop.f32.mrb[0].mxu0
        %v2818 = vadd.f32 %v2721, %v2817
        %v2819 = vpop.f32.mrb[0].mxu0
        %v2820 = vpop.f32.mrb[0].mxu0
        %v2821 = vadd.f32 %v2724, %v2820
        %v2822 = vpop.f32.mrb[0].mxu0
        %2823 = vmatprep.mubr.bf16.mxu0 0
        %2824 = vmatmul.mubr.bf16.gmra.mrb[0].mxu0 %v615
        %v2825 = vpop.f32.mrb[0].mxu0
        %v2826 = vadd.f32 %v2729, %v2825
        %v2827 = vpop.f32.mrb[0].mxu0
        %v2828 = vpop.f32.mrb[0].mxu0
        %v2829 = vadd.f32 %v2732, %v2828
        %v2830 = vpop.f32.mrb[0].mxu0
        %2831 = vmatprep.mubr.bf16.mxu0 0
        %2832 = vmatmul.mubr.bf16.gmra.mrb[0].mxu0 %v618
        %v2833 = vpop.f32.mrb[0].mxu0
        %v2834 = vadd.f32 %v2737, %v2833
        %v2835 = vpop.f32.mrb[0].mxu0
        %v2836 = vpop.f32.mrb[0].mxu0
        %v2837 = vadd.f32 %v2740, %v2836
        %v2838 = vpop.f32.mrb[0].mxu0
        %2839 = vmatprep.mubr.bf16.mxu0 0
        %2840 = vmatmul.mubr.bf16.gmra.mrb[0].mxu0 %v621
        %v2841 = vpop.f32.mrb[0].mxu0
        %v2842 = vadd.f32 %v2745, %v2841
        %v2843 = vpop.f32.mrb[0].mxu0
        %v2844 = vpop.f32.mrb[0].mxu0
        %v2845 = vadd.f32 %v2748, %v2844
        %v2846 = vpop.f32.mrb[0].mxu0
        %2847 = vdwg.mxu0
        %v2848 = vpack.c.bf16 %v1902, %v1898
        %v2849 = vpack.c.bf16 %v1904, %v1900
        %v2850 = vpack.c.bf16 %v2128, %v2124
        %v2851 = vpack.c.bf16 %v2130, %v2126
        %v2852 = vpack.c.bf16 %v2354, %v2350
        %v2853 = vpack.c.bf16 %v2356, %v2352
        %v2854 = vpack.c.bf16 %v2580, %v2576
        %v2855 = vpack.c.bf16 %v2582, %v2578
        %v2856 = vpack.c.bf16 %v2789, %v2786
        %v2857 = vpack.c.bf16 %v1912, %v1908
        %v2858 = vpack.c.bf16 %v1914, %v1910
        %v2859 = vpack.c.bf16 %v2138, %v2134
        %v2860 = vpack.c.bf16 %v2140, %v2136
        %v2861 = vpack.c.bf16 %v2364, %v2360
        %v2862 = vpack.c.bf16 %v2366, %v2362
        %v2863 = vpack.c.bf16 %v2590, %v2586
        %v2864 = vpack.c.bf16 %v2592, %v2588
        %v2865 = vpack.c.bf16 %v2797, %v2794
        %v2866 = vpack.c.bf16 %v1922, %v1918
        %v2867 = vpack.c.bf16 %v1924, %v1920
        %v2868 = vpack.c.bf16 %v2148, %v2144
        %v2869 = vpack.c.bf16 %v2150, %v2146
        %v2870 = vpack.c.bf16 %v2374, %v2370
        %v2871 = vpack.c.bf16 %v2376, %v2372
        %v2872 = vpack.c.bf16 %v2600, %v2596
        %v2873 = vpack.c.bf16 %v2602, %v2598
        %v2874 = vpack.c.bf16 %v2805, %v2802
        %v2875 = vpack.c.bf16 %v1932, %v1928
        %v2876 = vpack.c.bf16 %v1934, %v1930
        %v2877 = vpack.c.bf16 %v2158, %v2154
        %v2878 = vpack.c.bf16 %v2160, %v2156
        %v2879 = vpack.c.bf16 %v2384, %v2380
        %v2880 = vpack.c.bf16 %v2386, %v2382
        %v2881 = vpack.c.bf16 %v2610, %v2606
        %v2882 = vpack.c.bf16 %v2612, %v2608
        %v2883 = vpack.c.bf16 %v2813, %v2810
        %v2884 = vpack.c.bf16 %v1942, %v1938
        %v2885 = vpack.c.bf16 %v1944, %v1940
        %v2886 = vpack.c.bf16 %v2168, %v2164
        %v2887 = vpack.c.bf16 %v2170, %v2166
        %v2888 = vpack.c.bf16 %v2394, %v2390
        %v2889 = vpack.c.bf16 %v2396, %v2392
        %v2890 = vpack.c.bf16 %v2620, %v2616
        %v2891 = vpack.c.bf16 %v2622, %v2618
        %v2892 = vpack.c.bf16 %v2821, %v2818
        %v2893 = vpack.c.bf16 %v1952, %v1948
        %v2894 = vpack.c.bf16 %v1954, %v1950
        %v2895 = vpack.c.bf16 %v2178, %v2174
        %v2896 = vpack.c.bf16 %v2180, %v2176
        %v2897 = vpack.c.bf16 %v2404, %v2400
        %v2898 = vpack.c.bf16 %v2406, %v2402
        %v2899 = vpack.c.bf16 %v2630, %v2626
        %v2900 = vpack.c.bf16 %v2632, %v2628
        %v2901 = vpack.c.bf16 %v2829, %v2826
        %v2902 = vpack.c.bf16 %v1962, %v1958
        %v2903 = vpack.c.bf16 %v1964, %v1960
        %v2904 = vpack.c.bf16 %v2188, %v2184
        %v2905 = vpack.c.bf16 %v2190, %v2186
        %v2906 = vpack.c.bf16 %v2414, %v2410
        %v2907 = vpack.c.bf16 %v2416, %v2412
        %v2908 = vpack.c.bf16 %v2640, %v2636
        %v2909 = vpack.c.bf16 %v2642, %v2638
        %v2910 = vpack.c.bf16 %v2837, %v2834
        %v2911 = vpack.c.bf16 %v1972, %v1968
        %v2912 = vpack.c.bf16 %v1974, %v1970
        %v2913 = vpack.c.bf16 %v2198, %v2194
        %v2914 = vpack.c.bf16 %v2200, %v2196
        %v2915 = vpack.c.bf16 %v2424, %v2420
        %v2916 = vpack.c.bf16 %v2426, %v2422
        %v2917 = vpack.c.bf16 %v2650, %v2646
        %v2918 = vpack.c.bf16 %v2652, %v2648
        %v2919 = vpack.c.bf16 %v2845, %v2842
        %2920 = vst [vmem:[#allocation2] sm:$0xff] %v2848
        %2921 = vst [vmem:[#allocation2 + $0x8] sm:$0xff] %v2849
        %2922 = vst [vmem:[#allocation2 + $0x10] sm:$0xff] %v2850
        %2923 = vst [vmem:[#allocation2 + $0x18] sm:$0xff] %v2851
        %2924 = vst [vmem:[#allocation2 + $0x20] sm:$0xff] %v2852
        %2925 = vst [vmem:[#allocation2 + $0x28] sm:$0xff] %v2853
        %2926 = vst [vmem:[#allocation2 + $0x30] sm:$0xff] %v2854
        %2927 = vst [vmem:[#allocation2 + $0x38] sm:$0xff] %v2855
        %2928 = vst [vmem:[#allocation2 + $0x40] sm:$0xff] %v2856
        %2929 = vst [vmem:[#allocation2 + $0x48] sm:$0xff] %v2857
        %2930 = vst [vmem:[#allocation2 + $0x50] sm:$0xff] %v2858
        %2931 = vst [vmem:[#allocation2 + $0x58] sm:$0xff] %v2859
        %2932 = vst [vmem:[#allocation2 + $0x60] sm:$0xff] %v2860
        %2933 = vst [vmem:[#allocation2 + $0x68] sm:$0xff] %v2861
        %2934 = vst [vmem:[#allocation2 + $0x70] sm:$0xff] %v2862
        %2935 = vst [vmem:[#allocation2 + $0x78] sm:$0xff] %v2863
        %2936 = vst [vmem:[#allocation2 + $0x80] sm:$0xff] %v2864
        %2937 = vst [vmem:[#allocation2 + $0x88] sm:$0xff] %v2865
        %2938 = vst [vmem:[#allocation2 + $0x90] sm:$0xff] %v2866
        %2939 = vst [vmem:[#allocation2 + $0x98] sm:$0xff] %v2867
        %2940 = vst [vmem:[#allocation2 + $0xa0] sm:$0xff] %v2868
        %2941 = vst [vmem:[#allocation2 + $0xa8] sm:$0xff] %v2869
        %2942 = vst [vmem:[#allocation2 + $0xb0] sm:$0xff] %v2870
        %2943 = vst [vmem:[#allocation2 + $0xb8] sm:$0xff] %v2871
        %2944 = vst [vmem:[#allocation2 + $0xc0] sm:$0xff] %v2872
        %2945 = vst [vmem:[#allocation2 + $0xc8] sm:$0xff] %v2873
        %2946 = vst [vmem:[#allocation2 + $0xd0] sm:$0xff] %v2874
        %2947 = vst [vmem:[#allocation2 + $0xd8] sm:$0xff] %v2875
        %2948 = vst [vmem:[#allocation2 + $0xe0] sm:$0xff] %v2876
        %2949 = vst [vmem:[#allocation2 + $0xe8] sm:$0xff] %v2877
        %2950 = vst [vmem:[#allocation2 + $0xf0] sm:$0xff] %v2878
        %2951 = vst [vmem:[#allocation2 + $0xf8] sm:$0xff] %v2879
        %2952 = vst [vmem:[#allocation2 + $0x100] sm:$0xff] %v2880
        %2953 = vst [vmem:[#allocation2 + $0x108] sm:$0xff] %v2881
        %2954 = vst [vmem:[#allocation2 + $0x110] sm:$0xff] %v2882
        %2955 = vst [vmem:[#allocation2 + $0x118] sm:$0xff] %v2883
        %2956 = vst [vmem:[#allocation2 + $0x120] sm:$0xff] %v2884
        %2957 = vst [vmem:[#allocation2 + $0x128] sm:$0xff] %v2885
        %2958 = vst [vmem:[#allocation2 + $0x130] sm:$0xff] %v2886
        %2959 = vst [vmem:[#allocation2 + $0x138] sm:$0xff] %v2887
        %2960 = vst [vmem:[#allocation2 + $0x140] sm:$0xff] %v2888
        %2961 = vst [vmem:[#allocation2 + $0x148] sm:$0xff] %v2889
        %2962 = vst [vmem:[#allocation2 + $0x150] sm:$0xff] %v2890
        %2963 = vst [vmem:[#allocation2 + $0x158] sm:$0xff] %v2891
        %2964 = vst [vmem:[#allocation2 + $0x160] sm:$0xff] %v2892
        %2965 = vst [vmem:[#allocation2 + $0x168] sm:$0xff] %v2893
        %2966 = vst [vmem:[#allocation2 + $0x170] sm:$0xff] %v2894
        %2967 = vst [vmem:[#allocation2 + $0x178] sm:$0xff] %v2895
        %2968 = vst [vmem:[#allocation2 + $0x180] sm:$0xff] %v2896
        %2969 = vst [vmem:[#allocation2 + $0x188] sm:$0xff] %v2897
        %2970 = vst [vmem:[#allocation2 + $0x190] sm:$0xff] %v2898
        %2971 = vst [vmem:[#allocation2 + $0x198] sm:$0xff] %v2899
        %2972 = vst [vmem:[#allocation2 + $0x1a0] sm:$0xff] %v2900
        %2973 = vst [vmem:[#allocation2 + $0x1a8] sm:$0xff] %v2901
        %2974 = vst [vmem:[#allocation2 + $0x1b0] sm:$0xff] %v2902
        %2975 = vst [vmem:[#allocation2 + $0x1b8] sm:$0xff] %v2903
        %2976 = vst [vmem:[#allocation2 + $0x1c0] sm:$0xff] %v2904
        %2977 = vst [vmem:[#allocation2 + $0x1c8] sm:$0xff] %v2905
        %2978 = vst [vmem:[#allocation2 + $0x1d0] sm:$0xff] %v2906
        %2979 = vst [vmem:[#allocation2 + $0x1d8] sm:$0xff] %v2907
        %2980 = vst [vmem:[#allocation2 + $0x1e0] sm:$0xff] %v2908
        %2981 = vst [vmem:[#allocation2 + $0x1e8] sm:$0xff] %v2909
        %2982 = vst [vmem:[#allocation2 + $0x1f0] sm:$0xff] %v2910
        %2983 = vst [vmem:[#allocation2 + $0x1f8] sm:$0xff] %v2911
        %2984 = vst [vmem:[#allocation2 + $0x200] sm:$0xff] %v2912
        %2985 = vst [vmem:[#allocation2 + $0x208] sm:$0xff] %v2913
        %2986 = vst [vmem:[#allocation2 + $0x210] sm:$0xff] %v2914
        %2987 = vst [vmem:[#allocation2 + $0x218] sm:$0xff] %v2915
        %2988 = vst [vmem:[#allocation2 + $0x220] sm:$0xff] %v2916
        %2989 = vst [vmem:[#allocation2 + $0x228] sm:$0xff] %v2917
        %2990 = vst [vmem:[#allocation2 + $0x230] sm:$0xff] %v2918
        %2991 = vst [vmem:[#allocation2 + $0x238] sm:$0xff] %v2919
        %v2992 = vlaneseq
        %v2993 = vshrl.u32 %v2992, 7
        %v2994 = vadd.s32 %v2993, 8
        %v2995 = vadd.s32 %v2993, 16
        %v2996 = vadd.s32 %v2993, 24
        %v2997 = vadd.s32 %v2993, 32
        %v2998 = vadd.s32 %v2993, 40
        %v2999 = vadd.s32 %v2993, 48
        %v3000 = vadd.s32 %v2993, 56
        %v3001 = vadd.s32 %v2993, 64
        %v3002 = vadd.s32 %v2993, 72
        %v3003 = vadd.s32 %v2993, 80
        %v3004 = vadd.s32 %v2993, 88
        %v3005 = vadd.s32 %v2993, 96
        %v3006 = vadd.s32 %v2993, 104
        %v3007 = vadd.s32 %v2993, 112
        %v3008 = vadd.s32 %v2993, 120
        %v3009 = vlaneseq
        %v3010 = vand.u32 %v3009, 127
        %vm3011 = vcmp.ge.s32.totalorder %v2993, %v3010
        %vm3012 = vcmp.ge.s32.totalorder %v2994, %v3010
        %vm3013 = vcmp.ge.s32.totalorder %v2995, %v3010
        %vm3014 = vcmp.ge.s32.totalorder %v2996, %v3010
        %vm3015 = vcmp.ge.s32.totalorder %v2997, %v3010
        %vm3016 = vcmp.ge.s32.totalorder %v2998, %v3010
        %vm3017 = vcmp.ge.s32.totalorder %v2999, %v3010
        %vm3018 = vcmp.ge.s32.totalorder %v3000, %v3010
        %vm3019 = vcmp.ge.s32.totalorder %v3001, %v3010
        %vm3020 = vcmp.ge.s32.totalorder %v3002, %v3010
        %vm3021 = vcmp.ge.s32.totalorder %v3003, %v3010
        %vm3022 = vcmp.ge.s32.totalorder %v3004, %v3010
        %vm3023 = vcmp.ge.s32.totalorder %v3005, %v3010
        %vm3024 = vcmp.ge.s32.totalorder %v3006, %v3010
        %vm3025 = vcmp.ge.s32.totalorder %v3007, %v3010
        %vm3026 = vcmp.ge.s32.totalorder %v3008, %v3010
        %v3027 = vld [vmem:[#allocation2] sm:$0xff]
        %v3028 = vld [vmem:[#allocation2 + $0x48] sm:$0xff]
        %v3029 = vld [vmem:[#allocation2 + $0x90] sm:$0xff]
        %v3030 = vld [vmem:[#allocation2 + $0xd8] sm:$0xff]
        %v3031 = vld [vmem:[#allocation2 + $0x120] sm:$0xff]
        %v3032 = vld [vmem:[#allocation2 + $0x168] sm:$0xff]
        %v3033 = vld [vmem:[#allocation2 + $0x1b0] sm:$0xff]
        %v3034 = vld [vmem:[#allocation2 + $0x1f8] sm:$0xff]
        %v3035 = vld [vmem:[#allocation2 + $0x18] sm:$0xff]
        %v3036 = vld [vmem:[#allocation2 + $0x60] sm:$0xff]
        %v3037 = vld [vmem:[#allocation2 + $0xa8] sm:$0xff]
        %v3038 = vld [vmem:[#allocation2 + $0xf0] sm:$0xff]
        %v3039 = vld [vmem:[#allocation2 + $0x138] sm:$0xff]
        %v3040 = vld [vmem:[#allocation2 + $0x180] sm:$0xff]
        %v3041 = vld [vmem:[#allocation2 + $0x1c8] sm:$0xff]
        %v3042 = vld [vmem:[#allocation2 + $0x210] sm:$0xff]
        %v3043 = vld [vmem:[#allocation2 + $0x30] sm:$0xff]
        %v3044 = vld [vmem:[#allocation2 + $0x78] sm:$0xff]
        %v3045 = vld [vmem:[#allocation2 + $0xc0] sm:$0xff]
        %v3046 = vld [vmem:[#allocation2 + $0x108] sm:$0xff]
        %v3047 = vld [vmem:[#allocation2 + $0x150] sm:$0xff]
        %v3048 = vld [vmem:[#allocation2 + $0x198] sm:$0xff]
        %v3049 = vld [vmem:[#allocation2 + $0x1e0] sm:$0xff]
        %v3050 = vld [vmem:[#allocation2 + $0x228] sm:$0xff]
        %vm3051 = vcmask 523264
        %v3053 = vsel %vm3051, %v3027, 0
        %v3056 = vsel %vm3051, %v3028, 0
        %v3059 = vsel %vm3051, %v3029, 0
        %v3062 = vsel %vm3051, %v3030, 0
        %v3065 = vsel %vm3051, %v3031, 0
        %v3068 = vsel %vm3051, %v3032, 0
        %v3071 = vsel %vm3051, %v3033, 0
        %v3074 = vsel %vm3051, %v3034, 0
        %v3077 = vsel %vm3051, %v3035, 0
        %v3080 = vsel %vm3051, %v3036, 0
        %v3083 = vsel %vm3051, %v3037, 0
        %v3086 = vsel %vm3051, %v3038, 0
        %v3089 = vsel %vm3051, %v3039, 0
        %v3092 = vsel %vm3051, %v3040, 0
        %v3095 = vsel %vm3051, %v3041, 0
        %v3098 = vsel %vm3051, %v3042, 0
        %3100 = vmatprep.subr.bf16.mxu0 0
        %3101 = vmatpush1.bf16.xpose.msra.mxu0 %v3077
        %3102 = vmatprep.subr.bf16.mxu0 0
        %3103 = vmatpush1.bf16.xpose.msra.mxu0 %v3080
        %3104 = vmatprep.subr.bf16.mxu0 0
        %3105 = vmatpush1.bf16.xpose.msra.mxu0 %v3083
        %3106 = vmatprep.subr.bf16.mxu0 0
        %3107 = vmatpush1.bf16.xpose.msra.mxu0 %v3086
        %3108 = vmatprep.subr.bf16.mxu0 0
        %3109 = vmatpush1.bf16.xpose.msra.mxu0 %v3089
        %3110 = vmatprep.subr.bf16.mxu0 0
        %3111 = vmatpush1.bf16.xpose.msra.mxu0 %v3092
        %3112 = vmatprep.subr.bf16.mxu0 0
        %3113 = vmatpush1.bf16.xpose.msra.mxu0 %v3095
        %3114 = vmatprep.subr.bf16.mxu0 0
        %3115 = vmatpush1.bf16.xpose.msra.mxu0 %v3098
        %3116 = vmatprep.subr.bf16.mxu0 0
        %3117 = vmatpush1.bf16.xpose.msra.mxu0 0
        %3118 = vmatprep.subr.bf16.mxu0 0
        %3119 = vmatpush1.bf16.xpose.msra.mxu0 0
        %3120 = vmatprep.subr.bf16.mxu0 0
        %3121 = vmatpush1.bf16.xpose.msra.mxu0 0
        %3122 = vmatprep.subr.bf16.mxu0 0
        %3123 = vmatpush1.bf16.xpose.msra.mxu0 0
        %3124 = vmatprep.subr.bf16.mxu0 0
        %3125 = vmatpush1.bf16.xpose.msra.mxu0 0
        %3126 = vmatprep.subr.bf16.mxu0 0
        %3127 = vmatpush1.bf16.xpose.msra.mxu0 0
        %3128 = vmatprep.subr.bf16.mxu0 0
        %3129 = vmatpush1.bf16.xpose.msra.mxu0 0
        %3130 = vmatprep.subr.bf16.mxu0 0
        %3131 = vmatpush1.bf16.xpose.msra.mxu0 0
        %3132 = vmatprep.mubr.bf16.mxu0 0
        %3133 = vmatmul.mubr.bf16.gmra.mrb[0].mxu0 %v3053
        %v3134 = vpop.f32.mrb[0].mxu0
        %v3135 = vadd.f32 0.0, %v3134
        %v3136 = vpop.f32.mrb[0].mxu0
        %v3137 = vpop.f32.mrb[0].mxu0
        %v3138 = vadd.f32 0.0, %v3137
        %v3139 = vpop.f32.mrb[0].mxu0
        %3140 = vmatprep.mubr.bf16.mxu0 0
        %3141 = vmatmul.mubr.bf16.gmra.mrb[0].mxu0 %v3056
        %v3142 = vpop.f32.mrb[0].mxu0
        %v3143 = vadd.f32 0.0, %v3142
        %v3144 = vpop.f32.mrb[0].mxu0
        %v3145 = vpop.f32.mrb[0].mxu0
        %v3146 = vadd.f32 0.0, %v3145
        %v3147 = vpop.f32.mrb[0].mxu0
        %3148 = vmatprep.mubr.bf16.mxu0 0
        %3149 = vmatmul.mubr.bf16.gmra.mrb[0].mxu0 %v3059
        %v3150 = vpop.f32.mrb[0].mxu0
        %v3151 = vadd.f32 0.0, %v3150
        %v3152 = vpop.f32.mrb[0].mxu0
        %v3153 = vpop.f32.mrb[0].mxu0
        %v3154 = vadd.f32 0.0, %v3153
        %v3155 = vpop.f32.mrb[0].mxu0
        %3156 = vmatprep.mubr.bf16.mxu0 0
        %3157 = vmatmul.mubr.bf16.gmra.mrb[0].mxu0 %v3062
        %v3158 = vpop.f32.mrb[0].mxu0
        %v3159 = vadd.f32 0.0, %v3158
        %v3160 = vpop.f32.mrb[0].mxu0
        %v3161 = vpop.f32.mrb[0].mxu0
        %v3162 = vadd.f32 0.0, %v3161
        %v3163 = vpop.f32.mrb[0].mxu0
        %3164 = vmatprep.mubr.bf16.mxu0 0
        %3165 = vmatmul.mubr.bf16.gmra.mrb[0].mxu0 %v3065
        %v3166 = vpop.f32.mrb[0].mxu0
        %v3167 = vadd.f32 0.0, %v3166
        %v3168 = vpop.f32.mrb[0].mxu0
        %v3169 = vpop.f32.mrb[0].mxu0
        %v3170 = vadd.f32 0.0, %v3169
        %v3171 = vpop.f32.mrb[0].mxu0
        %3172 = vmatprep.mubr.bf16.mxu0 0
        %3173 = vmatmul.mubr.bf16.gmra.mrb[0].mxu0 %v3068
        %v3174 = vpop.f32.mrb[0].mxu0
        %v3175 = vadd.f32 0.0, %v3174
        %v3176 = vpop.f32.mrb[0].mxu0
        %v3177 = vpop.f32.mrb[0].mxu0
        %v3178 = vadd.f32 0.0, %v3177
        %v3179 = vpop.f32.mrb[0].mxu0
        %3180 = vmatprep.mubr.bf16.mxu0 0
        %3181 = vmatmul.mubr.bf16.gmra.mrb[0].mxu0 %v3071
        %v3182 = vpop.f32.mrb[0].mxu0
        %v3183 = vadd.f32 0.0, %v3182
        %v3184 = vpop.f32.mrb[0].mxu0
        %v3185 = vpop.f32.mrb[0].mxu0
        %v3186 = vadd.f32 0.0, %v3185
        %v3187 = vpop.f32.mrb[0].mxu0
        %3188 = vmatprep.mubr.bf16.mxu0 0
        %3189 = vmatmul.mubr.bf16.gmra.mrb[0].mxu0 %v3074
        %v3190 = vpop.f32.mrb[0].mxu0
        %v3191 = vadd.f32 0.0, %v3190
        %v3192 = vpop.f32.mrb[0].mxu0
        %v3193 = vpop.f32.mrb[0].mxu0
        %v3194 = vadd.f32 0.0, %v3193
        %v3195 = vpop.f32.mrb[0].mxu0
        %3196 = vdwg.mxu0
        %v3197 = vmul.f32 %v3135, 0.05103104
        %v3198 = vmul.f32 %v3138, 0.05103104
        %v3199 = vmul.f32 %v3143, 0.05103104
        %v3200 = vmul.f32 %v3146, 0.05103104
        %v3201 = vmul.f32 %v3151, 0.05103104
        %v3202 = vmul.f32 %v3154, 0.05103104
        %v3203 = vmul.f32 %v3159, 0.05103104
        %v3204 = vmul.f32 %v3162, 0.05103104
        %v3205 = vmul.f32 %v3167, 0.05103104
        %v3206 = vmul.f32 %v3170, 0.05103104
        %v3207 = vmul.f32 %v3175, 0.05103104
        %v3208 = vmul.f32 %v3178, 0.05103104
        %v3209 = vmul.f32 %v3183, 0.05103104
        %v3210 = vmul.f32 %v3186, 0.05103104
        %v3211 = vmul.f32 %v3191, 0.05103104
        %v3212 = vmul.f32 %v3194, 0.05103104
        %v3213 = vsel %vm3011, %v3197, -1e+30
        %v3214 = vsel %vm3012, %v3198, -1e+30
        %v3215 = vsel %vm3013, %v3199, -1e+30
        %v3216 = vsel %vm3014, %v3200, -1e+30
        %v3217 = vsel %vm3015, %v3201, -1e+30
        %v3218 = vsel %vm3016, %v3202, -1e+30
        %v3219 = vsel %vm3017, %v3203, -1e+30
        %v3220 = vsel %vm3018, %v3204, -1e+30
        %v3221 = vsel %vm3019, %v3205, -1e+30
        %v3222 = vsel %vm3020, %v3206, -1e+30
        %v3223 = vsel %vm3021, %v3207, -1e+30
        %v3224 = vsel %vm3022, %v3208, -1e+30
        %v3225 = vsel %vm3023, %v3209, -1e+30
        %v3226 = vsel %vm3024, %v3210, -1e+30
        %v3227 = vsel %vm3025, %v3211, -1e+30
        %v3228 = vsel %vm3026, %v3212, -1e+30
        %3229 = vmax.xlane.f32.xlu0 %v3213
        %v3230 = vpop.xlane.xlu0 %3229
        %3231 = vmax.xlane.f32.xlu0 %v3214
        %v3232 = vpop.xlane.xlu0 %3231
        %3233 = vmax.xlane.f32.xlu0 %v3215
        %v3234 = vpop.xlane.xlu0 %3233
        %3235 = vmax.xlane.f32.xlu0 %v3216
        %v3236 = vpop.xlane.xlu0 %3235
        %3237 = vmax.xlane.f32.xlu0 %v3217
        %v3238 = vpop.xlane.xlu0 %3237
        %3239 = vmax.xlane.f32.xlu0 %v3218
        %v3240 = vpop.xlane.xlu0 %3239
        %3241 = vmax.xlane.f32.xlu0 %v3219
        %v3242 = vpop.xlane.xlu0 %3241
        %3243 = vmax.xlane.f32.xlu0 %v3220
        %v3244 = vpop.xlane.xlu0 %3243
        %3245 = vmax.xlane.f32.xlu0 %v3221
        %v3246 = vpop.xlane.xlu0 %3245
        %3247 = vmax.xlane.f32.xlu0 %v3222
        %v3248 = vpop.xlane.xlu0 %3247
        %3249 = vmax.xlane.f32.xlu0 %v3223
        %v3250 = vpop.xlane.xlu0 %3249
        %3251 = vmax.xlane.f32.xlu0 %v3224
        %v3252 = vpop.xlane.xlu0 %3251
        %3253 = vmax.xlane.f32.xlu0 %v3225
        %v3254 = vpop.xlane.xlu0 %3253
        %3255 = vmax.xlane.f32.xlu0 %v3226
        %v3256 = vpop.xlane.xlu0 %3255
        %3257 = vmax.xlane.f32.xlu0 %v3227
        %v3258 = vpop.xlane.xlu0 %3257
        %3259 = vmax.xlane.f32.xlu0 %v3228
        %v3260 = vpop.xlane.xlu0 %3259
        %v3261 = vsub.f32 %v3213, %v3230
        %v3262 = vsub.f32 %v3214, %v3232
        %v3263 = vsub.f32 %v3215, %v3234
        %v3264 = vsub.f32 %v3216, %v3236
        %v3265 = vsub.f32 %v3217, %v3238
        %v3266 = vsub.f32 %v3218, %v3240
        %v3267 = vsub.f32 %v3219, %v3242
        %v3268 = vsub.f32 %v3220, %v3244
        %v3269 = vsub.f32 %v3221, %v3246
        %v3270 = vsub.f32 %v3222, %v3248
        %v3271 = vsub.f32 %v3223, %v3250
        %v3272 = vsub.f32 %v3224, %v3252
        %v3273 = vsub.f32 %v3225, %v3254
        %v3274 = vsub.f32 %v3226, %v3256
        %v3275 = vsub.f32 %v3227, %v3258
        %v3276 = vsub.f32 %v3228, %v3260
        %v3277 = vmul.f32 %v3261, 1.442695
        %v3278 = vpow.pop %v3277
        %v3279 = vmul.f32 %v3262, 1.442695
        %v3280 = vpow.pop %v3279
        %v3281 = vmul.f32 %v3263, 1.442695
        %v3282 = vpow.pop %v3281
        %v3283 = vmul.f32 %v3264, 1.442695
        %v3284 = vpow.pop %v3283
        %v3285 = vmul.f32 %v3265, 1.442695
        %v3286 = vpow.pop %v3285
        %v3287 = vmul.f32 %v3266, 1.442695
        %v3288 = vpow.pop %v3287
        %v3289 = vmul.f32 %v3267, 1.442695
        %v3290 = vpow.pop %v3289
        %v3291 = vmul.f32 %v3268, 1.442695
        %v3292 = vpow.pop %v3291
        %v3293 = vmul.f32 %v3269, 1.442695
        %v3294 = vpow.pop %v3293
        %v3295 = vmul.f32 %v3270, 1.442695
        %v3296 = vpow.pop %v3295
        %v3297 = vmul.f32 %v3271, 1.442695
        %v3298 = vpow.pop %v3297
        %v3299 = vmul.f32 %v3272, 1.442695
        %v3300 = vpow.pop %v3299
        %v3301 = vmul.f32 %v3273, 1.442695
        %v3302 = vpow.pop %v3301
        %v3303 = vmul.f32 %v3274, 1.442695
        %v3304 = vpow.pop %v3303
        %v3305 = vmul.f32 %v3275, 1.442695
        %v3306 = vpow.pop %v3305
        %v3307 = vmul.f32 %v3276, 1.442695
        %v3308 = vpow.pop %v3307
        %3309 = vadd.xlane.f32.xlu0 %v3278
        %v3310 = vpop.xlane.xlu0 %3309
        %3311 = vadd.xlane.f32.xlu0 %v3280
        %v3312 = vpop.xlane.xlu0 %3311
        %3313 = vadd.xlane.f32.xlu0 %v3282
        %v3314 = vpop.xlane.xlu0 %3313
        %3315 = vadd.xlane.f32.xlu0 %v3284
        %v3316 = vpop.xlane.xlu0 %3315
        %3317 = vadd.xlane.f32.xlu0 %v3286
        %v3318 = vpop.xlane.xlu0 %3317
        %3319 = vadd.xlane.f32.xlu0 %v3288
        %v3320 = vpop.xlane.xlu0 %3319
        %3321 = vadd.xlane.f32.xlu0 %v3290
        %v3322 = vpop.xlane.xlu0 %3321
        %3323 = vadd.xlane.f32.xlu0 %v3292
        %v3324 = vpop.xlane.xlu0 %3323
        %3325 = vadd.xlane.f32.xlu0 %v3294
        %v3326 = vpop.xlane.xlu0 %3325
        %3327 = vadd.xlane.f32.xlu0 %v3296
        %v3328 = vpop.xlane.xlu0 %3327
        %3329 = vadd.xlane.f32.xlu0 %v3298
        %v3330 = vpop.xlane.xlu0 %3329
        %3331 = vadd.xlane.f32.xlu0 %v3300
        %v3332 = vpop.xlane.xlu0 %3331
        %3333 = vadd.xlane.f32.xlu0 %v3302
        %v3334 = vpop.xlane.xlu0 %3333
        %3335 = vadd.xlane.f32.xlu0 %v3304
        %v3336 = vpop.xlane.xlu0 %3335
        %3337 = vadd.xlane.f32.xlu0 %v3306
        %v3338 = vpop.xlane.xlu0 %3337
        %3339 = vadd.xlane.f32.xlu0 %v3308
        %v3340 = vpop.xlane.xlu0 %3339
        %v3341 = vrcp.pop %v3310
        %v3342 = vrcp.pop %v3312
        %v3343 = vrcp.pop %v3314
        %v3344 = vrcp.pop %v3316
        %v3345 = vrcp.pop %v3318
        %v3346 = vrcp.pop %v3320
        %v3347 = vrcp.pop %v3322
        %v3348 = vrcp.pop %v3324
        %v3349 = vrcp.pop %v3326
        %v3350 = vrcp.pop %v3328
        %v3351 = vrcp.pop %v3330
        %v3352 = vrcp.pop %v3332
        %v3353 = vrcp.pop %v3334
        %v3354 = vrcp.pop %v3336
        %v3355 = vrcp.pop %v3338
        %v3356 = vrcp.pop %v3340
        %v3357 = vmul.f32 %v3278, %v3341
        %v3358 = vmul.f32 %v3280, %v3342
        %v3359 = vmul.f32 %v3282, %v3343
        %v3360 = vmul.f32 %v3284, %v3344
        %v3361 = vmul.f32 %v3286, %v3345
        %v3362 = vmul.f32 %v3288, %v3346
        %v3363 = vmul.f32 %v3290, %v3347
        %v3364 = vmul.f32 %v3292, %v3348
        %v3365 = vmul.f32 %v3294, %v3349
        %v3366 = vmul.f32 %v3296, %v3350
        %v3367 = vmul.f32 %v3298, %v3351
        %v3368 = vmul.f32 %v3300, %v3352
        %v3369 = vmul.f32 %v3302, %v3353
        %v3370 = vmul.f32 %v3304, %v3354
        %v3371 = vmul.f32 %v3306, %v3355
        %v3372 = vmul.f32 %v3308, %v3356
        %v3373 = vpack.c.bf16 %v3358, %v3357
        %v3374 = vpack.c.bf16 %v3360, %v3359
        %v3375 = vpack.c.bf16 %v3362, %v3361
        %v3376 = vpack.c.bf16 %v3364, %v3363
        %v3377 = vpack.c.bf16 %v3366, %v3365
        %v3378 = vpack.c.bf16 %v3368, %v3367
        %v3379 = vpack.c.bf16 %v3370, %v3369
        %v3380 = vpack.c.bf16 %v3372, %v3371
        %3381 = vmatprep.subr.bf16.mxu0 0
        %3382 = vmatpush1.bf16.msra.mxu0 %v3043
        %3383 = vmatprep.subr.bf16.mxu0 0
        %3384 = vmatpush1.bf16.msra.mxu0 %v3044
        %3385 = vmatprep.subr.bf16.mxu0 0
        %3386 = vmatpush1.bf16.msra.mxu0 %v3045
        %3387 = vmatprep.subr.bf16.mxu0 0
        %3388 = vmatpush1.bf16.msra.mxu0 %v3046
        %3389 = vmatprep.subr.bf16.mxu0 0
        %3390 = vmatpush1.bf16.msra.mxu0 %v3047
        %3391 = vmatprep.subr.bf16.mxu0 0
        %3392 = vmatpush1.bf16.msra.mxu0 %v3048
        %3393 = vmatprep.subr.bf16.mxu0 0
        %3394 = vmatpush1.bf16.msra.mxu0 %v3049
        %3395 = vmatprep.subr.bf16.mxu0 0
        %3396 = vmatpush1.bf16.msra.mxu0 %v3050
        %3397 = vmatprep.subr.bf16.mxu0 0
        %3398 = vmatpush1.bf16.msra.mxu0 0
        %3399 = vmatprep.subr.bf16.mxu0 0
        %3400 = vmatpush1.bf16.msra.mxu0 0
        %3401 = vmatprep.subr.bf16.mxu0 0
        %3402 = vmatpush1.bf16.msra.mxu0 0
        %3403 = vmatprep.subr.bf16.mxu0 0
        %3404 = vmatpush1.bf16.msra.mxu0 0
        %3405 = vmatprep.subr.bf16.mxu0 0
        %3406 = vmatpush1.bf16.msra.mxu0 0
        %3407 = vmatprep.subr.bf16.mxu0 0
        %3408 = vmatpush1.bf16.msra.mxu0 0
        %3409 = vmatprep.subr.bf16.mxu0 0
        %3410 = vmatpush1.bf16.msra.mxu0 0
        %3411 = vmatprep.subr.bf16.mxu0 0
        %3412 = vmatpush1.bf16.msra.mxu0 0
        %3413 = vmatprep.mubr.bf16.mxu0 0
        %3414 = vmatmul.mubr.bf16.gmra.mrb[0].mxu0 %v3373
        %v3415 = vpop.f32.mrb[0].mxu0
        %v3416 = vadd.f32 0.0, %v3415
        %v3417 = vpop.f32.mrb[0].mxu0
        %v3418 = vpop.f32.mrb[0].mxu0
        %v3419 = vadd.f32 0.0, %v3418
        %v3420 = vpop.f32.mrb[0].mxu0
        %3421 = vmatprep.mubr.bf16.mxu0 0
        %3422 = vmatmul.mubr.bf16.gmra.mrb[0].mxu0 %v3374
        %v3423 = vpop.f32.mrb[0].mxu0
        %v3424 = vadd.f32 0.0, %v3423
        %v3425 = vpop.f32.mrb[0].mxu0
        %v3426 = vpop.f32.mrb[0].mxu0
        %v3427 = vadd.f32 0.0, %v3426
        %v3428 = vpop.f32.mrb[0].mxu0
        %3429 = vmatprep.mubr.bf16.mxu0 0
        %3430 = vmatmul.mubr.bf16.gmra.mrb[0].mxu0 %v3375
        %v3431 = vpop.f32.mrb[0].mxu0
        %v3432 = vadd.f32 0.0, %v3431
        %v3433 = vpop.f32.mrb[0].mxu0
        %v3434 = vpop.f32.mrb[0].mxu0
        %v3435 = vadd.f32 0.0, %v3434
        %v3436 = vpop.f32.mrb[0].mxu0
        %3437 = vmatprep.mubr.bf16.mxu0 0
        %3438 = vmatmul.mubr.bf16.gmra.mrb[0].mxu0 %v3376
        %v3439 = vpop.f32.mrb[0].mxu0
        %v3440 = vadd.f32 0.0, %v3439
        %v3441 = vpop.f32.mrb[0].mxu0
        %v3442 = vpop.f32.mrb[0].mxu0
        %v3443 = vadd.f32 0.0, %v3442
        %v3444 = vpop.f32.mrb[0].mxu0
        %3445 = vmatprep.mubr.bf16.mxu0 0
        %3446 = vmatmul.mubr.bf16.gmra.mrb[0].mxu0 %v3377
        %v3447 = vpop.f32.mrb[0].mxu0
        %v3448 = vadd.f32 0.0, %v3447
        %v3449 = vpop.f32.mrb[0].mxu0
        %v3450 = vpop.f32.mrb[0].mxu0
        %v3451 = vadd.f32 0.0, %v3450
        %v3452 = vpop.f32.mrb[0].mxu0
        %3453 = vmatprep.mubr.bf16.mxu0 0
        %3454 = vmatmul.mubr.bf16.gmra.mrb[0].mxu0 %v3378
        %v3455 = vpop.f32.mrb[0].mxu0
        %v3456 = vadd.f32 0.0, %v3455
        %v3457 = vpop.f32.mrb[0].mxu0
        %v3458 = vpop.f32.mrb[0].mxu0
        %v3459 = vadd.f32 0.0, %v3458
        %v3460 = vpop.f32.mrb[0].mxu0
        %3461 = vmatprep.mubr.bf16.mxu0 0
        %3462 = vmatmul.mubr.bf16.gmra.mrb[0].mxu0 %v3379
        %v3463 = vpop.f32.mrb[0].mxu0
        %v3464 = vadd.f32 0.0, %v3463
        %v3465 = vpop.f32.mrb[0].mxu0
        %v3466 = vpop.f32.mrb[0].mxu0
        %v3467 = vadd.f32 0.0, %v3466
        %v3468 = vpop.f32.mrb[0].mxu0
        %3469 = vmatprep.mubr.bf16.mxu0 0
        %3470 = vmatmul.mubr.bf16.gmra.mrb[0].mxu0 %v3380
        %v3471 = vpop.f32.mrb[0].mxu0
        %v3472 = vadd.f32 0.0, %v3471
        %v3473 = vpop.f32.mrb[0].mxu0
        %v3474 = vpop.f32.mrb[0].mxu0
        %v3475 = vadd.f32 0.0, %v3474
        %v3476 = vpop.f32.mrb[0].mxu0
        %3477 = vdwg.mxu0
        %v3478 = vpack.c.bf16 %v3419, %v3416
        %v3479 = vpack.c.bf16 %v3427, %v3424
        %v3480 = vpack.c.bf16 %v3435, %v3432
        %v3481 = vpack.c.bf16 %v3443, %v3440
        %v3482 = vpack.c.bf16 %v3451, %v3448
        %v3483 = vpack.c.bf16 %v3459, %v3456
        %v3484 = vpack.c.bf16 %v3467, %v3464
        %v3485 = vpack.c.bf16 %v3475, %v3472
        %3486 = vst.msk [vmem:[#allocation3] sm:$0xff] %vm3051, %v3478
        %3487 = vst.msk [vmem:[#allocation3 + $0x18] sm:$0xff] %vm3051, %v3479
        %3488 = vst.msk [vmem:[#allocation3 + $0x30] sm:$0xff] %vm3051, %v3480
        %3489 = vst.msk [vmem:[#allocation3 + $0x48] sm:$0xff] %vm3051, %v3481
        %3490 = vst.msk [vmem:[#allocation3 + $0x60] sm:$0xff] %vm3051, %v3482
        %3491 = vst.msk [vmem:[#allocation3 + $0x78] sm:$0xff] %vm3051, %v3483
        %3492 = vst.msk [vmem:[#allocation3 + $0x90] sm:$0xff] %vm3051, %v3484
        %3493 = vst.msk [vmem:[#allocation3 + $0xa8] sm:$0xff] %vm3051, %v3485
        %v3494 = vld [vmem:[#allocation2] sm:$0xff]
        %v3495 = vld [vmem:[#allocation2 + $0x48] sm:$0xff]
        %v3496 = vld [vmem:[#allocation2 + $0x90] sm:$0xff]
        %v3497 = vld [vmem:[#allocation2 + $0xd8] sm:$0xff]
        %v3498 = vld [vmem:[#allocation2 + $0x120] sm:$0xff]
        %v3499 = vld [vmem:[#allocation2 + $0x168] sm:$0xff]
        %v3500 = vld [vmem:[#allocation2 + $0x1b0] sm:$0xff]
        %v3501 = vld [vmem:[#allocation2 + $0x1f8] sm:$0xff]
        %v3502 = vld [vmem:[#allocation2 + $0x18] sm:$0xff]
        %v3503 = vld [vmem:[#allocation2 + $0x60] sm:$0xff]
        %v3504 = vld [vmem:[#allocation2 + $0xa8] sm:$0xff]
        %v3505 = vld [vmem:[#allocation2 + $0xf0] sm:$0xff]
        %v3506 = vld [vmem:[#allocation2 + $0x138] sm:$0xff]
        %v3507 = vld [vmem:[#allocation2 + $0x180] sm:$0xff]
        %v3508 = vld [vmem:[#allocation2 + $0x1c8] sm:$0xff]
        %v3509 = vld [vmem:[#allocation2 + $0x210] sm:$0xff]
        %v3510 = vld [vmem:[#allocation2 + $0x30] sm:$0xff]
        %v3511 = vld [vmem:[#allocation2 + $0x78] sm:$0xff]
        %v3512 = vld [vmem:[#allocation2 + $0xc0] sm:$0xff]
        %v3513 = vld [vmem:[#allocation2 + $0x108] sm:$0xff]
        %v3514 = vld [vmem:[#allocation2 + $0x150] sm:$0xff]
        %v3515 = vld [vmem:[#allocation2 + $0x198] sm:$0xff]
        %v3516 = vld [vmem:[#allocation2 + $0x1e0] sm:$0xff]
        %v3517 = vld [vmem:[#allocation2 + $0x228] sm:$0xff]
        %3526 = vrot.lane.b32.xlu0 %v3494, 64
        %v3527 = vpop.permute.xlu0 %3526
        %3528 = vrot.lane.b32.xlu0 %v3495, 64
        %v3529 = vpop.permute.xlu0 %3528
        %3530 = vrot.lane.b32.xlu0 %v3496, 64
        %v3531 = vpop.permute.xlu0 %3530
        %3532 = vrot.lane.b32.xlu0 %v3497, 64
        %v3533 = vpop.permute.xlu0 %3532
        %3534 = vrot.lane.b32.xlu0 %v3498, 64
        %v3535 = vpop.permute.xlu0 %3534
        %3536 = vrot.lane.b32.xlu0 %v3499, 64
        %v3537 = vpop.permute.xlu0 %3536
        %3538 = vrot.lane.b32.xlu0 %v3500, 64
        %v3539 = vpop.permute.xlu0 %3538
        %3540 = vrot.lane.b32.xlu0 %v3501, 64
        %v3541 = vpop.permute.xlu0 %3540
        %3550 = vrot.lane.b32.xlu0 %v3502, 64
        %v3551 = vpop.permute.xlu0 %3550
        %3552 = vrot.lane.b32.xlu0 %v3503, 64
        %v3553 = vpop.permute.xlu0 %3552
        %3554 = vrot.lane.b32.xlu0 %v3504, 64
        %v3555 = vpop.permute.xlu0 %3554
        %3556 = vrot.lane.b32.xlu0 %v3505, 64
        %v3557 = vpop.permute.xlu0 %3556
        %3558 = vrot.lane.b32.xlu0 %v3506, 64
        %v3559 = vpop.permute.xlu0 %3558
        %3560 = vrot.lane.b32.xlu0 %v3507, 64
        %v3561 = vpop.permute.xlu0 %3560
        %3562 = vrot.lane.b32.xlu0 %v3508, 64
        %v3563 = vpop.permute.xlu0 %3562
        %3564 = vrot.lane.b32.xlu0 %v3509, 64
        %v3565 = vpop.permute.xlu0 %3564
        %v3567 = vsel %vm3051, %v3527, 0
        %v3570 = vsel %vm3051, %v3529, 0
        %v3573 = vsel %vm3051, %v3531, 0
        %v3576 = vsel %vm3051, %v3533, 0
        %v3579 = vsel %vm3051, %v3535, 0
        %v3582 = vsel %vm3051, %v3537, 0
        %v3585 = vsel %vm3051, %v3539, 0
        %v3588 = vsel %vm3051, %v3541, 0
        %v3591 = vsel %vm3051, %v3551, 0
        %v3594 = vsel %vm3051, %v3553, 0
        %v3597 = vsel %vm3051, %v3555, 0
        %v3600 = vsel %vm3051, %v3557, 0
        %v3603 = vsel %vm3051, %v3559, 0
        %v3606 = vsel %vm3051, %v3561, 0
        %v3609 = vsel %vm3051, %v3563, 0
        %v3612 = vsel %vm3051, %v3565, 0
        %3614 = vmatprep.subr.bf16.mxu0 0
        %3615 = vmatpush1.bf16.xpose.msra.mxu0 %v3591
        %3616 = vmatprep.subr.bf16.mxu0 0
        %3617 = vmatpush1.bf16.xpose.msra.mxu0 %v3594
        %3618 = vmatprep.subr.bf16.mxu0 0
        %3619 = vmatpush1.bf16.xpose.msra.mxu0 %v3597
        %3620 = vmatprep.subr.bf16.mxu0 0
        %3621 = vmatpush1.bf16.xpose.msra.mxu0 %v3600
        %3622 = vmatprep.subr.bf16.mxu0 0
        %3623 = vmatpush1.bf16.xpose.msra.mxu0 %v3603
        %3624 = vmatprep.subr.bf16.mxu0 0
        %3625 = vmatpush1.bf16.xpose.msra.mxu0 %v3606
        %3626 = vmatprep.subr.bf16.mxu0 0
        %3627 = vmatpush1.bf16.xpose.msra.mxu0 %v3609
        %3628 = vmatprep.subr.bf16.mxu0 0
        %3629 = vmatpush1.bf16.xpose.msra.mxu0 %v3612
        %3630 = vmatprep.subr.bf16.mxu0 0
        %3631 = vmatpush1.bf16.xpose.msra.mxu0 0
        %3632 = vmatprep.subr.bf16.mxu0 0
        %3633 = vmatpush1.bf16.xpose.msra.mxu0 0
        %3634 = vmatprep.subr.bf16.mxu0 0
        %3635 = vmatpush1.bf16.xpose.msra.mxu0 0
        %3636 = vmatprep.subr.bf16.mxu0 0
        %3637 = vmatpush1.bf16.xpose.msra.mxu0 0
        %3638 = vmatprep.subr.bf16.mxu0 0
        %3639 = vmatpush1.bf16.xpose.msra.mxu0 0
        %3640 = vmatprep.subr.bf16.mxu0 0
        %3641 = vmatpush1.bf16.xpose.msra.mxu0 0
        %3642 = vmatprep.subr.bf16.mxu0 0
        %3643 = vmatpush1.bf16.xpose.msra.mxu0 0
        %3644 = vmatprep.subr.bf16.mxu0 0
        %3645 = vmatpush1.bf16.xpose.msra.mxu0 0
        %3646 = vmatprep.mubr.bf16.mxu0 0
        %3647 = vmatmul.mubr.bf16.gmra.mrb[0].mxu0 %v3567
        %v3648 = vpop.f32.mrb[0].mxu0
        %v3649 = vadd.f32 0.0, %v3648
        %v3650 = vpop.f32.mrb[0].mxu0
        %v3651 = vpop.f32.mrb[0].mxu0
        %v3652 = vadd.f32 0.0, %v3651
        %v3653 = vpop.f32.mrb[0].mxu0
        %3654 = vmatprep.mubr.bf16.mxu0 0
        %3655 = vmatmul.mubr.bf16.gmra.mrb[0].mxu0 %v3570
        %v3656 = vpop.f32.mrb[0].mxu0
        %v3657 = vadd.f32 0.0, %v3656
        %v3658 = vpop.f32.mrb[0].mxu0
        %v3659 = vpop.f32.mrb[0].mxu0
        %v3660 = vadd.f32 0.0, %v3659
        %v3661 = vpop.f32.mrb[0].mxu0
        %3662 = vmatprep.mubr.bf16.mxu0 0
        %3663 = vmatmul.mubr.bf16.gmra.mrb[0].mxu0 %v3573
        %v3664 = vpop.f32.mrb[0].mxu0
        %v3665 = vadd.f32 0.0, %v3664
        %v3666 = vpop.f32.mrb[0].mxu0
        %v3667 = vpop.f32.mrb[0].mxu0
        %v3668 = vadd.f32 0.0, %v3667
        %v3669 = vpop.f32.mrb[0].mxu0
        %3670 = vmatprep.mubr.bf16.mxu0 0
        %3671 = vmatmul.mubr.bf16.gmra.mrb[0].mxu0 %v3576
        %v3672 = vpop.f32.mrb[0].mxu0
        %v3673 = vadd.f32 0.0, %v3672
        %v3674 = vpop.f32.mrb[0].mxu0
        %v3675 = vpop.f32.mrb[0].mxu0
        %v3676 = vadd.f32 0.0, %v3675
        %v3677 = vpop.f32.mrb[0].mxu0
        %3678 = vmatprep.mubr.bf16.mxu0 0
        %3679 = vmatmul.mubr.bf16.gmra.mrb[0].mxu0 %v3579
        %v3680 = vpop.f32.mrb[0].mxu0
        %v3681 = vadd.f32 0.0, %v3680
        %v3682 = vpop.f32.mrb[0].mxu0
        %v3683 = vpop.f32.mrb[0].mxu0
        %v3684 = vadd.f32 0.0, %v3683
        %v3685 = vpop.f32.mrb[0].mxu0
        %3686 = vmatprep.mubr.bf16.mxu0 0
        %3687 = vmatmul.mubr.bf16.gmra.mrb[0].mxu0 %v3582
        %v3688 = vpop.f32.mrb[0].mxu0
        %v3689 = vadd.f32 0.0, %v3688
        %v3690 = vpop.f32.mrb[0].mxu0
        %v3691 = vpop.f32.mrb[0].mxu0
        %v3692 = vadd.f32 0.0, %v3691
        %v3693 = vpop.f32.mrb[0].mxu0
        %3694 = vmatprep.mubr.bf16.mxu0 0
        %3695 = vmatmul.mubr.bf16.gmra.mrb[0].mxu0 %v3585
        %v3696 = vpop.f32.mrb[0].mxu0
        %v3697 = vadd.f32 0.0, %v3696
        %v3698 = vpop.f32.mrb[0].mxu0
        %v3699 = vpop.f32.mrb[0].mxu0
        %v3700 = vadd.f32 0.0, %v3699
        %v3701 = vpop.f32.mrb[0].mxu0
        %3702 = vmatprep.mubr.bf16.mxu0 0
        %3703 = vmatmul.mubr.bf16.gmra.mrb[0].mxu0 %v3588
        %v3704 = vpop.f32.mrb[0].mxu0
        %v3705 = vadd.f32 0.0, %v3704
        %v3706 = vpop.f32.mrb[0].mxu0
        %v3707 = vpop.f32.mrb[0].mxu0
        %v3708 = vadd.f32 0.0, %v3707
        %v3709 = vpop.f32.mrb[0].mxu0
        %3710 = vdwg.mxu0
        %v3711 = vmul.f32 %v3649, 0.05103104
        %v3712 = vmul.f32 %v3652, 0.05103104
        %v3713 = vmul.f32 %v3657, 0.05103104
        %v3714 = vmul.f32 %v3660, 0.05103104
        %v3715 = vmul.f32 %v3665, 0.05103104
        %v3716 = vmul.f32 %v3668, 0.05103104
        %v3717 = vmul.f32 %v3673, 0.05103104
        %v3718 = vmul.f32 %v3676, 0.05103104
        %v3719 = vmul.f32 %v3681, 0.05103104
        %v3720 = vmul.f32 %v3684, 0.05103104
        %v3721 = vmul.f32 %v3689, 0.05103104
        %v3722 = vmul.f32 %v3692, 0.05103104
        %v3723 = vmul.f32 %v3697, 0.05103104
        %v3724 = vmul.f32 %v3700, 0.05103104
        %v3725 = vmul.f32 %v3705, 0.05103104
        %v3726 = vmul.f32 %v3708, 0.05103104
        %v3727 = vsel %vm3011, %v3711, -1e+30
        %v3728 = vsel %vm3012, %v3712, -1e+30
        %v3729 = vsel %vm3013, %v3713, -1e+30
        %v3730 = vsel %vm3014, %v3714, -1e+30
        %v3731 = vsel %vm3015, %v3715, -1e+30
        %v3732 = vsel %vm3016, %v3716, -1e+30
        %v3733 = vsel %vm3017, %v3717, -1e+30
        %v3734 = vsel %vm3018, %v3718, -1e+30
        %v3735 = vsel %vm3019, %v3719, -1e+30
        %v3736 = vsel %vm3020, %v3720, -1e+30
        %v3737 = vsel %vm3021, %v3721, -1e+30
        %v3738 = vsel %vm3022, %v3722, -1e+30
        %v3739 = vsel %vm3023, %v3723, -1e+30
        %v3740 = vsel %vm3024, %v3724, -1e+30
        %v3741 = vsel %vm3025, %v3725, -1e+30
        %v3742 = vsel %vm3026, %v3726, -1e+30
        %3743 = vmax.xlane.f32.xlu0 %v3727
        %v3744 = vpop.xlane.xlu0 %3743
        %3745 = vmax.xlane.f32.xlu0 %v3728
        %v3746 = vpop.xlane.xlu0 %3745
        %3747 = vmax.xlane.f32.xlu0 %v3729
        %v3748 = vpop.xlane.xlu0 %3747
        %3749 = vmax.xlane.f32.xlu0 %v3730
        %v3750 = vpop.xlane.xlu0 %3749
        %3751 = vmax.xlane.f32.xlu0 %v3731
        %v3752 = vpop.xlane.xlu0 %3751
        %3753 = vmax.xlane.f32.xlu0 %v3732
        %v3754 = vpop.xlane.xlu0 %3753
        %3755 = vmax.xlane.f32.xlu0 %v3733
        %v3756 = vpop.xlane.xlu0 %3755
        %3757 = vmax.xlane.f32.xlu0 %v3734
        %v3758 = vpop.xlane.xlu0 %3757
        %3759 = vmax.xlane.f32.xlu0 %v3735
        %v3760 = vpop.xlane.xlu0 %3759
        %3761 = vmax.xlane.f32.xlu0 %v3736
        %v3762 = vpop.xlane.xlu0 %3761
        %3763 = vmax.xlane.f32.xlu0 %v3737
        %v3764 = vpop.xlane.xlu0 %3763
        %3765 = vmax.xlane.f32.xlu0 %v3738
        %v3766 = vpop.xlane.xlu0 %3765
        %3767 = vmax.xlane.f32.xlu0 %v3739
        %v3768 = vpop.xlane.xlu0 %3767
        %3769 = vmax.xlane.f32.xlu0 %v3740
        %v3770 = vpop.xlane.xlu0 %3769
        %3771 = vmax.xlane.f32.xlu0 %v3741
        %v3772 = vpop.xlane.xlu0 %3771
        %3773 = vmax.xlane.f32.xlu0 %v3742
        %v3774 = vpop.xlane.xlu0 %3773
        %v3775 = vsub.f32 %v3727, %v3744
        %v3776 = vsub.f32 %v3728, %v3746
        %v3777 = vsub.f32 %v3729, %v3748
        %v3778 = vsub.f32 %v3730, %v3750
        %v3779 = vsub.f32 %v3731, %v3752
        %v3780 = vsub.f32 %v3732, %v3754
        %v3781 = vsub.f32 %v3733, %v3756
        %v3782 = vsub.f32 %v3734, %v3758
        %v3783 = vsub.f32 %v3735, %v3760
        %v3784 = vsub.f32 %v3736, %v3762
        %v3785 = vsub.f32 %v3737, %v3764
        %v3786 = vsub.f32 %v3738, %v3766
        %v3787 = vsub.f32 %v3739, %v3768
        %v3788 = vsub.f32 %v3740, %v3770
        %v3789 = vsub.f32 %v3741, %v3772
        %v3790 = vsub.f32 %v3742, %v3774
        %v3791 = vmul.f32 %v3775, 1.442695
        %v3792 = vpow.pop %v3791
        %v3793 = vmul.f32 %v3776, 1.442695
        %v3794 = vpow.pop %v3793
        %v3795 = vmul.f32 %v3777, 1.442695
        %v3796 = vpow.pop %v3795
        %v3797 = vmul.f32 %v3778, 1.442695
        %v3798 = vpow.pop %v3797
        %v3799 = vmul.f32 %v3779, 1.442695
        %v3800 = vpow.pop %v3799
        %v3801 = vmul.f32 %v3780, 1.442695
        %v3802 = vpow.pop %v3801
        %v3803 = vmul.f32 %v3781, 1.442695
        %v3804 = vpow.pop %v3803
        %v3805 = vmul.f32 %v3782, 1.442695
        %v3806 = vpow.pop %v3805
        %v3807 = vmul.f32 %v3783, 1.442695
        %v3808 = vpow.pop %v3807
        %v3809 = vmul.f32 %v3784, 1.442695
        %v3810 = vpow.pop %v3809
        %v3811 = vmul.f32 %v3785, 1.442695
        %v3812 = vpow.pop %v3811
        %v3813 = vmul.f32 %v3786, 1.442695
        %v3814 = vpow.pop %v3813
        %v3815 = vmul.f32 %v3787, 1.442695
        %v3816 = vpow.pop %v3815
        %v3817 = vmul.f32 %v3788, 1.442695
        %v3818 = vpow.pop %v3817
        %v3819 = vmul.f32 %v3789, 1.442695
        %v3820 = vpow.pop %v3819
        %v3821 = vmul.f32 %v3790, 1.442695
        %v3822 = vpow.pop %v3821
        %3823 = vadd.xlane.f32.xlu0 %v3792
        %v3824 = vpop.xlane.xlu0 %3823
        %3825 = vadd.xlane.f32.xlu0 %v3794
        %v3826 = vpop.xlane.xlu0 %3825
        %3827 = vadd.xlane.f32.xlu0 %v3796
        %v3828 = vpop.xlane.xlu0 %3827
        %3829 = vadd.xlane.f32.xlu0 %v3798
        %v3830 = vpop.xlane.xlu0 %3829
        %3831 = vadd.xlane.f32.xlu0 %v3800
        %v3832 = vpop.xlane.xlu0 %3831
        %3833 = vadd.xlane.f32.xlu0 %v3802
        %v3834 = vpop.xlane.xlu0 %3833
        %3835 = vadd.xlane.f32.xlu0 %v3804
        %v3836 = vpop.xlane.xlu0 %3835
        %3837 = vadd.xlane.f32.xlu0 %v3806
        %v3838 = vpop.xlane.xlu0 %3837
        %3839 = vadd.xlane.f32.xlu0 %v3808
        %v3840 = vpop.xlane.xlu0 %3839
        %3841 = vadd.xlane.f32.xlu0 %v3810
        %v3842 = vpop.xlane.xlu0 %3841
        %3843 = vadd.xlane.f32.xlu0 %v3812
        %v3844 = vpop.xlane.xlu0 %3843
        %3845 = vadd.xlane.f32.xlu0 %v3814
        %v3846 = vpop.xlane.xlu0 %3845
        %3847 = vadd.xlane.f32.xlu0 %v3816
        %v3848 = vpop.xlane.xlu0 %3847
        %3849 = vadd.xlane.f32.xlu0 %v3818
        %v3850 = vpop.xlane.xlu0 %3849
        %3851 = vadd.xlane.f32.xlu0 %v3820
        %v3852 = vpop.xlane.xlu0 %3851
        %3853 = vadd.xlane.f32.xlu0 %v3822
        %v3854 = vpop.xlane.xlu0 %3853
        %v3855 = vrcp.pop %v3824
        %v3856 = vrcp.pop %v3826
        %v3857 = vrcp.pop %v3828
        %v3858 = vrcp.pop %v3830
        %v3859 = vrcp.pop %v3832
        %v3860 = vrcp.pop %v3834
        %v3861 = vrcp.pop %v3836
        %v3862 = vrcp.pop %v3838
        %v3863 = vrcp.pop %v3840
        %v3864 = vrcp.pop %v3842
        %v3865 = vrcp.pop %v3844
        %v3866 = vrcp.pop %v3846
        %v3867 = vrcp.pop %v3848
        %v3868 = vrcp.pop %v3850
        %v3869 = vrcp.pop %v3852
        %v3870 = vrcp.pop %v3854
        %v3871 = vmul.f32 %v3792, %v3855
        %v3872 = vmul.f32 %v3794, %v3856
        %v3873 = vmul.f32 %v3796, %v3857
        %v3874 = vmul.f32 %v3798, %v3858
        %v3875 = vmul.f32 %v3800, %v3859
        %v3876 = vmul.f32 %v3802, %v3860
        %v3877 = vmul.f32 %v3804, %v3861
        %v3878 = vmul.f32 %v3806, %v3862
        %v3879 = vmul.f32 %v3808, %v3863
        %v3880 = vmul.f32 %v3810, %v3864
        %v3881 = vmul.f32 %v3812, %v3865
        %v3882 = vmul.f32 %v3814, %v3866
        %v3883 = vmul.f32 %v3816, %v3867
        %v3884 = vmul.f32 %v3818, %v3868
        %v3885 = vmul.f32 %v3820, %v3869
        %v3886 = vmul.f32 %v3822, %v3870
        %v3887 = vpack.c.bf16 %v3872, %v3871
        %v3888 = vpack.c.bf16 %v3874, %v3873
        %v3889 = vpack.c.bf16 %v3876, %v3875
        %v3890 = vpack.c.bf16 %v3878, %v3877
        %v3891 = vpack.c.bf16 %v3880, %v3879
        %v3892 = vpack.c.bf16 %v3882, %v3881
        %v3893 = vpack.c.bf16 %v3884, %v3883
        %v3894 = vpack.c.bf16 %v3886, %v3885
        %3903 = vrot.lane.b32.xlu0 %v3510, 64
        %v3904 = vpop.permute.xlu0 %3903
        %3905 = vrot.lane.b32.xlu0 %v3511, 64
        %v3906 = vpop.permute.xlu0 %3905
        %3907 = vrot.lane.b32.xlu0 %v3512, 64
        %v3908 = vpop.permute.xlu0 %3907
        %3909 = vrot.lane.b32.xlu0 %v3513, 64
        %v3910 = vpop.permute.xlu0 %3909
        %3911 = vrot.lane.b32.xlu0 %v3514, 64
        %v3912 = vpop.permute.xlu0 %3911
        %3913 = vrot.lane.b32.xlu0 %v3515, 64
        %v3914 = vpop.permute.xlu0 %3913
        %3915 = vrot.lane.b32.xlu0 %v3516, 64
        %v3916 = vpop.permute.xlu0 %3915
        %3917 = vrot.lane.b32.xlu0 %v3517, 64
        %v3918 = vpop.permute.xlu0 %3917
        %3927 = vmatprep.subr.bf16.mxu0 0
        %3928 = vmatpush1.bf16.msra.mxu0 %v3904
        %3929 = vmatprep.subr.bf16.mxu0 0
        %3930 = vmatpush1.bf16.msra.mxu0 %v3906
        %3931 = vmatprep.subr.bf16.mxu0 0
        %3932 = vmatpush1.bf16.msra.mxu0 %v3908
        %3933 = vmatprep.subr.bf16.mxu0 0
        %3934 = vmatpush1.bf16.msra.mxu0 %v3910
        %3935 = vmatprep.subr.bf16.mxu0 0
        %3936 = vmatpush1.bf16.msra.mxu0 %v3912
        %3937 = vmatprep.subr.bf16.mxu0 0
        %3938 = vmatpush1.bf16.msra.mxu0 %v3914
        %3939 = vmatprep.subr.bf16.mxu0 0
        %3940 = vmatpush1.bf16.msra.mxu0 %v3916
        %3941 = vmatprep.subr.bf16.mxu0 0
        %3942 = vmatpush1.bf16.msra.mxu0 %v3918
        %3943 = vmatprep.subr.bf16.mxu0 0
        %3944 = vmatpush1.bf16.msra.mxu0 0
        %3945 = vmatprep.subr.bf16.mxu0 0
        %3946 = vmatpush1.bf16.msra.mxu0 0
        %3947 = vmatprep.subr.bf16.mxu0 0
        %3948 = vmatpush1.bf16.msra.mxu0 0
        %3949 = vmatprep.subr.bf16.mxu0 0
        %3950 = vmatpush1.bf16.msra.mxu0 0
        %3951 = vmatprep.subr.bf16.mxu0 0
        %3952 = vmatpush1.bf16.msra.mxu0 0
        %3953 = vmatprep.subr.bf16.mxu0 0
        %3954 = vmatpush1.bf16.msra.mxu0 0
        %3955 = vmatprep.subr.bf16.mxu0 0
        %3956 = vmatpush1.bf16.msra.mxu0 0
        %3957 = vmatprep.subr.bf16.mxu0 0
        %3958 = vmatpush1.bf16.msra.mxu0 0
        %3959 = vmatprep.mubr.bf16.mxu0 0
        %3960 = vmatmul.mubr.bf16.gmra.mrb[0].mxu0 %v3887
        %v3961 = vpop.f32.mrb[0].mxu0
        %v3962 = vadd.f32 0.0, %v3961
        %v3963 = vpop.f32.mrb[0].mxu0
        %v3964 = vpop.f32.mrb[0].mxu0
        %v3965 = vadd.f32 0.0, %v3964
        %v3966 = vpop.f32.mrb[0].mxu0
        %3967 = vmatprep.mubr.bf16.mxu0 0
        %3968 = vmatmul.mubr.bf16.gmra.mrb[0].mxu0 %v3888
        %v3969 = vpop.f32.mrb[0].mxu0
        %v3970 = vadd.f32 0.0, %v3969
        %v3971 = vpop.f32.mrb[0].mxu0
        %v3972 = vpop.f32.mrb[0].mxu0
        %v3973 = vadd.f32 0.0, %v3972
        %v3974 = vpop.f32.mrb[0].mxu0
        %3975 = vmatprep.mubr.bf16.mxu0 0
        %3976 = vmatmul.mubr.bf16.gmra.mrb[0].mxu0 %v3889
        %v3977 = vpop.f32.mrb[0].mxu0
        %v3978 = vadd.f32 0.0, %v3977
        %v3979 = vpop.f32.mrb[0].mxu0
        %v3980 = vpop.f32.mrb[0].mxu0
        %v3981 = vadd.f32 0.0, %v3980
        %v3982 = vpop.f32.mrb[0].mxu0
        %3983 = vmatprep.mubr.bf16.mxu0 0
        %3984 = vmatmul.mubr.bf16.gmra.mrb[0].mxu0 %v3890
        %v3985 = vpop.f32.mrb[0].mxu0
        %v3986 = vadd.f32 0.0, %v3985
        %v3987 = vpop.f32.mrb[0].mxu0
        %v3988 = vpop.f32.mrb[0].mxu0
        %v3989 = vadd.f32 0.0, %v3988
        %v3990 = vpop.f32.mrb[0].mxu0
        %3991 = vmatprep.mubr.bf16.mxu0 0
        %3992 = vmatmul.mubr.bf16.gmra.mrb[0].mxu0 %v3891
        %v3993 = vpop.f32.mrb[0].mxu0
        %v3994 = vadd.f32 0.0, %v3993
        %v3995 = vpop.f32.mrb[0].mxu0
        %v3996 = vpop.f32.mrb[0].mxu0
        %v3997 = vadd.f32 0.0, %v3996
        %v3998 = vpop.f32.mrb[0].mxu0
        %3999 = vmatprep.mubr.bf16.mxu0 0
        %4000 = vmatmul.mubr.bf16.gmra.mrb[0].mxu0 %v3892
        %v4001 = vpop.f32.mrb[0].mxu0
        %v4002 = vadd.f32 0.0, %v4001
        %v4003 = vpop.f32.mrb[0].mxu0
        %v4004 = vpop.f32.mrb[0].mxu0
        %v4005 = vadd.f32 0.0, %v4004
        %v4006 = vpop.f32.mrb[0].mxu0
        %4007 = vmatprep.mubr.bf16.mxu0 0
        %4008 = vmatmul.mubr.bf16.gmra.mrb[0].mxu0 %v3893
        %v4009 = vpop.f32.mrb[0].mxu0
        %v4010 = vadd.f32 0.0, %v4009
        %v4011 = vpop.f32.mrb[0].mxu0
        %v4012 = vpop.f32.mrb[0].mxu0
        %v4013 = vadd.f32 0.0, %v4012
        %v4014 = vpop.f32.mrb[0].mxu0
        %4015 = vmatprep.mubr.bf16.mxu0 0
        %4016 = vmatmul.mubr.bf16.gmra.mrb[0].mxu0 %v3894
        %v4017 = vpop.f32.mrb[0].mxu0
        %v4018 = vadd.f32 0.0, %v4017
        %v4019 = vpop.f32.mrb[0].mxu0
        %v4020 = vpop.f32.mrb[0].mxu0
        %v4021 = vadd.f32 0.0, %v4020
        %v4022 = vpop.f32.mrb[0].mxu0
        %4023 = vdwg.mxu0
        %v4024 = vpack.c.bf16 %v3965, %v3962
        %v4025 = vpack.c.bf16 %v3973, %v3970
        %v4026 = vpack.c.bf16 %v3981, %v3978
        %v4027 = vpack.c.bf16 %v3989, %v3986
        %v4028 = vpack.c.bf16 %v3997, %v3994
        %v4029 = vpack.c.bf16 %v4005, %v4002
        %v4030 = vpack.c.bf16 %v4013, %v4010
        %v4031 = vpack.c.bf16 %v4021, %v4018
        %4040 = vrot.lane.b32.xlu0 %v4024, 64
        %v4041 = vpop.permute.xlu0 %4040
        %4042 = vrot.lane.b32.xlu0 %v4025, 64
        %v4043 = vpop.permute.xlu0 %4042
        %4044 = vrot.lane.b32.xlu0 %v4026, 64
        %v4045 = vpop.permute.xlu0 %4044
        %4046 = vrot.lane.b32.xlu0 %v4027, 64
        %v4047 = vpop.permute.xlu0 %4046
        %4048 = vrot.lane.b32.xlu0 %v4028, 64
        %v4049 = vpop.permute.xlu0 %4048
        %4050 = vrot.lane.b32.xlu0 %v4029, 64
        %v4051 = vpop.permute.xlu0 %4050
        %4052 = vrot.lane.b32.xlu0 %v4030, 64
        %v4053 = vpop.permute.xlu0 %4052
        %4054 = vrot.lane.b32.xlu0 %v4031, 64
        %v4055 = vpop.permute.xlu0 %4054
        %vm4064 = vcmask 1048064
        %4065 = vst.msk [vmem:[#allocation3] sm:$0xff] %vm4064, %v4041
        %4066 = vst.msk [vmem:[#allocation3 + $0x18] sm:$0xff] %vm4064, %v4043
        %4067 = vst.msk [vmem:[#allocation3 + $0x30] sm:$0xff] %vm4064, %v4045
        %4068 = vst.msk [vmem:[#allocation3 + $0x48] sm:$0xff] %vm4064, %v4047
        %4069 = vst.msk [vmem:[#allocation3 + $0x60] sm:$0xff] %vm4064, %v4049
        %4070 = vst.msk [vmem:[#allocation3 + $0x78] sm:$0xff] %vm4064, %v4051
        %4071 = vst.msk [vmem:[#allocation3 + $0x90] sm:$0xff] %vm4064, %v4053
        %4072 = vst.msk [vmem:[#allocation3 + $0xa8] sm:$0xff] %vm4064, %v4055
        %v4073 = vld [vmem:[#allocation2 + $0x8] sm:$0xff]
        %v4074 = vld [vmem:[#allocation2 + $0x50] sm:$0xff]
        %v4075 = vld [vmem:[#allocation2 + $0x98] sm:$0xff]
        %v4076 = vld [vmem:[#allocation2 + $0xe0] sm:$0xff]
        %v4077 = vld [vmem:[#allocation2 + $0x128] sm:$0xff]
        %v4078 = vld [vmem:[#allocation2 + $0x170] sm:$0xff]
        %v4079 = vld [vmem:[#allocation2 + $0x1b8] sm:$0xff]
        %v4080 = vld [vmem:[#allocation2 + $0x200] sm:$0xff]
        %v4081 = vld [vmem:[#allocation2 + $0x20] sm:$0xff]
        %v4082 = vld [vmem:[#allocation2 + $0x68] sm:$0xff]
        %v4083 = vld [vmem:[#allocation2 + $0xb0] sm:$0xff]
        %v4084 = vld [vmem:[#allocation2 + $0xf8] sm:$0xff]
        %v4085 = vld [vmem:[#allocation2 + $0x140] sm:$0xff]
        %v4086 = vld [vmem:[#allocation2 + $0x188] sm:$0xff]
        %v4087 = vld [vmem:[#allocation2 + $0x1d0] sm:$0xff]
        %v4088 = vld [vmem:[#allocation2 + $0x218] sm:$0xff]
        %v4089 = vld [vmem:[#allocation2 + $0x38] sm:$0xff]
        %v4090 = vld [vmem:[#allocation2 + $0x80] sm:$0xff]
        %v4091 = vld [vmem:[#allocation2 + $0xc8] sm:$0xff]
        %v4092 = vld [vmem:[#allocation2 + $0x110] sm:$0xff]
        %v4093 = vld [vmem:[#allocation2 + $0x158] sm:$0xff]
        %v4094 = vld [vmem:[#allocation2 + $0x1a0] sm:$0xff]
        %v4095 = vld [vmem:[#allocation2 + $0x1e8] sm:$0xff]
        %v4096 = vld [vmem:[#allocation2 + $0x230] sm:$0xff]
        %v4098 = vsel %vm3051, %v4073, 0
        %v4101 = vsel %vm3051, %v4074, 0
        %v4104 = vsel %vm3051, %v4075, 0
        %v4107 = vsel %vm3051, %v4076, 0
        %v4110 = vsel %vm3051, %v4077, 0
        %v4113 = vsel %vm3051, %v4078, 0
        %v4116 = vsel %vm3051, %v4079, 0
        %v4119 = vsel %vm3051, %v4080, 0
        %v4122 = vsel %vm3051, %v4081, 0
        %v4125 = vsel %vm3051, %v4082, 0
        %v4128 = vsel %vm3051, %v4083, 0
        %v4131 = vsel %vm3051, %v4084, 0
        %v4134 = vsel %vm3051, %v4085, 0
        %v4137 = vsel %vm3051, %v4086, 0
        %v4140 = vsel %vm3051, %v4087, 0
        %v4143 = vsel %vm3051, %v4088, 0
        %4145 = vmatprep.subr.bf16.mxu0 0
        %4146 = vmatpush1.bf16.xpose.msra.mxu0 %v4122
        %4147 = vmatprep.subr.bf16.mxu0 0
        %4148 = vmatpush1.bf16.xpose.msra.mxu0 %v4125
        %4149 = vmatprep.subr.bf16.mxu0 0
        %4150 = vmatpush1.bf16.xpose.msra.mxu0 %v4128
        %4151 = vmatprep.subr.bf16.mxu0 0
        %4152 = vmatpush1.bf16.xpose.msra.mxu0 %v4131
        %4153 = vmatprep.subr.bf16.mxu0 0
        %4154 = vmatpush1.bf16.xpose.msra.mxu0 %v4134
        %4155 = vmatprep.subr.bf16.mxu0 0
        %4156 = vmatpush1.bf16.xpose.msra.mxu0 %v4137
        %4157 = vmatprep.subr.bf16.mxu0 0
        %4158 = vmatpush1.bf16.xpose.msra.mxu0 %v4140
        %4159 = vmatprep.subr.bf16.mxu0 0
        %4160 = vmatpush1.bf16.xpose.msra.mxu0 %v4143
        %4161 = vmatprep.subr.bf16.mxu0 0
        %4162 = vmatpush1.bf16.xpose.msra.mxu0 0
        %4163 = vmatprep.subr.bf16.mxu0 0
        %4164 = vmatpush1.bf16.xpose.msra.mxu0 0
        %4165 = vmatprep.subr.bf16.mxu0 0
        %4166 = vmatpush1.bf16.xpose.msra.mxu0 0
        %4167 = vmatprep.subr.bf16.mxu0 0
        %4168 = vmatpush1.bf16.xpose.msra.mxu0 0
        %4169 = vmatprep.subr.bf16.mxu0 0
        %4170 = vmatpush1.bf16.xpose.msra.mxu0 0
        %4171 = vmatprep.subr.bf16.mxu0 0
        %4172 = vmatpush1.bf16.xpose.msra.mxu0 0
        %4173 = vmatprep.subr.bf16.mxu0 0
        %4174 = vmatpush1.bf16.xpose.msra.mxu0 0
        %4175 = vmatprep.subr.bf16.mxu0 0
        %4176 = vmatpush1.bf16.xpose.msra.mxu0 0
        %4177 = vmatprep.mubr.bf16.mxu0 0
        %4178 = vmatmul.mubr.bf16.gmra.mrb[0].mxu0 %v4098
        %v4179 = vpop.f32.mrb[0].mxu0
        %v4180 = vadd.f32 0.0, %v4179
        %v4181 = vpop.f32.mrb[0].mxu0
        %v4182 = vpop.f32.mrb[0].mxu0
        %v4183 = vadd.f32 0.0, %v4182
        %v4184 = vpop.f32.mrb[0].mxu0
        %4185 = vmatprep.mubr.bf16.mxu0 0
        %4186 = vmatmul.mubr.bf16.gmra.mrb[0].mxu0 %v4101
        %v4187 = vpop.f32.mrb[0].mxu0
        %v4188 = vadd.f32 0.0, %v4187
        %v4189 = vpop.f32.mrb[0].mxu0
        %v4190 = vpop.f32.mrb[0].mxu0
        %v4191 = vadd.f32 0.0, %v4190
        %v4192 = vpop.f32.mrb[0].mxu0
        %4193 = vmatprep.mubr.bf16.mxu0 0
        %4194 = vmatmul.mubr.bf16.gmra.mrb[0].mxu0 %v4104
        %v4195 = vpop.f32.mrb[0].mxu0
        %v4196 = vadd.f32 0.0, %v4195
        %v4197 = vpop.f32.mrb[0].mxu0
        %v4198 = vpop.f32.mrb[0].mxu0
        %v4199 = vadd.f32 0.0, %v4198
        %v4200 = vpop.f32.mrb[0].mxu0
        %4201 = vmatprep.mubr.bf16.mxu0 0
        %4202 = vmatmul.mubr.bf16.gmra.mrb[0].mxu0 %v4107
        %v4203 = vpop.f32.mrb[0].mxu0
        %v4204 = vadd.f32 0.0, %v4203
        %v4205 = vpop.f32.mrb[0].mxu0
        %v4206 = vpop.f32.mrb[0].mxu0
        %v4207 = vadd.f32 0.0, %v4206
        %v4208 = vpop.f32.mrb[0].mxu0
        %4209 = vmatprep.mubr.bf16.mxu0 0
        %4210 = vmatmul.mubr.bf16.gmra.mrb[0].mxu0 %v4110
        %v4211 = vpop.f32.mrb[0].mxu0
        %v4212 = vadd.f32 0.0, %v4211
        %v4213 = vpop.f32.mrb[0].mxu0
        %v4214 = vpop.f32.mrb[0].mxu0
        %v4215 = vadd.f32 0.0, %v4214
        %v4216 = vpop.f32.mrb[0].mxu0
        %4217 = vmatprep.mubr.bf16.mxu0 0
        %4218 = vmatmul.mubr.bf16.gmra.mrb[0].mxu0 %v4113
        %v4219 = vpop.f32.mrb[0].mxu0
        %v4220 = vadd.f32 0.0, %v4219
        %v4221 = vpop.f32.mrb[0].mxu0
        %v4222 = vpop.f32.mrb[0].mxu0
        %v4223 = vadd.f32 0.0, %v4222
        %v4224 = vpop.f32.mrb[0].mxu0
        %4225 = vmatprep.mubr.bf16.mxu0 0
        %4226 = vmatmul.mubr.bf16.gmra.mrb[0].mxu0 %v4116
        %v4227 = vpop.f32.mrb[0].mxu0
        %v4228 = vadd.f32 0.0, %v4227
        %v4229 = vpop.f32.mrb[0].mxu0
        %v4230 = vpop.f32.mrb[0].mxu0
        %v4231 = vadd.f32 0.0, %v4230
        %v4232 = vpop.f32.mrb[0].mxu0
        %4233 = vmatprep.mubr.bf16.mxu0 0
        %4234 = vmatmul.mubr.bf16.gmra.mrb[0].mxu0 %v4119
        %v4235 = vpop.f32.mrb[0].mxu0
        %v4236 = vadd.f32 0.0, %v4235
        %v4237 = vpop.f32.mrb[0].mxu0
        %v4238 = vpop.f32.mrb[0].mxu0
        %v4239 = vadd.f32 0.0, %v4238
        %v4240 = vpop.f32.mrb[0].mxu0
        %4241 = vdwg.mxu0
        %v4242 = vmul.f32 %v4180, 0.05103104
        %v4243 = vmul.f32 %v4183, 0.05103104
        %v4244 = vmul.f32 %v4188, 0.05103104
        %v4245 = vmul.f32 %v4191, 0.05103104
        %v4246 = vmul.f32 %v4196, 0.05103104
        %v4247 = vmul.f32 %v4199, 0.05103104
        %v4248 = vmul.f32 %v4204, 0.05103104
        %v4249 = vmul.f32 %v4207, 0.05103104
        %v4250 = vmul.f32 %v4212, 0.05103104
        %v4251 = vmul.f32 %v4215, 0.05103104
        %v4252 = vmul.f32 %v4220, 0.05103104
        %v4253 = vmul.f32 %v4223, 0.05103104
        %v4254 = vmul.f32 %v4228, 0.05103104
        %v4255 = vmul.f32 %v4231, 0.05103104
        %v4256 = vmul.f32 %v4236, 0.05103104
        %v4257 = vmul.f32 %v4239, 0.05103104
        %v4258 = vsel %vm3011, %v4242, -1e+30
        %v4259 = vsel %vm3012, %v4243, -1e+30
        %v4260 = vsel %vm3013, %v4244, -1e+30
        %v4261 = vsel %vm3014, %v4245, -1e+30
        %v4262 = vsel %vm3015, %v4246, -1e+30
        %v4263 = vsel %vm3016, %v4247, -1e+30
        %v4264 = vsel %vm3017, %v4248, -1e+30
        %v4265 = vsel %vm3018, %v4249, -1e+30
        %v4266 = vsel %vm3019, %v4250, -1e+30
        %v4267 = vsel %vm3020, %v4251, -1e+30
        %v4268 = vsel %vm3021, %v4252, -1e+30
        %v4269 = vsel %vm3022, %v4253, -1e+30
        %v4270 = vsel %vm3023, %v4254, -1e+30
        %v4271 = vsel %vm3024, %v4255, -1e+30
        %v4272 = vsel %vm3025, %v4256, -1e+30
        %v4273 = vsel %vm3026, %v4257, -1e+30
        %4274 = vmax.xlane.f32.xlu0 %v4258
        %v4275 = vpop.xlane.xlu0 %4274
        %4276 = vmax.xlane.f32.xlu0 %v4259
        %v4277 = vpop.xlane.xlu0 %4276
        %4278 = vmax.xlane.f32.xlu0 %v4260
        %v4279 = vpop.xlane.xlu0 %4278
        %4280 = vmax.xlane.f32.xlu0 %v4261
        %v4281 = vpop.xlane.xlu0 %4280
        %4282 = vmax.xlane.f32.xlu0 %v4262
        %v4283 = vpop.xlane.xlu0 %4282
        %4284 = vmax.xlane.f32.xlu0 %v4263
        %v4285 = vpop.xlane.xlu0 %4284
        %4286 = vmax.xlane.f32.xlu0 %v4264
        %v4287 = vpop.xlane.xlu0 %4286
        %4288 = vmax.xlane.f32.xlu0 %v4265
        %v4289 = vpop.xlane.xlu0 %4288
        %4290 = vmax.xlane.f32.xlu0 %v4266
        %v4291 = vpop.xlane.xlu0 %4290
        %4292 = vmax.xlane.f32.xlu0 %v4267
        %v4293 = vpop.xlane.xlu0 %4292
        %4294 = vmax.xlane.f32.xlu0 %v4268
        %v4295 = vpop.xlane.xlu0 %4294
        %4296 = vmax.xlane.f32.xlu0 %v4269
        %v4297 = vpop.xlane.xlu0 %4296
        %4298 = vmax.xlane.f32.xlu0 %v4270
        %v4299 = vpop.xlane.xlu0 %4298
        %4300 = vmax.xlane.f32.xlu0 %v4271
        %v4301 = vpop.xlane.xlu0 %4300
        %4302 = vmax.xlane.f32.xlu0 %v4272
        %v4303 = vpop.xlane.xlu0 %4302
        %4304 = vmax.xlane.f32.xlu0 %v4273
        %v4305 = vpop.xlane.xlu0 %4304
        %v4306 = vsub.f32 %v4258, %v4275
        %v4307 = vsub.f32 %v4259, %v4277
        %v4308 = vsub.f32 %v4260, %v4279
        %v4309 = vsub.f32 %v4261, %v4281
        %v4310 = vsub.f32 %v4262, %v4283
        %v4311 = vsub.f32 %v4263, %v4285
        %v4312 = vsub.f32 %v4264, %v4287
        %v4313 = vsub.f32 %v4265, %v4289
        %v4314 = vsub.f32 %v4266, %v4291
        %v4315 = vsub.f32 %v4267, %v4293
        %v4316 = vsub.f32 %v4268, %v4295
        %v4317 = vsub.f32 %v4269, %v4297
        %v4318 = vsub.f32 %v4270, %v4299
        %v4319 = vsub.f32 %v4271, %v4301
        %v4320 = vsub.f32 %v4272, %v4303
        %v4321 = vsub.f32 %v4273, %v4305
        %v4322 = vmul.f32 %v4306, 1.442695
        %v4323 = vpow.pop %v4322
        %v4324 = vmul.f32 %v4307, 1.442695
        %v4325 = vpow.pop %v4324
        %v4326 = vmul.f32 %v4308, 1.442695
        %v4327 = vpow.pop %v4326
        %v4328 = vmul.f32 %v4309, 1.442695
        %v4329 = vpow.pop %v4328
        %v4330 = vmul.f32 %v4310, 1.442695
        %v4331 = vpow.pop %v4330
        %v4332 = vmul.f32 %v4311, 1.442695
        %v4333 = vpow.pop %v4332
        %v4334 = vmul.f32 %v4312, 1.442695
        %v4335 = vpow.pop %v4334
        %v4336 = vmul.f32 %v4313, 1.442695
        %v4337 = vpow.pop %v4336
        %v4338 = vmul.f32 %v4314, 1.442695
        %v4339 = vpow.pop %v4338
        %v4340 = vmul.f32 %v4315, 1.442695
        %v4341 = vpow.pop %v4340
        %v4342 = vmul.f32 %v4316, 1.442695
        %v4343 = vpow.pop %v4342
        %v4344 = vmul.f32 %v4317, 1.442695
        %v4345 = vpow.pop %v4344
        %v4346 = vmul.f32 %v4318, 1.442695
        %v4347 = vpow.pop %v4346
        %v4348 = vmul.f32 %v4319, 1.442695
        %v4349 = vpow.pop %v4348
        %v4350 = vmul.f32 %v4320, 1.442695
        %v4351 = vpow.pop %v4350
        %v4352 = vmul.f32 %v4321, 1.442695
        %v4353 = vpow.pop %v4352
        %4354 = vadd.xlane.f32.xlu0 %v4323
        %v4355 = vpop.xlane.xlu0 %4354
        %4356 = vadd.xlane.f32.xlu0 %v4325
        %v4357 = vpop.xlane.xlu0 %4356
        %4358 = vadd.xlane.f32.xlu0 %v4327
        %v4359 = vpop.xlane.xlu0 %4358
        %4360 = vadd.xlane.f32.xlu0 %v4329
        %v4361 = vpop.xlane.xlu0 %4360
        %4362 = vadd.xlane.f32.xlu0 %v4331
        %v4363 = vpop.xlane.xlu0 %4362
        %4364 = vadd.xlane.f32.xlu0 %v4333
        %v4365 = vpop.xlane.xlu0 %4364
        %4366 = vadd.xlane.f32.xlu0 %v4335
        %v4367 = vpop.xlane.xlu0 %4366
        %4368 = vadd.xlane.f32.xlu0 %v4337
        %v4369 = vpop.xlane.xlu0 %4368
        %4370 = vadd.xlane.f32.xlu0 %v4339
        %v4371 = vpop.xlane.xlu0 %4370
        %4372 = vadd.xlane.f32.xlu0 %v4341
        %v4373 = vpop.xlane.xlu0 %4372
        %4374 = vadd.xlane.f32.xlu0 %v4343
        %v4375 = vpop.xlane.xlu0 %4374
        %4376 = vadd.xlane.f32.xlu0 %v4345
        %v4377 = vpop.xlane.xlu0 %4376
        %4378 = vadd.xlane.f32.xlu0 %v4347
        %v4379 = vpop.xlane.xlu0 %4378
        %4380 = vadd.xlane.f32.xlu0 %v4349
        %v4381 = vpop.xlane.xlu0 %4380
        %4382 = vadd.xlane.f32.xlu0 %v4351
        %v4383 = vpop.xlane.xlu0 %4382
        %4384 = vadd.xlane.f32.xlu0 %v4353
        %v4385 = vpop.xlane.xlu0 %4384
        %v4386 = vrcp.pop %v4355
        %v4387 = vrcp.pop %v4357
        %v4388 = vrcp.pop %v4359
        %v4389 = vrcp.pop %v4361
        %v4390 = vrcp.pop %v4363
        %v4391 = vrcp.pop %v4365
        %v4392 = vrcp.pop %v4367
        %v4393 = vrcp.pop %v4369
        %v4394 = vrcp.pop %v4371
        %v4395 = vrcp.pop %v4373
        %v4396 = vrcp.pop %v4375
        %v4397 = vrcp.pop %v4377
        %v4398 = vrcp.pop %v4379
        %v4399 = vrcp.pop %v4381
        %v4400 = vrcp.pop %v4383
        %v4401 = vrcp.pop %v4385
        %v4402 = vmul.f32 %v4323, %v4386
        %v4403 = vmul.f32 %v4325, %v4387
        %v4404 = vmul.f32 %v4327, %v4388
        %v4405 = vmul.f32 %v4329, %v4389
        %v4406 = vmul.f32 %v4331, %v4390
        %v4407 = vmul.f32 %v4333, %v4391
        %v4408 = vmul.f32 %v4335, %v4392
        %v4409 = vmul.f32 %v4337, %v4393
        %v4410 = vmul.f32 %v4339, %v4394
        %v4411 = vmul.f32 %v4341, %v4395
        %v4412 = vmul.f32 %v4343, %v4396
        %v4413 = vmul.f32 %v4345, %v4397
        %v4414 = vmul.f32 %v4347, %v4398
        %v4415 = vmul.f32 %v4349, %v4399
        %v4416 = vmul.f32 %v4351, %v4400
        %v4417 = vmul.f32 %v4353, %v4401
        %v4418 = vpack.c.bf16 %v4403, %v4402
        %v4419 = vpack.c.bf16 %v4405, %v4404
        %v4420 = vpack.c.bf16 %v4407, %v4406
        %v4421 = vpack.c.bf16 %v4409, %v4408
        %v4422 = vpack.c.bf16 %v4411, %v4410
        %v4423 = vpack.c.bf16 %v4413, %v4412
        %v4424 = vpack.c.bf16 %v4415, %v4414
        %v4425 = vpack.c.bf16 %v4417, %v4416
        %4426 = vmatprep.subr.bf16.mxu0 0
        %4427 = vmatpush1.bf16.msra.mxu0 %v4089
        %4428 = vmatprep.subr.bf16.mxu0 0
        %4429 = vmatpush1.bf16.msra.mxu0 %v4090
        %4430 = vmatprep.subr.bf16.mxu0 0
        %4431 = vmatpush1.bf16.msra.mxu0 %v4091
        %4432 = vmatprep.subr.bf16.mxu0 0
        %4433 = vmatpush1.bf16.msra.mxu0 %v4092
        %4434 = vmatprep.subr.bf16.mxu0 0
        %4435 = vmatpush1.bf16.msra.mxu0 %v4093
        %4436 = vmatprep.subr.bf16.mxu0 0
        %4437 = vmatpush1.bf16.msra.mxu0 %v4094
        %4438 = vmatprep.subr.bf16.mxu0 0
        %4439 = vmatpush1.bf16.msra.mxu0 %v4095
        %4440 = vmatprep.subr.bf16.mxu0 0
        %4441 = vmatpush1.bf16.msra.mxu0 %v4096
        %4442 = vmatprep.subr.bf16.mxu0 0
        %4443 = vmatpush1.bf16.msra.mxu0 0
        %4444 = vmatprep.subr.bf16.mxu0 0
        %4445 = vmatpush1.bf16.msra.mxu0 0
        %4446 = vmatprep.subr.bf16.mxu0 0
        %4447 = vmatpush1.bf16.msra.mxu0 0
        %4448 = vmatprep.subr.bf16.mxu0 0
        %4449 = vmatpush1.bf16.msra.mxu0 0
        %4450 = vmatprep.subr.bf16.mxu0 0
        %4451 = vmatpush1.bf16.msra.mxu0 0
        %4452 = vmatprep.subr.bf16.mxu0 0
        %4453 = vmatpush1.bf16.msra.mxu0 0
        %4454 = vmatprep.subr.bf16.mxu0 0
        %4455 = vmatpush1.bf16.msra.mxu0 0
        %4456 = vmatprep.subr.bf16.mxu0 0
        %4457 = vmatpush1.bf16.msra.mxu0 0
        %4458 = vmatprep.mubr.bf16.mxu0 0
        %4459 = vmatmul.mubr.bf16.gmra.mrb[0].mxu0 %v4418
        %v4460 = vpop.f32.mrb[0].mxu0
        %v4461 = vadd.f32 0.0, %v4460
        %v4462 = vpop.f32.mrb[0].mxu0
        %v4463 = vpop.f32.mrb[0].mxu0
        %v4464 = vadd.f32 0.0, %v4463
        %v4465 = vpop.f32.mrb[0].mxu0
        %4466 = vmatprep.mubr.bf16.mxu0 0
        %4467 = vmatmul.mubr.bf16.gmra.mrb[0].mxu0 %v4419
        %v4468 = vpop.f32.mrb[0].mxu0
        %v4469 = vadd.f32 0.0, %v4468
        %v4470 = vpop.f32.mrb[0].mxu0
        %v4471 = vpop.f32.mrb[0].mxu0
        %v4472 = vadd.f32 0.0, %v4471
        %v4473 = vpop.f32.mrb[0].mxu0
        %4474 = vmatprep.mubr.bf16.mxu0 0
        %4475 = vmatmul.mubr.bf16.gmra.mrb[0].mxu0 %v4420
        %v4476 = vpop.f32.mrb[0].mxu0
        %v4477 = vadd.f32 0.0, %v4476
        %v4478 = vpop.f32.mrb[0].mxu0
        %v4479 = vpop.f32.mrb[0].mxu0
        %v4480 = vadd.f32 0.0, %v4479
        %v4481 = vpop.f32.mrb[0].mxu0
        %4482 = vmatprep.mubr.bf16.mxu0 0
        %4483 = vmatmul.mubr.bf16.gmra.mrb[0].mxu0 %v4421
        %v4484 = vpop.f32.mrb[0].mxu0
        %v4485 = vadd.f32 0.0, %v4484
        %v4486 = vpop.f32.mrb[0].mxu0
        %v4487 = vpop.f32.mrb[0].mxu0
        %v4488 = vadd.f32 0.0, %v4487
        %v4489 = vpop.f32.mrb[0].mxu0
        %4490 = vmatprep.mubr.bf16.mxu0 0
        %4491 = vmatmul.mubr.bf16.gmra.mrb[0].mxu0 %v4422
        %v4492 = vpop.f32.mrb[0].mxu0
        %v4493 = vadd.f32 0.0, %v4492
        %v4494 = vpop.f32.mrb[0].mxu0
        %v4495 = vpop.f32.mrb[0].mxu0
        %v4496 = vadd.f32 0.0, %v4495
        %v4497 = vpop.f32.mrb[0].mxu0
        %4498 = vmatprep.mubr.bf16.mxu0 0
        %4499 = vmatmul.mubr.bf16.gmra.mrb[0].mxu0 %v4423
        %v4500 = vpop.f32.mrb[0].mxu0
        %v4501 = vadd.f32 0.0, %v4500
        %v4502 = vpop.f32.mrb[0].mxu0
        %v4503 = vpop.f32.mrb[0].mxu0
        %v4504 = vadd.f32 0.0, %v4503
        %v4505 = vpop.f32.mrb[0].mxu0
        %4506 = vmatprep.mubr.bf16.mxu0 0
        %4507 = vmatmul.mubr.bf16.gmra.mrb[0].mxu0 %v4424
        %v4508 = vpop.f32.mrb[0].mxu0
        %v4509 = vadd.f32 0.0, %v4508
        %v4510 = vpop.f32.mrb[0].mxu0
        %v4511 = vpop.f32.mrb[0].mxu0
        %v4512 = vadd.f32 0.0, %v4511
        %v4513 = vpop.f32.mrb[0].mxu0
        %4514 = vmatprep.mubr.bf16.mxu0 0
        %4515 = vmatmul.mubr.bf16.gmra.mrb[0].mxu0 %v4425
        %v4516 = vpop.f32.mrb[0].mxu0
        %v4517 = vadd.f32 0.0, %v4516
        %v4518 = vpop.f32.mrb[0].mxu0
        %v4519 = vpop.f32.mrb[0].mxu0
        %v4520 = vadd.f32 0.0, %v4519
        %v4521 = vpop.f32.mrb[0].mxu0
        %4522 = vdwg.mxu0
        %v4523 = vpack.c.bf16 %v4464, %v4461
        %v4524 = vpack.c.bf16 %v4472, %v4469
        %v4525 = vpack.c.bf16 %v4480, %v4477
        %v4526 = vpack.c.bf16 %v4488, %v4485
        %v4527 = vpack.c.bf16 %v4496, %v4493
        %v4528 = vpack.c.bf16 %v4504, %v4501
        %v4529 = vpack.c.bf16 %v4512, %v4509
        %v4530 = vpack.c.bf16 %v4520, %v4517
        %4531 = vst.msk [vmem:[#allocation3 + $0x8] sm:$0xff] %vm3051, %v4523
        %4532 = vst.msk [vmem:[#allocation3 + $0x20] sm:$0xff] %vm3051, %v4524
        %4533 = vst.msk [vmem:[#allocation3 + $0x38] sm:$0xff] %vm3051, %v4525
        %4534 = vst.msk [vmem:[#allocation3 + $0x50] sm:$0xff] %vm3051, %v4526
        %4535 = vst.msk [vmem:[#allocation3 + $0x68] sm:$0xff] %vm3051, %v4527
        %4536 = vst.msk [vmem:[#allocation3 + $0x80] sm:$0xff] %vm3051, %v4528
        %4537 = vst.msk [vmem:[#allocation3 + $0x98] sm:$0xff] %vm3051, %v4529
        %4538 = vst.msk [vmem:[#allocation3 + $0xb0] sm:$0xff] %vm3051, %v4530
        %v4539 = vld [vmem:[#allocation2 + $0x8] sm:$0xff]
        %v4540 = vld [vmem:[#allocation2 + $0x50] sm:$0xff]
        %v4541 = vld [vmem:[#allocation2 + $0x98] sm:$0xff]
        %v4542 = vld [vmem:[#allocation2 + $0xe0] sm:$0xff]
        %v4543 = vld [vmem:[#allocation2 + $0x128] sm:$0xff]
        %v4544 = vld [vmem:[#allocation2 + $0x170] sm:$0xff]
        %v4545 = vld [vmem:[#allocation2 + $0x1b8] sm:$0xff]
        %v4546 = vld [vmem:[#allocation2 + $0x200] sm:$0xff]
        %v4547 = vld [vmem:[#allocation2 + $0x20] sm:$0xff]
        %v4548 = vld [vmem:[#allocation2 + $0x68] sm:$0xff]
        %v4549 = vld [vmem:[#allocation2 + $0xb0] sm:$0xff]
        %v4550 = vld [vmem:[#allocation2 + $0xf8] sm:$0xff]
        %v4551 = vld [vmem:[#allocation2 + $0x140] sm:$0xff]
        %v4552 = vld [vmem:[#allocation2 + $0x188] sm:$0xff]
        %v4553 = vld [vmem:[#allocation2 + $0x1d0] sm:$0xff]
        %v4554 = vld [vmem:[#allocation2 + $0x218] sm:$0xff]
        %v4555 = vld [vmem:[#allocation2 + $0x38] sm:$0xff]
        %v4556 = vld [vmem:[#allocation2 + $0x80] sm:$0xff]
        %v4557 = vld [vmem:[#allocation2 + $0xc8] sm:$0xff]
        %v4558 = vld [vmem:[#allocation2 + $0x110] sm:$0xff]
        %v4559 = vld [vmem:[#allocation2 + $0x158] sm:$0xff]
        %v4560 = vld [vmem:[#allocation2 + $0x1a0] sm:$0xff]
        %v4561 = vld [vmem:[#allocation2 + $0x1e8] sm:$0xff]
        %v4562 = vld [vmem:[#allocation2 + $0x230] sm:$0xff]
        %4571 = vrot.lane.b32.xlu0 %v4539, 64
        %v4572 = vpop.permute.xlu0 %4571
        %4573 = vrot.lane.b32.xlu0 %v4540, 64
        %v4574 = vpop.permute.xlu0 %4573
        %4575 = vrot.lane.b32.xlu0 %v4541, 64
        %v4576 = vpop.permute.xlu0 %4575
        %4577 = vrot.lane.b32.xlu0 %v4542, 64
        %v4578 = vpop.permute.xlu0 %4577
        %4579 = vrot.lane.b32.xlu0 %v4543, 64
        %v4580 = vpop.permute.xlu0 %4579
        %4581 = vrot.lane.b32.xlu0 %v4544, 64
        %v4582 = vpop.permute.xlu0 %4581
        %4583 = vrot.lane.b32.xlu0 %v4545, 64
        %v4584 = vpop.permute.xlu0 %4583
        %4585 = vrot.lane.b32.xlu0 %v4546, 64
        %v4586 = vpop.permute.xlu0 %4585
        %4595 = vrot.lane.b32.xlu0 %v4547, 64
        %v4596 = vpop.permute.xlu0 %4595
        %4597 = vrot.lane.b32.xlu0 %v4548, 64
        %v4598 = vpop.permute.xlu0 %4597
        %4599 = vrot.lane.b32.xlu0 %v4549, 64
        %v4600 = vpop.permute.xlu0 %4599
        %4601 = vrot.lane.b32.xlu0 %v4550, 64
        %v4602 = vpop.permute.xlu0 %4601
        %4603 = vrot.lane.b32.xlu0 %v4551, 64
        %v4604 = vpop.permute.xlu0 %4603
        %4605 = vrot.lane.b32.xlu0 %v4552, 64
        %v4606 = vpop.permute.xlu0 %4605
        %4607 = vrot.lane.b32.xlu0 %v4553, 64
        %v4608 = vpop.permute.xlu0 %4607
        %4609 = vrot.lane.b32.xlu0 %v4554, 64
        %v4610 = vpop.permute.xlu0 %4609
        %v4612 = vsel %vm3051, %v4572, 0
        %v4615 = vsel %vm3051, %v4574, 0
        %v4618 = vsel %vm3051, %v4576, 0
        %v4621 = vsel %vm3051, %v4578, 0
        %v4624 = vsel %vm3051, %v4580, 0
        %v4627 = vsel %vm3051, %v4582, 0
        %v4630 = vsel %vm3051, %v4584, 0
        %v4633 = vsel %vm3051, %v4586, 0
        %v4636 = vsel %vm3051, %v4596, 0
        %v4639 = vsel %vm3051, %v4598, 0
        %v4642 = vsel %vm3051, %v4600, 0
        %v4645 = vsel %vm3051, %v4602, 0
        %v4648 = vsel %vm3051, %v4604, 0
        %v4651 = vsel %vm3051, %v4606, 0
        %v4654 = vsel %vm3051, %v4608, 0
        %v4657 = vsel %vm3051, %v4610, 0
        %4659 = vmatprep.subr.bf16.mxu0 0
        %4660 = vmatpush1.bf16.xpose.msra.mxu0 %v4636
        %4661 = vmatprep.subr.bf16.mxu0 0
        %4662 = vmatpush1.bf16.xpose.msra.mxu0 %v4639
        %4663 = vmatprep.subr.bf16.mxu0 0
        %4664 = vmatpush1.bf16.xpose.msra.mxu0 %v4642
        %4665 = vmatprep.subr.bf16.mxu0 0
        %4666 = vmatpush1.bf16.xpose.msra.mxu0 %v4645
        %4667 = vmatprep.subr.bf16.mxu0 0
        %4668 = vmatpush1.bf16.xpose.msra.mxu0 %v4648
        %4669 = vmatprep.subr.bf16.mxu0 0
        %4670 = vmatpush1.bf16.xpose.msra.mxu0 %v4651
        %4671 = vmatprep.subr.bf16.mxu0 0
        %4672 = vmatpush1.bf16.xpose.msra.mxu0 %v4654
        %4673 = vmatprep.subr.bf16.mxu0 0
        %4674 = vmatpush1.bf16.xpose.msra.mxu0 %v4657
        %4675 = vmatprep.subr.bf16.mxu0 0
        %4676 = vmatpush1.bf16.xpose.msra.mxu0 0
        %4677 = vmatprep.subr.bf16.mxu0 0
        %4678 = vmatpush1.bf16.xpose.msra.mxu0 0
        %4679 = vmatprep.subr.bf16.mxu0 0
        %4680 = vmatpush1.bf16.xpose.msra.mxu0 0
        %4681 = vmatprep.subr.bf16.mxu0 0
        %4682 = vmatpush1.bf16.xpose.msra.mxu0 0
        %4683 = vmatprep.subr.bf16.mxu0 0
        %4684 = vmatpush1.bf16.xpose.msra.mxu0 0
        %4685 = vmatprep.subr.bf16.mxu0 0
        %4686 = vmatpush1.bf16.xpose.msra.mxu0 0
        %4687 = vmatprep.subr.bf16.mxu0 0
        %4688 = vmatpush1.bf16.xpose.msra.mxu0 0
        %4689 = vmatprep.subr.bf16.mxu0 0
        %4690 = vmatpush1.bf16.xpose.msra.mxu0 0
        %4691 = vmatprep.mubr.bf16.mxu0 0
        %4692 = vmatmul.mubr.bf16.gmra.mrb[0].mxu0 %v4612
        %v4693 = vpop.f32.mrb[0].mxu0
        %v4694 = vadd.f32 0.0, %v4693
        %v4695 = vpop.f32.mrb[0].mxu0
        %v4696 = vpop.f32.mrb[0].mxu0
        %v4697 = vadd.f32 0.0, %v4696
        %v4698 = vpop.f32.mrb[0].mxu0
        %4699 = vmatprep.mubr.bf16.mxu0 0
        %4700 = vmatmul.mubr.bf16.gmra.mrb[0].mxu0 %v4615
        %v4701 = vpop.f32.mrb[0].mxu0
        %v4702 = vadd.f32 0.0, %v4701
        %v4703 = vpop.f32.mrb[0].mxu0
        %v4704 = vpop.f32.mrb[0].mxu0
        %v4705 = vadd.f32 0.0, %v4704
        %v4706 = vpop.f32.mrb[0].mxu0
        %4707 = vmatprep.mubr.bf16.mxu0 0
        %4708 = vmatmul.mubr.bf16.gmra.mrb[0].mxu0 %v4618
        %v4709 = vpop.f32.mrb[0].mxu0
        %v4710 = vadd.f32 0.0, %v4709
        %v4711 = vpop.f32.mrb[0].mxu0
        %v4712 = vpop.f32.mrb[0].mxu0
        %v4713 = vadd.f32 0.0, %v4712
        %v4714 = vpop.f32.mrb[0].mxu0
        %4715 = vmatprep.mubr.bf16.mxu0 0
        %4716 = vmatmul.mubr.bf16.gmra.mrb[0].mxu0 %v4621
        %v4717 = vpop.f32.mrb[0].mxu0
        %v4718 = vadd.f32 0.0, %v4717
        %v4719 = vpop.f32.mrb[0].mxu0
        %v4720 = vpop.f32.mrb[0].mxu0
        %v4721 = vadd.f32 0.0, %v4720
        %v4722 = vpop.f32.mrb[0].mxu0
        %4723 = vmatprep.mubr.bf16.mxu0 0
        %4724 = vmatmul.mubr.bf16.gmra.mrb[0].mxu0 %v4624
        %v4725 = vpop.f32.mrb[0].mxu0
        %v4726 = vadd.f32 0.0, %v4725
        %v4727 = vpop.f32.mrb[0].mxu0
        %v4728 = vpop.f32.mrb[0].mxu0
        %v4729 = vadd.f32 0.0, %v4728
        %v4730 = vpop.f32.mrb[0].mxu0
        %4731 = vmatprep.mubr.bf16.mxu0 0
        %4732 = vmatmul.mubr.bf16.gmra.mrb[0].mxu0 %v4627
        %v4733 = vpop.f32.mrb[0].mxu0
        %v4734 = vadd.f32 0.0, %v4733
        %v4735 = vpop.f32.mrb[0].mxu0
        %v4736 = vpop.f32.mrb[0].mxu0
        %v4737 = vadd.f32 0.0, %v4736
        %v4738 = vpop.f32.mrb[0].mxu0
        %4739 = vmatprep.mubr.bf16.mxu0 0
        %4740 = vmatmul.mubr.bf16.gmra.mrb[0].mxu0 %v4630
        %v4741 = vpop.f32.mrb[0].mxu0
        %v4742 = vadd.f32 0.0, %v4741
        %v4743 = vpop.f32.mrb[0].mxu0
        %v4744 = vpop.f32.mrb[0].mxu0
        %v4745 = vadd.f32 0.0, %v4744
        %v4746 = vpop.f32.mrb[0].mxu0
        %4747 = vmatprep.mubr.bf16.mxu0 0
        %4748 = vmatmul.mubr.bf16.gmra.mrb[0].mxu0 %v4633
        %v4749 = vpop.f32.mrb[0].mxu0
        %v4750 = vadd.f32 0.0, %v4749
        %v4751 = vpop.f32.mrb[0].mxu0
        %v4752 = vpop.f32.mrb[0].mxu0
        %v4753 = vadd.f32 0.0, %v4752
        %v4754 = vpop.f32.mrb[0].mxu0
        %4755 = vdwg.mxu0
        %v4756 = vmul.f32 %v4694, 0.05103104
        %v4757 = vmul.f32 %v4697, 0.05103104
        %v4758 = vmul.f32 %v4702, 0.05103104
        %v4759 = vmul.f32 %v4705, 0.05103104
        %v4760 = vmul.f32 %v4710, 0.05103104
        %v4761 = vmul.f32 %v4713, 0.05103104
        %v4762 = vmul.f32 %v4718, 0.05103104
        %v4763 = vmul.f32 %v4721, 0.05103104
        %v4764 = vmul.f32 %v4726, 0.05103104
        %v4765 = vmul.f32 %v4729, 0.05103104
        %v4766 = vmul.f32 %v4734, 0.05103104
        %v4767 = vmul.f32 %v4737, 0.05103104
        %v4768 = vmul.f32 %v4742, 0.05103104
        %v4769 = vmul.f32 %v4745, 0.05103104
        %v4770 = vmul.f32 %v4750, 0.05103104
        %v4771 = vmul.f32 %v4753, 0.05103104
        %v4772 = vsel %vm3011, %v4756, -1e+30
        %v4773 = vsel %vm3012, %v4757, -1e+30
        %v4774 = vsel %vm3013, %v4758, -1e+30
        %v4775 = vsel %vm3014, %v4759, -1e+30
        %v4776 = vsel %vm3015, %v4760, -1e+30
        %v4777 = vsel %vm3016, %v4761, -1e+30
        %v4778 = vsel %vm3017, %v4762, -1e+30
        %v4779 = vsel %vm3018, %v4763, -1e+30
        %v4780 = vsel %vm3019, %v4764, -1e+30
        %v4781 = vsel %vm3020, %v4765, -1e+30
        %v4782 = vsel %vm3021, %v4766, -1e+30
        %v4783 = vsel %vm3022, %v4767, -1e+30
        %v4784 = vsel %vm3023, %v4768, -1e+30
        %v4785 = vsel %vm3024, %v4769, -1e+30
        %v4786 = vsel %vm3025, %v4770, -1e+30
        %v4787 = vsel %vm3026, %v4771, -1e+30
        %4788 = vmax.xlane.f32.xlu0 %v4772
        %v4789 = vpop.xlane.xlu0 %4788
        %4790 = vmax.xlane.f32.xlu0 %v4773
        %v4791 = vpop.xlane.xlu0 %4790
        %4792 = vmax.xlane.f32.xlu0 %v4774
        %v4793 = vpop.xlane.xlu0 %4792
        %4794 = vmax.xlane.f32.xlu0 %v4775
        %v4795 = vpop.xlane.xlu0 %4794
        %4796 = vmax.xlane.f32.xlu0 %v4776
        %v4797 = vpop.xlane.xlu0 %4796
        %4798 = vmax.xlane.f32.xlu0 %v4777
        %v4799 = vpop.xlane.xlu0 %4798
        %4800 = vmax.xlane.f32.xlu0 %v4778
        %v4801 = vpop.xlane.xlu0 %4800
        %4802 = vmax.xlane.f32.xlu0 %v4779
        %v4803 = vpop.xlane.xlu0 %4802
        %4804 = vmax.xlane.f32.xlu0 %v4780
        %v4805 = vpop.xlane.xlu0 %4804
        %4806 = vmax.xlane.f32.xlu0 %v4781
        %v4807 = vpop.xlane.xlu0 %4806
        %4808 = vmax.xlane.f32.xlu0 %v4782
        %v4809 = vpop.xlane.xlu0 %4808
        %4810 = vmax.xlane.f32.xlu0 %v4783
        %v4811 = vpop.xlane.xlu0 %4810
        %4812 = vmax.xlane.f32.xlu0 %v4784
        %v4813 = vpop.xlane.xlu0 %4812
        %4814 = vmax.xlane.f32.xlu0 %v4785
        %v4815 = vpop.xlane.xlu0 %4814
        %4816 = vmax.xlane.f32.xlu0 %v4786
        %v4817 = vpop.xlane.xlu0 %4816
        %4818 = vmax.xlane.f32.xlu0 %v4787
        %v4819 = vpop.xlane.xlu0 %4818
        %v4820 = vsub.f32 %v4772, %v4789
        %v4821 = vsub.f32 %v4773, %v4791
        %v4822 = vsub.f32 %v4774, %v4793
        %v4823 = vsub.f32 %v4775, %v4795
        %v4824 = vsub.f32 %v4776, %v4797
        %v4825 = vsub.f32 %v4777, %v4799
        %v4826 = vsub.f32 %v4778, %v4801
        %v4827 = vsub.f32 %v4779, %v4803
        %v4828 = vsub.f32 %v4780, %v4805
        %v4829 = vsub.f32 %v4781, %v4807
        %v4830 = vsub.f32 %v4782, %v4809
        %v4831 = vsub.f32 %v4783, %v4811
        %v4832 = vsub.f32 %v4784, %v4813
        %v4833 = vsub.f32 %v4785, %v4815
        %v4834 = vsub.f32 %v4786, %v4817
        %v4835 = vsub.f32 %v4787, %v4819
        %v4836 = vmul.f32 %v4820, 1.442695
        %v4837 = vpow.pop %v4836
        %v4838 = vmul.f32 %v4821, 1.442695
        %v4839 = vpow.pop %v4838
        %v4840 = vmul.f32 %v4822, 1.442695
        %v4841 = vpow.pop %v4840
        %v4842 = vmul.f32 %v4823, 1.442695
        %v4843 = vpow.pop %v4842
        %v4844 = vmul.f32 %v4824, 1.442695
        %v4845 = vpow.pop %v4844
        %v4846 = vmul.f32 %v4825, 1.442695
        %v4847 = vpow.pop %v4846
        %v4848 = vmul.f32 %v4826, 1.442695
        %v4849 = vpow.pop %v4848
        %v4850 = vmul.f32 %v4827, 1.442695
        %v4851 = vpow.pop %v4850
        %v4852 = vmul.f32 %v4828, 1.442695
        %v4853 = vpow.pop %v4852
        %v4854 = vmul.f32 %v4829, 1.442695
        %v4855 = vpow.pop %v4854
        %v4856 = vmul.f32 %v4830, 1.442695
        %v4857 = vpow.pop %v4856
        %v4858 = vmul.f32 %v4831, 1.442695
        %v4859 = vpow.pop %v4858
        %v4860 = vmul.f32 %v4832, 1.442695
        %v4861 = vpow.pop %v4860
        %v4862 = vmul.f32 %v4833, 1.442695
        %v4863 = vpow.pop %v4862
        %v4864 = vmul.f32 %v4834, 1.442695
        %v4865 = vpow.pop %v4864
        %v4866 = vmul.f32 %v4835, 1.442695
        %v4867 = vpow.pop %v4866
        %4868 = vadd.xlane.f32.xlu0 %v4837
        %v4869 = vpop.xlane.xlu0 %4868
        %4870 = vadd.xlane.f32.xlu0 %v4839
        %v4871 = vpop.xlane.xlu0 %4870
        %4872 = vadd.xlane.f32.xlu0 %v4841
        %v4873 = vpop.xlane.xlu0 %4872
        %4874 = vadd.xlane.f32.xlu0 %v4843
        %v4875 = vpop.xlane.xlu0 %4874
        %4876 = vadd.xlane.f32.xlu0 %v4845
        %v4877 = vpop.xlane.xlu0 %4876
        %4878 = vadd.xlane.f32.xlu0 %v4847
        %v4879 = vpop.xlane.xlu0 %4878
        %4880 = vadd.xlane.f32.xlu0 %v4849
        %v4881 = vpop.xlane.xlu0 %4880
        %4882 = vadd.xlane.f32.xlu0 %v4851
        %v4883 = vpop.xlane.xlu0 %4882
        %4884 = vadd.xlane.f32.xlu0 %v4853
        %v4885 = vpop.xlane.xlu0 %4884
        %4886 = vadd.xlane.f32.xlu0 %v4855
        %v4887 = vpop.xlane.xlu0 %4886
        %4888 = vadd.xlane.f32.xlu0 %v4857
        %v4889 = vpop.xlane.xlu0 %4888
        %4890 = vadd.xlane.f32.xlu0 %v4859
        %v4891 = vpop.xlane.xlu0 %4890
        %4892 = vadd.xlane.f32.xlu0 %v4861
        %v4893 = vpop.xlane.xlu0 %4892
        %4894 = vadd.xlane.f32.xlu0 %v4863
        %v4895 = vpop.xlane.xlu0 %4894
        %4896 = vadd.xlane.f32.xlu0 %v4865
        %v4897 = vpop.xlane.xlu0 %4896
        %4898 = vadd.xlane.f32.xlu0 %v4867
        %v4899 = vpop.xlane.xlu0 %4898
        %v4900 = vrcp.pop %v4869
        %v4901 = vrcp.pop %v4871
        %v4902 = vrcp.pop %v4873
        %v4903 = vrcp.pop %v4875
        %v4904 = vrcp.pop %v4877
        %v4905 = vrcp.pop %v4879
        %v4906 = vrcp.pop %v4881
        %v4907 = vrcp.pop %v4883
        %v4908 = vrcp.pop %v4885
        %v4909 = vrcp.pop %v4887
        %v4910 = vrcp.pop %v4889
        %v4911 = vrcp.pop %v4891
        %v4912 = vrcp.pop %v4893
        %v4913 = vrcp.pop %v4895
        %v4914 = vrcp.pop %v4897
        %v4915 = vrcp.pop %v4899
        %v4916 = vmul.f32 %v4837, %v4900
        %v4917 = vmul.f32 %v4839, %v4901
        %v4918 = vmul.f32 %v4841, %v4902
        %v4919 = vmul.f32 %v4843, %v4903
        %v4920 = vmul.f32 %v4845, %v4904
        %v4921 = vmul.f32 %v4847, %v4905
        %v4922 = vmul.f32 %v4849, %v4906
        %v4923 = vmul.f32 %v4851, %v4907
        %v4924 = vmul.f32 %v4853, %v4908
        %v4925 = vmul.f32 %v4855, %v4909
        %v4926 = vmul.f32 %v4857, %v4910
        %v4927 = vmul.f32 %v4859, %v4911
        %v4928 = vmul.f32 %v4861, %v4912
        %v4929 = vmul.f32 %v4863, %v4913
        %v4930 = vmul.f32 %v4865, %v4914
        %v4931 = vmul.f32 %v4867, %v4915
        %v4932 = vpack.c.bf16 %v4917, %v4916
        %v4933 = vpack.c.bf16 %v4919, %v4918
        %v4934 = vpack.c.bf16 %v4921, %v4920
        %v4935 = vpack.c.bf16 %v4923, %v4922
        %v4936 = vpack.c.bf16 %v4925, %v4924
        %v4937 = vpack.c.bf16 %v4927, %v4926
        %v4938 = vpack.c.bf16 %v4929, %v4928
        %v4939 = vpack.c.bf16 %v4931, %v4930
        %4948 = vrot.lane.b32.xlu0 %v4555, 64
        %v4949 = vpop.permute.xlu0 %4948
        %4950 = vrot.lane.b32.xlu0 %v4556, 64
        %v4951 = vpop.permute.xlu0 %4950
        %4952 = vrot.lane.b32.xlu0 %v4557, 64
        %v4953 = vpop.permute.xlu0 %4952
        %4954 = vrot.lane.b32.xlu0 %v4558, 64
        %v4955 = vpop.permute.xlu0 %4954
        %4956 = vrot.lane.b32.xlu0 %v4559, 64
        %v4957 = vpop.permute.xlu0 %4956
        %4958 = vrot.lane.b32.xlu0 %v4560, 64
        %v4959 = vpop.permute.xlu0 %4958
        %4960 = vrot.lane.b32.xlu0 %v4561, 64
        %v4961 = vpop.permute.xlu0 %4960
        %4962 = vrot.lane.b32.xlu0 %v4562, 64
        %v4963 = vpop.permute.xlu0 %4962
        %4972 = vmatprep.subr.bf16.mxu0 0
        %4973 = vmatpush1.bf16.msra.mxu0 %v4949
        %4974 = vmatprep.subr.bf16.mxu0 0
        %4975 = vmatpush1.bf16.msra.mxu0 %v4951
        %4976 = vmatprep.subr.bf16.mxu0 0
        %4977 = vmatpush1.bf16.msra.mxu0 %v4953
        %4978 = vmatprep.subr.bf16.mxu0 0
        %4979 = vmatpush1.bf16.msra.mxu0 %v4955
        %4980 = vmatprep.subr.bf16.mxu0 0
        %4981 = vmatpush1.bf16.msra.mxu0 %v4957
        %4982 = vmatprep.subr.bf16.mxu0 0
        %4983 = vmatpush1.bf16.msra.mxu0 %v4959
        %4984 = vmatprep.subr.bf16.mxu0 0
        %4985 = vmatpush1.bf16.msra.mxu0 %v4961
        %4986 = vmatprep.subr.bf16.mxu0 0
        %4987 = vmatpush1.bf16.msra.mxu0 %v4963
        %4988 = vmatprep.subr.bf16.mxu0 0
        %4989 = vmatpush1.bf16.msra.mxu0 0
        %4990 = vmatprep.subr.bf16.mxu0 0
        %4991 = vmatpush1.bf16.msra.mxu0 0
        %4992 = vmatprep.subr.bf16.mxu0 0
        %4993 = vmatpush1.bf16.msra.mxu0 0
        %4994 = vmatprep.subr.bf16.mxu0 0
        %4995 = vmatpush1.bf16.msra.mxu0 0
        %4996 = vmatprep.subr.bf16.mxu0 0
        %4997 = vmatpush1.bf16.msra.mxu0 0
        %4998 = vmatprep.subr.bf16.mxu0 0
        %4999 = vmatpush1.bf16.msra.mxu0 0
        %5000 = vmatprep.subr.bf16.mxu0 0
        %5001 = vmatpush1.bf16.msra.mxu0 0
        %5002 = vmatprep.subr.bf16.mxu0 0
        %5003 = vmatpush1.bf16.msra.mxu0 0
        %5004 = vmatprep.mubr.bf16.mxu0 0
        %5005 = vmatmul.mubr.bf16.gmra.mrb[0].mxu0 %v4932
        %v5006 = vpop.f32.mrb[0].mxu0
        %v5007 = vadd.f32 0.0, %v5006
        %v5008 = vpop.f32.mrb[0].mxu0
        %v5009 = vpop.f32.mrb[0].mxu0
        %v5010 = vadd.f32 0.0, %v5009
        %v5011 = vpop.f32.mrb[0].mxu0
        %5012 = vmatprep.mubr.bf16.mxu0 0
        %5013 = vmatmul.mubr.bf16.gmra.mrb[0].mxu0 %v4933
        %v5014 = vpop.f32.mrb[0].mxu0
        %v5015 = vadd.f32 0.0, %v5014
        %v5016 = vpop.f32.mrb[0].mxu0
        %v5017 = vpop.f32.mrb[0].mxu0
        %v5018 = vadd.f32 0.0, %v5017
        %v5019 = vpop.f32.mrb[0].mxu0
        %5020 = vmatprep.mubr.bf16.mxu0 0
        %5021 = vmatmul.mubr.bf16.gmra.mrb[0].mxu0 %v4934
        %v5022 = vpop.f32.mrb[0].mxu0
        %v5023 = vadd.f32 0.0, %v5022
        %v5024 = vpop.f32.mrb[0].mxu0
        %v5025 = vpop.f32.mrb[0].mxu0
        %v5026 = vadd.f32 0.0, %v5025
        %v5027 = vpop.f32.mrb[0].mxu0
        %5028 = vmatprep.mubr.bf16.mxu0 0
        %5029 = vmatmul.mubr.bf16.gmra.mrb[0].mxu0 %v4935
        %v5030 = vpop.f32.mrb[0].mxu0
        %v5031 = vadd.f32 0.0, %v5030
        %v5032 = vpop.f32.mrb[0].mxu0
        %v5033 = vpop.f32.mrb[0].mxu0
        %v5034 = vadd.f32 0.0, %v5033
        %v5035 = vpop.f32.mrb[0].mxu0
        %5036 = vmatprep.mubr.bf16.mxu0 0
        %5037 = vmatmul.mubr.bf16.gmra.mrb[0].mxu0 %v4936
        %v5038 = vpop.f32.mrb[0].mxu0
        %v5039 = vadd.f32 0.0, %v5038
        %v5040 = vpop.f32.mrb[0].mxu0
        %v5041 = vpop.f32.mrb[0].mxu0
        %v5042 = vadd.f32 0.0, %v5041
        %v5043 = vpop.f32.mrb[0].mxu0
        %5044 = vmatprep.mubr.bf16.mxu0 0
        %5045 = vmatmul.mubr.bf16.gmra.mrb[0].mxu0 %v4937
        %v5046 = vpop.f32.mrb[0].mxu0
        %v5047 = vadd.f32 0.0, %v5046
        %v5048 = vpop.f32.mrb[0].mxu0
        %v5049 = vpop.f32.mrb[0].mxu0
        %v5050 = vadd.f32 0.0, %v5049
        %v5051 = vpop.f32.mrb[0].mxu0
        %5052 = vmatprep.mubr.bf16.mxu0 0
        %5053 = vmatmul.mubr.bf16.gmra.mrb[0].mxu0 %v4938
        %v5054 = vpop.f32.mrb[0].mxu0
        %v5055 = vadd.f32 0.0, %v5054
        %v5056 = vpop.f32.mrb[0].mxu0
        %v5057 = vpop.f32.mrb[0].mxu0
        %v5058 = vadd.f32 0.0, %v5057
        %v5059 = vpop.f32.mrb[0].mxu0
        %5060 = vmatprep.mubr.bf16.mxu0 0
        %5061 = vmatmul.mubr.bf16.gmra.mrb[0].mxu0 %v4939
        %v5062 = vpop.f32.mrb[0].mxu0
        %v5063 = vadd.f32 0.0, %v5062
        %v5064 = vpop.f32.mrb[0].mxu0
        %v5065 = vpop.f32.mrb[0].mxu0
        %v5066 = vadd.f32 0.0, %v5065
        %v5067 = vpop.f32.mrb[0].mxu0
        %5068 = vdwg.mxu0
        %v5069 = vpack.c.bf16 %v5010, %v5007
        %v5070 = vpack.c.bf16 %v5018, %v5015
        %v5071 = vpack.c.bf16 %v5026, %v5023
        %v5072 = vpack.c.bf16 %v5034, %v5031
        %v5073 = vpack.c.bf16 %v5042, %v5039
        %v5074 = vpack.c.bf16 %v5050, %v5047
        %v5075 = vpack.c.bf16 %v5058, %v5055
        %v5076 = vpack.c.bf16 %v5066, %v5063
        %5085 = vrot.lane.b32.xlu0 %v5069, 64
        %v5086 = vpop.permute.xlu0 %5085
        %5087 = vrot.lane.b32.xlu0 %v5070, 64
        %v5088 = vpop.permute.xlu0 %5087
        %5089 = vrot.lane.b32.xlu0 %v5071, 64
        %v5090 = vpop.permute.xlu0 %5089
        %5091 = vrot.lane.b32.xlu0 %v5072, 64
        %v5092 = vpop.permute.xlu0 %5091
        %5093 = vrot.lane.b32.xlu0 %v5073, 64
        %v5094 = vpop.permute.xlu0 %5093
        %5095 = vrot.lane.b32.xlu0 %v5074, 64
        %v5096 = vpop.permute.xlu0 %5095
        %5097 = vrot.lane.b32.xlu0 %v5075, 64
        %v5098 = vpop.permute.xlu0 %5097
        %5099 = vrot.lane.b32.xlu0 %v5076, 64
        %v5100 = vpop.permute.xlu0 %5099
        %5109 = vst.msk [vmem:[#allocation3 + $0x8] sm:$0xff] %vm4064, %v5086
        %5110 = vst.msk [vmem:[#allocation3 + $0x20] sm:$0xff] %vm4064, %v5088
        %5111 = vst.msk [vmem:[#allocation3 + $0x38] sm:$0xff] %vm4064, %v5090
        %5112 = vst.msk [vmem:[#allocation3 + $0x50] sm:$0xff] %vm4064, %v5092
        %5113 = vst.msk [vmem:[#allocation3 + $0x68] sm:$0xff] %vm4064, %v5094
        %5114 = vst.msk [vmem:[#allocation3 + $0x80] sm:$0xff] %vm4064, %v5096
        %5115 = vst.msk [vmem:[#allocation3 + $0x98] sm:$0xff] %vm4064, %v5098
        %5116 = vst.msk [vmem:[#allocation3 + $0xb0] sm:$0xff] %vm4064, %v5100
        %v5117 = vld [vmem:[#allocation2 + $0x10] sm:$0xff]
        %v5118 = vld [vmem:[#allocation2 + $0x58] sm:$0xff]
        %v5119 = vld [vmem:[#allocation2 + $0xa0] sm:$0xff]
        %v5120 = vld [vmem:[#allocation2 + $0xe8] sm:$0xff]
        %v5121 = vld [vmem:[#allocation2 + $0x130] sm:$0xff]
        %v5122 = vld [vmem:[#allocation2 + $0x178] sm:$0xff]
        %v5123 = vld [vmem:[#allocation2 + $0x1c0] sm:$0xff]
        %v5124 = vld [vmem:[#allocation2 + $0x208] sm:$0xff]
        %v5125 = vld [vmem:[#allocation2 + $0x28] sm:$0xff]
        %v5126 = vld [vmem:[#allocation2 + $0x70] sm:$0xff]
        %v5127 = vld [vmem:[#allocation2 + $0xb8] sm:$0xff]
        %v5128 = vld [vmem:[#allocation2 + $0x100] sm:$0xff]
        %v5129 = vld [vmem:[#allocation2 + $0x148] sm:$0xff]
        %v5130 = vld [vmem:[#allocation2 + $0x190] sm:$0xff]
        %v5131 = vld [vmem:[#allocation2 + $0x1d8] sm:$0xff]
        %v5132 = vld [vmem:[#allocation2 + $0x220] sm:$0xff]
        %v5133 = vld [vmem:[#allocation2 + $0x40] sm:$0xff]
        %v5134 = vld [vmem:[#allocation2 + $0x88] sm:$0xff]
        %v5135 = vld [vmem:[#allocation2 + $0xd0] sm:$0xff]
        %v5136 = vld [vmem:[#allocation2 + $0x118] sm:$0xff]
        %v5137 = vld [vmem:[#allocation2 + $0x160] sm:$0xff]
        %v5138 = vld [vmem:[#allocation2 + $0x1a8] sm:$0xff]
        %v5139 = vld [vmem:[#allocation2 + $0x1f0] sm:$0xff]
        %v5140 = vld [vmem:[#allocation2 + $0x238] sm:$0xff]
        %v5142 = vsel %vm3051, %v5117, 0
        %v5145 = vsel %vm3051, %v5118, 0
        %v5148 = vsel %vm3051, %v5119, 0
        %v5151 = vsel %vm3051, %v5120, 0
        %v5154 = vsel %vm3051, %v5121, 0
        %v5157 = vsel %vm3051, %v5122, 0
        %v5160 = vsel %vm3051, %v5123, 0
        %v5163 = vsel %vm3051, %v5124, 0
        %v5166 = vsel %vm3051, %v5125, 0
        %v5169 = vsel %vm3051, %v5126, 0
        %v5172 = vsel %vm3051, %v5127, 0
        %v5175 = vsel %vm3051, %v5128, 0
        %v5178 = vsel %vm3051, %v5129, 0
        %v5181 = vsel %vm3051, %v5130, 0
        %v5184 = vsel %vm3051, %v5131, 0
        %v5187 = vsel %vm3051, %v5132, 0
        %5189 = vmatprep.subr.bf16.mxu0 0
        %5190 = vmatpush1.bf16.xpose.msra.mxu0 %v5166
        %5191 = vmatprep.subr.bf16.mxu0 0
        %5192 = vmatpush1.bf16.xpose.msra.mxu0 %v5169
        %5193 = vmatprep.subr.bf16.mxu0 0
        %5194 = vmatpush1.bf16.xpose.msra.mxu0 %v5172
        %5195 = vmatprep.subr.bf16.mxu0 0
        %5196 = vmatpush1.bf16.xpose.msra.mxu0 %v5175
        %5197 = vmatprep.subr.bf16.mxu0 0
        %5198 = vmatpush1.bf16.xpose.msra.mxu0 %v5178
        %5199 = vmatprep.subr.bf16.mxu0 0
        %5200 = vmatpush1.bf16.xpose.msra.mxu0 %v5181
        %5201 = vmatprep.subr.bf16.mxu0 0
        %5202 = vmatpush1.bf16.xpose.msra.mxu0 %v5184
        %5203 = vmatprep.subr.bf16.mxu0 0
        %5204 = vmatpush1.bf16.xpose.msra.mxu0 %v5187
        %5205 = vmatprep.subr.bf16.mxu0 0
        %5206 = vmatpush1.bf16.xpose.msra.mxu0 0
        %5207 = vmatprep.subr.bf16.mxu0 0
        %5208 = vmatpush1.bf16.xpose.msra.mxu0 0
        %5209 = vmatprep.subr.bf16.mxu0 0
        %5210 = vmatpush1.bf16.xpose.msra.mxu0 0
        %5211 = vmatprep.subr.bf16.mxu0 0
        %5212 = vmatpush1.bf16.xpose.msra.mxu0 0
        %5213 = vmatprep.subr.bf16.mxu0 0
        %5214 = vmatpush1.bf16.xpose.msra.mxu0 0
        %5215 = vmatprep.subr.bf16.mxu0 0
        %5216 = vmatpush1.bf16.xpose.msra.mxu0 0
        %5217 = vmatprep.subr.bf16.mxu0 0
        %5218 = vmatpush1.bf16.xpose.msra.mxu0 0
        %5219 = vmatprep.subr.bf16.mxu0 0
        %5220 = vmatpush1.bf16.xpose.msra.mxu0 0
        %5221 = vmatprep.mubr.bf16.mxu0 0
        %5222 = vmatmul.mubr.bf16.gmra.mrb[0].mxu0 %v5142
        %v5223 = vpop.f32.mrb[0].mxu0
        %v5224 = vadd.f32 0.0, %v5223
        %v5225 = vpop.f32.mrb[0].mxu0
        %v5226 = vpop.f32.mrb[0].mxu0
        %v5227 = vadd.f32 0.0, %v5226
        %v5228 = vpop.f32.mrb[0].mxu0
        %5229 = vmatprep.mubr.bf16.mxu0 0
        %5230 = vmatmul.mubr.bf16.gmra.mrb[0].mxu0 %v5145
        %v5231 = vpop.f32.mrb[0].mxu0
        %v5232 = vadd.f32 0.0, %v5231
        %v5233 = vpop.f32.mrb[0].mxu0
        %v5234 = vpop.f32.mrb[0].mxu0
        %v5235 = vadd.f32 0.0, %v5234
        %v5236 = vpop.f32.mrb[0].mxu0
        %5237 = vmatprep.mubr.bf16.mxu0 0
        %5238 = vmatmul.mubr.bf16.gmra.mrb[0].mxu0 %v5148
        %v5239 = vpop.f32.mrb[0].mxu0
        %v5240 = vadd.f32 0.0, %v5239
        %v5241 = vpop.f32.mrb[0].mxu0
        %v5242 = vpop.f32.mrb[0].mxu0
        %v5243 = vadd.f32 0.0, %v5242
        %v5244 = vpop.f32.mrb[0].mxu0
        %5245 = vmatprep.mubr.bf16.mxu0 0
        %5246 = vmatmul.mubr.bf16.gmra.mrb[0].mxu0 %v5151
        %v5247 = vpop.f32.mrb[0].mxu0
        %v5248 = vadd.f32 0.0, %v5247
        %v5249 = vpop.f32.mrb[0].mxu0
        %v5250 = vpop.f32.mrb[0].mxu0
        %v5251 = vadd.f32 0.0, %v5250
        %v5252 = vpop.f32.mrb[0].mxu0
        %5253 = vmatprep.mubr.bf16.mxu0 0
        %5254 = vmatmul.mubr.bf16.gmra.mrb[0].mxu0 %v5154
        %v5255 = vpop.f32.mrb[0].mxu0
        %v5256 = vadd.f32 0.0, %v5255
        %v5257 = vpop.f32.mrb[0].mxu0
        %v5258 = vpop.f32.mrb[0].mxu0
        %v5259 = vadd.f32 0.0, %v5258
        %v5260 = vpop.f32.mrb[0].mxu0
        %5261 = vmatprep.mubr.bf16.mxu0 0
        %5262 = vmatmul.mubr.bf16.gmra.mrb[0].mxu0 %v5157
        %v5263 = vpop.f32.mrb[0].mxu0
        %v5264 = vadd.f32 0.0, %v5263
        %v5265 = vpop.f32.mrb[0].mxu0
        %v5266 = vpop.f32.mrb[0].mxu0
        %v5267 = vadd.f32 0.0, %v5266
        %v5268 = vpop.f32.mrb[0].mxu0
        %5269 = vmatprep.mubr.bf16.mxu0 0
        %5270 = vmatmul.mubr.bf16.gmra.mrb[0].mxu0 %v5160
        %v5271 = vpop.f32.mrb[0].mxu0
        %v5272 = vadd.f32 0.0, %v5271
        %v5273 = vpop.f32.mrb[0].mxu0
        %v5274 = vpop.f32.mrb[0].mxu0
        %v5275 = vadd.f32 0.0, %v5274
        %v5276 = vpop.f32.mrb[0].mxu0
        %5277 = vmatprep.mubr.bf16.mxu0 0
        %5278 = vmatmul.mubr.bf16.gmra.mrb[0].mxu0 %v5163
        %v5279 = vpop.f32.mrb[0].mxu0
        %v5280 = vadd.f32 0.0, %v5279
        %v5281 = vpop.f32.mrb[0].mxu0
        %v5282 = vpop.f32.mrb[0].mxu0
        %v5283 = vadd.f32 0.0, %v5282
        %v5284 = vpop.f32.mrb[0].mxu0
        %5285 = vdwg.mxu0
        %v5286 = vmul.f32 %v5224, 0.05103104
        %v5287 = vmul.f32 %v5227, 0.05103104
        %v5288 = vmul.f32 %v5232, 0.05103104
        %v5289 = vmul.f32 %v5235, 0.05103104
        %v5290 = vmul.f32 %v5240, 0.05103104
        %v5291 = vmul.f32 %v5243, 0.05103104
        %v5292 = vmul.f32 %v5248, 0.05103104
        %v5293 = vmul.f32 %v5251, 0.05103104
        %v5294 = vmul.f32 %v5256, 0.05103104
        %v5295 = vmul.f32 %v5259, 0.05103104
        %v5296 = vmul.f32 %v5264, 0.05103104
        %v5297 = vmul.f32 %v5267, 0.05103104
        %v5298 = vmul.f32 %v5272, 0.05103104
        %v5299 = vmul.f32 %v5275, 0.05103104
        %v5300 = vmul.f32 %v5280, 0.05103104
        %v5301 = vmul.f32 %v5283, 0.05103104
        %v5302 = vsel %vm3011, %v5286, -1e+30
        %v5303 = vsel %vm3012, %v5287, -1e+30
        %v5304 = vsel %vm3013, %v5288, -1e+30
        %v5305 = vsel %vm3014, %v5289, -1e+30
        %v5306 = vsel %vm3015, %v5290, -1e+30
        %v5307 = vsel %vm3016, %v5291, -1e+30
        %v5308 = vsel %vm3017, %v5292, -1e+30
        %v5309 = vsel %vm3018, %v5293, -1e+30
        %v5310 = vsel %vm3019, %v5294, -1e+30
        %v5311 = vsel %vm3020, %v5295, -1e+30
        %v5312 = vsel %vm3021, %v5296, -1e+30
        %v5313 = vsel %vm3022, %v5297, -1e+30
        %v5314 = vsel %vm3023, %v5298, -1e+30
        %v5315 = vsel %vm3024, %v5299, -1e+30
        %v5316 = vsel %vm3025, %v5300, -1e+30
        %v5317 = vsel %vm3026, %v5301, -1e+30
        %5318 = vmax.xlane.f32.xlu0 %v5302
        %v5319 = vpop.xlane.xlu0 %5318
        %5320 = vmax.xlane.f32.xlu0 %v5303
        %v5321 = vpop.xlane.xlu0 %5320
        %5322 = vmax.xlane.f32.xlu0 %v5304
        %v5323 = vpop.xlane.xlu0 %5322
        %5324 = vmax.xlane.f32.xlu0 %v5305
        %v5325 = vpop.xlane.xlu0 %5324
        %5326 = vmax.xlane.f32.xlu0 %v5306
        %v5327 = vpop.xlane.xlu0 %5326
        %5328 = vmax.xlane.f32.xlu0 %v5307
        %v5329 = vpop.xlane.xlu0 %5328
        %5330 = vmax.xlane.f32.xlu0 %v5308
        %v5331 = vpop.xlane.xlu0 %5330
        %5332 = vmax.xlane.f32.xlu0 %v5309
        %v5333 = vpop.xlane.xlu0 %5332
        %5334 = vmax.xlane.f32.xlu0 %v5310
        %v5335 = vpop.xlane.xlu0 %5334
        %5336 = vmax.xlane.f32.xlu0 %v5311
        %v5337 = vpop.xlane.xlu0 %5336
        %5338 = vmax.xlane.f32.xlu0 %v5312
        %v5339 = vpop.xlane.xlu0 %5338
        %5340 = vmax.xlane.f32.xlu0 %v5313
        %v5341 = vpop.xlane.xlu0 %5340
        %5342 = vmax.xlane.f32.xlu0 %v5314
        %v5343 = vpop.xlane.xlu0 %5342
        %5344 = vmax.xlane.f32.xlu0 %v5315
        %v5345 = vpop.xlane.xlu0 %5344
        %5346 = vmax.xlane.f32.xlu0 %v5316
        %v5347 = vpop.xlane.xlu0 %5346
        %5348 = vmax.xlane.f32.xlu0 %v5317
        %v5349 = vpop.xlane.xlu0 %5348
        %v5350 = vsub.f32 %v5302, %v5319
        %v5351 = vsub.f32 %v5303, %v5321
        %v5352 = vsub.f32 %v5304, %v5323
        %v5353 = vsub.f32 %v5305, %v5325
        %v5354 = vsub.f32 %v5306, %v5327
        %v5355 = vsub.f32 %v5307, %v5329
        %v5356 = vsub.f32 %v5308, %v5331
        %v5357 = vsub.f32 %v5309, %v5333
        %v5358 = vsub.f32 %v5310, %v5335
        %v5359 = vsub.f32 %v5311, %v5337
        %v5360 = vsub.f32 %v5312, %v5339
        %v5361 = vsub.f32 %v5313, %v5341
        %v5362 = vsub.f32 %v5314, %v5343
        %v5363 = vsub.f32 %v5315, %v5345
        %v5364 = vsub.f32 %v5316, %v5347
        %v5365 = vsub.f32 %v5317, %v5349
        %v5366 = vmul.f32 %v5350, 1.442695
        %v5367 = vpow.pop %v5366
        %v5368 = vmul.f32 %v5351, 1.442695
        %v5369 = vpow.pop %v5368
        %v5370 = vmul.f32 %v5352, 1.442695
        %v5371 = vpow.pop %v5370
        %v5372 = vmul.f32 %v5353, 1.442695
        %v5373 = vpow.pop %v5372
        %v5374 = vmul.f32 %v5354, 1.442695
        %v5375 = vpow.pop %v5374
        %v5376 = vmul.f32 %v5355, 1.442695
        %v5377 = vpow.pop %v5376
        %v5378 = vmul.f32 %v5356, 1.442695
        %v5379 = vpow.pop %v5378
        %v5380 = vmul.f32 %v5357, 1.442695
        %v5381 = vpow.pop %v5380
        %v5382 = vmul.f32 %v5358, 1.442695
        %v5383 = vpow.pop %v5382
        %v5384 = vmul.f32 %v5359, 1.442695
        %v5385 = vpow.pop %v5384
        %v5386 = vmul.f32 %v5360, 1.442695
        %v5387 = vpow.pop %v5386
        %v5388 = vmul.f32 %v5361, 1.442695
        %v5389 = vpow.pop %v5388
        %v5390 = vmul.f32 %v5362, 1.442695
        %v5391 = vpow.pop %v5390
        %v5392 = vmul.f32 %v5363, 1.442695
        %v5393 = vpow.pop %v5392
        %v5394 = vmul.f32 %v5364, 1.442695
        %v5395 = vpow.pop %v5394
        %v5396 = vmul.f32 %v5365, 1.442695
        %v5397 = vpow.pop %v5396
        %5398 = vadd.xlane.f32.xlu0 %v5367
        %v5399 = vpop.xlane.xlu0 %5398
        %5400 = vadd.xlane.f32.xlu0 %v5369
        %v5401 = vpop.xlane.xlu0 %5400
        %5402 = vadd.xlane.f32.xlu0 %v5371
        %v5403 = vpop.xlane.xlu0 %5402
        %5404 = vadd.xlane.f32.xlu0 %v5373
        %v5405 = vpop.xlane.xlu0 %5404
        %5406 = vadd.xlane.f32.xlu0 %v5375
        %v5407 = vpop.xlane.xlu0 %5406
        %5408 = vadd.xlane.f32.xlu0 %v5377
        %v5409 = vpop.xlane.xlu0 %5408
        %5410 = vadd.xlane.f32.xlu0 %v5379
        %v5411 = vpop.xlane.xlu0 %5410
        %5412 = vadd.xlane.f32.xlu0 %v5381
        %v5413 = vpop.xlane.xlu0 %5412
        %5414 = vadd.xlane.f32.xlu0 %v5383
        %v5415 = vpop.xlane.xlu0 %5414
        %5416 = vadd.xlane.f32.xlu0 %v5385
        %v5417 = vpop.xlane.xlu0 %5416
        %5418 = vadd.xlane.f32.xlu0 %v5387
        %v5419 = vpop.xlane.xlu0 %5418
        %5420 = vadd.xlane.f32.xlu0 %v5389
        %v5421 = vpop.xlane.xlu0 %5420
        %5422 = vadd.xlane.f32.xlu0 %v5391
        %v5423 = vpop.xlane.xlu0 %5422
        %5424 = vadd.xlane.f32.xlu0 %v5393
        %v5425 = vpop.xlane.xlu0 %5424
        %5426 = vadd.xlane.f32.xlu0 %v5395
        %v5427 = vpop.xlane.xlu0 %5426
        %5428 = vadd.xlane.f32.xlu0 %v5397
        %v5429 = vpop.xlane.xlu0 %5428
        %v5430 = vrcp.pop %v5399
        %v5431 = vrcp.pop %v5401
        %v5432 = vrcp.pop %v5403
        %v5433 = vrcp.pop %v5405
        %v5434 = vrcp.pop %v5407
        %v5435 = vrcp.pop %v5409
        %v5436 = vrcp.pop %v5411
        %v5437 = vrcp.pop %v5413
        %v5438 = vrcp.pop %v5415
        %v5439 = vrcp.pop %v5417
        %v5440 = vrcp.pop %v5419
        %v5441 = vrcp.pop %v5421
        %v5442 = vrcp.pop %v5423
        %v5443 = vrcp.pop %v5425
        %v5444 = vrcp.pop %v5427
        %v5445 = vrcp.pop %v5429
        %v5446 = vmul.f32 %v5367, %v5430
        %v5447 = vmul.f32 %v5369, %v5431
        %v5448 = vmul.f32 %v5371, %v5432
        %v5449 = vmul.f32 %v5373, %v5433
        %v5450 = vmul.f32 %v5375, %v5434
        %v5451 = vmul.f32 %v5377, %v5435
        %v5452 = vmul.f32 %v5379, %v5436
        %v5453 = vmul.f32 %v5381, %v5437
        %v5454 = vmul.f32 %v5383, %v5438
        %v5455 = vmul.f32 %v5385, %v5439
        %v5456 = vmul.f32 %v5387, %v5440
        %v5457 = vmul.f32 %v5389, %v5441
        %v5458 = vmul.f32 %v5391, %v5442
        %v5459 = vmul.f32 %v5393, %v5443
        %v5460 = vmul.f32 %v5395, %v5444
        %v5461 = vmul.f32 %v5397, %v5445
        %v5462 = vpack.c.bf16 %v5447, %v5446
        %v5463 = vpack.c.bf16 %v5449, %v5448
        %v5464 = vpack.c.bf16 %v5451, %v5450
        %v5465 = vpack.c.bf16 %v5453, %v5452
        %v5466 = vpack.c.bf16 %v5455, %v5454
        %v5467 = vpack.c.bf16 %v5457, %v5456
        %v5468 = vpack.c.bf16 %v5459, %v5458
        %v5469 = vpack.c.bf16 %v5461, %v5460
        %5470 = vmatprep.subr.bf16.mxu0 0
        %5471 = vmatpush1.bf16.msra.mxu0 %v5133
        %5472 = vmatprep.subr.bf16.mxu0 0
        %5473 = vmatpush1.bf16.msra.mxu0 %v5134
        %5474 = vmatprep.subr.bf16.mxu0 0
        %5475 = vmatpush1.bf16.msra.mxu0 %v5135
        %5476 = vmatprep.subr.bf16.mxu0 0
        %5477 = vmatpush1.bf16.msra.mxu0 %v5136
        %5478 = vmatprep.subr.bf16.mxu0 0
        %5479 = vmatpush1.bf16.msra.mxu0 %v5137
        %5480 = vmatprep.subr.bf16.mxu0 0
        %5481 = vmatpush1.bf16.msra.mxu0 %v5138
        %5482 = vmatprep.subr.bf16.mxu0 0
        %5483 = vmatpush1.bf16.msra.mxu0 %v5139
        %5484 = vmatprep.subr.bf16.mxu0 0
        %5485 = vmatpush1.bf16.msra.mxu0 %v5140
        %5486 = vmatprep.subr.bf16.mxu0 0
        %5487 = vmatpush1.bf16.msra.mxu0 0
        %5488 = vmatprep.subr.bf16.mxu0 0
        %5489 = vmatpush1.bf16.msra.mxu0 0
        %5490 = vmatprep.subr.bf16.mxu0 0
        %5491 = vmatpush1.bf16.msra.mxu0 0
        %5492 = vmatprep.subr.bf16.mxu0 0
        %5493 = vmatpush1.bf16.msra.mxu0 0
        %5494 = vmatprep.subr.bf16.mxu0 0
        %5495 = vmatpush1.bf16.msra.mxu0 0
        %5496 = vmatprep.subr.bf16.mxu0 0
        %5497 = vmatpush1.bf16.msra.mxu0 0
        %5498 = vmatprep.subr.bf16.mxu0 0
        %5499 = vmatpush1.bf16.msra.mxu0 0
        %5500 = vmatprep.subr.bf16.mxu0 0
        %5501 = vmatpush1.bf16.msra.mxu0 0
        %5502 = vmatprep.mubr.bf16.mxu0 0
        %5503 = vmatmul.mubr.bf16.gmra.mrb[0].mxu0 %v5462
        %v5504 = vpop.f32.mrb[0].mxu0
        %v5505 = vadd.f32 0.0, %v5504
        %v5506 = vpop.f32.mrb[0].mxu0
        %v5507 = vpop.f32.mrb[0].mxu0
        %v5508 = vadd.f32 0.0, %v5507
        %v5509 = vpop.f32.mrb[0].mxu0
        %5510 = vmatprep.mubr.bf16.mxu0 0
        %5511 = vmatmul.mubr.bf16.gmra.mrb[0].mxu0 %v5463
        %v5512 = vpop.f32.mrb[0].mxu0
        %v5513 = vadd.f32 0.0, %v5512
        %v5514 = vpop.f32.mrb[0].mxu0
        %v5515 = vpop.f32.mrb[0].mxu0
        %v5516 = vadd.f32 0.0, %v5515
        %v5517 = vpop.f32.mrb[0].mxu0
        %5518 = vmatprep.mubr.bf16.mxu0 0
        %5519 = vmatmul.mubr.bf16.gmra.mrb[0].mxu0 %v5464
        %v5520 = vpop.f32.mrb[0].mxu0
        %v5521 = vadd.f32 0.0, %v5520
        %v5522 = vpop.f32.mrb[0].mxu0
        %v5523 = vpop.f32.mrb[0].mxu0
        %v5524 = vadd.f32 0.0, %v5523
        %v5525 = vpop.f32.mrb[0].mxu0
        %5526 = vmatprep.mubr.bf16.mxu0 0
        %5527 = vmatmul.mubr.bf16.gmra.mrb[0].mxu0 %v5465
        %v5528 = vpop.f32.mrb[0].mxu0
        %v5529 = vadd.f32 0.0, %v5528
        %v5530 = vpop.f32.mrb[0].mxu0
        %v5531 = vpop.f32.mrb[0].mxu0
        %v5532 = vadd.f32 0.0, %v5531
        %v5533 = vpop.f32.mrb[0].mxu0
        %5534 = vmatprep.mubr.bf16.mxu0 0
        %5535 = vmatmul.mubr.bf16.gmra.mrb[0].mxu0 %v5466
        %v5536 = vpop.f32.mrb[0].mxu0
        %v5537 = vadd.f32 0.0, %v5536
        %v5538 = vpop.f32.mrb[0].mxu0
        %v5539 = vpop.f32.mrb[0].mxu0
        %v5540 = vadd.f32 0.0, %v5539
        %v5541 = vpop.f32.mrb[0].mxu0
        %5542 = vmatprep.mubr.bf16.mxu0 0
        %5543 = vmatmul.mubr.bf16.gmra.mrb[0].mxu0 %v5467
        %v5544 = vpop.f32.mrb[0].mxu0
        %v5545 = vadd.f32 0.0, %v5544
        %v5546 = vpop.f32.mrb[0].mxu0
        %v5547 = vpop.f32.mrb[0].mxu0
        %v5548 = vadd.f32 0.0, %v5547
        %v5549 = vpop.f32.mrb[0].mxu0
        %5550 = vmatprep.mubr.bf16.mxu0 0
        %5551 = vmatmul.mubr.bf16.gmra.mrb[0].mxu0 %v5468
        %v5552 = vpop.f32.mrb[0].mxu0
        %v5553 = vadd.f32 0.0, %v5552
        %v5554 = vpop.f32.mrb[0].mxu0
        %v5555 = vpop.f32.mrb[0].mxu0
        %v5556 = vadd.f32 0.0, %v5555
        %v5557 = vpop.f32.mrb[0].mxu0
        %5558 = vmatprep.mubr.bf16.mxu0 0
        %5559 = vmatmul.mubr.bf16.gmra.mrb[0].mxu0 %v5469
        %v5560 = vpop.f32.mrb[0].mxu0
        %v5561 = vadd.f32 0.0, %v5560
        %v5562 = vpop.f32.mrb[0].mxu0
        %v5563 = vpop.f32.mrb[0].mxu0
        %v5564 = vadd.f32 0.0, %v5563
        %v5565 = vpop.f32.mrb[0].mxu0
        %5566 = vdwg.mxu0
        %v5567 = vpack.c.bf16 %v5508, %v5505
        %v5568 = vpack.c.bf16 %v5516, %v5513
        %v5569 = vpack.c.bf16 %v5524, %v5521
        %v5570 = vpack.c.bf16 %v5532, %v5529
        %v5571 = vpack.c.bf16 %v5540, %v5537
        %v5572 = vpack.c.bf16 %v5548, %v5545
        %v5573 = vpack.c.bf16 %v5556, %v5553
        %v5574 = vpack.c.bf16 %v5564, %v5561
        %5575 = vst.msk [vmem:[#allocation3 + $0x10] sm:$0xff] %vm3051, %v5567
        %5576 = vst.msk [vmem:[#allocation3 + $0x28] sm:$0xff] %vm3051, %v5568
        %5577 = vst.msk [vmem:[#allocation3 + $0x40] sm:$0xff] %vm3051, %v5569
        %5578 = vst.msk [vmem:[#allocation3 + $0x58] sm:$0xff] %vm3051, %v5570
        %5579 = vst.msk [vmem:[#allocation3 + $0x70] sm:$0xff] %vm3051, %v5571
        %5580 = vst.msk [vmem:[#allocation3 + $0x88] sm:$0xff] %vm3051, %v5572
        %5581 = vst.msk [vmem:[#allocation3 + $0xa0] sm:$0xff] %vm3051, %v5573
        %5582 = vst.msk [vmem:[#allocation3 + $0xb8] sm:$0xff] %vm3051, %v5574
        %v5583 = vld [vmem:[#allocation2 + $0x10] sm:$0xff]
        %v5584 = vld [vmem:[#allocation2 + $0x58] sm:$0xff]
        %v5585 = vld [vmem:[#allocation2 + $0xa0] sm:$0xff]
        %v5586 = vld [vmem:[#allocation2 + $0xe8] sm:$0xff]
        %v5587 = vld [vmem:[#allocation2 + $0x130] sm:$0xff]
        %v5588 = vld [vmem:[#allocation2 + $0x178] sm:$0xff]
        %v5589 = vld [vmem:[#allocation2 + $0x1c0] sm:$0xff]
        %v5590 = vld [vmem:[#allocation2 + $0x208] sm:$0xff]
        %v5591 = vld [vmem:[#allocation2 + $0x28] sm:$0xff]
        %v5592 = vld [vmem:[#allocation2 + $0x70] sm:$0xff]
        %v5593 = vld [vmem:[#allocation2 + $0xb8] sm:$0xff]
        %v5594 = vld [vmem:[#allocation2 + $0x100] sm:$0xff]
        %v5595 = vld [vmem:[#allocation2 + $0x148] sm:$0xff]
        %v5596 = vld [vmem:[#allocation2 + $0x190] sm:$0xff]
        %v5597 = vld [vmem:[#allocation2 + $0x1d8] sm:$0xff]
        %v5598 = vld [vmem:[#allocation2 + $0x220] sm:$0xff]
        %v5599 = vld [vmem:[#allocation2 + $0x40] sm:$0xff]
        %v5600 = vld [vmem:[#allocation2 + $0x88] sm:$0xff]
        %v5601 = vld [vmem:[#allocation2 + $0xd0] sm:$0xff]
        %v5602 = vld [vmem:[#allocation2 + $0x118] sm:$0xff]
        %v5603 = vld [vmem:[#allocation2 + $0x160] sm:$0xff]
        %v5604 = vld [vmem:[#allocation2 + $0x1a8] sm:$0xff]
        %v5605 = vld [vmem:[#allocation2 + $0x1f0] sm:$0xff]
        %v5606 = vld [vmem:[#allocation2 + $0x238] sm:$0xff]
        %5615 = vrot.lane.b32.xlu0 %v5583, 64
        %v5616 = vpop.permute.xlu0 %5615
        %5617 = vrot.lane.b32.xlu0 %v5584, 64
        %v5618 = vpop.permute.xlu0 %5617
        %5619 = vrot.lane.b32.xlu0 %v5585, 64
        %v5620 = vpop.permute.xlu0 %5619
        %5621 = vrot.lane.b32.xlu0 %v5586, 64
        %v5622 = vpop.permute.xlu0 %5621
        %5623 = vrot.lane.b32.xlu0 %v5587, 64
        %v5624 = vpop.permute.xlu0 %5623
        %5625 = vrot.lane.b32.xlu0 %v5588, 64
        %v5626 = vpop.permute.xlu0 %5625
        %5627 = vrot.lane.b32.xlu0 %v5589, 64
        %v5628 = vpop.permute.xlu0 %5627
        %5629 = vrot.lane.b32.xlu0 %v5590, 64
        %v5630 = vpop.permute.xlu0 %5629
        %5639 = vrot.lane.b32.xlu0 %v5591, 64
        %v5640 = vpop.permute.xlu0 %5639
        %5641 = vrot.lane.b32.xlu0 %v5592, 64
        %v5642 = vpop.permute.xlu0 %5641
        %5643 = vrot.lane.b32.xlu0 %v5593, 64
        %v5644 = vpop.permute.xlu0 %5643
        %5645 = vrot.lane.b32.xlu0 %v5594, 64
        %v5646 = vpop.permute.xlu0 %5645
        %5647 = vrot.lane.b32.xlu0 %v5595, 64
        %v5648 = vpop.permute.xlu0 %5647
        %5649 = vrot.lane.b32.xlu0 %v5596, 64
        %v5650 = vpop.permute.xlu0 %5649
        %5651 = vrot.lane.b32.xlu0 %v5597, 64
        %v5652 = vpop.permute.xlu0 %5651
        %5653 = vrot.lane.b32.xlu0 %v5598, 64
        %v5654 = vpop.permute.xlu0 %5653
        %v5656 = vsel %vm3051, %v5616, 0
        %v5659 = vsel %vm3051, %v5618, 0
        %v5662 = vsel %vm3051, %v5620, 0
        %v5665 = vsel %vm3051, %v5622, 0
        %v5668 = vsel %vm3051, %v5624, 0
        %v5671 = vsel %vm3051, %v5626, 0
        %v5674 = vsel %vm3051, %v5628, 0
        %v5677 = vsel %vm3051, %v5630, 0
        %v5680 = vsel %vm3051, %v5640, 0
        %v5683 = vsel %vm3051, %v5642, 0
        %v5686 = vsel %vm3051, %v5644, 0
        %v5689 = vsel %vm3051, %v5646, 0
        %v5692 = vsel %vm3051, %v5648, 0
        %v5695 = vsel %vm3051, %v5650, 0
        %v5698 = vsel %vm3051, %v5652, 0
        %v5701 = vsel %vm3051, %v5654, 0
        %5703 = vmatprep.subr.bf16.mxu0 0
        %5704 = vmatpush1.bf16.xpose.msra.mxu0 %v5680
        %5705 = vmatprep.subr.bf16.mxu0 0
        %5706 = vmatpush1.bf16.xpose.msra.mxu0 %v5683
        %5707 = vmatprep.subr.bf16.mxu0 0
        %5708 = vmatpush1.bf16.xpose.msra.mxu0 %v5686
        %5709 = vmatprep.subr.bf16.mxu0 0
        %5710 = vmatpush1.bf16.xpose.msra.mxu0 %v5689
        %5711 = vmatprep.subr.bf16.mxu0 0
        %5712 = vmatpush1.bf16.xpose.msra.mxu0 %v5692
        %5713 = vmatprep.subr.bf16.mxu0 0
        %5714 = vmatpush1.bf16.xpose.msra.mxu0 %v5695
        %5715 = vmatprep.subr.bf16.mxu0 0
        %5716 = vmatpush1.bf16.xpose.msra.mxu0 %v5698
        %5717 = vmatprep.subr.bf16.mxu0 0
        %5718 = vmatpush1.bf16.xpose.msra.mxu0 %v5701
        %5719 = vmatprep.subr.bf16.mxu0 0
        %5720 = vmatpush1.bf16.xpose.msra.mxu0 0
        %5721 = vmatprep.subr.bf16.mxu0 0
        %5722 = vmatpush1.bf16.xpose.msra.mxu0 0
        %5723 = vmatprep.subr.bf16.mxu0 0
        %5724 = vmatpush1.bf16.xpose.msra.mxu0 0
        %5725 = vmatprep.subr.bf16.mxu0 0
        %5726 = vmatpush1.bf16.xpose.msra.mxu0 0
        %5727 = vmatprep.subr.bf16.mxu0 0
        %5728 = vmatpush1.bf16.xpose.msra.mxu0 0
        %5729 = vmatprep.subr.bf16.mxu0 0
        %5730 = vmatpush1.bf16.xpose.msra.mxu0 0
        %5731 = vmatprep.subr.bf16.mxu0 0
        %5732 = vmatpush1.bf16.xpose.msra.mxu0 0
        %5733 = vmatprep.subr.bf16.mxu0 0
        %5734 = vmatpush1.bf16.xpose.msra.mxu0 0
        %5735 = vmatprep.mubr.bf16.mxu0 0
        %5736 = vmatmul.mubr.bf16.gmra.mrb[0].mxu0 %v5656
        %v5737 = vpop.f32.mrb[0].mxu0
        %v5738 = vadd.f32 0.0, %v5737
        %v5739 = vpop.f32.mrb[0].mxu0
        %v5740 = vpop.f32.mrb[0].mxu0
        %v5741 = vadd.f32 0.0, %v5740
        %v5742 = vpop.f32.mrb[0].mxu0
        %5743 = vmatprep.mubr.bf16.mxu0 0
        %5744 = vmatmul.mubr.bf16.gmra.mrb[0].mxu0 %v5659
        %v5745 = vpop.f32.mrb[0].mxu0
        %v5746 = vadd.f32 0.0, %v5745
        %v5747 = vpop.f32.mrb[0].mxu0
        %v5748 = vpop.f32.mrb[0].mxu0
        %v5749 = vadd.f32 0.0, %v5748
        %v5750 = vpop.f32.mrb[0].mxu0
        %5751 = vmatprep.mubr.bf16.mxu0 0
        %5752 = vmatmul.mubr.bf16.gmra.mrb[0].mxu0 %v5662
        %v5753 = vpop.f32.mrb[0].mxu0
        %v5754 = vadd.f32 0.0, %v5753
        %v5755 = vpop.f32.mrb[0].mxu0
        %v5756 = vpop.f32.mrb[0].mxu0
        %v5757 = vadd.f32 0.0, %v5756
        %v5758 = vpop.f32.mrb[0].mxu0
        %5759 = vmatprep.mubr.bf16.mxu0 0
        %5760 = vmatmul.mubr.bf16.gmra.mrb[0].mxu0 %v5665
        %v5761 = vpop.f32.mrb[0].mxu0
        %v5762 = vadd.f32 0.0, %v5761
        %v5763 = vpop.f32.mrb[0].mxu0
        %v5764 = vpop.f32.mrb[0].mxu0
        %v5765 = vadd.f32 0.0, %v5764
        %v5766 = vpop.f32.mrb[0].mxu0
        %5767 = vmatprep.mubr.bf16.mxu0 0
        %5768 = vmatmul.mubr.bf16.gmra.mrb[0].mxu0 %v5668
        %v5769 = vpop.f32.mrb[0].mxu0
        %v5770 = vadd.f32 0.0, %v5769
        %v5771 = vpop.f32.mrb[0].mxu0
        %v5772 = vpop.f32.mrb[0].mxu0
        %v5773 = vadd.f32 0.0, %v5772
        %v5774 = vpop.f32.mrb[0].mxu0
        %5775 = vmatprep.mubr.bf16.mxu0 0
        %5776 = vmatmul.mubr.bf16.gmra.mrb[0].mxu0 %v5671
        %v5777 = vpop.f32.mrb[0].mxu0
        %v5778 = vadd.f32 0.0, %v5777
        %v5779 = vpop.f32.mrb[0].mxu0
        %v5780 = vpop.f32.mrb[0].mxu0
        %v5781 = vadd.f32 0.0, %v5780
        %v5782 = vpop.f32.mrb[0].mxu0
        %5783 = vmatprep.mubr.bf16.mxu0 0
        %5784 = vmatmul.mubr.bf16.gmra.mrb[0].mxu0 %v5674
        %v5785 = vpop.f32.mrb[0].mxu0
        %v5786 = vadd.f32 0.0, %v5785
        %v5787 = vpop.f32.mrb[0].mxu0
        %v5788 = vpop.f32.mrb[0].mxu0
        %v5789 = vadd.f32 0.0, %v5788
        %v5790 = vpop.f32.mrb[0].mxu0
        %5791 = vmatprep.mubr.bf16.mxu0 0
        %5792 = vmatmul.mubr.bf16.gmra.mrb[0].mxu0 %v5677
        %v5793 = vpop.f32.mrb[0].mxu0
        %v5794 = vadd.f32 0.0, %v5793
        %v5795 = vpop.f32.mrb[0].mxu0
        %v5796 = vpop.f32.mrb[0].mxu0
        %v5797 = vadd.f32 0.0, %v5796
        %v5798 = vpop.f32.mrb[0].mxu0
        %5799 = vdwg.mxu0
        %v5800 = vmul.f32 %v5738, 0.05103104
        %v5801 = vmul.f32 %v5741, 0.05103104
        %v5802 = vmul.f32 %v5746, 0.05103104
        %v5803 = vmul.f32 %v5749, 0.05103104
        %v5804 = vmul.f32 %v5754, 0.05103104
        %v5805 = vmul.f32 %v5757, 0.05103104
        %v5806 = vmul.f32 %v5762, 0.05103104
        %v5807 = vmul.f32 %v5765, 0.05103104
        %v5808 = vmul.f32 %v5770, 0.05103104
        %v5809 = vmul.f32 %v5773, 0.05103104
        %v5810 = vmul.f32 %v5778, 0.05103104
        %v5811 = vmul.f32 %v5781, 0.05103104
        %v5812 = vmul.f32 %v5786, 0.05103104
        %v5813 = vmul.f32 %v5789, 0.05103104
        %v5814 = vmul.f32 %v5794, 0.05103104
        %v5815 = vmul.f32 %v5797, 0.05103104
        %v5816 = vsel %vm3011, %v5800, -1e+30
        %v5817 = vsel %vm3012, %v5801, -1e+30
        %v5818 = vsel %vm3013, %v5802, -1e+30
        %v5819 = vsel %vm3014, %v5803, -1e+30
        %v5820 = vsel %vm3015, %v5804, -1e+30
        %v5821 = vsel %vm3016, %v5805, -1e+30
        %v5822 = vsel %vm3017, %v5806, -1e+30
        %v5823 = vsel %vm3018, %v5807, -1e+30
        %v5824 = vsel %vm3019, %v5808, -1e+30
        %v5825 = vsel %vm3020, %v5809, -1e+30
        %v5826 = vsel %vm3021, %v5810, -1e+30
        %v5827 = vsel %vm3022, %v5811, -1e+30
        %v5828 = vsel %vm3023, %v5812, -1e+30
        %v5829 = vsel %vm3024, %v5813, -1e+30
        %v5830 = vsel %vm3025, %v5814, -1e+30
        %v5831 = vsel %vm3026, %v5815, -1e+30
        %5832 = vmax.xlane.f32.xlu0 %v5816
        %v5833 = vpop.xlane.xlu0 %5832
        %5834 = vmax.xlane.f32.xlu0 %v5817
        %v5835 = vpop.xlane.xlu0 %5834
        %5836 = vmax.xlane.f32.xlu0 %v5818
        %v5837 = vpop.xlane.xlu0 %5836
        %5838 = vmax.xlane.f32.xlu0 %v5819
        %v5839 = vpop.xlane.xlu0 %5838
        %5840 = vmax.xlane.f32.xlu0 %v5820
        %v5841 = vpop.xlane.xlu0 %5840
        %5842 = vmax.xlane.f32.xlu0 %v5821
        %v5843 = vpop.xlane.xlu0 %5842
        %5844 = vmax.xlane.f32.xlu0 %v5822
        %v5845 = vpop.xlane.xlu0 %5844
        %5846 = vmax.xlane.f32.xlu0 %v5823
        %v5847 = vpop.xlane.xlu0 %5846
        %5848 = vmax.xlane.f32.xlu0 %v5824
        %v5849 = vpop.xlane.xlu0 %5848
        %5850 = vmax.xlane.f32.xlu0 %v5825
        %v5851 = vpop.xlane.xlu0 %5850
        %5852 = vmax.xlane.f32.xlu0 %v5826
        %v5853 = vpop.xlane.xlu0 %5852
        %5854 = vmax.xlane.f32.xlu0 %v5827
        %v5855 = vpop.xlane.xlu0 %5854
        %5856 = vmax.xlane.f32.xlu0 %v5828
        %v5857 = vpop.xlane.xlu0 %5856
        %5858 = vmax.xlane.f32.xlu0 %v5829
        %v5859 = vpop.xlane.xlu0 %5858
        %5860 = vmax.xlane.f32.xlu0 %v5830
        %v5861 = vpop.xlane.xlu0 %5860
        %5862 = vmax.xlane.f32.xlu0 %v5831
        %v5863 = vpop.xlane.xlu0 %5862
        %v5864 = vsub.f32 %v5816, %v5833
        %v5865 = vsub.f32 %v5817, %v5835
        %v5866 = vsub.f32 %v5818, %v5837
        %v5867 = vsub.f32 %v5819, %v5839
        %v5868 = vsub.f32 %v5820, %v5841
        %v5869 = vsub.f32 %v5821, %v5843
        %v5870 = vsub.f32 %v5822, %v5845
        %v5871 = vsub.f32 %v5823, %v5847
        %v5872 = vsub.f32 %v5824, %v5849
        %v5873 = vsub.f32 %v5825, %v5851
        %v5874 = vsub.f32 %v5826, %v5853
        %v5875 = vsub.f32 %v5827, %v5855
        %v5876 = vsub.f32 %v5828, %v5857
        %v5877 = vsub.f32 %v5829, %v5859
        %v5878 = vsub.f32 %v5830, %v5861
        %v5879 = vsub.f32 %v5831, %v5863
        %v5880 = vmul.f32 %v5864, 1.442695
        %v5881 = vpow.pop %v5880
        %v5882 = vmul.f32 %v5865, 1.442695
        %v5883 = vpow.pop %v5882
        %v5884 = vmul.f32 %v5866, 1.442695
        %v5885 = vpow.pop %v5884
        %v5886 = vmul.f32 %v5867, 1.442695
        %v5887 = vpow.pop %v5886
        %v5888 = vmul.f32 %v5868, 1.442695
        %v5889 = vpow.pop %v5888
        %v5890 = vmul.f32 %v5869, 1.442695
        %v5891 = vpow.pop %v5890
        %v5892 = vmul.f32 %v5870, 1.442695
        %v5893 = vpow.pop %v5892
        %v5894 = vmul.f32 %v5871, 1.442695
        %v5895 = vpow.pop %v5894
        %v5896 = vmul.f32 %v5872, 1.442695
        %v5897 = vpow.pop %v5896
        %v5898 = vmul.f32 %v5873, 1.442695
        %v5899 = vpow.pop %v5898
        %v5900 = vmul.f32 %v5874, 1.442695
        %v5901 = vpow.pop %v5900
        %v5902 = vmul.f32 %v5875, 1.442695
        %v5903 = vpow.pop %v5902
        %v5904 = vmul.f32 %v5876, 1.442695
        %v5905 = vpow.pop %v5904
        %v5906 = vmul.f32 %v5877, 1.442695
        %v5907 = vpow.pop %v5906
        %v5908 = vmul.f32 %v5878, 1.442695
        %v5909 = vpow.pop %v5908
        %v5910 = vmul.f32 %v5879, 1.442695
        %v5911 = vpow.pop %v5910
        %5912 = vadd.xlane.f32.xlu0 %v5881
        %v5913 = vpop.xlane.xlu0 %5912
        %5914 = vadd.xlane.f32.xlu0 %v5883
        %v5915 = vpop.xlane.xlu0 %5914
        %5916 = vadd.xlane.f32.xlu0 %v5885
        %v5917 = vpop.xlane.xlu0 %5916
        %5918 = vadd.xlane.f32.xlu0 %v5887
        %v5919 = vpop.xlane.xlu0 %5918
        %5920 = vadd.xlane.f32.xlu0 %v5889
        %v5921 = vpop.xlane.xlu0 %5920
        %5922 = vadd.xlane.f32.xlu0 %v5891
        %v5923 = vpop.xlane.xlu0 %5922
        %5924 = vadd.xlane.f32.xlu0 %v5893
        %v5925 = vpop.xlane.xlu0 %5924
        %5926 = vadd.xlane.f32.xlu0 %v5895
        %v5927 = vpop.xlane.xlu0 %5926
        %5928 = vadd.xlane.f32.xlu0 %v5897
        %v5929 = vpop.xlane.xlu0 %5928
        %5930 = vadd.xlane.f32.xlu0 %v5899
        %v5931 = vpop.xlane.xlu0 %5930
        %5932 = vadd.xlane.f32.xlu0 %v5901
        %v5933 = vpop.xlane.xlu0 %5932
        %5934 = vadd.xlane.f32.xlu0 %v5903
        %v5935 = vpop.xlane.xlu0 %5934
        %5936 = vadd.xlane.f32.xlu0 %v5905
        %v5937 = vpop.xlane.xlu0 %5936
        %5938 = vadd.xlane.f32.xlu0 %v5907
        %v5939 = vpop.xlane.xlu0 %5938
        %5940 = vadd.xlane.f32.xlu0 %v5909
        %v5941 = vpop.xlane.xlu0 %5940
        %5942 = vadd.xlane.f32.xlu0 %v5911
        %v5943 = vpop.xlane.xlu0 %5942
        %v5944 = vrcp.pop %v5913
        %v5945 = vrcp.pop %v5915
        %v5946 = vrcp.pop %v5917
        %v5947 = vrcp.pop %v5919
        %v5948 = vrcp.pop %v5921
        %v5949 = vrcp.pop %v5923
        %v5950 = vrcp.pop %v5925
        %v5951 = vrcp.pop %v5927
        %v5952 = vrcp.pop %v5929
        %v5953 = vrcp.pop %v5931
        %v5954 = vrcp.pop %v5933
        %v5955 = vrcp.pop %v5935
        %v5956 = vrcp.pop %v5937
        %v5957 = vrcp.pop %v5939
        %v5958 = vrcp.pop %v5941
        %v5959 = vrcp.pop %v5943
        %v5960 = vmul.f32 %v5881, %v5944
        %v5961 = vmul.f32 %v5883, %v5945
        %v5962 = vmul.f32 %v5885, %v5946
        %v5963 = vmul.f32 %v5887, %v5947
        %v5964 = vmul.f32 %v5889, %v5948
        %v5965 = vmul.f32 %v5891, %v5949
        %v5966 = vmul.f32 %v5893, %v5950
        %v5967 = vmul.f32 %v5895, %v5951
        %v5968 = vmul.f32 %v5897, %v5952
        %v5969 = vmul.f32 %v5899, %v5953
        %v5970 = vmul.f32 %v5901, %v5954
        %v5971 = vmul.f32 %v5903, %v5955
        %v5972 = vmul.f32 %v5905, %v5956
        %v5973 = vmul.f32 %v5907, %v5957
        %v5974 = vmul.f32 %v5909, %v5958
        %v5975 = vmul.f32 %v5911, %v5959
        %v5976 = vpack.c.bf16 %v5961, %v5960
        %v5977 = vpack.c.bf16 %v5963, %v5962
        %v5978 = vpack.c.bf16 %v5965, %v5964
        %v5979 = vpack.c.bf16 %v5967, %v5966
        %v5980 = vpack.c.bf16 %v5969, %v5968
        %v5981 = vpack.c.bf16 %v5971, %v5970
        %v5982 = vpack.c.bf16 %v5973, %v5972
        %v5983 = vpack.c.bf16 %v5975, %v5974
        %5992 = vrot.lane.b32.xlu0 %v5599, 64
        %v5993 = vpop.permute.xlu0 %5992
        %5994 = vrot.lane.b32.xlu0 %v5600, 64
        %v5995 = vpop.permute.xlu0 %5994
        %5996 = vrot.lane.b32.xlu0 %v5601, 64
        %v5997 = vpop.permute.xlu0 %5996
        %5998 = vrot.lane.b32.xlu0 %v5602, 64
        %v5999 = vpop.permute.xlu0 %5998
        %6000 = vrot.lane.b32.xlu0 %v5603, 64
        %v6001 = vpop.permute.xlu0 %6000
        %6002 = vrot.lane.b32.xlu0 %v5604, 64
        %v6003 = vpop.permute.xlu0 %6002
        %6004 = vrot.lane.b32.xlu0 %v5605, 64
        %v6005 = vpop.permute.xlu0 %6004
        %6006 = vrot.lane.b32.xlu0 %v5606, 64
        %v6007 = vpop.permute.xlu0 %6006
        %6016 = vmatprep.subr.bf16.mxu0 0
        %6017 = vmatpush1.bf16.msra.mxu0 %v5993
        %6018 = vmatprep.subr.bf16.mxu0 0
        %6019 = vmatpush1.bf16.msra.mxu0 %v5995
        %6020 = vmatprep.subr.bf16.mxu0 0
        %6021 = vmatpush1.bf16.msra.mxu0 %v5997
        %6022 = vmatprep.subr.bf16.mxu0 0
        %6023 = vmatpush1.bf16.msra.mxu0 %v5999
        %6024 = vmatprep.subr.bf16.mxu0 0
        %6025 = vmatpush1.bf16.msra.mxu0 %v6001
        %6026 = vmatprep.subr.bf16.mxu0 0
        %6027 = vmatpush1.bf16.msra.mxu0 %v6003
        %6028 = vmatprep.subr.bf16.mxu0 0
        %6029 = vmatpush1.bf16.msra.mxu0 %v6005
        %6030 = vmatprep.subr.bf16.mxu0 0
        %6031 = vmatpush1.bf16.msra.mxu0 %v6007
        %6032 = vmatprep.subr.bf16.mxu0 0
        %6033 = vmatpush1.bf16.msra.mxu0 0
        %6034 = vmatprep.subr.bf16.mxu0 0
        %6035 = vmatpush1.bf16.msra.mxu0 0
        %6036 = vmatprep.subr.bf16.mxu0 0
        %6037 = vmatpush1.bf16.msra.mxu0 0
        %6038 = vmatprep.subr.bf16.mxu0 0
        %6039 = vmatpush1.bf16.msra.mxu0 0
        %6040 = vmatprep.subr.bf16.mxu0 0
        %6041 = vmatpush1.bf16.msra.mxu0 0
        %6042 = vmatprep.subr.bf16.mxu0 0
        %6043 = vmatpush1.bf16.msra.mxu0 0
        %6044 = vmatprep.subr.bf16.mxu0 0
        %6045 = vmatpush1.bf16.msra.mxu0 0
        %6046 = vmatprep.subr.bf16.mxu0 0
        %6047 = vmatpush1.bf16.msra.mxu0 0
        %6048 = vmatprep.mubr.bf16.mxu0 0
        %6049 = vmatmul.mubr.bf16.gmra.mrb[0].mxu0 %v5976
        %v6050 = vpop.f32.mrb[0].mxu0
        %v6051 = vadd.f32 0.0, %v6050
        %v6052 = vpop.f32.mrb[0].mxu0
        %v6053 = vpop.f32.mrb[0].mxu0
        %v6054 = vadd.f32 0.0, %v6053
        %v6055 = vpop.f32.mrb[0].mxu0
        %6056 = vmatprep.mubr.bf16.mxu0 0
        %6057 = vmatmul.mubr.bf16.gmra.mrb[0].mxu0 %v5977
        %v6058 = vpop.f32.mrb[0].mxu0
        %v6059 = vadd.f32 0.0, %v6058
        %v6060 = vpop.f32.mrb[0].mxu0
        %v6061 = vpop.f32.mrb[0].mxu0
        %v6062 = vadd.f32 0.0, %v6061
        %v6063 = vpop.f32.mrb[0].mxu0
        %6064 = vmatprep.mubr.bf16.mxu0 0
        %6065 = vmatmul.mubr.bf16.gmra.mrb[0].mxu0 %v5978
        %v6066 = vpop.f32.mrb[0].mxu0
        %v6067 = vadd.f32 0.0, %v6066
        %v6068 = vpop.f32.mrb[0].mxu0
        %v6069 = vpop.f32.mrb[0].mxu0
        %v6070 = vadd.f32 0.0, %v6069
        %v6071 = vpop.f32.mrb[0].mxu0
        %6072 = vmatprep.mubr.bf16.mxu0 0
        %6073 = vmatmul.mubr.bf16.gmra.mrb[0].mxu0 %v5979
        %v6074 = vpop.f32.mrb[0].mxu0
        %v6075 = vadd.f32 0.0, %v6074
        %v6076 = vpop.f32.mrb[0].mxu0
        %v6077 = vpop.f32.mrb[0].mxu0
        %v6078 = vadd.f32 0.0, %v6077
        %v6079 = vpop.f32.mrb[0].mxu0
        %6080 = vmatprep.mubr.bf16.mxu0 0
        %6081 = vmatmul.mubr.bf16.gmra.mrb[0].mxu0 %v5980
        %v6082 = vpop.f32.mrb[0].mxu0
        %v6083 = vadd.f32 0.0, %v6082
        %v6084 = vpop.f32.mrb[0].mxu0
        %v6085 = vpop.f32.mrb[0].mxu0
        %v6086 = vadd.f32 0.0, %v6085
        %v6087 = vpop.f32.mrb[0].mxu0
        %6088 = vmatprep.mubr.bf16.mxu0 0
        %6089 = vmatmul.mubr.bf16.gmra.mrb[0].mxu0 %v5981
        %v6090 = vpop.f32.mrb[0].mxu0
        %v6091 = vadd.f32 0.0, %v6090
        %v6092 = vpop.f32.mrb[0].mxu0
        %v6093 = vpop.f32.mrb[0].mxu0
        %v6094 = vadd.f32 0.0, %v6093
        %v6095 = vpop.f32.mrb[0].mxu0
        %6096 = vmatprep.mubr.bf16.mxu0 0
        %6097 = vmatmul.mubr.bf16.gmra.mrb[0].mxu0 %v5982
        %v6098 = vpop.f32.mrb[0].mxu0
        %v6099 = vadd.f32 0.0, %v6098
        %v6100 = vpop.f32.mrb[0].mxu0
        %v6101 = vpop.f32.mrb[0].mxu0
        %v6102 = vadd.f32 0.0, %v6101
        %v6103 = vpop.f32.mrb[0].mxu0
        %6104 = vmatprep.mubr.bf16.mxu0 0
        %6105 = vmatmul.mubr.bf16.gmra.mrb[0].mxu0 %v5983
        %v6106 = vpop.f32.mrb[0].mxu0
        %v6107 = vadd.f32 0.0, %v6106
        %v6108 = vpop.f32.mrb[0].mxu0
        %v6109 = vpop.f32.mrb[0].mxu0
        %v6110 = vadd.f32 0.0, %v6109
        %v6111 = vpop.f32.mrb[0].mxu0
        %6112 = vdwg.mxu0
        %v6113 = vpack.c.bf16 %v6054, %v6051
        %v6114 = vpack.c.bf16 %v6062, %v6059
        %v6115 = vpack.c.bf16 %v6070, %v6067
        %v6116 = vpack.c.bf16 %v6078, %v6075
        %v6117 = vpack.c.bf16 %v6086, %v6083
        %v6118 = vpack.c.bf16 %v6094, %v6091
        %v6119 = vpack.c.bf16 %v6102, %v6099
        %v6120 = vpack.c.bf16 %v6110, %v6107
        %6129 = vrot.lane.b32.xlu0 %v6113, 64
        %v6130 = vpop.permute.xlu0 %6129
        %6131 = vrot.lane.b32.xlu0 %v6114, 64
        %v6132 = vpop.permute.xlu0 %6131
        %6133 = vrot.lane.b32.xlu0 %v6115, 64
        %v6134 = vpop.permute.xlu0 %6133
        %6135 = vrot.lane.b32.xlu0 %v6116, 64
        %v6136 = vpop.permute.xlu0 %6135
        %6137 = vrot.lane.b32.xlu0 %v6117, 64
        %v6138 = vpop.permute.xlu0 %6137
        %6139 = vrot.lane.b32.xlu0 %v6118, 64
        %v6140 = vpop.permute.xlu0 %6139
        %6141 = vrot.lane.b32.xlu0 %v6119, 64
        %v6142 = vpop.permute.xlu0 %6141
        %6143 = vrot.lane.b32.xlu0 %v6120, 64
        %v6144 = vpop.permute.xlu0 %6143
        %6153 = vst.msk [vmem:[#allocation3 + $0x10] sm:$0xff] %vm4064, %v6130
        %6154 = vst.msk [vmem:[#allocation3 + $0x28] sm:$0xff] %vm4064, %v6132
        %6155 = vst.msk [vmem:[#allocation3 + $0x40] sm:$0xff] %vm4064, %v6134
        %6156 = vst.msk [vmem:[#allocation3 + $0x58] sm:$0xff] %vm4064, %v6136
        %6157 = vst.msk [vmem:[#allocation3 + $0x70] sm:$0xff] %vm4064, %v6138
        %6158 = vst.msk [vmem:[#allocation3 + $0x88] sm:$0xff] %vm4064, %v6140
        %6159 = vst.msk [vmem:[#allocation3 + $0xa0] sm:$0xff] %vm4064, %v6142
        %6160 = vst.msk [vmem:[#allocation3 + $0xb8] sm:$0xff] %vm4064, %v6144
        %v6161 = vld [vmem:[#allocation3] sm:$0xff]
        %v6162 = vld [vmem:[#allocation3 + $0x8] sm:$0xff]
        %v6163 = vld [vmem:[#allocation3 + $0x10] sm:$0xff]
        %v6164 = vld [vmem:[#allocation3 + $0x18] sm:$0xff]
        %v6165 = vld [vmem:[#allocation3 + $0x20] sm:$0xff]
        %v6166 = vld [vmem:[#allocation3 + $0x28] sm:$0xff]
        %v6167 = vld [vmem:[#allocation3 + $0x30] sm:$0xff]
        %v6168 = vld [vmem:[#allocation3 + $0x38] sm:$0xff]
        %v6169 = vld [vmem:[#allocation3 + $0x40] sm:$0xff]
        %v6170 = vld [vmem:[#allocation3 + $0x48] sm:$0xff]
        %v6171 = vld [vmem:[#allocation3 + $0x50] sm:$0xff]
        %v6172 = vld [vmem:[#allocation3 + $0x58] sm:$0xff]
        %v6173 = vld [vmem:[#allocation3 + $0x60] sm:$0xff]
        %v6174 = vld [vmem:[#allocation3 + $0x68] sm:$0xff]
        %v6175 = vld [vmem:[#allocation3 + $0x70] sm:$0xff]
        %v6176 = vld [vmem:[#allocation3 + $0x78] sm:$0xff]
        %v6177 = vld [vmem:[#allocation3 + $0x80] sm:$0xff]
        %v6178 = vld [vmem:[#allocation3 + $0x88] sm:$0xff]
        %v6179 = vld [vmem:[#allocation3 + $0x90] sm:$0xff]
        %v6180 = vld [vmem:[#allocation3 + $0x98] sm:$0xff]
        %v6181 = vld [vmem:[#allocation3 + $0xa0] sm:$0xff]
        %v6182 = vld [vmem:[#allocation3 + $0xa8] sm:$0xff]
        %v6183 = vld [vmem:[#allocation3 + $0xb0] sm:$0xff]
        %v6184 = vld [vmem:[#allocation3 + $0xb8] sm:$0xff]
        %v6185 = vld [vmem:[#allocation9] sm:$0xff]
        %v6186 = vld [vmem:[#allocation9 + $0x8] sm:$0xf]
        %v6187 = vld [vmem:[#allocation9 + $0xc] sm:$0xff]
        %v6188 = vld [vmem:[#allocation9 + $0x14] sm:$0xf]
        %v6189 = vld [vmem:[#allocation9 + $0x18] sm:$0xff]
        %v6190 = vld [vmem:[#allocation9 + $0x20] sm:$0xf]
        %v6191 = vld [vmem:[#allocation9 + $0x24] sm:$0xff]
        %v6192 = vld [vmem:[#allocation9 + $0x2c] sm:$0xf]
        %v6193 = vld [vmem:[#allocation9 + $0x30] sm:$0xff]
        %v6194 = vld [vmem:[#allocation9 + $0x38] sm:$0xf]
        %v6195 = vld [vmem:[#allocation9 + $0x3c] sm:$0xff]
        %v6196 = vld [vmem:[#allocation9 + $0x44] sm:$0xf]
        %v6197 = vld [vmem:[#allocation9 + $0x48] sm:$0xff]
        %v6198 = vld [vmem:[#allocation9 + $0x50] sm:$0xf]
        %v6199 = vld [vmem:[#allocation9 + $0x54] sm:$0xff]
        %v6200 = vld [vmem:[#allocation9 + $0x5c] sm:$0xf]
        %v6201 = vld [vmem:[#allocation9 + $0x60] sm:$0xff]
        %v6202 = vld [vmem:[#allocation9 + $0x68] sm:$0xf]
        %v6203 = vld [vmem:[#allocation9 + $0x6c] sm:$0xff]
        %v6204 = vld [vmem:[#allocation9 + $0x74] sm:$0xf]
        %v6205 = vld [vmem:[#allocation9 + $0x78] sm:$0xff]
        %v6206 = vld [vmem:[#allocation9 + $0x80] sm:$0xf]
        %v6207 = vld [vmem:[#allocation9 + $0x84] sm:$0xff]
        %v6208 = vld [vmem:[#allocation9 + $0x8c] sm:$0xf]
        %v6209 = vld [vmem:[#allocation9 + $0x90] sm:$0xff]
        %v6210 = vld [vmem:[#allocation9 + $0x98] sm:$0xf]
        %v6211 = vld [vmem:[#allocation9 + $0x9c] sm:$0xff]
        %v6212 = vld [vmem:[#allocation9 + $0xa4] sm:$0xf]
        %v6213 = vld [vmem:[#allocation9 + $0xa8] sm:$0xff]
        %v6214 = vld [vmem:[#allocation9 + $0xb0] sm:$0xf]
        %v6215 = vld [vmem:[#allocation9 + $0xb4] sm:$0xff]
        %v6216 = vld [vmem:[#allocation9 + $0xbc] sm:$0xf]
        %v6217 = vld [vmem:[#allocation9 + $0xc0] sm:$0xff]
        %v6218 = vld [vmem:[#allocation9 + $0xc8] sm:$0xf]
        %v6219 = vld [vmem:[#allocation9 + $0xcc] sm:$0xff]
        %v6220 = vld [vmem:[#allocation9 + $0xd4] sm:$0xf]
        %v6221 = vld [vmem:[#allocation9 + $0xd8] sm:$0xff]
        %v6222 = vld [vmem:[#allocation9 + $0xe0] sm:$0xf]
        %v6223 = vld [vmem:[#allocation9 + $0xe4] sm:$0xff]
        %v6224 = vld [vmem:[#allocation9 + $0xec] sm:$0xf]
        %v6225 = vld [vmem:[#allocation9 + $0xf0] sm:$0xff]
        %v6226 = vld [vmem:[#allocation9 + $0xf8] sm:$0xf]
        %v6227 = vld [vmem:[#allocation9 + $0xfc] sm:$0xff]
        %v6228 = vld [vmem:[#allocation9 + $0x104] sm:$0xf]
        %v6229 = vld [vmem:[#allocation9 + $0x108] sm:$0xff]
        %v6230 = vld [vmem:[#allocation9 + $0x110] sm:$0xf]
        %v6231 = vld [vmem:[#allocation9 + $0x114] sm:$0xff]
        %v6232 = vld [vmem:[#allocation9 + $0x11c] sm:$0xf]
        %v6233 = vld [vmem:[#allocation9 + $0x120] sm:$0xff]
        %v6234 = vld [vmem:[#allocation9 + $0x128] sm:$0xf]
        %v6235 = vld [vmem:[#allocation9 + $0x12c] sm:$0xff]
        %v6236 = vld [vmem:[#allocation9 + $0x134] sm:$0xf]
        %v6237 = vld [vmem:[#allocation9 + $0x138] sm:$0xff]
        %v6238 = vld [vmem:[#allocation9 + $0x140] sm:$0xf]
        %v6239 = vld [vmem:[#allocation9 + $0x144] sm:$0xff]
        %v6240 = vld [vmem:[#allocation9 + $0x14c] sm:$0xf]
        %v6241 = vld [vmem:[#allocation9 + $0x150] sm:$0xff]
        %v6242 = vld [vmem:[#allocation9 + $0x158] sm:$0xf]
        %v6243 = vld [vmem:[#allocation9 + $0x15c] sm:$0xff]
        %v6244 = vld [vmem:[#allocation9 + $0x164] sm:$0xf]
        %v6245 = vld [vmem:[#allocation9 + $0x168] sm:$0xff]
        %v6246 = vld [vmem:[#allocation9 + $0x170] sm:$0xf]
        %v6247 = vld [vmem:[#allocation9 + $0x174] sm:$0xff]
        %v6248 = vld [vmem:[#allocation9 + $0x17c] sm:$0xf]
        %v6249 = vld [vmem:[#allocation9 + $0x180] sm:$0xff]
        %v6250 = vld [vmem:[#allocation9 + $0x188] sm:$0xf]
        %v6251 = vld [vmem:[#allocation9 + $0x18c] sm:$0xff]
        %v6252 = vld [vmem:[#allocation9 + $0x194] sm:$0xf]
        %v6253 = vld [vmem:[#allocation9 + $0x198] sm:$0xff]
        %v6254 = vld [vmem:[#allocation9 + $0x1a0] sm:$0xf]
        %v6255 = vld [vmem:[#allocation9 + $0x1a4] sm:$0xff]
        %v6256 = vld [vmem:[#allocation9 + $0x1ac] sm:$0xf]
        %v6257 = vld [vmem:[#allocation9 + $0x1b0] sm:$0xff]
        %v6258 = vld [vmem:[#allocation9 + $0x1b8] sm:$0xf]
        %v6259 = vld [vmem:[#allocation9 + $0x1bc] sm:$0xff]
        %v6260 = vld [vmem:[#allocation9 + $0x1c4] sm:$0xf]
        %v6261 = vld [vmem:[#allocation9 + $0x1c8] sm:$0xff]
        %v6262 = vld [vmem:[#allocation9 + $0x1d0] sm:$0xf]
        %v6263 = vld [vmem:[#allocation9 + $0x1d4] sm:$0xff]
        %v6264 = vld [vmem:[#allocation9 + $0x1dc] sm:$0xf]
        %v6265 = vld [vmem:[#allocation9 + $0x1e0] sm:$0xff]
        %v6266 = vld [vmem:[#allocation9 + $0x1e8] sm:$0xf]
        %v6267 = vld [vmem:[#allocation9 + $0x1ec] sm:$0xff]
        %v6268 = vld [vmem:[#allocation9 + $0x1f4] sm:$0xf]
        %v6269 = vld [vmem:[#allocation9 + $0x1f8] sm:$0xff]
        %v6270 = vld [vmem:[#allocation9 + $0x200] sm:$0xf]
        %v6271 = vld [vmem:[#allocation9 + $0x204] sm:$0xff]
        %v6272 = vld [vmem:[#allocation9 + $0x20c] sm:$0xf]
        %v6273 = vld [vmem:[#allocation9 + $0x210] sm:$0xff]
        %v6274 = vld [vmem:[#allocation9 + $0x218] sm:$0xf]
        %v6275 = vld [vmem:[#allocation9 + $0x21c] sm:$0xff]
        %v6276 = vld [vmem:[#allocation9 + $0x224] sm:$0xf]
        %v6277 = vld [vmem:[#allocation9 + $0x228] sm:$0xff]
        %v6278 = vld [vmem:[#allocation9 + $0x230] sm:$0xf]
        %v6279 = vld [vmem:[#allocation9 + $0x234] sm:$0xff]
        %v6280 = vld [vmem:[#allocation9 + $0x23c] sm:$0xf]
        %v6281 = vld [vmem:[%s3] sm:$0x7]
        %v6283 = vlaneseq
        %v6284 = vshrl.u32 %v6283, 7
        %v6285 = vsub.s32 0, %v6284
        %v6286 = vrot.slane %v6281, %v6285
        %v6287 = vlaneseq
        %v6288 = vshrl.u32 %v6287, 7
        %v6289 = vsub.s32 1, %v6288
        %v6290 = vrot.slane %v6281, %v6289
        %v6291 = vlaneseq
        %v6292 = vshrl.u32 %v6291, 7
        %v6293 = vsub.s32 2, %v6292
        %v6294 = vrot.slane %v6281, %v6293
        %v6394 = vunpack.c.l.b16 %v6185
        %v6395 = vunpack.c.h.b16 %v6185
        %v6396 = vunpack.c.l.b16 %v6186
        %v6397 = vunpack.c.l.b16 %v6187
        %v6398 = vunpack.c.h.b16 %v6187
        %v6399 = vunpack.c.l.b16 %v6188
        %v6400 = vunpack.c.l.b16 %v6189
        %v6401 = vunpack.c.h.b16 %v6189
        %v6402 = vunpack.c.l.b16 %v6190
        %v6403 = vunpack.c.l.b16 %v6191
        %v6404 = vunpack.c.h.b16 %v6191
        %v6405 = vunpack.c.l.b16 %v6192
        %v6406 = vunpack.c.l.b16 %v6193
        %v6407 = vunpack.c.h.b16 %v6193
        %v6408 = vunpack.c.l.b16 %v6194
        %v6409 = vunpack.c.l.b16 %v6195
        %v6410 = vunpack.c.h.b16 %v6195
        %v6411 = vunpack.c.l.b16 %v6196
        %v6412 = vunpack.c.l.b16 %v6197
        %v6413 = vunpack.c.h.b16 %v6197
        %v6414 = vunpack.c.l.b16 %v6198
        %v6415 = vunpack.c.l.b16 %v6199
        %v6416 = vunpack.c.h.b16 %v6199
        %v6417 = vunpack.c.l.b16 %v6200
        %v6418 = vunpack.c.l.b16 %v6201
        %v6419 = vunpack.c.h.b16 %v6201
        %v6420 = vunpack.c.l.b16 %v6202
        %v6421 = vunpack.c.l.b16 %v6203
        %v6422 = vunpack.c.h.b16 %v6203
        %v6423 = vunpack.c.l.b16 %v6204
        %v6424 = vunpack.c.l.b16 %v6205
        %v6425 = vunpack.c.h.b16 %v6205
        %v6426 = vunpack.c.l.b16 %v6206
        %v6427 = vunpack.c.l.b16 %v6207
        %v6428 = vunpack.c.h.b16 %v6207
        %v6429 = vunpack.c.l.b16 %v6208
        %v6430 = vunpack.c.l.b16 %v6209
        %v6431 = vunpack.c.h.b16 %v6209
        %v6432 = vunpack.c.l.b16 %v6210
        %v6433 = vunpack.c.l.b16 %v6211
        %v6434 = vunpack.c.h.b16 %v6211
        %v6435 = vunpack.c.l.b16 %v6212
        %v6436 = vunpack.c.l.b16 %v6213
        %v6437 = vunpack.c.h.b16 %v6213
        %v6438 = vunpack.c.l.b16 %v6214
        %v6439 = vunpack.c.l.b16 %v6215
        %v6440 = vunpack.c.h.b16 %v6215
        %v6441 = vunpack.c.l.b16 %v6216
        %v6442 = vunpack.c.l.b16 %v6217
        %v6443 = vunpack.c.h.b16 %v6217
        %v6444 = vunpack.c.l.b16 %v6218
        %v6445 = vunpack.c.l.b16 %v6219
        %v6446 = vunpack.c.h.b16 %v6219
        %v6447 = vunpack.c.l.b16 %v6220
        %v6448 = vunpack.c.l.b16 %v6221
        %v6449 = vunpack.c.h.b16 %v6221
        %v6450 = vunpack.c.l.b16 %v6222
        %v6451 = vunpack.c.l.b16 %v6223
        %v6452 = vunpack.c.h.b16 %v6223
        %v6453 = vunpack.c.l.b16 %v6224
        %v6454 = vunpack.c.l.b16 %v6225
        %v6455 = vunpack.c.h.b16 %v6225
        %v6456 = vunpack.c.l.b16 %v6226
        %v6457 = vunpack.c.l.b16 %v6227
        %v6458 = vunpack.c.h.b16 %v6227
        %v6459 = vunpack.c.l.b16 %v6228
        %v6460 = vunpack.c.l.b16 %v6229
        %v6461 = vunpack.c.h.b16 %v6229
        %v6462 = vunpack.c.l.b16 %v6230
        %v6463 = vunpack.c.l.b16 %v6231
        %v6464 = vunpack.c.h.b16 %v6231
        %v6465 = vunpack.c.l.b16 %v6232
        %v6466 = vunpack.c.l.b16 %v6233
        %v6467 = vunpack.c.h.b16 %v6233
        %v6468 = vunpack.c.l.b16 %v6234
        %v6469 = vunpack.c.l.b16 %v6235
        %v6470 = vunpack.c.h.b16 %v6235
        %v6471 = vunpack.c.l.b16 %v6236
        %v6472 = vunpack.c.l.b16 %v6237
        %v6473 = vunpack.c.h.b16 %v6237
        %v6474 = vunpack.c.l.b16 %v6238
        %v6475 = vunpack.c.l.b16 %v6239
        %v6476 = vunpack.c.h.b16 %v6239
        %v6477 = vunpack.c.l.b16 %v6240
        %v6478 = vunpack.c.l.b16 %v6241
        %v6479 = vunpack.c.h.b16 %v6241
        %v6480 = vunpack.c.l.b16 %v6242
        %v6481 = vunpack.c.l.b16 %v6243
        %v6482 = vunpack.c.h.b16 %v6243
        %v6483 = vunpack.c.l.b16 %v6244
        %v6484 = vunpack.c.l.b16 %v6245
        %v6485 = vunpack.c.h.b16 %v6245
        %v6486 = vunpack.c.l.b16 %v6246
        %v6487 = vunpack.c.l.b16 %v6247
        %v6488 = vunpack.c.h.b16 %v6247
        %v6489 = vunpack.c.l.b16 %v6248
        %v6490 = vunpack.c.l.b16 %v6249
        %v6491 = vunpack.c.h.b16 %v6249
        %v6492 = vunpack.c.l.b16 %v6250
        %v6493 = vunpack.c.l.b16 %v6251
        %v6494 = vunpack.c.h.b16 %v6251
        %v6495 = vunpack.c.l.b16 %v6252
        %v6496 = vunpack.c.l.b16 %v6253
        %v6497 = vunpack.c.h.b16 %v6253
        %v6498 = vunpack.c.l.b16 %v6254
        %v6499 = vunpack.c.l.b16 %v6255
        %v6500 = vunpack.c.h.b16 %v6255
        %v6501 = vunpack.c.l.b16 %v6256
        %v6502 = vunpack.c.l.b16 %v6257
        %v6503 = vunpack.c.h.b16 %v6257
        %v6504 = vunpack.c.l.b16 %v6258
        %v6505 = vunpack.c.l.b16 %v6259
        %v6506 = vunpack.c.h.b16 %v6259
        %v6507 = vunpack.c.l.b16 %v6260
        %v6508 = vunpack.c.l.b16 %v6261
        %v6509 = vunpack.c.h.b16 %v6261
        %v6510 = vunpack.c.l.b16 %v6262
        %v6511 = vunpack.c.l.b16 %v6263
        %v6512 = vunpack.c.h.b16 %v6263
        %v6513 = vunpack.c.l.b16 %v6264
        %v6514 = vunpack.c.l.b16 %v6265
        %v6515 = vunpack.c.h.b16 %v6265
        %v6516 = vunpack.c.l.b16 %v6266
        %v6517 = vunpack.c.l.b16 %v6267
        %v6518 = vunpack.c.h.b16 %v6267
        %v6519 = vunpack.c.l.b16 %v6268
        %v6520 = vunpack.c.l.b16 %v6269
        %v6521 = vunpack.c.h.b16 %v6269
        %v6522 = vunpack.c.l.b16 %v6270
        %v6523 = vunpack.c.l.b16 %v6271
        %v6524 = vunpack.c.h.b16 %v6271
        %v6525 = vunpack.c.l.b16 %v6272
        %v6526 = vunpack.c.l.b16 %v6273
        %v6527 = vunpack.c.h.b16 %v6273
        %v6528 = vunpack.c.l.b16 %v6274
        %v6529 = vunpack.c.l.b16 %v6275
        %v6530 = vunpack.c.h.b16 %v6275
        %v6531 = vunpack.c.l.b16 %v6276
        %v6532 = vunpack.c.l.b16 %v6277
        %v6533 = vunpack.c.h.b16 %v6277
        %v6534 = vunpack.c.l.b16 %v6278
        %v6535 = vunpack.c.l.b16 %v6279
        %v6536 = vunpack.c.h.b16 %v6279
        %v6537 = vunpack.c.l.b16 %v6280
        %v6538 = vpack.c.b16 %v6397, %v6394
        %v6539 = vpack.c.b16 %v6398, %v6395
        %v6540 = vpack.c.b16 %v6399, %v6396
        %v6541 = vpack.c.b16 %v6403, %v6400
        %v6542 = vpack.c.b16 %v6404, %v6401
        %v6543 = vpack.c.b16 %v6405, %v6402
        %v6544 = vpack.c.b16 %v6409, %v6406
        %v6545 = vpack.c.b16 %v6410, %v6407
        %v6546 = vpack.c.b16 %v6411, %v6408
        %v6547 = vpack.c.b16 %v6415, %v6412
        %v6548 = vpack.c.b16 %v6416, %v6413
        %v6549 = vpack.c.b16 %v6417, %v6414
        %v6550 = vpack.c.b16 %v6421, %v6418
        %v6551 = vpack.c.b16 %v6422, %v6419
        %v6552 = vpack.c.b16 %v6423, %v6420
        %v6553 = vpack.c.b16 %v6427, %v6424
        %v6554 = vpack.c.b16 %v6428, %v6425
        %v6555 = vpack.c.b16 %v6429, %v6426
        %v6556 = vpack.c.b16 %v6433, %v6430
        %v6557 = vpack.c.b16 %v6434, %v6431
        %v6558 = vpack.c.b16 %v6435, %v6432
        %v6559 = vpack.c.b16 %v6439, %v6436
        %v6560 = vpack.c.b16 %v6440, %v6437
        %v6561 = vpack.c.b16 %v6441, %v6438
        %v6562 = vpack.c.b16 %v6445, %v6442
        %v6563 = vpack.c.b16 %v6446, %v6443
        %v6564 = vpack.c.b16 %v6447, %v6444
        %v6565 = vpack.c.b16 %v6451, %v6448
        %v6566 = vpack.c.b16 %v6452, %v6449
        %v6567 = vpack.c.b16 %v6453, %v6450
        %v6568 = vpack.c.b16 %v6457, %v6454
        %v6569 = vpack.c.b16 %v6458, %v6455
        %v6570 = vpack.c.b16 %v6459, %v6456
        %v6571 = vpack.c.b16 %v6463, %v6460
        %v6572 = vpack.c.b16 %v6464, %v6461
        %v6573 = vpack.c.b16 %v6465, %v6462
        %v6574 = vpack.c.b16 %v6469, %v6466
        %v6575 = vpack.c.b16 %v6470, %v6467
        %v6576 = vpack.c.b16 %v6471, %v6468
        %v6577 = vpack.c.b16 %v6475, %v6472
        %v6578 = vpack.c.b16 %v6476, %v6473
        %v6579 = vpack.c.b16 %v6477, %v6474
        %v6580 = vpack.c.b16 %v6481, %v6478
        %v6581 = vpack.c.b16 %v6482, %v6479
        %v6582 = vpack.c.b16 %v6483, %v6480
        %v6583 = vpack.c.b16 %v6487, %v6484
        %v6584 = vpack.c.b16 %v6488, %v6485
        %v6585 = vpack.c.b16 %v6489, %v6486
        %v6586 = vpack.c.b16 %v6493, %v6490
        %v6587 = vpack.c.b16 %v6494, %v6491
        %v6588 = vpack.c.b16 %v6495, %v6492
        %v6589 = vpack.c.b16 %v6499, %v6496
        %v6590 = vpack.c.b16 %v6500, %v6497
        %v6591 = vpack.c.b16 %v6501, %v6498
        %v6592 = vpack.c.b16 %v6505, %v6502
        %v6593 = vpack.c.b16 %v6506, %v6503
        %v6594 = vpack.c.b16 %v6507, %v6504
        %v6595 = vpack.c.b16 %v6511, %v6508
        %v6596 = vpack.c.b16 %v6512, %v6509
        %v6597 = vpack.c.b16 %v6513, %v6510
        %v6598 = vpack.c.b16 %v6517, %v6514
        %v6599 = vpack.c.b16 %v6518, %v6515
        %v6600 = vpack.c.b16 %v6519, %v6516
        %v6601 = vpack.c.b16 %v6523, %v6520
        %v6602 = vpack.c.b16 %v6524, %v6521
        %v6603 = vpack.c.b16 %v6525, %v6522
        %v6604 = vpack.c.b16 %v6529, %v6526
        %v6605 = vpack.c.b16 %v6530, %v6527
        %v6606 = vpack.c.b16 %v6531, %v6528
        %v6607 = vpack.c.b16 %v6535, %v6532
        %v6608 = vpack.c.b16 %v6536, %v6533
        %v6609 = vpack.c.b16 %v6537, %v6534
        %6682 = vmatprep.subr.bf16.mxu0 %v6539
        %6683 = vmatpush1.bf16.msra.mxu0 %v6538
        %6684 = vmatprep.subr.bf16.mxu0 %v6542
        %6685 = vmatpush1.bf16.msra.mxu0 %v6541
        %6686 = vmatprep.subr.bf16.mxu0 %v6545
        %6687 = vmatpush1.bf16.msra.mxu0 %v6544
        %6688 = vmatprep.subr.bf16.mxu0 %v6548
        %6689 = vmatpush1.bf16.msra.mxu0 %v6547
        %6690 = vmatprep.subr.bf16.mxu0 %v6551
        %6691 = vmatpush1.bf16.msra.mxu0 %v6550
        %6692 = vmatprep.subr.bf16.mxu0 %v6554
        %6693 = vmatpush1.bf16.msra.mxu0 %v6553
        %6694 = vmatprep.subr.bf16.mxu0 %v6557
        %6695 = vmatpush1.bf16.msra.mxu0 %v6556
        %6696 = vmatprep.subr.bf16.mxu0 %v6560
        %6697 = vmatpush1.bf16.msra.mxu0 %v6559
        %6698 = vmatprep.subr.bf16.mxu0 %v6563
        %6699 = vmatpush1.bf16.msra.mxu0 %v6562
        %6700 = vmatprep.subr.bf16.mxu0 %v6566
        %6701 = vmatpush1.bf16.msra.mxu0 %v6565
        %6702 = vmatprep.subr.bf16.mxu0 %v6569
        %6703 = vmatpush1.bf16.msra.mxu0 %v6568
        %6704 = vmatprep.subr.bf16.mxu0 %v6572
        %6705 = vmatpush1.bf16.msra.mxu0 %v6571
        %6706 = vmatprep.subr.bf16.mxu0 %v6575
        %6707 = vmatpush1.bf16.msra.mxu0 %v6574
        %6708 = vmatprep.subr.bf16.mxu0 %v6578
        %6709 = vmatpush1.bf16.msra.mxu0 %v6577
        %6710 = vmatprep.subr.bf16.mxu0 %v6581
        %6711 = vmatpush1.bf16.msra.mxu0 %v6580
        %6712 = vmatprep.subr.bf16.mxu0 %v6584
        %6713 = vmatpush1.bf16.msra.mxu0 %v6583
        %6714 = vmatprep.mubr.bf16.mxu0 %v6162
        %6715 = vmatmul.mubr.bf16.gmra.mrb[0].mxu0 %v6161
        %v6716 = vpop.f32.mrb[0].mxu0
        %v6717 = vadd.f32 %v6286, %v6716
        %v6718 = vpop.f32.mrb[0].mxu0
        %v6719 = vadd.f32 %v6290, %v6718
        %v6720 = vpop.f32.mrb[0].mxu0
        %v6721 = vadd.f32 %v6286, %v6720
        %v6722 = vpop.f32.mrb[0].mxu0
        %v6723 = vadd.f32 %v6290, %v6722
        %6724 = vmatprep.mubr.bf16.mxu0 %v6165
        %6725 = vmatmul.mubr.bf16.gmra.mrb[0].mxu0 %v6164
        %v6726 = vpop.f32.mrb[0].mxu0
        %v6727 = vadd.f32 %v6286, %v6726
        %v6728 = vpop.f32.mrb[0].mxu0
        %v6729 = vadd.f32 %v6290, %v6728
        %v6730 = vpop.f32.mrb[0].mxu0
        %v6731 = vadd.f32 %v6286, %v6730
        %v6732 = vpop.f32.mrb[0].mxu0
        %v6733 = vadd.f32 %v6290, %v6732
        %6734 = vmatprep.mubr.bf16.mxu0 %v6168
        %6735 = vmatmul.mubr.bf16.gmra.mrb[0].mxu0 %v6167
        %v6736 = vpop.f32.mrb[0].mxu0
        %v6737 = vadd.f32 %v6286, %v6736
        %v6738 = vpop.f32.mrb[0].mxu0
        %v6739 = vadd.f32 %v6290, %v6738
        %v6740 = vpop.f32.mrb[0].mxu0
        %v6741 = vadd.f32 %v6286, %v6740
        %v6742 = vpop.f32.mrb[0].mxu0
        %v6743 = vadd.f32 %v6290, %v6742
        %6744 = vmatprep.mubr.bf16.mxu0 %v6171
        %6745 = vmatmul.mubr.bf16.gmra.mrb[0].mxu0 %v6170
        %v6746 = vpop.f32.mrb[0].mxu0
        %v6747 = vadd.f32 %v6286, %v6746
        %v6748 = vpop.f32.mrb[0].mxu0
        %v6749 = vadd.f32 %v6290, %v6748
        %v6750 = vpop.f32.mrb[0].mxu0
        %v6751 = vadd.f32 %v6286, %v6750
        %v6752 = vpop.f32.mrb[0].mxu0
        %v6753 = vadd.f32 %v6290, %v6752
        %6754 = vmatprep.mubr.bf16.mxu0 %v6174
        %6755 = vmatmul.mubr.bf16.gmra.mrb[0].mxu0 %v6173
        %v6756 = vpop.f32.mrb[0].mxu0
        %v6757 = vadd.f32 %v6286, %v6756
        %v6758 = vpop.f32.mrb[0].mxu0
        %v6759 = vadd.f32 %v6290, %v6758
        %v6760 = vpop.f32.mrb[0].mxu0
        %v6761 = vadd.f32 %v6286, %v6760
        %v6762 = vpop.f32.mrb[0].mxu0
        %v6763 = vadd.f32 %v6290, %v6762
        %6764 = vmatprep.mubr.bf16.mxu0 %v6177
        %6765 = vmatmul.mubr.bf16.gmra.mrb[0].mxu0 %v6176
        %v6766 = vpop.f32.mrb[0].mxu0
        %v6767 = vadd.f32 %v6286, %v6766
        %v6768 = vpop.f32.mrb[0].mxu0
        %v6769 = vadd.f32 %v6290, %v6768
        %v6770 = vpop.f32.mrb[0].mxu0
        %v6771 = vadd.f32 %v6286, %v6770
        %v6772 = vpop.f32.mrb[0].mxu0
        %v6773 = vadd.f32 %v6290, %v6772
        %6774 = vmatprep.mubr.bf16.mxu0 %v6180
        %6775 = vmatmul.mubr.bf16.gmra.mrb[0].mxu0 %v6179
        %v6776 = vpop.f32.mrb[0].mxu0
        %v6777 = vadd.f32 %v6286, %v6776
        %v6778 = vpop.f32.mrb[0].mxu0
        %v6779 = vadd.f32 %v6290, %v6778
        %v6780 = vpop.f32.mrb[0].mxu0
        %v6781 = vadd.f32 %v6286, %v6780
        %v6782 = vpop.f32.mrb[0].mxu0
        %v6783 = vadd.f32 %v6290, %v6782
        %6784 = vmatprep.mubr.bf16.mxu0 %v6183
        %6785 = vmatmul.mubr.bf16.gmra.mrb[0].mxu0 %v6182
        %v6786 = vpop.f32.mrb[0].mxu0
        %v6787 = vadd.f32 %v6286, %v6786
        %v6788 = vpop.f32.mrb[0].mxu0
        %v6789 = vadd.f32 %v6290, %v6788
        %v6790 = vpop.f32.mrb[0].mxu0
        %v6791 = vadd.f32 %v6286, %v6790
        %v6792 = vpop.f32.mrb[0].mxu0
        %v6793 = vadd.f32 %v6290, %v6792
        %6794 = vdwg.mxu0
        %6795 = vmatprep.subr.bf16.mxu0 %v6587
        %6796 = vmatpush1.bf16.msra.mxu0 %v6586
        %6797 = vmatprep.subr.bf16.mxu0 %v6590
        %6798 = vmatpush1.bf16.msra.mxu0 %v6589
        %6799 = vmatprep.subr.bf16.mxu0 %v6593
        %6800 = vmatpush1.bf16.msra.mxu0 %v6592
        %6801 = vmatprep.subr.bf16.mxu0 %v6596
        %6802 = vmatpush1.bf16.msra.mxu0 %v6595
        %6803 = vmatprep.subr.bf16.mxu0 %v6599
        %6804 = vmatpush1.bf16.msra.mxu0 %v6598
        %6805 = vmatprep.subr.bf16.mxu0 %v6602
        %6806 = vmatpush1.bf16.msra.mxu0 %v6601
        %6807 = vmatprep.subr.bf16.mxu0 %v6605
        %6808 = vmatpush1.bf16.msra.mxu0 %v6604
        %6809 = vmatprep.subr.bf16.mxu0 %v6608
        %6810 = vmatpush1.bf16.msra.mxu0 %v6607
        %6811 = vmatprep.subr.bf16.mxu0 0
        %6812 = vmatpush1.bf16.msra.mxu0 0
        %6813 = vmatprep.subr.bf16.mxu0 0
        %6814 = vmatpush1.bf16.msra.mxu0 0
        %6815 = vmatprep.subr.bf16.mxu0 0
        %6816 = vmatpush1.bf16.msra.mxu0 0
        %6817 = vmatprep.subr.bf16.mxu0 0
        %6818 = vmatpush1.bf16.msra.mxu0 0
        %6819 = vmatprep.subr.bf16.mxu0 0
        %6820 = vmatpush1.bf16.msra.mxu0 0
        %6821 = vmatprep.subr.bf16.mxu0 0
        %6822 = vmatpush1.bf16.msra.mxu0 0
        %6823 = vmatprep.subr.bf16.mxu0 0
        %6824 = vmatpush1.bf16.msra.mxu0 0
        %6825 = vmatprep.subr.bf16.mxu0 0
        %6826 = vmatpush1.bf16.msra.mxu0 0
        %6827 = vmatprep.mubr.bf16.mxu0 0
        %6828 = vmatmul.mubr.bf16.gmra.mrb[0].mxu0 %v6163
        %v6829 = vpop.f32.mrb[0].mxu0
        %v6830 = vadd.f32 %v6717, %v6829
        %v6831 = vpop.f32.mrb[0].mxu0
        %v6832 = vadd.f32 %v6719, %v6831
        %v6833 = vpop.f32.mrb[0].mxu0
        %v6834 = vadd.f32 %v6721, %v6833
        %v6835 = vpop.f32.mrb[0].mxu0
        %v6836 = vadd.f32 %v6723, %v6835
        %6837 = vmatprep.mubr.bf16.mxu0 0
        %6838 = vmatmul.mubr.bf16.gmra.mrb[0].mxu0 %v6166
        %v6839 = vpop.f32.mrb[0].mxu0
        %v6840 = vadd.f32 %v6727, %v6839
        %v6841 = vpop.f32.mrb[0].mxu0
        %v6842 = vadd.f32 %v6729, %v6841
        %v6843 = vpop.f32.mrb[0].mxu0
        %v6844 = vadd.f32 %v6731, %v6843
        %v6845 = vpop.f32.mrb[0].mxu0
        %v6846 = vadd.f32 %v6733, %v6845
        %6847 = vmatprep.mubr.bf16.mxu0 0
        %6848 = vmatmul.mubr.bf16.gmra.mrb[0].mxu0 %v6169
        %v6849 = vpop.f32.mrb[0].mxu0
        %v6850 = vadd.f32 %v6737, %v6849
        %v6851 = vpop.f32.mrb[0].mxu0
        %v6852 = vadd.f32 %v6739, %v6851
        %v6853 = vpop.f32.mrb[0].mxu0
        %v6854 = vadd.f32 %v6741, %v6853
        %v6855 = vpop.f32.mrb[0].mxu0
        %v6856 = vadd.f32 %v6743, %v6855
        %6857 = vmatprep.mubr.bf16.mxu0 0
        %6858 = vmatmul.mubr.bf16.gmra.mrb[0].mxu0 %v6172
        %v6859 = vpop.f32.mrb[0].mxu0
        %v6860 = vadd.f32 %v6747, %v6859
        %v6861 = vpop.f32.mrb[0].mxu0
        %v6862 = vadd.f32 %v6749, %v6861
        %v6863 = vpop.f32.mrb[0].mxu0
        %v6864 = vadd.f32 %v6751, %v6863
        %v6865 = vpop.f32.mrb[0].mxu0
        %v6866 = vadd.f32 %v6753, %v6865
        %6867 = vmatprep.mubr.bf16.mxu0 0
        %6868 = vmatmul.mubr.bf16.gmra.mrb[0].mxu0 %v6175
        %v6869 = vpop.f32.mrb[0].mxu0
        %v6870 = vadd.f32 %v6757, %v6869
        %v6871 = vpop.f32.mrb[0].mxu0
        %v6872 = vadd.f32 %v6759, %v6871
        %v6873 = vpop.f32.mrb[0].mxu0
        %v6874 = vadd.f32 %v6761, %v6873
        %v6875 = vpop.f32.mrb[0].mxu0
        %v6876 = vadd.f32 %v6763, %v6875
        %6877 = vmatprep.mubr.bf16.mxu0 0
        %6878 = vmatmul.mubr.bf16.gmra.mrb[0].mxu0 %v6178
        %v6879 = vpop.f32.mrb[0].mxu0
        %v6880 = vadd.f32 %v6767, %v6879
        %v6881 = vpop.f32.mrb[0].mxu0
        %v6882 = vadd.f32 %v6769, %v6881
        %v6883 = vpop.f32.mrb[0].mxu0
        %v6884 = vadd.f32 %v6771, %v6883
        %v6885 = vpop.f32.mrb[0].mxu0
        %v6886 = vadd.f32 %v6773, %v6885
        %6887 = vmatprep.mubr.bf16.mxu0 0
        %6888 = vmatmul.mubr.bf16.gmra.mrb[0].mxu0 %v6181
        %v6889 = vpop.f32.mrb[0].mxu0
        %v6890 = vadd.f32 %v6777, %v6889
        %v6891 = vpop.f32.mrb[0].mxu0
        %v6892 = vadd.f32 %v6779, %v6891
        %v6893 = vpop.f32.mrb[0].mxu0
        %v6894 = vadd.f32 %v6781, %v6893
        %v6895 = vpop.f32.mrb[0].mxu0
        %v6896 = vadd.f32 %v6783, %v6895
        %6897 = vmatprep.mubr.bf16.mxu0 0
        %6898 = vmatmul.mubr.bf16.gmra.mrb[0].mxu0 %v6184
        %v6899 = vpop.f32.mrb[0].mxu0
        %v6900 = vadd.f32 %v6787, %v6899
        %v6901 = vpop.f32.mrb[0].mxu0
        %v6902 = vadd.f32 %v6789, %v6901
        %v6903 = vpop.f32.mrb[0].mxu0
        %v6904 = vadd.f32 %v6791, %v6903
        %v6905 = vpop.f32.mrb[0].mxu0
        %v6906 = vadd.f32 %v6793, %v6905
        %6907 = vdwg.mxu0
        %6908 = vmatprep.subr.bf16.mxu0 0
        %6909 = vmatpush1.bf16.msra.mxu0 %v6540
        %6910 = vmatprep.subr.bf16.mxu0 0
        %6911 = vmatpush1.bf16.msra.mxu0 %v6543
        %6912 = vmatprep.subr.bf16.mxu0 0
        %6913 = vmatpush1.bf16.msra.mxu0 %v6546
        %6914 = vmatprep.subr.bf16.mxu0 0
        %6915 = vmatpush1.bf16.msra.mxu0 %v6549
        %6916 = vmatprep.subr.bf16.mxu0 0
        %6917 = vmatpush1.bf16.msra.mxu0 %v6552
        %6918 = vmatprep.subr.bf16.mxu0 0
        %6919 = vmatpush1.bf16.msra.mxu0 %v6555
        %6920 = vmatprep.subr.bf16.mxu0 0
        %6921 = vmatpush1.bf16.msra.mxu0 %v6558
        %6922 = vmatprep.subr.bf16.mxu0 0
        %6923 = vmatpush1.bf16.msra.mxu0 %v6561
        %6924 = vmatprep.subr.bf16.mxu0 0
        %6925 = vmatpush1.bf16.msra.mxu0 %v6564
        %6926 = vmatprep.subr.bf16.mxu0 0
        %6927 = vmatpush1.bf16.msra.mxu0 %v6567
        %6928 = vmatprep.subr.bf16.mxu0 0
        %6929 = vmatpush1.bf16.msra.mxu0 %v6570
        %6930 = vmatprep.subr.bf16.mxu0 0
        %6931 = vmatpush1.bf16.msra.mxu0 %v6573
        %6932 = vmatprep.subr.bf16.mxu0 0
        %6933 = vmatpush1.bf16.msra.mxu0 %v6576
        %6934 = vmatprep.subr.bf16.mxu0 0
        %6935 = vmatpush1.bf16.msra.mxu0 %v6579
        %6936 = vmatprep.subr.bf16.mxu0 0
        %6937 = vmatpush1.bf16.msra.mxu0 %v6582
        %6938 = vmatprep.subr.bf16.mxu0 0
        %6939 = vmatpush1.bf16.msra.mxu0 %v6585
        %6940 = vmatprep.mubr.bf16.mxu0 %v6162
        %6941 = vmatmul.mubr.bf16.gmra.mrb[0].mxu0 %v6161
        %v6942 = vpop.f32.mrb[0].mxu0
        %v6943 = vadd.f32 %v6294, %v6942
        %v6944 = vpop.f32.mrb[0].mxu0
        %v6945 = vpop.f32.mrb[0].mxu0
        %v6946 = vadd.f32 %v6294, %v6945
        %v6947 = vpop.f32.mrb[0].mxu0
        %6948 = vmatprep.mubr.bf16.mxu0 %v6165
        %6949 = vmatmul.mubr.bf16.gmra.mrb[0].mxu0 %v6164
        %v6950 = vpop.f32.mrb[0].mxu0
        %v6951 = vadd.f32 %v6294, %v6950
        %v6952 = vpop.f32.mrb[0].mxu0
        %v6953 = vpop.f32.mrb[0].mxu0
        %v6954 = vadd.f32 %v6294, %v6953
        %v6955 = vpop.f32.mrb[0].mxu0
        %6956 = vmatprep.mubr.bf16.mxu0 %v6168
        %6957 = vmatmul.mubr.bf16.gmra.mrb[0].mxu0 %v6167
        %v6958 = vpop.f32.mrb[0].mxu0
        %v6959 = vadd.f32 %v6294, %v6958
        %v6960 = vpop.f32.mrb[0].mxu0
        %v6961 = vpop.f32.mrb[0].mxu0
        %v6962 = vadd.f32 %v6294, %v6961
        %v6963 = vpop.f32.mrb[0].mxu0
        %6964 = vmatprep.mubr.bf16.mxu0 %v6171
        %6965 = vmatmul.mubr.bf16.gmra.mrb[0].mxu0 %v6170
        %v6966 = vpop.f32.mrb[0].mxu0
        %v6967 = vadd.f32 %v6294, %v6966
        %v6968 = vpop.f32.mrb[0].mxu0
        %v6969 = vpop.f32.mrb[0].mxu0
        %v6970 = vadd.f32 %v6294, %v6969
        %v6971 = vpop.f32.mrb[0].mxu0
        %6972 = vmatprep.mubr.bf16.mxu0 %v6174
        %6973 = vmatmul.mubr.bf16.gmra.mrb[0].mxu0 %v6173
        %v6974 = vpop.f32.mrb[0].mxu0
        %v6975 = vadd.f32 %v6294, %v6974
        %v6976 = vpop.f32.mrb[0].mxu0
        %v6977 = vpop.f32.mrb[0].mxu0
        %v6978 = vadd.f32 %v6294, %v6977
        %v6979 = vpop.f32.mrb[0].mxu0
        %6980 = vmatprep.mubr.bf16.mxu0 %v6177
        %6981 = vmatmul.mubr.bf16.gmra.mrb[0].mxu0 %v6176
        %v6982 = vpop.f32.mrb[0].mxu0
        %v6983 = vadd.f32 %v6294, %v6982
        %v6984 = vpop.f32.mrb[0].mxu0
        %v6985 = vpop.f32.mrb[0].mxu0
        %v6986 = vadd.f32 %v6294, %v6985
        %v6987 = vpop.f32.mrb[0].mxu0
        %6988 = vmatprep.mubr.bf16.mxu0 %v6180
        %6989 = vmatmul.mubr.bf16.gmra.mrb[0].mxu0 %v6179
        %v6990 = vpop.f32.mrb[0].mxu0
        %v6991 = vadd.f32 %v6294, %v6990
        %v6992 = vpop.f32.mrb[0].mxu0
        %v6993 = vpop.f32.mrb[0].mxu0
        %v6994 = vadd.f32 %v6294, %v6993
        %v6995 = vpop.f32.mrb[0].mxu0
        %6996 = vmatprep.mubr.bf16.mxu0 %v6183
        %6997 = vmatmul.mubr.bf16.gmra.mrb[0].mxu0 %v6182
        %v6998 = vpop.f32.mrb[0].mxu0
        %v6999 = vadd.f32 %v6294, %v6998
        %v7000 = vpop.f32.mrb[0].mxu0
        %v7001 = vpop.f32.mrb[0].mxu0
        %v7002 = vadd.f32 %v6294, %v7001
        %v7003 = vpop.f32.mrb[0].mxu0
        %7004 = vdwg.mxu0
        %7005 = vmatprep.subr.bf16.mxu0 0
        %7006 = vmatpush1.bf16.msra.mxu0 %v6588
        %7007 = vmatprep.subr.bf16.mxu0 0
        %7008 = vmatpush1.bf16.msra.mxu0 %v6591
        %7009 = vmatprep.subr.bf16.mxu0 0
        %7010 = vmatpush1.bf16.msra.mxu0 %v6594
        %7011 = vmatprep.subr.bf16.mxu0 0
        %7012 = vmatpush1.bf16.msra.mxu0 %v6597
        %7013 = vmatprep.subr.bf16.mxu0 0
        %7014 = vmatpush1.bf16.msra.mxu0 %v6600
        %7015 = vmatprep.subr.bf16.mxu0 0
        %7016 = vmatpush1.bf16.msra.mxu0 %v6603
        %7017 = vmatprep.subr.bf16.mxu0 0
        %7018 = vmatpush1.bf16.msra.mxu0 %v6606
        %7019 = vmatprep.subr.bf16.mxu0 0
        %7020 = vmatpush1.bf16.msra.mxu0 %v6609
        %7021 = vmatprep.subr.bf16.mxu0 0
        %7022 = vmatpush1.bf16.msra.mxu0 0
        %7023 = vmatprep.subr.bf16.mxu0 0
        %7024 = vmatpush1.bf16.msra.mxu0 0
        %7025 = vmatprep.subr.bf16.mxu0 0
        %7026 = vmatpush1.bf16.msra.mxu0 0
        %7027 = vmatprep.subr.bf16.mxu0 0
        %7028 = vmatpush1.bf16.msra.mxu0 0
        %7029 = vmatprep.subr.bf16.mxu0 0
        %7030 = vmatpush1.bf16.msra.mxu0 0
        %7031 = vmatprep.subr.bf16.mxu0 0
        %7032 = vmatpush1.bf16.msra.mxu0 0
        %7033 = vmatprep.subr.bf16.mxu0 0
        %7034 = vmatpush1.bf16.msra.mxu0 0
        %7035 = vmatprep.subr.bf16.mxu0 0
        %7036 = vmatpush1.bf16.msra.mxu0 0
        %7037 = vmatprep.mubr.bf16.mxu0 0
        %7038 = vmatmul.mubr.bf16.gmra.mrb[0].mxu0 %v6163
        %v7039 = vpop.f32.mrb[0].mxu0
        %v7040 = vadd.f32 %v6943, %v7039
        %v7041 = vpop.f32.mrb[0].mxu0
        %v7042 = vpop.f32.mrb[0].mxu0
        %v7043 = vadd.f32 %v6946, %v7042
        %v7044 = vpop.f32.mrb[0].mxu0
        %7045 = vmatprep.mubr.bf16.mxu0 0
        %7046 = vmatmul.mubr.bf16.gmra.mrb[0].mxu0 %v6166
        %v7047 = vpop.f32.mrb[0].mxu0
        %v7048 = vadd.f32 %v6951, %v7047
        %v7049 = vpop.f32.mrb[0].mxu0
        %v7050 = vpop.f32.mrb[0].mxu0
        %v7051 = vadd.f32 %v6954, %v7050
        %v7052 = vpop.f32.mrb[0].mxu0
        %7053 = vmatprep.mubr.bf16.mxu0 0
        %7054 = vmatmul.mubr.bf16.gmra.mrb[0].mxu0 %v6169
        %v7055 = vpop.f32.mrb[0].mxu0
        %v7056 = vadd.f32 %v6959, %v7055
        %v7057 = vpop.f32.mrb[0].mxu0
        %v7058 = vpop.f32.mrb[0].mxu0
        %v7059 = vadd.f32 %v6962, %v7058
        %v7060 = vpop.f32.mrb[0].mxu0
        %7061 = vmatprep.mubr.bf16.mxu0 0
        %7062 = vmatmul.mubr.bf16.gmra.mrb[0].mxu0 %v6172
        %v7063 = vpop.f32.mrb[0].mxu0
        %v7064 = vadd.f32 %v6967, %v7063
        %v7065 = vpop.f32.mrb[0].mxu0
        %v7066 = vpop.f32.mrb[0].mxu0
        %v7067 = vadd.f32 %v6970, %v7066
        %v7068 = vpop.f32.mrb[0].mxu0
        %7069 = vmatprep.mubr.bf16.mxu0 0
        %7070 = vmatmul.mubr.bf16.gmra.mrb[0].mxu0 %v6175
        %v7071 = vpop.f32.mrb[0].mxu0
        %v7072 = vadd.f32 %v6975, %v7071
        %v7073 = vpop.f32.mrb[0].mxu0
        %v7074 = vpop.f32.mrb[0].mxu0
        %v7075 = vadd.f32 %v6978, %v7074
        %v7076 = vpop.f32.mrb[0].mxu0
        %7077 = vmatprep.mubr.bf16.mxu0 0
        %7078 = vmatmul.mubr.bf16.gmra.mrb[0].mxu0 %v6178
        %v7079 = vpop.f32.mrb[0].mxu0
        %v7080 = vadd.f32 %v6983, %v7079
        %v7081 = vpop.f32.mrb[0].mxu0
        %v7082 = vpop.f32.mrb[0].mxu0
        %v7083 = vadd.f32 %v6986, %v7082
        %v7084 = vpop.f32.mrb[0].mxu0
        %7085 = vmatprep.mubr.bf16.mxu0 0
        %7086 = vmatmul.mubr.bf16.gmra.mrb[0].mxu0 %v6181
        %v7087 = vpop.f32.mrb[0].mxu0
        %v7088 = vadd.f32 %v6991, %v7087
        %v7089 = vpop.f32.mrb[0].mxu0
        %v7090 = vpop.f32.mrb[0].mxu0
        %v7091 = vadd.f32 %v6994, %v7090
        %v7092 = vpop.f32.mrb[0].mxu0
        %7093 = vmatprep.mubr.bf16.mxu0 0
        %7094 = vmatmul.mubr.bf16.gmra.mrb[0].mxu0 %v6184
        %v7095 = vpop.f32.mrb[0].mxu0
        %v7096 = vadd.f32 %v6999, %v7095
        %v7097 = vpop.f32.mrb[0].mxu0
        %v7098 = vpop.f32.mrb[0].mxu0
        %v7099 = vadd.f32 %v7002, %v7098
        %v7100 = vpop.f32.mrb[0].mxu0
        %7101 = vdwg.mxu0
        %v7102 = vpack.c.bf16 %v6834, %v6830
        %v7103 = vpack.c.bf16 %v6836, %v6832
        %v7104 = vpack.c.bf16 %v7043, %v7040
        %v7105 = vpack.c.bf16 %v6844, %v6840
        %v7106 = vpack.c.bf16 %v6846, %v6842
        %v7107 = vpack.c.bf16 %v7051, %v7048
        %v7108 = vpack.c.bf16 %v6854, %v6850
        %v7109 = vpack.c.bf16 %v6856, %v6852
        %v7110 = vpack.c.bf16 %v7059, %v7056
        %v7111 = vpack.c.bf16 %v6864, %v6860
        %v7112 = vpack.c.bf16 %v6866, %v6862
        %v7113 = vpack.c.bf16 %v7067, %v7064
        %v7114 = vpack.c.bf16 %v6874, %v6870
        %v7115 = vpack.c.bf16 %v6876, %v6872
        %v7116 = vpack.c.bf16 %v7075, %v7072
        %v7117 = vpack.c.bf16 %v6884, %v6880
        %v7118 = vpack.c.bf16 %v6886, %v6882
        %v7119 = vpack.c.bf16 %v7083, %v7080
        %v7120 = vpack.c.bf16 %v6894, %v6890
        %v7121 = vpack.c.bf16 %v6896, %v6892
        %v7122 = vpack.c.bf16 %v7091, %v7088
        %v7123 = vpack.c.bf16 %v6904, %v6900
        %v7124 = vpack.c.bf16 %v6906, %v6902
        %v7125 = vpack.c.bf16 %v7099, %v7096
        %v7150 = vunpack.c.l.b16 %v7102
        %v7151 = vunpack.c.l.b16 %v7103
        %v7152 = vunpack.c.l.b16 %v7104
        %v7153 = vunpack.c.h.b16 %v7102
        %v7154 = vunpack.c.h.b16 %v7103
        %v7155 = vunpack.c.h.b16 %v7104
        %v7156 = vunpack.c.l.b16 %v7105
        %v7157 = vunpack.c.l.b16 %v7106
        %v7158 = vunpack.c.l.b16 %v7107
        %v7159 = vunpack.c.h.b16 %v7105
        %v7160 = vunpack.c.h.b16 %v7106
        %v7161 = vunpack.c.h.b16 %v7107
        %v7162 = vunpack.c.l.b16 %v7108
        %v7163 = vunpack.c.l.b16 %v7109
        %v7164 = vunpack.c.l.b16 %v7110
        %v7165 = vunpack.c.h.b16 %v7108
        %v7166 = vunpack.c.h.b16 %v7109
        %v7167 = vunpack.c.h.b16 %v7110
        %v7168 = vunpack.c.l.b16 %v7111
        %v7169 = vunpack.c.l.b16 %v7112
        %v7170 = vunpack.c.l.b16 %v7113
        %v7171 = vunpack.c.h.b16 %v7111
        %v7172 = vunpack.c.h.b16 %v7112
        %v7173 = vunpack.c.h.b16 %v7113
        %v7174 = vunpack.c.l.b16 %v7114
        %v7175 = vunpack.c.l.b16 %v7115
        %v7176 = vunpack.c.l.b16 %v7116
        %v7177 = vunpack.c.h.b16 %v7114
        %v7178 = vunpack.c.h.b16 %v7115
        %v7179 = vunpack.c.h.b16 %v7116
        %v7180 = vunpack.c.l.b16 %v7117
        %v7181 = vunpack.c.l.b16 %v7118
        %v7182 = vunpack.c.l.b16 %v7119
        %v7183 = vunpack.c.h.b16 %v7117
        %v7184 = vunpack.c.h.b16 %v7118
        %v7185 = vunpack.c.h.b16 %v7119
        %v7186 = vunpack.c.l.b16 %v7120
        %v7187 = vunpack.c.l.b16 %v7121
        %v7188 = vunpack.c.l.b16 %v7122
        %v7189 = vunpack.c.h.b16 %v7120
        %v7190 = vunpack.c.h.b16 %v7121
        %v7191 = vunpack.c.h.b16 %v7122
        %v7192 = vunpack.c.l.b16 %v7123
        %v7193 = vunpack.c.l.b16 %v7124
        %v7194 = vunpack.c.l.b16 %v7125
        %v7195 = vunpack.c.h.b16 %v7123
        %v7196 = vunpack.c.h.b16 %v7124
        %v7197 = vunpack.c.h.b16 %v7125
        %v7198 = vpack.c.b16 %v7151, %v7150
        %v7199 = vpack.c.b16 %v7152, %v7152
        %v7200 = vpack.c.b16 %v7154, %v7153
        %v7201 = vpack.c.b16 %v7155, %v7155
        %v7202 = vpack.c.b16 %v7157, %v7156
        %v7203 = vpack.c.b16 %v7158, %v7158
        %v7204 = vpack.c.b16 %v7160, %v7159
        %v7205 = vpack.c.b16 %v7161, %v7161
        %v7206 = vpack.c.b16 %v7163, %v7162
        %v7207 = vpack.c.b16 %v7164, %v7164
        %v7208 = vpack.c.b16 %v7166, %v7165
        %v7209 = vpack.c.b16 %v7167, %v7167
        %v7210 = vpack.c.b16 %v7169, %v7168
        %v7211 = vpack.c.b16 %v7170, %v7170
        %v7212 = vpack.c.b16 %v7172, %v7171
        %v7213 = vpack.c.b16 %v7173, %v7173
        %v7214 = vpack.c.b16 %v7175, %v7174
        %v7215 = vpack.c.b16 %v7176, %v7176
        %v7216 = vpack.c.b16 %v7178, %v7177
        %v7217 = vpack.c.b16 %v7179, %v7179
        %v7218 = vpack.c.b16 %v7181, %v7180
        %v7219 = vpack.c.b16 %v7182, %v7182
        %v7220 = vpack.c.b16 %v7184, %v7183
        %v7221 = vpack.c.b16 %v7185, %v7185
        %v7222 = vpack.c.b16 %v7187, %v7186
        %v7223 = vpack.c.b16 %v7188, %v7188
        %v7224 = vpack.c.b16 %v7190, %v7189
        %v7225 = vpack.c.b16 %v7191, %v7191
        %v7226 = vpack.c.b16 %v7193, %v7192
        %v7227 = vpack.c.b16 %v7194, %v7194
        %v7228 = vpack.c.b16 %v7196, %v7195
        %v7229 = vpack.c.b16 %v7197, %v7197
        %7262 = vst [vmem:[%s244] sm:$0xff] %v7198
        %7263 = vst [vmem:[%s244 + $0x8] sm:$0xf] %v7199
        %7264 = vst [vmem:[%s244 + $0xc] sm:$0xff] %v7200
        %7265 = vst [vmem:[%s244 + $0x14] sm:$0xf] %v7201
        %7266 = vst [vmem:[%s244 + $0x18] sm:$0xff] %v7202
        %7267 = vst [vmem:[%s244 + $0x20] sm:$0xf] %v7203
        %7268 = vst [vmem:[%s244 + $0x24] sm:$0xff] %v7204
        %7269 = vst [vmem:[%s244 + $0x2c] sm:$0xf] %v7205
        %7270 = vst [vmem:[%s244 + $0x30] sm:$0xff] %v7206
        %7271 = vst [vmem:[%s244 + $0x38] sm:$0xf] %v7207
        %7272 = vst [vmem:[%s244 + $0x3c] sm:$0xff] %v7208
        %7273 = vst [vmem:[%s244 + $0x44] sm:$0xf] %v7209
        %7274 = vst [vmem:[%s244 + $0x48] sm:$0xff] %v7210
        %7275 = vst [vmem:[%s244 + $0x50] sm:$0xf] %v7211
        %7276 = vst [vmem:[%s244 + $0x54] sm:$0xff] %v7212
        %7277 = vst [vmem:[%s244 + $0x5c] sm:$0xf] %v7213
        %7278 = vst [vmem:[%s244 + $0x60] sm:$0xff] %v7214
        %7279 = vst [vmem:[%s244 + $0x68] sm:$0xf] %v7215
        %7280 = vst [vmem:[%s244 + $0x6c] sm:$0xff] %v7216
        %7281 = vst [vmem:[%s244 + $0x74] sm:$0xf] %v7217
        %7282 = vst [vmem:[%s244 + $0x78] sm:$0xff] %v7218
        %7283 = vst [vmem:[%s244 + $0x80] sm:$0xf] %v7219
        %7284 = vst [vmem:[%s244 + $0x84] sm:$0xff] %v7220
        %7285 = vst [vmem:[%s244 + $0x8c] sm:$0xf] %v7221
        %7286 = vst [vmem:[%s244 + $0x90] sm:$0xff] %v7222
        %7287 = vst [vmem:[%s244 + $0x98] sm:$0xf] %v7223
        %7288 = vst [vmem:[%s244 + $0x9c] sm:$0xff] %v7224
        %7289 = vst [vmem:[%s244 + $0xa4] sm:$0xf] %v7225
        %7290 = vst [vmem:[%s244 + $0xa8] sm:$0xff] %v7226
        %7291 = vst [vmem:[%s244 + $0xb0] sm:$0xf] %v7227
        %7292 = vst [vmem:[%s244 + $0xb4] sm:$0xff] %v7228
        %7293 = vst [vmem:[%s244 + $0xbc] sm:$0xf] %v7229
        %s7294 = sand.u32 %s119, 1
        %s7295 = scalar_lea.sflag [#allocation6], %s7294
        %s7296 = sand.u32 %s119, 1
        %s7297 = smul.addr %s7296, 192
        %s7298 = scalar_lea.vmem [#allocation10], %s7297
        // Predicated region
        $region49: #{tpu_custom_call.1} parent=35 // pred_check
          %p7299 = pneg %p129
        $region50: #{tpu_custom_call.1} parent=35 // pred_check_branch
          %7301 = sbr.rel (%p7299) target = $region52
        $region51: #{tpu_custom_call.1} parent=35 // pred_region
          %s7303 = ssub.s32 3072, 3072
          %7304 = vsyncadd %s7295, %s7303
          %s7305 = smul.addr %s22, 48
          %s7306 = smul.addr %s7305, 64
          %s7307 = scalar_lea.hbm %s4, %s7306
          %s7308 = sshll.u32 %s7298, 4
          %s7309 = int_to_ptr.vmem [resolvable:$true] %s7308
          %7314 = dma.vmem_to_hbm [thread:$0]  %s7309, 3072, %s7307, %s7295, 192, 192, 12
        $region52: #{tpu_custom_call.1} parent=35 // pred_fallthru
          _
      $region36: #{tpu_custom_call.1} parent=5 // pred_fallthru
        _
      %p7315 = scmp.le.s32.totalorder 2, %s17
      // Predicated region
      $region53: #{tpu_custom_call.1} parent=5 // pred_check
        %p7316 = pneg %p7315
      $region54: #{tpu_custom_call.1} parent=5 // pred_check_branch
        %7318 = sbr.rel (%p7316) target = $region56
      $region55: #{tpu_custom_call.1} parent=5 // pred_region
        %s7319 = ssub.s32 %s17, 2
        // Predicated region
        $region57: #{tpu_custom_call.1} parent=55 // pred_check
          %p7320 = pneg %p135
        $region58: #{tpu_custom_call.1} parent=55 // pred_check_branch
          %7322 = sbr.rel (%p7320) target = $region60
        $region59: #{tpu_custom_call.1} parent=55 // pred_region
          %s7323 = sand.u32 %s120, 1
          %s7324 = scalar_lea.sflag [#allocation6], %s7323
          %s7325 = sand.u32 %s120, 1
          %s7326 = smul.addr %s7325, 192
          %s7327 = scalar_lea.vmem [#allocation10], %s7326
          %7328 = dma.done %s7324, 3072
        $region60: #{tpu_custom_call.1} parent=55 // pred_fallthru
          _
      $region56: #{tpu_custom_call.1} parent=5 // pred_fallthru
        _
    $region6: #{tpu_custom_call.1} parent=1 // loop_footer
      %s21 = sadd.s32 1, %s17
    $region7: #{tpu_custom_call.1} parent=1 // loop_footer_branch
      %16 = sbr.rel target = $region3
    $region8: #{tpu_custom_call.1} parent=1 // loop_exit
      _
    %7329 = vsyncpa [#allocation5], 1
    %s7330 = scalar_lea.sflag [#allocation5], 1
    %7331 = vsyncpa %s7330, 1
    %7332 = vsyncpa [#allocation8], 1
    %7333 = vsyncpa [#allocation6], 1
    %s7334 = scalar_lea.sflag [#allocation6], 1
    %7335 = vsyncpa %s7334, 1

</llo_original>
